<compile_context>
chip_gen: v5e
topology: v5e:2x2
jax: 0.10.0
libtpu: 0.0.40
codegen_flags: <defaults>
</compile_context>

<pallas_src>
import jax
import jax.numpy as jnp
from jax.experimental import pallas as pl
from jax.experimental.pallas import tpu as pltpu


def mlp4_kernel(x_ref,
                w1_ref, b1_ref,
                w2_ref, b2_ref,
                w3_ref, b3_ref,
                w4_ref, b4_ref,
                o_ref):
    # x tile: (TB, n_inputs) f32; weights bf16; accumulate in f32 on the MXU.
    x = x_ref[...].astype(jnp.bfloat16)

    # encode: fc1 -> relu -> fc2 -> relu
    h1 = jnp.dot(x, w1_ref[...], preferred_element_type=jnp.float32) + b1_ref[...]
    h1 = jnp.maximum(h1, 0.0).astype(jnp.bfloat16)
    h2 = jnp.dot(h1, w2_ref[...], preferred_element_type=jnp.float32) + b2_ref[...]
    h2 = jnp.maximum(h2, 0.0).astype(jnp.bfloat16)

    # decode: fc3 -> relu -> fc4 -> sigmoid
    h3 = jnp.dot(h2, w3_ref[...], preferred_element_type=jnp.float32) + b3_ref[...]
    h3 = jnp.maximum(h3, 0.0).astype(jnp.bfloat16)
    h4 = jnp.dot(h3, w4_ref[...], preferred_element_type=jnp.float32) + b4_ref[...]
    o_ref[...] = jax.nn.sigmoid(h4).astype(o_ref.dtype)


def mlp4_forward(x, params, *, batch_tile=128):
    """x: (B, n_inputs) float32. params: w1..w4 (bf16, (in,out)), b1..b4 (f32, (1,out))."""
    B, n_in = x.shape
    n_out = params["w4"].shape[1]

    TB = batch_tile
    n_tiles = pl.cdiv(B, TB)
    B_pad = n_tiles * TB
    if B_pad != B:
        x = jnp.pad(x, ((0, B_pad - B), (0, 0)))

    # Batch-tiled x / out; weights & biases use a constant block index so they
    # are loaded once and remain VMEM-resident across all grid steps.
    def const_spec(a):
        return pl.BlockSpec(a.shape, lambda i: tuple(0 for _ in a.shape))

    in_specs = [
        pl.BlockSpec((TB, n_in), lambda i: (i, 0)),      # x tile streams
        const_spec(params["w1"]), const_spec(params["b1"]),
        const_spec(params["w2"]), const_spec(params["b2"]),
        const_spec(params["w3"]), const_spec(params["b3"]),
        const_spec(params["w4"]), const_spec(params["b4"]),
    ]
    out_spec = pl.BlockSpec((TB, n_out), lambda i: (i, 0))

    out = pl.pallas_call(
        mlp4_kernel,
        out_shape=jax.ShapeDtypeStruct((B_pad, n_out), jnp.float32),
        grid=(n_tiles,),
        in_specs=in_specs,
        out_specs=out_spec,
        compiler_params=pltpu.CompilerParams(
            dimension_semantics=("parallel",),   # 2-TC chips split the batch
            vmem_limit_bytes=64 << 20),
    )(
        x,
        params["w1"], params["b1"],
        params["w2"], params["b2"],
        params["w3"], params["b3"],
        params["w4"], params["b4"],
    )
    return out[:B]


def init_params(key, n_inputs=784, n_bottleneck=8, n_output=784):
    n2 = n_inputs // 2
    dims = [(n_inputs, n2), (n2, n_bottleneck), (n_bottleneck, n2), (n2, n_output)]
    params = {}
    for i, (fan_in, fan_out) in enumerate(dims, start=1):
        key, kw, kb = jax.random.split(key, 3)
        bound = 1.0 / jnp.sqrt(fan_in)  # matches nn.Linear default init range
        # weights in bf16 (halves HBM traffic; MXU-native), biases in f32.
        params[f"w{i}"] = jax.random.uniform(
            kw, (fan_in, fan_out), jnp.float32, -bound, bound).astype(jnp.bfloat16)
        params[f"b{i}"] = jax.random.uniform(
            kb, (1, fan_out), jnp.float32, -bound, bound)
    return params


if __name__ == "__main__":
    key = jax.random.PRNGKey(0)
    key, kx = jax.random.split(key)

    n_inputs, n_bottleneck, n_output = 784, 8, 784
    batch = 256  # 2 batch tiles of 128 rows -> weights reused across grid steps

    params = init_params(key, n_inputs, n_bottleneck, n_output)
    x = jax.random.normal(kx, (batch, n_inputs), jnp.float32)

    out = mlp4_forward(x, params)
    jax.block_until_ready(out)

    # pure-JAX reference mirroring the kernel numerics (bf16 operands, f32 acc)
    def ref(x, p):
        def dot(a, w):
            return jnp.dot(a.astype(jnp.bfloat16), w,
                           preferred_element_type=jnp.float32)
        h = jnp.maximum(dot(x, p["w1"]) + p["b1"], 0.0)
        h = jnp.maximum(dot(h, p["w2"]) + p["b2"], 0.0)
        h = jnp.maximum(dot(h, p["w3"]) + p["b3"], 0.0)
        return jax.nn.sigmoid(dot(h, p["w4"]) + p["b4"])

    expected = ref(x, params)
    assert out.shape == (batch, n_output)
    assert jnp.allclose(out, expected, atol=1e-2, rtol=1e-2)
    print("KERNEL_OK")
</pallas_src>

<mosaic_0001>
module attributes {stable_mosaic.version = 11 : i64} {
  func.func @mlp4_kernel(%arg0: i32, %arg1: memref<128x784xf32, #tpu.memory_space<vmem>>, %arg2: memref<784x392xbf16, #tpu.memory_space<vmem>>, %arg3: memref<1x392xf32, #tpu.memory_space<vmem>>, %arg4: memref<392x8xbf16, #tpu.memory_space<vmem>>, %arg5: memref<1x8xf32, #tpu.memory_space<vmem>>, %arg6: memref<8x392xbf16, #tpu.memory_space<vmem>>, %arg7: memref<1x392xf32, #tpu.memory_space<vmem>>, %arg8: memref<392x784xbf16, #tpu.memory_space<vmem>>, %arg9: memref<1x784xf32, #tpu.memory_space<vmem>>, %arg10: memref<128x784xf32, #tpu.memory_space<vmem>>) attributes {dimension_semantics = [#tpu.dimension_semantics<parallel>], iteration_bounds = array<i64: 2>, scalar_prefetch = 0 : i64, scratch_operands = 0 : i64, tpu.core_type = #tpu.core_type<tc>, window_params = [{transform_indices = @transform_0, window_bounds = array<i64: 128, 784>}, {pipeline_mode = #tpu.pipeline_mode<synchronous>, transform_indices = @transform_1, window_bounds = array<i64: 784, 392>}, {pipeline_mode = #tpu.pipeline_mode<synchronous>, transform_indices = @transform_2, window_bounds = array<i64: 1, 392>}, {pipeline_mode = #tpu.pipeline_mode<synchronous>, transform_indices = @transform_3, window_bounds = array<i64: 392, 8>}, {pipeline_mode = #tpu.pipeline_mode<synchronous>, transform_indices = @transform_4, window_bounds = array<i64: 1, 8>}, {pipeline_mode = #tpu.pipeline_mode<synchronous>, transform_indices = @transform_5, window_bounds = array<i64: 8, 392>}, {pipeline_mode = #tpu.pipeline_mode<synchronous>, transform_indices = @transform_6, window_bounds = array<i64: 1, 392>}, {pipeline_mode = #tpu.pipeline_mode<synchronous>, transform_indices = @transform_7, window_bounds = array<i64: 392, 784>}, {pipeline_mode = #tpu.pipeline_mode<synchronous>, transform_indices = @transform_8, window_bounds = array<i64: 1, 784>}, {transform_indices = @transform_9, window_bounds = array<i64: 128, 784>}]} {
    %c0 = arith.constant 0 : index
    %c0_0 = arith.constant 0 : index
    %0 = vector.load %arg1[%c0, %c0_0] : memref<128x784xf32, #tpu.memory_space<vmem>>, vector<128x784xf32>
    %1 = arith.truncf %0 : vector<128x784xf32> to vector<128x784xbf16>
    %c0_1 = arith.constant 0 : index
    %c0_2 = arith.constant 0 : index
    %2 = vector.load %arg2[%c0_1, %c0_2] : memref<784x392xbf16, #tpu.memory_space<vmem>>, vector<784x392xbf16>
    %cst = arith.constant dense<0.000000e+00> : vector<128x392xf32>
    %3 = tpu.matmul %1, %2, %cst {dimension_numbers = #tpu.dot_dimension_numbers<[1], [0], [0], [1], [0, 0, 1, 1], [], []>} : vector<128x784xbf16>, vector<784x392xbf16>, vector<128x392xf32> -> vector<128x392xf32>
    %c0_3 = arith.constant 0 : index
    %c0_4 = arith.constant 0 : index
    %4 = vector.load %arg3[%c0_3, %c0_4] : memref<1x392xf32, #tpu.memory_space<vmem>>, vector<1x392xf32>
    %5 = vector.broadcast %4 : vector<1x392xf32> to vector<128x392xf32>
    %6 = arith.addf %3, %5 : vector<128x392xf32>
    %cst_5 = arith.constant 0.000000e+00 : f32
    %7 = vector.broadcast %cst_5 : f32 to vector<128x392xf32>
    %8 = arith.maximumf %6, %7 : vector<128x392xf32>
    %9 = arith.truncf %8 : vector<128x392xf32> to vector<128x392xbf16>
    %c0_6 = arith.constant 0 : index
    %c0_7 = arith.constant 0 : index
    %10 = vector.load %arg4[%c0_6, %c0_7] : memref<392x8xbf16, #tpu.memory_space<vmem>>, vector<392x8xbf16>
    %cst_8 = arith.constant dense<0.000000e+00> : vector<128x8xf32>
    %11 = tpu.matmul %9, %10, %cst_8 {dimension_numbers = #tpu.dot_dimension_numbers<[1], [0], [0], [1], [0, 0, 1, 1], [], []>} : vector<128x392xbf16>, vector<392x8xbf16>, vector<128x8xf32> -> vector<128x8xf32>
    %c0_9 = arith.constant 0 : index
    %c0_10 = arith.constant 0 : index
    %12 = vector.load %arg5[%c0_9, %c0_10] : memref<1x8xf32, #tpu.memory_space<vmem>>, vector<1x8xf32>
    %13 = vector.broadcast %12 : vector<1x8xf32> to vector<128x8xf32>
    %14 = arith.addf %11, %13 : vector<128x8xf32>
    %cst_11 = arith.constant 0.000000e+00 : f32
    %15 = vector.broadcast %cst_11 : f32 to vector<128x8xf32>
    %16 = arith.maximumf %14, %15 : vector<128x8xf32>
    %17 = arith.truncf %16 : vector<128x8xf32> to vector<128x8xbf16>
    %c0_12 = arith.constant 0 : index
    %c0_13 = arith.constant 0 : index
    %18 = vector.load %arg6[%c0_12, %c0_13] : memref<8x392xbf16, #tpu.memory_space<vmem>>, vector<8x392xbf16>
    %cst_14 = arith.constant dense<0.000000e+00> : vector<128x392xf32>
    %19 = tpu.matmul %17, %18, %cst_14 {dimension_numbers = #tpu.dot_dimension_numbers<[1], [0], [0], [1], [0, 0, 1, 1], [], []>} : vector<128x8xbf16>, vector<8x392xbf16>, vector<128x392xf32> -> vector<128x392xf32>
    %c0_15 = arith.constant 0 : index
    %c0_16 = arith.constant 0 : index
    %20 = vector.load %arg7[%c0_15, %c0_16] : memref<1x392xf32, #tpu.memory_space<vmem>>, vector<1x392xf32>
    %21 = vector.broadcast %20 : vector<1x392xf32> to vector<128x392xf32>
    %22 = arith.addf %19, %21 : vector<128x392xf32>
    %cst_17 = arith.constant 0.000000e+00 : f32
    %23 = vector.broadcast %cst_17 : f32 to vector<128x392xf32>
    %24 = arith.maximumf %22, %23 : vector<128x392xf32>
    %25 = arith.truncf %24 : vector<128x392xf32> to vector<128x392xbf16>
    %c0_18 = arith.constant 0 : index
    %c0_19 = arith.constant 0 : index
    %26 = vector.load %arg8[%c0_18, %c0_19] : memref<392x784xbf16, #tpu.memory_space<vmem>>, vector<392x784xbf16>
    %cst_20 = arith.constant dense<0.000000e+00> : vector<128x784xf32>
    %27 = tpu.matmul %25, %26, %cst_20 {dimension_numbers = #tpu.dot_dimension_numbers<[1], [0], [0], [1], [0, 0, 1, 1], [], []>} : vector<128x392xbf16>, vector<392x784xbf16>, vector<128x784xf32> -> vector<128x784xf32>
    %c0_21 = arith.constant 0 : index
    %c0_22 = arith.constant 0 : index
    %28 = vector.load %arg9[%c0_21, %c0_22] : memref<1x784xf32, #tpu.memory_space<vmem>>, vector<1x784xf32>
    %29 = vector.broadcast %28 : vector<1x784xf32> to vector<128x784xf32>
    %30 = arith.addf %27, %29 : vector<128x784xf32>
    %31 = arith.negf %30 : vector<128x784xf32>
    %32 = math.exp %31 : vector<128x784xf32>
    %cst_23 = arith.constant 1.000000e+00 : f32
    %33 = vector.broadcast %cst_23 : f32 to vector<128x784xf32>
    %34 = arith.addf %33, %32 : vector<128x784xf32>
    %35 = arith.divf %33, %34 : vector<128x784xf32>
    %c0_24 = arith.constant 0 : index
    %c0_25 = arith.constant 0 : index
    %36 = vector.load %arg10[%c0_24, %c0_25] : memref<128x784xf32, #tpu.memory_space<vmem>>, vector<128x784xf32>
    tpu.vector_store %arg10[%c0_24, %c0_25], %35 {strides = array<i32>} : memref<128x784xf32, #tpu.memory_space<vmem>>, vector<128x784xf32>,
    return
  }
  func.func @transform_0(%arg0: i32) -> (i32, i32) {
    %c0_i32 = arith.constant 0 : i32
    %c0_i32_0 = arith.constant 0 : i32
    return %arg0, %c0_i32 : i32, i32
  }
  func.func @transform_1(%arg0: i32) -> (i32, i32) {
    %c0_i32 = arith.constant 0 : i32
    %c0_i32_0 = arith.constant 0 : i32
    %c0_i32_1 = arith.constant 0 : i32
    return %c0_i32, %c0_i32_0 : i32, i32
  }
  func.func @transform_2(%arg0: i32) -> (i32, i32) {
    %c0_i32 = arith.constant 0 : i32
    %c0_i32_0 = arith.constant 0 : i32
    %c0_i32_1 = arith.constant 0 : i32
    return %c0_i32, %c0_i32_0 : i32, i32
  }
  func.func @transform_3(%arg0: i32) -> (i32, i32) {
    %c0_i32 = arith.constant 0 : i32
    %c0_i32_0 = arith.constant 0 : i32
    %c0_i32_1 = arith.constant 0 : i32
    return %c0_i32, %c0_i32_0 : i32, i32
  }
  func.func @transform_4(%arg0: i32) -> (i32, i32) {
    %c0_i32 = arith.constant 0 : i32
    %c0_i32_0 = arith.constant 0 : i32
    %c0_i32_1 = arith.constant 0 : i32
    return %c0_i32, %c0_i32_0 : i32, i32
  }
  func.func @transform_5(%arg0: i32) -> (i32, i32) {
    %c0_i32 = arith.constant 0 : i32
    %c0_i32_0 = arith.constant 0 : i32
    %c0_i32_1 = arith.constant 0 : i32
    return %c0_i32, %c0_i32_0 : i32, i32
  }
  func.func @transform_6(%arg0: i32) -> (i32, i32) {
    %c0_i32 = arith.constant 0 : i32
    %c0_i32_0 = arith.constant 0 : i32
    %c0_i32_1 = arith.constant 0 : i32
    return %c0_i32, %c0_i32_0 : i32, i32
  }
  func.func @transform_7(%arg0: i32) -> (i32, i32) {
    %c0_i32 = arith.constant 0 : i32
    %c0_i32_0 = arith.constant 0 : i32
    %c0_i32_1 = arith.constant 0 : i32
    return %c0_i32, %c0_i32_0 : i32, i32
  }
  func.func @transform_8(%arg0: i32) -> (i32, i32) {
    %c0_i32 = arith.constant 0 : i32
    %c0_i32_0 = arith.constant 0 : i32
    %c0_i32_1 = arith.constant 0 : i32
    return %c0_i32, %c0_i32_0 : i32, i32
  }
  func.func @transform_9(%arg0: i32) -> (i32, i32) {
    %c0_i32 = arith.constant 0 : i32
    %c0_i32_0 = arith.constant 0 : i32
    return %arg0, %c0_i32 : i32, i32
  }
}

</mosaic_0001>

<llo_original>
// kernel: tpu_custom_call.1
$region0: #{tpu_custom_call.1}
  #allocation0 [shape = 'u32[]', space=smem, size = 0x4, offset = 0x4, fixed_abs, tag = 'smem constant byte address 0x4 - core index']
  #allocation1 [shape = 'u32[72,128]{1,0:T(1,128)}', space=vmem, size = 0x9000, scoped, tag = 'internal scratch']
  %s0 = inlined_call_operand.vmem [shape: f32[256,784], index: 0, kind: input, shape index: {}]
  %s1 = inlined_call_operand.vmem [shape: bf16[784,392], index: 1, kind: input, shape index: {}]
  %s2 = inlined_call_operand.vmem [shape: f32[1,392], index: 2, kind: input, shape index: {}]
  %s3 = inlined_call_operand.vmem [shape: bf16[392,8], index: 3, kind: input, shape index: {}]
  %s4 = inlined_call_operand.vmem [shape: f32[1,8], index: 4, kind: input, shape index: {}]
  %s5 = inlined_call_operand.vmem [shape: bf16[8,392], index: 5, kind: input, shape index: {}]
  %s6 = inlined_call_operand.vmem [shape: f32[1,392], index: 6, kind: input, shape index: {}]
  %s7 = inlined_call_operand.vmem [shape: bf16[392,784], index: 7, kind: input, shape index: {}]
  %s8 = inlined_call_operand.vmem [shape: f32[1,784], index: 8, kind: input, shape index: {}]
  %s9 = inlined_call_operand.vmem [shape: f32[256,784], index: 9, kind: output, shape index: {}]
  %s10 = sld [smem:[#allocation0]]
  $region69: #{tpu_custom_call.1} parent=0
    _
  %s12 = ssub.s32 1, %s10
  %s13 = scalar_select 0, %s12, %s10
  loop: start=0, step=1, limit=4
  $region2: #{tpu_custom_call.1} parent=0 // loop_pre_header
    _
  $region3: #{tpu_custom_call.1} parent=0 // loop_header
    %s15 = sphi 0, %s19
    %p16 = scmp.ge.s32.totalorder %s15, 4
    %s25 = sphi 0, %s27
    %s28 = sphi 0, %s25
    %s29 = sphi 0, %s28
    %s45 = sphi 0, %s29
    %s49 = sphi 0, %s49
    %s51 = sphi 0, %s49
    %s52 = sphi 0, %s51
    %s66 = sphi 0, %s52
    %s70 = sphi 0, %s70
    %s72 = sphi 0, %s70
    %s73 = sphi 0, %s72
    %s87 = sphi 0, %s73
    %s91 = sphi 0, %s91
    %s93 = sphi 0, %s91
    %s94 = sphi 0, %s93
    %s108 = sphi 0, %s94
    %s112 = sphi 0, %s112
    %s114 = sphi 0, %s112
    %s115 = sphi 0, %s114
    %s129 = sphi 0, %s115
    %s133 = sphi 0, %s133
    %s135 = sphi 0, %s133
    %s136 = sphi 0, %s135
    %s150 = sphi 0, %s136
    %s154 = sphi 0, %s154
    %s156 = sphi 0, %s154
    %s157 = sphi 0, %s156
    %s171 = sphi 0, %s157
    %s175 = sphi 0, %s175
    %s177 = sphi 0, %s175
    %s178 = sphi 0, %s177
    %s192 = sphi 0, %s178
    %s196 = sphi 0, %s196
    %s198 = sphi 0, %s196
    %s199 = sphi 0, %s198
    %s213 = sphi 0, %s199
    %s219 = sphi 0, %s221
    %s222 = sphi 0, %s219
    %s223 = sphi 0, %s222
    %s239 = sphi 0, %s223
  $region4: #{tpu_custom_call.1} parent=0 // loop_header_branch
    %18 = sbr.rel (%p16) target = $region8
  $region5: #{tpu_custom_call.1} parent=0 // loop_body
    %s20 = ssub.s32 %s15, 1
    %s21 = ssub.s32 %s15, 2
    %s22 = sadd.s32 %s15, 1
    %s23 = ssub.s32 %s15, %s22
    %p24 = scmp.eq.s32.totalorder %s23, 0
    %s26 = sadd.s32 %s25, 1
    %s27 = scalar_select %p24, %s25, %s26
    %p30 = pneg %p24
    %p31 = scmp.eq.s32.totalorder %s15, 1
    %p32 = por %p30, %p31
    %p33 = scmp.ne.s32.totalorder %s25, %s28
    %p34 = scmp.eq.s32.totalorder %s15, 0
    %p35 = por %p33, %p34
    %p36 = scmp.ne.s32.totalorder %s25, %s28
    %p37 = scmp.eq.s32.totalorder %s20, 1
    %p38 = por %p36, %p37
    %p39 = scmp.ne.s32.totalorder %s28, %s29
    %p40 = scmp.eq.s32.totalorder %s20, 0
    %p41 = por %p39, %p40
    %p42 = scmp.ne.s32.totalorder %s28, %s29
    %p43 = scmp.eq.s32.totalorder %s21, 1
    %p44 = por %p42, %p43
    %p46 = scmp.ne.s32.totalorder %s29, %s45
    %p47 = scmp.eq.s32.totalorder %s21, 0
    %p48 = por %p46, %p47
    %s50 = sadd.s32 %s49, 1
    %p53 = scmp.eq.s32.totalorder %s15, 1
    %p54 = scmp.ne.s32.totalorder %s49, %s51
    %p55 = scmp.eq.s32.totalorder %s15, 0
    %p56 = por %p54, %p55
    %p57 = scmp.ne.s32.totalorder %s49, %s51
    %p58 = scmp.eq.s32.totalorder %s20, 1
    %p59 = por %p57, %p58
    %p60 = scmp.ne.s32.totalorder %s51, %s52
    %p61 = scmp.eq.s32.totalorder %s20, 0
    %p62 = por %p60, %p61
    %p63 = scmp.ne.s32.totalorder %s51, %s52
    %p64 = scmp.eq.s32.totalorder %s21, 1
    %p65 = por %p63, %p64
    %p67 = scmp.ne.s32.totalorder %s52, %s66
    %p68 = scmp.eq.s32.totalorder %s21, 0
    %p69 = por %p67, %p68
    %s71 = sadd.s32 %s70, 1
    %p74 = scmp.eq.s32.totalorder %s15, 1
    %p75 = scmp.ne.s32.totalorder %s70, %s72
    %p76 = scmp.eq.s32.totalorder %s15, 0
    %p77 = por %p75, %p76
    %p78 = scmp.ne.s32.totalorder %s70, %s72
    %p79 = scmp.eq.s32.totalorder %s20, 1
    %p80 = por %p78, %p79
    %p81 = scmp.ne.s32.totalorder %s72, %s73
    %p82 = scmp.eq.s32.totalorder %s20, 0
    %p83 = por %p81, %p82
    %p84 = scmp.ne.s32.totalorder %s72, %s73
    %p85 = scmp.eq.s32.totalorder %s21, 1
    %p86 = por %p84, %p85
    %p88 = scmp.ne.s32.totalorder %s73, %s87
    %p89 = scmp.eq.s32.totalorder %s21, 0
    %p90 = por %p88, %p89
    %s92 = sadd.s32 %s91, 1
    %p95 = scmp.eq.s32.totalorder %s15, 1
    %p96 = scmp.ne.s32.totalorder %s91, %s93
    %p97 = scmp.eq.s32.totalorder %s15, 0
    %p98 = por %p96, %p97
    %p99 = scmp.ne.s32.totalorder %s91, %s93
    %p100 = scmp.eq.s32.totalorder %s20, 1
    %p101 = por %p99, %p100
    %p102 = scmp.ne.s32.totalorder %s93, %s94
    %p103 = scmp.eq.s32.totalorder %s20, 0
    %p104 = por %p102, %p103
    %p105 = scmp.ne.s32.totalorder %s93, %s94
    %p106 = scmp.eq.s32.totalorder %s21, 1
    %p107 = por %p105, %p106
    %p109 = scmp.ne.s32.totalorder %s94, %s108
    %p110 = scmp.eq.s32.totalorder %s21, 0
    %p111 = por %p109, %p110
    %s113 = sadd.s32 %s112, 1
    %p116 = scmp.eq.s32.totalorder %s15, 1
    %p117 = scmp.ne.s32.totalorder %s112, %s114
    %p118 = scmp.eq.s32.totalorder %s15, 0
    %p119 = por %p117, %p118
    %p120 = scmp.ne.s32.totalorder %s112, %s114
    %p121 = scmp.eq.s32.totalorder %s20, 1
    %p122 = por %p120, %p121
    %p123 = scmp.ne.s32.totalorder %s114, %s115
    %p124 = scmp.eq.s32.totalorder %s20, 0
    %p125 = por %p123, %p124
    %p126 = scmp.ne.s32.totalorder %s114, %s115
    %p127 = scmp.eq.s32.totalorder %s21, 1
    %p128 = por %p126, %p127
    %p130 = scmp.ne.s32.totalorder %s115, %s129
    %p131 = scmp.eq.s32.totalorder %s21, 0
    %p132 = por %p130, %p131
    %s134 = sadd.s32 %s133, 1
    %p137 = scmp.eq.s32.totalorder %s15, 1
    %p138 = scmp.ne.s32.totalorder %s133, %s135
    %p139 = scmp.eq.s32.totalorder %s15, 0
    %p140 = por %p138, %p139
    %p141 = scmp.ne.s32.totalorder %s133, %s135
    %p142 = scmp.eq.s32.totalorder %s20, 1
    %p143 = por %p141, %p142
    %p144 = scmp.ne.s32.totalorder %s135, %s136
    %p145 = scmp.eq.s32.totalorder %s20, 0
    %p146 = por %p144, %p145
    %p147 = scmp.ne.s32.totalorder %s135, %s136
    %p148 = scmp.eq.s32.totalorder %s21, 1
    %p149 = por %p147, %p148
    %p151 = scmp.ne.s32.totalorder %s136, %s150
    %p152 = scmp.eq.s32.totalorder %s21, 0
    %p153 = por %p151, %p152
    %s155 = sadd.s32 %s154, 1
    %p158 = scmp.eq.s32.totalorder %s15, 1
    %p159 = scmp.ne.s32.totalorder %s154, %s156
    %p160 = scmp.eq.s32.totalorder %s15, 0
    %p161 = por %p159, %p160
    %p162 = scmp.ne.s32.totalorder %s154, %s156
    %p163 = scmp.eq.s32.totalorder %s20, 1
    %p164 = por %p162, %p163
    %p165 = scmp.ne.s32.totalorder %s156, %s157
    %p166 = scmp.eq.s32.totalorder %s20, 0
    %p167 = por %p165, %p166
    %p168 = scmp.ne.s32.totalorder %s156, %s157
    %p169 = scmp.eq.s32.totalorder %s21, 1
    %p170 = por %p168, %p169
    %p172 = scmp.ne.s32.totalorder %s157, %s171
    %p173 = scmp.eq.s32.totalorder %s21, 0
    %p174 = por %p172, %p173
    %s176 = sadd.s32 %s175, 1
    %p179 = scmp.eq.s32.totalorder %s15, 1
    %p180 = scmp.ne.s32.totalorder %s175, %s177
    %p181 = scmp.eq.s32.totalorder %s15, 0
    %p182 = por %p180, %p181
    %p183 = scmp.ne.s32.totalorder %s175, %s177
    %p184 = scmp.eq.s32.totalorder %s20, 1
    %p185 = por %p183, %p184
    %p186 = scmp.ne.s32.totalorder %s177, %s178
    %p187 = scmp.eq.s32.totalorder %s20, 0
    %p188 = por %p186, %p187
    %p189 = scmp.ne.s32.totalorder %s177, %s178
    %p190 = scmp.eq.s32.totalorder %s21, 1
    %p191 = por %p189, %p190
    %p193 = scmp.ne.s32.totalorder %s178, %s192
    %p194 = scmp.eq.s32.totalorder %s21, 0
    %p195 = por %p193, %p194
    %s197 = sadd.s32 %s196, 1
    %p200 = scmp.eq.s32.totalorder %s15, 1
    %p201 = scmp.ne.s32.totalorder %s196, %s198
    %p202 = scmp.eq.s32.totalorder %s15, 0
    %p203 = por %p201, %p202
    %p204 = scmp.ne.s32.totalorder %s196, %s198
    %p205 = scmp.eq.s32.totalorder %s20, 1
    %p206 = por %p204, %p205
    %p207 = scmp.ne.s32.totalorder %s198, %s199
    %p208 = scmp.eq.s32.totalorder %s20, 0
    %p209 = por %p207, %p208
    %p210 = scmp.ne.s32.totalorder %s198, %s199
    %p211 = scmp.eq.s32.totalorder %s21, 1
    %p212 = por %p210, %p211
    %p214 = scmp.ne.s32.totalorder %s199, %s213
    %p215 = scmp.eq.s32.totalorder %s21, 0
    %p216 = por %p214, %p215
    %s217 = ssub.s32 %s15, %s22
    %p218 = scmp.eq.s32.totalorder %s217, 0
    %s220 = sadd.s32 %s219, 1
    %s221 = scalar_select %p218, %s219, %s220
    %p224 = pneg %p218
    %p225 = scmp.eq.s32.totalorder %s15, 1
    %p226 = por %p224, %p225
    %p227 = scmp.ne.s32.totalorder %s219, %s222
    %p228 = scmp.eq.s32.totalorder %s15, 0
    %p229 = por %p227, %p228
    %p230 = scmp.ne.s32.totalorder %s219, %s222
    %p231 = scmp.eq.s32.totalorder %s20, 1
    %p232 = por %p230, %p231
    %p233 = scmp.ne.s32.totalorder %s222, %s223
    %p234 = scmp.eq.s32.totalorder %s20, 0
    %p235 = por %p233, %p234
    %p236 = scmp.ne.s32.totalorder %s222, %s223
    %p237 = scmp.eq.s32.totalorder %s21, 1
    %p238 = por %p236, %p237
    %p240 = scmp.ne.s32.totalorder %s223, %s239
    %p241 = scmp.eq.s32.totalorder %s21, 0
    %p242 = por %p240, %p241
    %p243 = scmp.le.s32.totalorder 1, %s15
    %p244 = scmp.lt.s32.totalorder %s15, 3
    %p245 = pnand %p243, %p244
    %p246 = pneg %p245
    // Predicated region
    $region9: #{tpu_custom_call.1} parent=5 // pred_check
      _
    $region10: #{tpu_custom_call.1} parent=5 // pred_check_branch
      %248 = sbr.rel (%p245) target = $region12
    $region11: #{tpu_custom_call.1} parent=5 // pred_region
      %s249 = ssub.s32 %s15, 1
      // Predicated region
      $region13: #{tpu_custom_call.1} parent=11 // pred_check
        %p250 = pneg %p62
      $region14: #{tpu_custom_call.1} parent=11 // pred_check_branch
        %252 = sbr.rel (%p250) target = $region16
      $region15: #{tpu_custom_call.1} parent=11 // pred_region
        _
      $region16: #{tpu_custom_call.1} parent=11 // pred_fallthru
        _
      // Predicated region
      $region17: #{tpu_custom_call.1} parent=11 // pred_check
        %p253 = pneg %p83
      $region18: #{tpu_custom_call.1} parent=11 // pred_check_branch
        %255 = sbr.rel (%p253) target = $region20
      $region19: #{tpu_custom_call.1} parent=11 // pred_region
        _
      $region20: #{tpu_custom_call.1} parent=11 // pred_fallthru
        _
      // Predicated region
      $region21: #{tpu_custom_call.1} parent=11 // pred_check
        %p256 = pneg %p104
      $region22: #{tpu_custom_call.1} parent=11 // pred_check_branch
        %258 = sbr.rel (%p256) target = $region24
      $region23: #{tpu_custom_call.1} parent=11 // pred_region
        _
      $region24: #{tpu_custom_call.1} parent=11 // pred_fallthru
        _
      // Predicated region
      $region25: #{tpu_custom_call.1} parent=11 // pred_check
        %p259 = pneg %p125
      $region26: #{tpu_custom_call.1} parent=11 // pred_check_branch
        %261 = sbr.rel (%p259) target = $region28
      $region27: #{tpu_custom_call.1} parent=11 // pred_region
        _
      $region28: #{tpu_custom_call.1} parent=11 // pred_fallthru
        _
      // Predicated region
      $region29: #{tpu_custom_call.1} parent=11 // pred_check
        %p262 = pneg %p146
      $region30: #{tpu_custom_call.1} parent=11 // pred_check_branch
        %264 = sbr.rel (%p262) target = $region32
      $region31: #{tpu_custom_call.1} parent=11 // pred_region
        _
      $region32: #{tpu_custom_call.1} parent=11 // pred_fallthru
        _
      // Predicated region
      $region33: #{tpu_custom_call.1} parent=11 // pred_check
        %p265 = pneg %p167
      $region34: #{tpu_custom_call.1} parent=11 // pred_check_branch
        %267 = sbr.rel (%p265) target = $region36
      $region35: #{tpu_custom_call.1} parent=11 // pred_region
        _
      $region36: #{tpu_custom_call.1} parent=11 // pred_fallthru
        _
      // Predicated region
      $region37: #{tpu_custom_call.1} parent=11 // pred_check
        %p268 = pneg %p188
      $region38: #{tpu_custom_call.1} parent=11 // pred_check_branch
        %270 = sbr.rel (%p268) target = $region40
      $region39: #{tpu_custom_call.1} parent=11 // pred_region
        _
      $region40: #{tpu_custom_call.1} parent=11 // pred_fallthru
        _
      // Predicated region
      $region41: #{tpu_custom_call.1} parent=11 // pred_check
        %p271 = pneg %p209
      $region42: #{tpu_custom_call.1} parent=11 // pred_check_branch
        %273 = sbr.rel (%p271) target = $region44
      $region43: #{tpu_custom_call.1} parent=11 // pred_region
        _
      $region44: #{tpu_custom_call.1} parent=11 // pred_fallthru
        _
    $region12: #{tpu_custom_call.1} parent=5 // pred_fallthru
      _
    %p274 = scmp.lt.s32.totalorder %s15, 2
    // Predicated region
    $region45: #{tpu_custom_call.1} parent=5 // pred_check
      %p275 = pneg %p274
    $region46: #{tpu_custom_call.1} parent=5 // pred_check_branch
      %277 = sbr.rel (%p275) target = $region48
    $region47: #{tpu_custom_call.1} parent=5 // pred_region
      // Predicated region
      $region49: #{tpu_custom_call.1} parent=47 // pred_check
        %p278 = pneg %p35
      $region50: #{tpu_custom_call.1} parent=47 // pred_check_branch
        %280 = sbr.rel (%p278) target = $region52
      $region51: #{tpu_custom_call.1} parent=47 // pred_region
        %s281 = smul.u32 16, %s15
        %p282 = scmp.lt.s32.totalorder %s281, 31
        %s283 = scalar_select %p282, %s281, 31
        %s284 = smul.addr %s283, 7
        %s285 = smul.addr %s284, 8
        %s286 = scalar_lea.vmem %s0, %s285
        %s287 = smul.u32 16, %s15
      $region52: #{tpu_custom_call.1} parent=47 // pred_fallthru
        _
    $region48: #{tpu_custom_call.1} parent=5 // pred_fallthru
      _
    %p288 = scmp.le.s32.totalorder 1, %s15
    %p289 = scmp.lt.s32.totalorder %s15, 3
    %p290 = pnand %p288, %p289
    %p291 = pneg %p290
    // Predicated region
    $region53: #{tpu_custom_call.1} parent=5 // pred_check
      _
    $region54: #{tpu_custom_call.1} parent=5 // pred_check_branch
      %293 = sbr.rel (%p290) target = $region56
    $region55: #{tpu_custom_call.1} parent=5 // pred_region
      %s294 = ssub.s32 %s15, 1
      %s295 = smul.u32 16, %s20
      %p296 = scmp.lt.s32.totalorder %s295, 31
      %s297 = scalar_select %p296, %s295, 31
      %s298 = smul.addr %s297, 7
      %s299 = smul.addr %s298, 8
      %s300 = scalar_lea.vmem %s0, %s299
      %p301 = pneg %p41
      %p302 = pneg %p38
      %p303 = pneg %p62
      %p304 = pneg %p59
      %p305 = pneg %p83
      %p306 = pneg %p80
      %p307 = pneg %p104
      %p308 = pneg %p101
      %p309 = pneg %p125
      %p310 = pneg %p122
      %p311 = pneg %p146
      %p312 = pneg %p143
      %p313 = pneg %p167
      %p314 = pneg %p164
      %p315 = pneg %p188
      %p316 = pneg %p185
      %p317 = pneg %p209
      %p318 = pneg %p206
      %p319 = pneg %p235
      %p320 = pneg %p232
      %s321 = smul.u32 16, %s20
      %p322 = scmp.lt.s32.totalorder %s321, 31
      %s323 = scalar_select %p322, %s321, 31
      %s324 = smul.addr %s323, 7
      %s325 = smul.addr %s324, 8
      %s326 = scalar_lea.vmem %s9, %s325
      %s327 = smul.u32 16, %s20
      %p328 = scmp.lt.s32.totalorder %s327, 31
      %s329 = scalar_select %p328, %s327, 31
      %s330 = smul.addr %s329, 7
      %s331 = smul.addr %s330, 8
      %s332 = scalar_lea.vmem %s0, %s331
      %s333 = smul.u32 16, %s20
      %s334 = smul.u32 16, %s20
      %p335 = scmp.lt.s32.totalorder %s334, 31
      %s336 = scalar_select %p335, %s334, 31
      %s337 = smul.addr %s336, 7
      %s338 = smul.addr %s337, 8
      %s339 = scalar_lea.vmem %s9, %s338
      %s340 = smul.u32 16, %s20
      %v342 = vld [vmem:[%s332] sm:$0xff]
      %v343 = vld [vmem:[%s332 + $0x8] sm:$0xff]
      %v344 = vld [vmem:[%s332 + $0x10] sm:$0xff]
      %v345 = vld [vmem:[%s332 + $0x18] sm:$0xff]
      %v346 = vld [vmem:[%s332 + $0x20] sm:$0xff]
      %v347 = vld [vmem:[%s332 + $0x28] sm:$0xff]
      %v348 = vld [vmem:[%s332 + $0x30] sm:$0xff]
      %v349 = vld [vmem:[%s332 + $0x38] sm:$0xff]
      %v350 = vld [vmem:[%s332 + $0x40] sm:$0xff]
      %v351 = vld [vmem:[%s332 + $0x48] sm:$0xff]
      %v352 = vld [vmem:[%s332 + $0x50] sm:$0xff]
      %v353 = vld [vmem:[%s332 + $0x58] sm:$0xff]
      %v354 = vld [vmem:[%s332 + $0x60] sm:$0xff]
      %v355 = vld [vmem:[%s332 + $0x68] sm:$0xff]
      %v356 = vld [vmem:[%s332 + $0x70] sm:$0xff]
      %v357 = vld [vmem:[%s332 + $0x78] sm:$0xff]
      %v358 = vld [vmem:[%s332 + $0x80] sm:$0xff]
      %v359 = vld [vmem:[%s332 + $0x88] sm:$0xff]
      %v360 = vld [vmem:[%s332 + $0x90] sm:$0xff]
      %v361 = vld [vmem:[%s332 + $0x98] sm:$0xff]
      %v362 = vld [vmem:[%s332 + $0xa0] sm:$0xff]
      %v363 = vld [vmem:[%s332 + $0xa8] sm:$0xff]
      %v364 = vld [vmem:[%s332 + $0xb0] sm:$0xff]
      %v365 = vld [vmem:[%s332 + $0xb8] sm:$0xff]
      %v366 = vld [vmem:[%s332 + $0xc0] sm:$0xff]
      %v367 = vld [vmem:[%s332 + $0xc8] sm:$0xff]
      %v368 = vld [vmem:[%s332 + $0xd0] sm:$0xff]
      %v369 = vld [vmem:[%s332 + $0xd8] sm:$0xff]
      %v370 = vld [vmem:[%s332 + $0xe0] sm:$0xff]
      %v371 = vld [vmem:[%s332 + $0xe8] sm:$0xff]
      %v372 = vld [vmem:[%s332 + $0xf0] sm:$0xff]
      %v373 = vld [vmem:[%s332 + $0xf8] sm:$0xff]
      %v374 = vld [vmem:[%s332 + $0x100] sm:$0xff]
      %v375 = vld [vmem:[%s332 + $0x108] sm:$0xff]
      %v376 = vld [vmem:[%s332 + $0x110] sm:$0xff]
      %v377 = vld [vmem:[%s332 + $0x118] sm:$0xff]
      %v378 = vld [vmem:[%s332 + $0x120] sm:$0xff]
      %v379 = vld [vmem:[%s332 + $0x128] sm:$0xff]
      %v380 = vld [vmem:[%s332 + $0x130] sm:$0xff]
      %v381 = vld [vmem:[%s332 + $0x138] sm:$0xff]
      %v382 = vld [vmem:[%s332 + $0x140] sm:$0xff]
      %v383 = vld [vmem:[%s332 + $0x148] sm:$0xff]
      %v384 = vld [vmem:[%s332 + $0x150] sm:$0xff]
      %v385 = vld [vmem:[%s332 + $0x158] sm:$0xff]
      %v386 = vld [vmem:[%s332 + $0x160] sm:$0xff]
      %v387 = vld [vmem:[%s332 + $0x168] sm:$0xff]
      %v388 = vld [vmem:[%s332 + $0x170] sm:$0xff]
      %v389 = vld [vmem:[%s332 + $0x178] sm:$0xff]
      %v390 = vld [vmem:[%s332 + $0x180] sm:$0xff]
      %v391 = vld [vmem:[%s332 + $0x188] sm:$0xff]
      %v392 = vld [vmem:[%s332 + $0x190] sm:$0xff]
      %v393 = vld [vmem:[%s332 + $0x198] sm:$0xff]
      %v394 = vld [vmem:[%s332 + $0x1a0] sm:$0xff]
      %v395 = vld [vmem:[%s332 + $0x1a8] sm:$0xff]
      %v396 = vld [vmem:[%s332 + $0x1b0] sm:$0xff]
      %v397 = vld [vmem:[%s332 + $0x1b8] sm:$0xff]
      %v398 = vld [vmem:[%s332 + $0x1c0] sm:$0xff]
      %v399 = vld [vmem:[%s332 + $0x1c8] sm:$0xff]
      %v400 = vld [vmem:[%s332 + $0x1d0] sm:$0xff]
      %v401 = vld [vmem:[%s332 + $0x1d8] sm:$0xff]
      %v402 = vld [vmem:[%s332 + $0x1e0] sm:$0xff]
      %v403 = vld [vmem:[%s332 + $0x1e8] sm:$0xff]
      %v404 = vld [vmem:[%s332 + $0x1f0] sm:$0xff]
      %v405 = vld [vmem:[%s332 + $0x1f8] sm:$0xff]
      %v406 = vld [vmem:[%s332 + $0x200] sm:$0xff]
      %v407 = vld [vmem:[%s332 + $0x208] sm:$0xff]
      %v408 = vld [vmem:[%s332 + $0x210] sm:$0xff]
      %v409 = vld [vmem:[%s332 + $0x218] sm:$0xff]
      %v410 = vld [vmem:[%s332 + $0x220] sm:$0xff]
      %v411 = vld [vmem:[%s332 + $0x228] sm:$0xff]
      %v412 = vld [vmem:[%s332 + $0x230] sm:$0xff]
      %v413 = vld [vmem:[%s332 + $0x238] sm:$0xff]
      %v414 = vld [vmem:[%s332 + $0x240] sm:$0xff]
      %v415 = vld [vmem:[%s332 + $0x248] sm:$0xff]
      %v416 = vld [vmem:[%s332 + $0x250] sm:$0xff]
      %v417 = vld [vmem:[%s332 + $0x258] sm:$0xff]
      %v418 = vld [vmem:[%s332 + $0x260] sm:$0xff]
      %v419 = vld [vmem:[%s332 + $0x268] sm:$0xff]
      %v420 = vld [vmem:[%s332 + $0x270] sm:$0xff]
      %v421 = vld [vmem:[%s332 + $0x278] sm:$0xff]
      %v422 = vld [vmem:[%s332 + $0x280] sm:$0xff]
      %v423 = vld [vmem:[%s332 + $0x288] sm:$0xff]
      %v424 = vld [vmem:[%s332 + $0x290] sm:$0xff]
      %v425 = vld [vmem:[%s332 + $0x298] sm:$0xff]
      %v426 = vld [vmem:[%s332 + $0x2a0] sm:$0xff]
      %v427 = vld [vmem:[%s332 + $0x2a8] sm:$0xff]
      %v428 = vld [vmem:[%s332 + $0x2b0] sm:$0xff]
      %v429 = vld [vmem:[%s332 + $0x2b8] sm:$0xff]
      %v430 = vld [vmem:[%s332 + $0x2c0] sm:$0xff]
      %v431 = vld [vmem:[%s332 + $0x2c8] sm:$0xff]
      %v432 = vld [vmem:[%s332 + $0x2d0] sm:$0xff]
      %v433 = vld [vmem:[%s332 + $0x2d8] sm:$0xff]
      %v434 = vld [vmem:[%s332 + $0x2e0] sm:$0xff]
      %v435 = vld [vmem:[%s332 + $0x2e8] sm:$0xff]
      %v436 = vld [vmem:[%s332 + $0x2f0] sm:$0xff]
      %v437 = vld [vmem:[%s332 + $0x2f8] sm:$0xff]
      %v438 = vld [vmem:[%s332 + $0x300] sm:$0xff]
      %v439 = vld [vmem:[%s332 + $0x308] sm:$0xff]
      %v440 = vld [vmem:[%s332 + $0x310] sm:$0xff]
      %v441 = vld [vmem:[%s332 + $0x318] sm:$0xff]
      %v442 = vld [vmem:[%s332 + $0x320] sm:$0xff]
      %v443 = vld [vmem:[%s332 + $0x328] sm:$0xff]
      %v444 = vld [vmem:[%s332 + $0x330] sm:$0xff]
      %v445 = vld [vmem:[%s332 + $0x338] sm:$0xff]
      %v446 = vld [vmem:[%s332 + $0x340] sm:$0xff]
      %v447 = vld [vmem:[%s332 + $0x348] sm:$0xff]
      %v448 = vld [vmem:[%s332 + $0x350] sm:$0xff]
      %v449 = vld [vmem:[%s332 + $0x358] sm:$0xff]
      %v450 = vld [vmem:[%s332 + $0x360] sm:$0xff]
      %v451 = vld [vmem:[%s332 + $0x368] sm:$0xff]
      %v452 = vld [vmem:[%s332 + $0x370] sm:$0xff]
      %v453 = vld [vmem:[%s332 + $0x378] sm:$0xff]
      %v454 = vpack.c.bf16 %v349, %v342
      %v455 = vpack.c.bf16 %v350, %v343
      %v456 = vpack.c.bf16 %v351, %v344
      %v457 = vpack.c.bf16 %v352, %v345
      %v458 = vpack.c.bf16 %v353, %v346
      %v459 = vpack.c.bf16 %v354, %v347
      %v460 = vpack.c.bf16 %v355, %v348
      %v461 = vpack.c.bf16 %v363, %v356
      %v462 = vpack.c.bf16 %v364, %v357
      %v463 = vpack.c.bf16 %v365, %v358
      %v464 = vpack.c.bf16 %v366, %v359
      %v465 = vpack.c.bf16 %v367, %v360
      %v466 = vpack.c.bf16 %v368, %v361
      %v467 = vpack.c.bf16 %v369, %v362
      %v468 = vpack.c.bf16 %v377, %v370
      %v469 = vpack.c.bf16 %v378, %v371
      %v470 = vpack.c.bf16 %v379, %v372
      %v471 = vpack.c.bf16 %v380, %v373
      %v472 = vpack.c.bf16 %v381, %v374
      %v473 = vpack.c.bf16 %v382, %v375
      %v474 = vpack.c.bf16 %v383, %v376
      %v475 = vpack.c.bf16 %v391, %v384
      %v476 = vpack.c.bf16 %v392, %v385
      %v477 = vpack.c.bf16 %v393, %v386
      %v478 = vpack.c.bf16 %v394, %v387
      %v479 = vpack.c.bf16 %v395, %v388
      %v480 = vpack.c.bf16 %v396, %v389
      %v481 = vpack.c.bf16 %v397, %v390
      %v482 = vpack.c.bf16 %v405, %v398
      %v483 = vpack.c.bf16 %v406, %v399
      %v484 = vpack.c.bf16 %v407, %v400
      %v485 = vpack.c.bf16 %v408, %v401
      %v486 = vpack.c.bf16 %v409, %v402
      %v487 = vpack.c.bf16 %v410, %v403
      %v488 = vpack.c.bf16 %v411, %v404
      %v489 = vpack.c.bf16 %v419, %v412
      %v490 = vpack.c.bf16 %v420, %v413
      %v491 = vpack.c.bf16 %v421, %v414
      %v492 = vpack.c.bf16 %v422, %v415
      %v493 = vpack.c.bf16 %v423, %v416
      %v494 = vpack.c.bf16 %v424, %v417
      %v495 = vpack.c.bf16 %v425, %v418
      %v496 = vpack.c.bf16 %v433, %v426
      %v497 = vpack.c.bf16 %v434, %v427
      %v498 = vpack.c.bf16 %v435, %v428
      %v499 = vpack.c.bf16 %v436, %v429
      %v500 = vpack.c.bf16 %v437, %v430
      %v501 = vpack.c.bf16 %v438, %v431
      %v502 = vpack.c.bf16 %v439, %v432
      %v503 = vpack.c.bf16 %v447, %v440
      %v504 = vpack.c.bf16 %v448, %v441
      %v505 = vpack.c.bf16 %v449, %v442
      %v506 = vpack.c.bf16 %v450, %v443
      %v507 = vpack.c.bf16 %v451, %v444
      %v508 = vpack.c.bf16 %v452, %v445
      %v509 = vpack.c.bf16 %v453, %v446
      %v510 = vld [vmem:[%s1] sm:$0xff]
      %v511 = vld [vmem:[%s1 + $0x8] sm:$0xff]
      %v512 = vld [vmem:[%s1 + $0x10] sm:$0xff]
      %v513 = vld [vmem:[%s1 + $0x18] sm:$0xff]
      %v514 = vld [vmem:[%s1 + $0x20] sm:$0xff]
      %v515 = vld [vmem:[%s1 + $0x28] sm:$0xff]
      %v516 = vld [vmem:[%s1 + $0x30] sm:$0xff]
      %v517 = vld [vmem:[%s1 + $0x38] sm:$0xff]
      %v518 = vld [vmem:[%s1 + $0x40] sm:$0xff]
      %v519 = vld [vmem:[%s1 + $0x48] sm:$0xff]
      %v520 = vld [vmem:[%s1 + $0x50] sm:$0xff]
      %v521 = vld [vmem:[%s1 + $0x58] sm:$0xff]
      %v522 = vld [vmem:[%s1 + $0x60] sm:$0xff]
      %v523 = vld [vmem:[%s1 + $0x68] sm:$0xff]
      %v524 = vld [vmem:[%s1 + $0x70] sm:$0xff]
      %v525 = vld [vmem:[%s1 + $0x78] sm:$0xff]
      %v526 = vld [vmem:[%s1 + $0x80] sm:$0xff]
      %v527 = vld [vmem:[%s1 + $0x88] sm:$0xff]
      %v528 = vld [vmem:[%s1 + $0x90] sm:$0xff]
      %v529 = vld [vmem:[%s1 + $0x98] sm:$0xff]
      %v530 = vld [vmem:[%s1 + $0xa0] sm:$0xff]
      %v531 = vld [vmem:[%s1 + $0xa8] sm:$0xff]
      %v532 = vld [vmem:[%s1 + $0xb0] sm:$0xff]
      %v533 = vld [vmem:[%s1 + $0xb8] sm:$0xff]
      %v534 = vld [vmem:[%s1 + $0xc0] sm:$0xff]
      %v535 = vld [vmem:[%s1 + $0xc8] sm:$0xff]
      %v536 = vld [vmem:[%s1 + $0xd0] sm:$0xff]
      %v537 = vld [vmem:[%s1 + $0xd8] sm:$0xff]
      %v538 = vld [vmem:[%s1 + $0xe0] sm:$0xff]
      %v539 = vld [vmem:[%s1 + $0xe8] sm:$0xff]
      %v540 = vld [vmem:[%s1 + $0xf0] sm:$0xff]
      %v541 = vld [vmem:[%s1 + $0xf8] sm:$0xff]
      %v542 = vld [vmem:[%s1 + $0x100] sm:$0xff]
      %v543 = vld [vmem:[%s1 + $0x108] sm:$0xff]
      %v544 = vld [vmem:[%s1 + $0x110] sm:$0xff]
      %v545 = vld [vmem:[%s1 + $0x118] sm:$0xff]
      %v546 = vld [vmem:[%s1 + $0x120] sm:$0xff]
      %v547 = vld [vmem:[%s1 + $0x128] sm:$0xff]
      %v548 = vld [vmem:[%s1 + $0x130] sm:$0xff]
      %v549 = vld [vmem:[%s1 + $0x138] sm:$0xff]
      %v550 = vld [vmem:[%s1 + $0x140] sm:$0xff]
      %v551 = vld [vmem:[%s1 + $0x148] sm:$0xff]
      %v552 = vld [vmem:[%s1 + $0x150] sm:$0xff]
      %v553 = vld [vmem:[%s1 + $0x158] sm:$0xff]
      %v554 = vld [vmem:[%s1 + $0x160] sm:$0xff]
      %v555 = vld [vmem:[%s1 + $0x168] sm:$0xff]
      %v556 = vld [vmem:[%s1 + $0x170] sm:$0xff]
      %v557 = vld [vmem:[%s1 + $0x178] sm:$0xff]
      %v558 = vld [vmem:[%s1 + $0x180] sm:$0xff]
      %v559 = vld [vmem:[%s1 + $0x188] sm:$0xff]
      %v560 = vld [vmem:[%s1 + $0x190] sm:$0xff]
      %v561 = vld [vmem:[%s1 + $0x198] sm:$0xff]
      %v562 = vld [vmem:[%s1 + $0x1a0] sm:$0xff]
      %v563 = vld [vmem:[%s1 + $0x1a8] sm:$0xff]
      %v564 = vld [vmem:[%s1 + $0x1b0] sm:$0xff]
      %v565 = vld [vmem:[%s1 + $0x1b8] sm:$0xff]
      %v566 = vld [vmem:[%s1 + $0x1c0] sm:$0xff]
      %v567 = vld [vmem:[%s1 + $0x1c8] sm:$0xff]
      %v568 = vld [vmem:[%s1 + $0x1d0] sm:$0xff]
      %v569 = vld [vmem:[%s1 + $0x1d8] sm:$0xff]
      %v570 = vld [vmem:[%s1 + $0x1e0] sm:$0xff]
      %v571 = vld [vmem:[%s1 + $0x1e8] sm:$0xff]
      %v572 = vld [vmem:[%s1 + $0x1f0] sm:$0xff]
      %v573 = vld [vmem:[%s1 + $0x1f8] sm:$0xff]
      %v574 = vld [vmem:[%s1 + $0x200] sm:$0xff]
      %v575 = vld [vmem:[%s1 + $0x208] sm:$0xff]
      %v576 = vld [vmem:[%s1 + $0x210] sm:$0xff]
      %v577 = vld [vmem:[%s1 + $0x218] sm:$0xff]
      %v578 = vld [vmem:[%s1 + $0x220] sm:$0xff]
      %v579 = vld [vmem:[%s1 + $0x228] sm:$0xff]
      %v580 = vld [vmem:[%s1 + $0x230] sm:$0xff]
      %v581 = vld [vmem:[%s1 + $0x238] sm:$0xff]
      %v582 = vld [vmem:[%s1 + $0x240] sm:$0xff]
      %v583 = vld [vmem:[%s1 + $0x248] sm:$0xff]
      %v584 = vld [vmem:[%s1 + $0x250] sm:$0xff]
      %v585 = vld [vmem:[%s1 + $0x258] sm:$0xff]
      %v586 = vld [vmem:[%s1 + $0x260] sm:$0xff]
      %v587 = vld [vmem:[%s1 + $0x268] sm:$0xff]
      %v588 = vld [vmem:[%s1 + $0x270] sm:$0xff]
      %v589 = vld [vmem:[%s1 + $0x278] sm:$0xff]
      %v590 = vld [vmem:[%s1 + $0x280] sm:$0xff]
      %v591 = vld [vmem:[%s1 + $0x288] sm:$0xff]
      %v592 = vld [vmem:[%s1 + $0x290] sm:$0xff]
      %v593 = vld [vmem:[%s1 + $0x298] sm:$0xff]
      %v594 = vld [vmem:[%s1 + $0x2a0] sm:$0xff]
      %v595 = vld [vmem:[%s1 + $0x2a8] sm:$0xff]
      %v596 = vld [vmem:[%s1 + $0x2b0] sm:$0xff]
      %v597 = vld [vmem:[%s1 + $0x2b8] sm:$0xff]
      %v598 = vld [vmem:[%s1 + $0x2c0] sm:$0xff]
      %v599 = vld [vmem:[%s1 + $0x2c8] sm:$0xff]
      %v600 = vld [vmem:[%s1 + $0x2d0] sm:$0xff]
      %v601 = vld [vmem:[%s1 + $0x2d8] sm:$0xff]
      %v602 = vld [vmem:[%s1 + $0x2e0] sm:$0xff]
      %v603 = vld [vmem:[%s1 + $0x2e8] sm:$0xff]
      %v604 = vld [vmem:[%s1 + $0x2f0] sm:$0xff]
      %v605 = vld [vmem:[%s1 + $0x2f8] sm:$0xff]
      %v606 = vld [vmem:[%s1 + $0x300] sm:$0xff]
      %v607 = vld [vmem:[%s1 + $0x308] sm:$0xff]
      %v608 = vld [vmem:[%s1 + $0x310] sm:$0xff]
      %v609 = vld [vmem:[%s1 + $0x318] sm:$0xff]
      %v610 = vld [vmem:[%s1 + $0x320] sm:$0xff]
      %v611 = vld [vmem:[%s1 + $0x328] sm:$0xff]
      %v612 = vld [vmem:[%s1 + $0x330] sm:$0xff]
      %v613 = vld [vmem:[%s1 + $0x338] sm:$0xff]
      %v614 = vld [vmem:[%s1 + $0x340] sm:$0xff]
      %v615 = vld [vmem:[%s1 + $0x348] sm:$0xff]
      %v616 = vld [vmem:[%s1 + $0x350] sm:$0xff]
      %v617 = vld [vmem:[%s1 + $0x358] sm:$0xff]
      %v618 = vld [vmem:[%s1 + $0x360] sm:$0xff]
      %v619 = vld [vmem:[%s1 + $0x368] sm:$0xff]
      %v620 = vld [vmem:[%s1 + $0x370] sm:$0xff]
      %v621 = vld [vmem:[%s1 + $0x378] sm:$0xff]
      %v622 = vld [vmem:[%s1 + $0x380] sm:$0xff]
      %v623 = vld [vmem:[%s1 + $0x388] sm:$0xff]
      %v624 = vld [vmem:[%s1 + $0x390] sm:$0xff]
      %v625 = vld [vmem:[%s1 + $0x398] sm:$0xff]
      %v626 = vld [vmem:[%s1 + $0x3a0] sm:$0xff]
      %v627 = vld [vmem:[%s1 + $0x3a8] sm:$0xff]
      %v628 = vld [vmem:[%s1 + $0x3b0] sm:$0xff]
      %v629 = vld [vmem:[%s1 + $0x3b8] sm:$0xff]
      %v630 = vld [vmem:[%s1 + $0x3c0] sm:$0xff]
      %v631 = vld [vmem:[%s1 + $0x3c8] sm:$0xff]
      %v632 = vld [vmem:[%s1 + $0x3d0] sm:$0xff]
      %v633 = vld [vmem:[%s1 + $0x3d8] sm:$0xff]
      %v634 = vld [vmem:[%s1 + $0x3e0] sm:$0xff]
      %v635 = vld [vmem:[%s1 + $0x3e8] sm:$0xff]
      %v636 = vld [vmem:[%s1 + $0x3f0] sm:$0xff]
      %v637 = vld [vmem:[%s1 + $0x3f8] sm:$0xff]
      %v638 = vld [vmem:[%s1 + $0x400] sm:$0xff]
      %v639 = vld [vmem:[%s1 + $0x408] sm:$0xff]
      %v640 = vld [vmem:[%s1 + $0x410] sm:$0xff]
      %v641 = vld [vmem:[%s1 + $0x418] sm:$0xff]
      %v642 = vld [vmem:[%s1 + $0x420] sm:$0xff]
      %v643 = vld [vmem:[%s1 + $0x428] sm:$0xff]
      %v644 = vld [vmem:[%s1 + $0x430] sm:$0xff]
      %v645 = vld [vmem:[%s1 + $0x438] sm:$0xff]
      %v646 = vld [vmem:[%s1 + $0x440] sm:$0xff]
      %v647 = vld [vmem:[%s1 + $0x448] sm:$0xff]
      %v648 = vld [vmem:[%s1 + $0x450] sm:$0xff]
      %v649 = vld [vmem:[%s1 + $0x458] sm:$0xff]
      %v650 = vld [vmem:[%s1 + $0x460] sm:$0xff]
      %v651 = vld [vmem:[%s1 + $0x468] sm:$0xff]
      %v652 = vld [vmem:[%s1 + $0x470] sm:$0xff]
      %v653 = vld [vmem:[%s1 + $0x478] sm:$0xff]
      %v654 = vld [vmem:[%s1 + $0x480] sm:$0xff]
      %v655 = vld [vmem:[%s1 + $0x488] sm:$0xff]
      %v656 = vld [vmem:[%s1 + $0x490] sm:$0xff]
      %v657 = vld [vmem:[%s1 + $0x498] sm:$0xff]
      %v658 = vld [vmem:[%s1 + $0x4a0] sm:$0xff]
      %v659 = vld [vmem:[%s1 + $0x4a8] sm:$0xff]
      %v660 = vld [vmem:[%s1 + $0x4b0] sm:$0xff]
      %v661 = vld [vmem:[%s1 + $0x4b8] sm:$0xff]
      %v662 = vld [vmem:[%s1 + $0x4c0] sm:$0xff]
      %v663 = vld [vmem:[%s1 + $0x4c8] sm:$0xff]
      %v664 = vld [vmem:[%s1 + $0x4d0] sm:$0xff]
      %v665 = vld [vmem:[%s1 + $0x4d8] sm:$0xff]
      %v666 = vld [vmem:[%s1 + $0x4e0] sm:$0xff]
      %v667 = vld [vmem:[%s1 + $0x4e8] sm:$0xff]
      %v668 = vld [vmem:[%s1 + $0x4f0] sm:$0xff]
      %v669 = vld [vmem:[%s1 + $0x4f8] sm:$0xff]
      %v670 = vld [vmem:[%s1 + $0x500] sm:$0xff]
      %v671 = vld [vmem:[%s1 + $0x508] sm:$0xff]
      %v672 = vld [vmem:[%s1 + $0x510] sm:$0xff]
      %v673 = vld [vmem:[%s1 + $0x518] sm:$0xff]
      %v674 = vld [vmem:[%s1 + $0x520] sm:$0xff]
      %v675 = vld [vmem:[%s1 + $0x528] sm:$0xff]
      %v676 = vld [vmem:[%s1 + $0x530] sm:$0xff]
      %v677 = vld [vmem:[%s1 + $0x538] sm:$0xff]
      %v678 = vld [vmem:[%s1 + $0x540] sm:$0xff]
      %v679 = vld [vmem:[%s1 + $0x548] sm:$0xff]
      %v680 = vld [vmem:[%s1 + $0x550] sm:$0xff]
      %v681 = vld [vmem:[%s1 + $0x558] sm:$0xff]
      %v682 = vld [vmem:[%s1 + $0x560] sm:$0xff]
      %v683 = vld [vmem:[%s1 + $0x568] sm:$0xff]
      %v684 = vld [vmem:[%s1 + $0x570] sm:$0xff]
      %v685 = vld [vmem:[%s1 + $0x578] sm:$0xff]
      %v686 = vld [vmem:[%s1 + $0x580] sm:$0xff]
      %v687 = vld [vmem:[%s1 + $0x588] sm:$0xff]
      %v688 = vld [vmem:[%s1 + $0x590] sm:$0xff]
      %v689 = vld [vmem:[%s1 + $0x598] sm:$0xff]
      %v690 = vld [vmem:[%s1 + $0x5a0] sm:$0xff]
      %v691 = vld [vmem:[%s1 + $0x5a8] sm:$0xff]
      %v692 = vld [vmem:[%s1 + $0x5b0] sm:$0xff]
      %v693 = vld [vmem:[%s1 + $0x5b8] sm:$0xff]
      %v694 = vld [vmem:[%s1 + $0x5c0] sm:$0xff]
      %v695 = vld [vmem:[%s1 + $0x5c8] sm:$0xff]
      %v696 = vld [vmem:[%s1 + $0x5d0] sm:$0xff]
      %v697 = vld [vmem:[%s1 + $0x5d8] sm:$0xff]
      %v698 = vld [vmem:[%s1 + $0x5e0] sm:$0xff]
      %v699 = vld [vmem:[%s1 + $0x5e8] sm:$0xff]
      %v700 = vld [vmem:[%s1 + $0x5f0] sm:$0xff]
      %v701 = vld [vmem:[%s1 + $0x5f8] sm:$0xff]
      %v702 = vld [vmem:[%s1 + $0x600] sm:$0xff]
      %v703 = vld [vmem:[%s1 + $0x608] sm:$0xff]
      %v704 = vld [vmem:[%s1 + $0x610] sm:$0xff]
      %v705 = vld [vmem:[%s1 + $0x618] sm:$0xff]
      %v706 = vld [vmem:[%s2] sm:$0xf]
      %v708 = vperm.slane %v706, 0
      %v709 = vperm.slane %v706, 1
      %v710 = vperm.slane %v706, 2
      %v711 = vperm.slane %v706, 3
      %v912 = vunpack.c.l.b16 %v510
      %v913 = vunpack.c.h.b16 %v510
      %v914 = vunpack.c.l.b16 %v511
      %v915 = vunpack.c.h.b16 %v511
      %v916 = vunpack.c.l.b16 %v512
      %v917 = vunpack.c.h.b16 %v512
      %v918 = vunpack.c.l.b16 %v513
      %v919 = vunpack.c.h.b16 %v513
      %v920 = vunpack.c.l.b16 %v514
      %v921 = vunpack.c.h.b16 %v514
      %v922 = vunpack.c.l.b16 %v515
      %v923 = vunpack.c.h.b16 %v515
      %v924 = vunpack.c.l.b16 %v516
      %v925 = vunpack.c.h.b16 %v516
      %v926 = vunpack.c.l.b16 %v517
      %v927 = vunpack.c.h.b16 %v517
      %v928 = vunpack.c.l.b16 %v518
      %v929 = vunpack.c.h.b16 %v518
      %v930 = vunpack.c.l.b16 %v519
      %v931 = vunpack.c.h.b16 %v519
      %v932 = vunpack.c.l.b16 %v520
      %v933 = vunpack.c.h.b16 %v520
      %v934 = vunpack.c.l.b16 %v521
      %v935 = vunpack.c.h.b16 %v521
      %v936 = vunpack.c.l.b16 %v522
      %v937 = vunpack.c.h.b16 %v522
      %v938 = vunpack.c.l.b16 %v523
      %v939 = vunpack.c.h.b16 %v523
      %v940 = vunpack.c.l.b16 %v524
      %v941 = vunpack.c.h.b16 %v524
      %v942 = vunpack.c.l.b16 %v525
      %v943 = vunpack.c.h.b16 %v525
      %v944 = vunpack.c.l.b16 %v526
      %v945 = vunpack.c.h.b16 %v526
      %v946 = vunpack.c.l.b16 %v527
      %v947 = vunpack.c.h.b16 %v527
      %v948 = vunpack.c.l.b16 %v528
      %v949 = vunpack.c.h.b16 %v528
      %v950 = vunpack.c.l.b16 %v529
      %v951 = vunpack.c.h.b16 %v529
      %v952 = vunpack.c.l.b16 %v530
      %v953 = vunpack.c.h.b16 %v530
      %v954 = vunpack.c.l.b16 %v531
      %v955 = vunpack.c.h.b16 %v531
      %v956 = vunpack.c.l.b16 %v532
      %v957 = vunpack.c.h.b16 %v532
      %v958 = vunpack.c.l.b16 %v533
      %v959 = vunpack.c.h.b16 %v533
      %v960 = vunpack.c.l.b16 %v534
      %v961 = vunpack.c.h.b16 %v534
      %v962 = vunpack.c.l.b16 %v535
      %v963 = vunpack.c.h.b16 %v535
      %v964 = vunpack.c.l.b16 %v536
      %v965 = vunpack.c.h.b16 %v536
      %v966 = vunpack.c.l.b16 %v537
      %v967 = vunpack.c.h.b16 %v537
      %v968 = vunpack.c.l.b16 %v538
      %v969 = vunpack.c.h.b16 %v538
      %v970 = vunpack.c.l.b16 %v539
      %v971 = vunpack.c.h.b16 %v539
      %v972 = vunpack.c.l.b16 %v540
      %v973 = vunpack.c.h.b16 %v540
      %v974 = vunpack.c.l.b16 %v541
      %v975 = vunpack.c.h.b16 %v541
      %v976 = vunpack.c.l.b16 %v542
      %v977 = vunpack.c.h.b16 %v542
      %v978 = vunpack.c.l.b16 %v543
      %v979 = vunpack.c.h.b16 %v543
      %v980 = vunpack.c.l.b16 %v544
      %v981 = vunpack.c.h.b16 %v544
      %v982 = vunpack.c.l.b16 %v545
      %v983 = vunpack.c.h.b16 %v545
      %v984 = vunpack.c.l.b16 %v546
      %v985 = vunpack.c.h.b16 %v546
      %v986 = vunpack.c.l.b16 %v547
      %v987 = vunpack.c.h.b16 %v547
      %v988 = vunpack.c.l.b16 %v548
      %v989 = vunpack.c.h.b16 %v548
      %v990 = vunpack.c.l.b16 %v549
      %v991 = vunpack.c.h.b16 %v549
      %v992 = vunpack.c.l.b16 %v550
      %v993 = vunpack.c.h.b16 %v550
      %v994 = vunpack.c.l.b16 %v551
      %v995 = vunpack.c.h.b16 %v551
      %v996 = vunpack.c.l.b16 %v552
      %v997 = vunpack.c.h.b16 %v552
      %v998 = vunpack.c.l.b16 %v553
      %v999 = vunpack.c.h.b16 %v553
      %v1000 = vunpack.c.l.b16 %v554
      %v1001 = vunpack.c.h.b16 %v554
      %v1002 = vunpack.c.l.b16 %v555
      %v1003 = vunpack.c.h.b16 %v555
      %v1004 = vunpack.c.l.b16 %v556
      %v1005 = vunpack.c.h.b16 %v556
      %v1006 = vunpack.c.l.b16 %v557
      %v1007 = vunpack.c.h.b16 %v557
      %v1008 = vunpack.c.l.b16 %v558
      %v1009 = vunpack.c.h.b16 %v558
      %v1010 = vunpack.c.l.b16 %v559
      %v1011 = vunpack.c.h.b16 %v559
      %v1012 = vunpack.c.l.b16 %v560
      %v1013 = vunpack.c.h.b16 %v560
      %v1014 = vunpack.c.l.b16 %v561
      %v1015 = vunpack.c.h.b16 %v561
      %v1016 = vunpack.c.l.b16 %v562
      %v1017 = vunpack.c.h.b16 %v562
      %v1018 = vunpack.c.l.b16 %v563
      %v1019 = vunpack.c.h.b16 %v563
      %v1020 = vunpack.c.l.b16 %v564
      %v1021 = vunpack.c.h.b16 %v564
      %v1022 = vunpack.c.l.b16 %v565
      %v1023 = vunpack.c.h.b16 %v565
      %v1024 = vunpack.c.l.b16 %v566
      %v1025 = vunpack.c.h.b16 %v566
      %v1026 = vunpack.c.l.b16 %v567
      %v1027 = vunpack.c.h.b16 %v567
      %v1028 = vunpack.c.l.b16 %v568
      %v1029 = vunpack.c.h.b16 %v568
      %v1030 = vunpack.c.l.b16 %v569
      %v1031 = vunpack.c.h.b16 %v569
      %v1032 = vunpack.c.l.b16 %v570
      %v1033 = vunpack.c.h.b16 %v570
      %v1034 = vunpack.c.l.b16 %v571
      %v1035 = vunpack.c.h.b16 %v571
      %v1036 = vunpack.c.l.b16 %v572
      %v1037 = vunpack.c.h.b16 %v572
      %v1038 = vunpack.c.l.b16 %v573
      %v1039 = vunpack.c.h.b16 %v573
      %v1040 = vunpack.c.l.b16 %v574
      %v1041 = vunpack.c.h.b16 %v574
      %v1042 = vunpack.c.l.b16 %v575
      %v1043 = vunpack.c.h.b16 %v575
      %v1044 = vunpack.c.l.b16 %v576
      %v1045 = vunpack.c.h.b16 %v576
      %v1046 = vunpack.c.l.b16 %v577
      %v1047 = vunpack.c.h.b16 %v577
      %v1048 = vunpack.c.l.b16 %v578
      %v1049 = vunpack.c.h.b16 %v578
      %v1050 = vunpack.c.l.b16 %v579
      %v1051 = vunpack.c.h.b16 %v579
      %v1052 = vunpack.c.l.b16 %v580
      %v1053 = vunpack.c.h.b16 %v580
      %v1054 = vunpack.c.l.b16 %v581
      %v1055 = vunpack.c.h.b16 %v581
      %v1056 = vunpack.c.l.b16 %v582
      %v1057 = vunpack.c.h.b16 %v582
      %v1058 = vunpack.c.l.b16 %v583
      %v1059 = vunpack.c.h.b16 %v583
      %v1060 = vunpack.c.l.b16 %v584
      %v1061 = vunpack.c.h.b16 %v584
      %v1062 = vunpack.c.l.b16 %v585
      %v1063 = vunpack.c.h.b16 %v585
      %v1064 = vunpack.c.l.b16 %v586
      %v1065 = vunpack.c.h.b16 %v586
      %v1066 = vunpack.c.l.b16 %v587
      %v1067 = vunpack.c.h.b16 %v587
      %v1068 = vunpack.c.l.b16 %v588
      %v1069 = vunpack.c.h.b16 %v588
      %v1070 = vunpack.c.l.b16 %v589
      %v1071 = vunpack.c.h.b16 %v589
      %v1072 = vunpack.c.l.b16 %v590
      %v1073 = vunpack.c.h.b16 %v590
      %v1074 = vunpack.c.l.b16 %v591
      %v1075 = vunpack.c.h.b16 %v591
      %v1076 = vunpack.c.l.b16 %v592
      %v1077 = vunpack.c.h.b16 %v592
      %v1078 = vunpack.c.l.b16 %v593
      %v1079 = vunpack.c.h.b16 %v593
      %v1080 = vunpack.c.l.b16 %v594
      %v1081 = vunpack.c.h.b16 %v594
      %v1082 = vunpack.c.l.b16 %v595
      %v1083 = vunpack.c.h.b16 %v595
      %v1084 = vunpack.c.l.b16 %v596
      %v1085 = vunpack.c.h.b16 %v596
      %v1086 = vunpack.c.l.b16 %v597
      %v1087 = vunpack.c.h.b16 %v597
      %v1088 = vunpack.c.l.b16 %v598
      %v1089 = vunpack.c.h.b16 %v598
      %v1090 = vunpack.c.l.b16 %v599
      %v1091 = vunpack.c.h.b16 %v599
      %v1092 = vunpack.c.l.b16 %v600
      %v1093 = vunpack.c.h.b16 %v600
      %v1094 = vunpack.c.l.b16 %v601
      %v1095 = vunpack.c.h.b16 %v601
      %v1096 = vunpack.c.l.b16 %v602
      %v1097 = vunpack.c.h.b16 %v602
      %v1098 = vunpack.c.l.b16 %v603
      %v1099 = vunpack.c.h.b16 %v603
      %v1100 = vunpack.c.l.b16 %v604
      %v1101 = vunpack.c.h.b16 %v604
      %v1102 = vunpack.c.l.b16 %v605
      %v1103 = vunpack.c.h.b16 %v605
      %v1104 = vunpack.c.l.b16 %v606
      %v1105 = vunpack.c.h.b16 %v606
      %v1106 = vunpack.c.l.b16 %v607
      %v1107 = vunpack.c.h.b16 %v607
      %v1108 = vunpack.c.l.b16 %v608
      %v1109 = vunpack.c.h.b16 %v608
      %v1110 = vunpack.c.l.b16 %v609
      %v1111 = vunpack.c.h.b16 %v609
      %v1112 = vunpack.c.l.b16 %v610
      %v1113 = vunpack.c.h.b16 %v610
      %v1114 = vunpack.c.l.b16 %v611
      %v1115 = vunpack.c.h.b16 %v611
      %v1116 = vunpack.c.l.b16 %v612
      %v1117 = vunpack.c.h.b16 %v612
      %v1118 = vunpack.c.l.b16 %v613
      %v1119 = vunpack.c.h.b16 %v613
      %v1120 = vunpack.c.l.b16 %v614
      %v1121 = vunpack.c.h.b16 %v614
      %v1122 = vunpack.c.l.b16 %v615
      %v1123 = vunpack.c.h.b16 %v615
      %v1124 = vunpack.c.l.b16 %v616
      %v1125 = vunpack.c.h.b16 %v616
      %v1126 = vunpack.c.l.b16 %v617
      %v1127 = vunpack.c.h.b16 %v617
      %v1128 = vunpack.c.l.b16 %v618
      %v1129 = vunpack.c.h.b16 %v618
      %v1130 = vunpack.c.l.b16 %v619
      %v1131 = vunpack.c.h.b16 %v619
      %v1132 = vunpack.c.l.b16 %v620
      %v1133 = vunpack.c.h.b16 %v620
      %v1134 = vunpack.c.l.b16 %v621
      %v1135 = vunpack.c.h.b16 %v621
      %v1136 = vunpack.c.l.b16 %v622
      %v1137 = vunpack.c.h.b16 %v622
      %v1138 = vunpack.c.l.b16 %v623
      %v1139 = vunpack.c.h.b16 %v623
      %v1140 = vunpack.c.l.b16 %v624
      %v1141 = vunpack.c.h.b16 %v624
      %v1142 = vunpack.c.l.b16 %v625
      %v1143 = vunpack.c.h.b16 %v625
      %v1144 = vunpack.c.l.b16 %v626
      %v1145 = vunpack.c.h.b16 %v626
      %v1146 = vunpack.c.l.b16 %v627
      %v1147 = vunpack.c.h.b16 %v627
      %v1148 = vunpack.c.l.b16 %v628
      %v1149 = vunpack.c.h.b16 %v628
      %v1150 = vunpack.c.l.b16 %v629
      %v1151 = vunpack.c.h.b16 %v629
      %v1152 = vunpack.c.l.b16 %v630
      %v1153 = vunpack.c.h.b16 %v630
      %v1154 = vunpack.c.l.b16 %v631
      %v1155 = vunpack.c.h.b16 %v631
      %v1156 = vunpack.c.l.b16 %v632
      %v1157 = vunpack.c.h.b16 %v632
      %v1158 = vunpack.c.l.b16 %v633
      %v1159 = vunpack.c.h.b16 %v633
      %v1160 = vunpack.c.l.b16 %v634
      %v1161 = vunpack.c.h.b16 %v634
      %v1162 = vunpack.c.l.b16 %v635
      %v1163 = vunpack.c.h.b16 %v635
      %v1164 = vunpack.c.l.b16 %v636
      %v1165 = vunpack.c.h.b16 %v636
      %v1166 = vunpack.c.l.b16 %v637
      %v1167 = vunpack.c.h.b16 %v637
      %v1168 = vunpack.c.l.b16 %v638
      %v1169 = vunpack.c.h.b16 %v638
      %v1170 = vunpack.c.l.b16 %v639
      %v1171 = vunpack.c.h.b16 %v639
      %v1172 = vunpack.c.l.b16 %v640
      %v1173 = vunpack.c.h.b16 %v640
      %v1174 = vunpack.c.l.b16 %v641
      %v1175 = vunpack.c.h.b16 %v641
      %v1176 = vunpack.c.l.b16 %v642
      %v1177 = vunpack.c.h.b16 %v642
      %v1178 = vunpack.c.l.b16 %v643
      %v1179 = vunpack.c.h.b16 %v643
      %v1180 = vunpack.c.l.b16 %v644
      %v1181 = vunpack.c.h.b16 %v644
      %v1182 = vunpack.c.l.b16 %v645
      %v1183 = vunpack.c.h.b16 %v645
      %v1184 = vunpack.c.l.b16 %v646
      %v1185 = vunpack.c.h.b16 %v646
      %v1186 = vunpack.c.l.b16 %v647
      %v1187 = vunpack.c.h.b16 %v647
      %v1188 = vunpack.c.l.b16 %v648
      %v1189 = vunpack.c.h.b16 %v648
      %v1190 = vunpack.c.l.b16 %v649
      %v1191 = vunpack.c.h.b16 %v649
      %v1192 = vunpack.c.l.b16 %v650
      %v1193 = vunpack.c.h.b16 %v650
      %v1194 = vunpack.c.l.b16 %v651
      %v1195 = vunpack.c.h.b16 %v651
      %v1196 = vunpack.c.l.b16 %v652
      %v1197 = vunpack.c.h.b16 %v652
      %v1198 = vunpack.c.l.b16 %v653
      %v1199 = vunpack.c.h.b16 %v653
      %v1200 = vunpack.c.l.b16 %v654
      %v1201 = vunpack.c.h.b16 %v654
      %v1202 = vunpack.c.l.b16 %v655
      %v1203 = vunpack.c.h.b16 %v655
      %v1204 = vunpack.c.l.b16 %v656
      %v1205 = vunpack.c.h.b16 %v656
      %v1206 = vunpack.c.l.b16 %v657
      %v1207 = vunpack.c.h.b16 %v657
      %v1208 = vunpack.c.l.b16 %v658
      %v1209 = vunpack.c.h.b16 %v658
      %v1210 = vunpack.c.l.b16 %v659
      %v1211 = vunpack.c.h.b16 %v659
      %v1212 = vunpack.c.l.b16 %v660
      %v1213 = vunpack.c.h.b16 %v660
      %v1214 = vunpack.c.l.b16 %v661
      %v1215 = vunpack.c.h.b16 %v661
      %v1216 = vunpack.c.l.b16 %v662
      %v1217 = vunpack.c.h.b16 %v662
      %v1218 = vunpack.c.l.b16 %v663
      %v1219 = vunpack.c.h.b16 %v663
      %v1220 = vunpack.c.l.b16 %v664
      %v1221 = vunpack.c.h.b16 %v664
      %v1222 = vunpack.c.l.b16 %v665
      %v1223 = vunpack.c.h.b16 %v665
      %v1224 = vunpack.c.l.b16 %v666
      %v1225 = vunpack.c.h.b16 %v666
      %v1226 = vunpack.c.l.b16 %v667
      %v1227 = vunpack.c.h.b16 %v667
      %v1228 = vunpack.c.l.b16 %v668
      %v1229 = vunpack.c.h.b16 %v668
      %v1230 = vunpack.c.l.b16 %v669
      %v1231 = vunpack.c.h.b16 %v669
      %v1232 = vunpack.c.l.b16 %v670
      %v1233 = vunpack.c.h.b16 %v670
      %v1234 = vunpack.c.l.b16 %v671
      %v1235 = vunpack.c.h.b16 %v671
      %v1236 = vunpack.c.l.b16 %v672
      %v1237 = vunpack.c.h.b16 %v672
      %v1238 = vunpack.c.l.b16 %v673
      %v1239 = vunpack.c.h.b16 %v673
      %v1240 = vunpack.c.l.b16 %v674
      %v1241 = vunpack.c.h.b16 %v674
      %v1242 = vunpack.c.l.b16 %v675
      %v1243 = vunpack.c.h.b16 %v675
      %v1244 = vunpack.c.l.b16 %v676
      %v1245 = vunpack.c.h.b16 %v676
      %v1246 = vunpack.c.l.b16 %v677
      %v1247 = vunpack.c.h.b16 %v677
      %v1248 = vunpack.c.l.b16 %v678
      %v1249 = vunpack.c.h.b16 %v678
      %v1250 = vunpack.c.l.b16 %v679
      %v1251 = vunpack.c.h.b16 %v679
      %v1252 = vunpack.c.l.b16 %v680
      %v1253 = vunpack.c.h.b16 %v680
      %v1254 = vunpack.c.l.b16 %v681
      %v1255 = vunpack.c.h.b16 %v681
      %v1256 = vunpack.c.l.b16 %v682
      %v1257 = vunpack.c.h.b16 %v682
      %v1258 = vunpack.c.l.b16 %v683
      %v1259 = vunpack.c.h.b16 %v683
      %v1260 = vunpack.c.l.b16 %v684
      %v1261 = vunpack.c.h.b16 %v684
      %v1262 = vunpack.c.l.b16 %v685
      %v1263 = vunpack.c.h.b16 %v685
      %v1264 = vunpack.c.l.b16 %v686
      %v1265 = vunpack.c.h.b16 %v686
      %v1266 = vunpack.c.l.b16 %v687
      %v1267 = vunpack.c.h.b16 %v687
      %v1268 = vunpack.c.l.b16 %v688
      %v1269 = vunpack.c.h.b16 %v688
      %v1270 = vunpack.c.l.b16 %v689
      %v1271 = vunpack.c.h.b16 %v689
      %v1272 = vunpack.c.l.b16 %v690
      %v1273 = vunpack.c.h.b16 %v690
      %v1274 = vunpack.c.l.b16 %v691
      %v1275 = vunpack.c.h.b16 %v691
      %v1276 = vunpack.c.l.b16 %v692
      %v1277 = vunpack.c.h.b16 %v692
      %v1278 = vunpack.c.l.b16 %v693
      %v1279 = vunpack.c.h.b16 %v693
      %v1280 = vunpack.c.l.b16 %v694
      %v1281 = vunpack.c.h.b16 %v694
      %v1282 = vunpack.c.l.b16 %v695
      %v1283 = vunpack.c.h.b16 %v695
      %v1284 = vunpack.c.l.b16 %v696
      %v1285 = vunpack.c.h.b16 %v696
      %v1286 = vunpack.c.l.b16 %v697
      %v1287 = vunpack.c.h.b16 %v697
      %v1288 = vunpack.c.l.b16 %v698
      %v1289 = vunpack.c.h.b16 %v698
      %v1290 = vunpack.c.l.b16 %v699
      %v1291 = vunpack.c.h.b16 %v699
      %v1292 = vunpack.c.l.b16 %v700
      %v1293 = vunpack.c.h.b16 %v700
      %v1294 = vunpack.c.l.b16 %v701
      %v1295 = vunpack.c.h.b16 %v701
      %v1296 = vunpack.c.l.b16 %v702
      %v1297 = vunpack.c.h.b16 %v702
      %v1298 = vunpack.c.l.b16 %v703
      %v1299 = vunpack.c.h.b16 %v703
      %v1300 = vunpack.c.l.b16 %v704
      %v1301 = vunpack.c.h.b16 %v704
      %v1302 = vunpack.c.l.b16 %v705
      %v1303 = vunpack.c.h.b16 %v705
      %v1304 = vpack.c.b16 %v916, %v912
      %v1305 = vpack.c.b16 %v917, %v913
      %v1306 = vpack.c.b16 %v918, %v914
      %v1307 = vpack.c.b16 %v919, %v915
      %v1308 = vpack.c.b16 %v924, %v920
      %v1309 = vpack.c.b16 %v925, %v921
      %v1310 = vpack.c.b16 %v926, %v922
      %v1311 = vpack.c.b16 %v927, %v923
      %v1312 = vpack.c.b16 %v932, %v928
      %v1313 = vpack.c.b16 %v933, %v929
      %v1314 = vpack.c.b16 %v934, %v930
      %v1315 = vpack.c.b16 %v935, %v931
      %v1316 = vpack.c.b16 %v940, %v936
      %v1317 = vpack.c.b16 %v941, %v937
      %v1318 = vpack.c.b16 %v942, %v938
      %v1319 = vpack.c.b16 %v943, %v939
      %v1320 = vpack.c.b16 %v948, %v944
      %v1321 = vpack.c.b16 %v949, %v945
      %v1322 = vpack.c.b16 %v950, %v946
      %v1323 = vpack.c.b16 %v951, %v947
      %v1324 = vpack.c.b16 %v956, %v952
      %v1325 = vpack.c.b16 %v957, %v953
      %v1326 = vpack.c.b16 %v958, %v954
      %v1327 = vpack.c.b16 %v959, %v955
      %v1328 = vpack.c.b16 %v964, %v960
      %v1329 = vpack.c.b16 %v965, %v961
      %v1330 = vpack.c.b16 %v966, %v962
      %v1331 = vpack.c.b16 %v967, %v963
      %v1332 = vpack.c.b16 %v972, %v968
      %v1333 = vpack.c.b16 %v973, %v969
      %v1334 = vpack.c.b16 %v974, %v970
      %v1335 = vpack.c.b16 %v975, %v971
      %v1336 = vpack.c.b16 %v980, %v976
      %v1337 = vpack.c.b16 %v981, %v977
      %v1338 = vpack.c.b16 %v982, %v978
      %v1339 = vpack.c.b16 %v983, %v979
      %v1340 = vpack.c.b16 %v988, %v984
      %v1341 = vpack.c.b16 %v989, %v985
      %v1342 = vpack.c.b16 %v990, %v986
      %v1343 = vpack.c.b16 %v991, %v987
      %v1344 = vpack.c.b16 %v996, %v992
      %v1345 = vpack.c.b16 %v997, %v993
      %v1346 = vpack.c.b16 %v998, %v994
      %v1347 = vpack.c.b16 %v999, %v995
      %v1348 = vpack.c.b16 %v1004, %v1000
      %v1349 = vpack.c.b16 %v1005, %v1001
      %v1350 = vpack.c.b16 %v1006, %v1002
      %v1351 = vpack.c.b16 %v1007, %v1003
      %v1352 = vpack.c.b16 %v1012, %v1008
      %v1353 = vpack.c.b16 %v1013, %v1009
      %v1354 = vpack.c.b16 %v1014, %v1010
      %v1355 = vpack.c.b16 %v1015, %v1011
      %v1356 = vpack.c.b16 %v1020, %v1016
      %v1357 = vpack.c.b16 %v1021, %v1017
      %v1358 = vpack.c.b16 %v1022, %v1018
      %v1359 = vpack.c.b16 %v1023, %v1019
      %v1360 = vpack.c.b16 %v1028, %v1024
      %v1361 = vpack.c.b16 %v1029, %v1025
      %v1362 = vpack.c.b16 %v1030, %v1026
      %v1363 = vpack.c.b16 %v1031, %v1027
      %v1364 = vpack.c.b16 %v1036, %v1032
      %v1365 = vpack.c.b16 %v1037, %v1033
      %v1366 = vpack.c.b16 %v1038, %v1034
      %v1367 = vpack.c.b16 %v1039, %v1035
      %v1368 = vpack.c.b16 %v1044, %v1040
      %v1369 = vpack.c.b16 %v1045, %v1041
      %v1370 = vpack.c.b16 %v1046, %v1042
      %v1371 = vpack.c.b16 %v1047, %v1043
      %v1372 = vpack.c.b16 %v1052, %v1048
      %v1373 = vpack.c.b16 %v1053, %v1049
      %v1374 = vpack.c.b16 %v1054, %v1050
      %v1375 = vpack.c.b16 %v1055, %v1051
      %v1376 = vpack.c.b16 %v1060, %v1056
      %v1377 = vpack.c.b16 %v1061, %v1057
      %v1378 = vpack.c.b16 %v1062, %v1058
      %v1379 = vpack.c.b16 %v1063, %v1059
      %v1380 = vpack.c.b16 %v1068, %v1064
      %v1381 = vpack.c.b16 %v1069, %v1065
      %v1382 = vpack.c.b16 %v1070, %v1066
      %v1383 = vpack.c.b16 %v1071, %v1067
      %v1384 = vpack.c.b16 %v1076, %v1072
      %v1385 = vpack.c.b16 %v1077, %v1073
      %v1386 = vpack.c.b16 %v1078, %v1074
      %v1387 = vpack.c.b16 %v1079, %v1075
      %v1388 = vpack.c.b16 %v1084, %v1080
      %v1389 = vpack.c.b16 %v1085, %v1081
      %v1390 = vpack.c.b16 %v1086, %v1082
      %v1391 = vpack.c.b16 %v1087, %v1083
      %v1392 = vpack.c.b16 %v1092, %v1088
      %v1393 = vpack.c.b16 %v1093, %v1089
      %v1394 = vpack.c.b16 %v1094, %v1090
      %v1395 = vpack.c.b16 %v1095, %v1091
      %v1396 = vpack.c.b16 %v1100, %v1096
      %v1397 = vpack.c.b16 %v1101, %v1097
      %v1398 = vpack.c.b16 %v1102, %v1098
      %v1399 = vpack.c.b16 %v1103, %v1099
      %v1400 = vpack.c.b16 %v1108, %v1104
      %v1401 = vpack.c.b16 %v1109, %v1105
      %v1402 = vpack.c.b16 %v1110, %v1106
      %v1403 = vpack.c.b16 %v1111, %v1107
      %v1404 = vpack.c.b16 %v1116, %v1112
      %v1405 = vpack.c.b16 %v1117, %v1113
      %v1406 = vpack.c.b16 %v1118, %v1114
      %v1407 = vpack.c.b16 %v1119, %v1115
      %v1408 = vpack.c.b16 %v1124, %v1120
      %v1409 = vpack.c.b16 %v1125, %v1121
      %v1410 = vpack.c.b16 %v1126, %v1122
      %v1411 = vpack.c.b16 %v1127, %v1123
      %v1412 = vpack.c.b16 %v1132, %v1128
      %v1413 = vpack.c.b16 %v1133, %v1129
      %v1414 = vpack.c.b16 %v1134, %v1130
      %v1415 = vpack.c.b16 %v1135, %v1131
      %v1416 = vpack.c.b16 %v1140, %v1136
      %v1417 = vpack.c.b16 %v1141, %v1137
      %v1418 = vpack.c.b16 %v1142, %v1138
      %v1419 = vpack.c.b16 %v1143, %v1139
      %v1420 = vpack.c.b16 %v1148, %v1144
      %v1421 = vpack.c.b16 %v1149, %v1145
      %v1422 = vpack.c.b16 %v1150, %v1146
      %v1423 = vpack.c.b16 %v1151, %v1147
      %v1424 = vpack.c.b16 %v1156, %v1152
      %v1425 = vpack.c.b16 %v1157, %v1153
      %v1426 = vpack.c.b16 %v1158, %v1154
      %v1427 = vpack.c.b16 %v1159, %v1155
      %v1428 = vpack.c.b16 %v1164, %v1160
      %v1429 = vpack.c.b16 %v1165, %v1161
      %v1430 = vpack.c.b16 %v1166, %v1162
      %v1431 = vpack.c.b16 %v1167, %v1163
      %v1432 = vpack.c.b16 %v1172, %v1168
      %v1433 = vpack.c.b16 %v1173, %v1169
      %v1434 = vpack.c.b16 %v1174, %v1170
      %v1435 = vpack.c.b16 %v1175, %v1171
      %v1436 = vpack.c.b16 %v1180, %v1176
      %v1437 = vpack.c.b16 %v1181, %v1177
      %v1438 = vpack.c.b16 %v1182, %v1178
      %v1439 = vpack.c.b16 %v1183, %v1179
      %v1440 = vpack.c.b16 %v1188, %v1184
      %v1441 = vpack.c.b16 %v1189, %v1185
      %v1442 = vpack.c.b16 %v1190, %v1186
      %v1443 = vpack.c.b16 %v1191, %v1187
      %v1444 = vpack.c.b16 %v1196, %v1192
      %v1445 = vpack.c.b16 %v1197, %v1193
      %v1446 = vpack.c.b16 %v1198, %v1194
      %v1447 = vpack.c.b16 %v1199, %v1195
      %v1448 = vpack.c.b16 %v1204, %v1200
      %v1449 = vpack.c.b16 %v1205, %v1201
      %v1450 = vpack.c.b16 %v1206, %v1202
      %v1451 = vpack.c.b16 %v1207, %v1203
      %v1452 = vpack.c.b16 %v1212, %v1208
      %v1453 = vpack.c.b16 %v1213, %v1209
      %v1454 = vpack.c.b16 %v1214, %v1210
      %v1455 = vpack.c.b16 %v1215, %v1211
      %v1456 = vpack.c.b16 %v1220, %v1216
      %v1457 = vpack.c.b16 %v1221, %v1217
      %v1458 = vpack.c.b16 %v1222, %v1218
      %v1459 = vpack.c.b16 %v1223, %v1219
      %v1460 = vpack.c.b16 %v1228, %v1224
      %v1461 = vpack.c.b16 %v1229, %v1225
      %v1462 = vpack.c.b16 %v1230, %v1226
      %v1463 = vpack.c.b16 %v1231, %v1227
      %v1464 = vpack.c.b16 %v1236, %v1232
      %v1465 = vpack.c.b16 %v1237, %v1233
      %v1466 = vpack.c.b16 %v1238, %v1234
      %v1467 = vpack.c.b16 %v1239, %v1235
      %v1468 = vpack.c.b16 %v1244, %v1240
      %v1469 = vpack.c.b16 %v1245, %v1241
      %v1470 = vpack.c.b16 %v1246, %v1242
      %v1471 = vpack.c.b16 %v1247, %v1243
      %v1472 = vpack.c.b16 %v1252, %v1248
      %v1473 = vpack.c.b16 %v1253, %v1249
      %v1474 = vpack.c.b16 %v1254, %v1250
      %v1475 = vpack.c.b16 %v1255, %v1251
      %v1476 = vpack.c.b16 %v1260, %v1256
      %v1477 = vpack.c.b16 %v1261, %v1257
      %v1478 = vpack.c.b16 %v1262, %v1258
      %v1479 = vpack.c.b16 %v1263, %v1259
      %v1480 = vpack.c.b16 %v1268, %v1264
      %v1481 = vpack.c.b16 %v1269, %v1265
      %v1482 = vpack.c.b16 %v1270, %v1266
      %v1483 = vpack.c.b16 %v1271, %v1267
      %v1484 = vpack.c.b16 %v1276, %v1272
      %v1485 = vpack.c.b16 %v1277, %v1273
      %v1486 = vpack.c.b16 %v1278, %v1274
      %v1487 = vpack.c.b16 %v1279, %v1275
      %v1488 = vpack.c.b16 %v1284, %v1280
      %v1489 = vpack.c.b16 %v1285, %v1281
      %v1490 = vpack.c.b16 %v1286, %v1282
      %v1491 = vpack.c.b16 %v1287, %v1283
      %v1492 = vpack.c.b16 %v1292, %v1288
      %v1493 = vpack.c.b16 %v1293, %v1289
      %v1494 = vpack.c.b16 %v1294, %v1290
      %v1495 = vpack.c.b16 %v1295, %v1291
      %v1496 = vpack.c.b16 %v1300, %v1296
      %v1497 = vpack.c.b16 %v1301, %v1297
      %v1498 = vpack.c.b16 %v1302, %v1298
      %v1499 = vpack.c.b16 %v1303, %v1299
      %vm1696 = vcmask 130048
      %v1698 = vsel %vm1696, %v460, 0
      %v1701 = vsel %vm1696, %v467, 0
      %v1704 = vsel %vm1696, %v474, 0
      %v1707 = vsel %vm1696, %v481, 0
      %v1710 = vsel %vm1696, %v488, 0
      %v1713 = vsel %vm1696, %v495, 0
      %v1716 = vsel %vm1696, %v502, 0
      %v1719 = vsel %vm1696, %v509, 0
      %1721 = vmatpush.bf16.msra.mxu0 %v1332
      %1722 = vmatpush.bf16.msra.mxu0 %v1328
      %1723 = vmatpush.bf16.msra.mxu0 %v1324
      %1724 = vmatpush.bf16.msra.mxu0 %v1320
      %1725 = vmatpush.bf16.msra.mxu0 %v1316
      %1726 = vmatpush.bf16.msra.mxu0 %v1312
      %1727 = vmatpush.bf16.msra.mxu0 %v1308
      %1728 = vmatpush.bf16.msra.mxu0 %v1304
      %1729 = vmatmul.bf16.gmra.mxu0 %v454
      %v1730 = vpop.f32.mrf.mxu0
      %v1731 = vadd.f32 %v708, %v1730
      %v1732 = vpop.f32.mrf.mxu0
      %v1733 = vadd.f32 %v708, %v1732
      %1734 = vmatmul.bf16.gmra.mxu0 %v461
      %v1735 = vpop.f32.mrf.mxu0
      %v1736 = vadd.f32 %v708, %v1735
      %v1737 = vpop.f32.mrf.mxu0
      %v1738 = vadd.f32 %v708, %v1737
      %1739 = vmatmul.bf16.gmra.mxu0 %v468
      %v1740 = vpop.f32.mrf.mxu0
      %v1741 = vadd.f32 %v708, %v1740
      %v1742 = vpop.f32.mrf.mxu0
      %v1743 = vadd.f32 %v708, %v1742
      %1744 = vmatmul.bf16.gmra.mxu0 %v475
      %v1745 = vpop.f32.mrf.mxu0
      %v1746 = vadd.f32 %v708, %v1745
      %v1747 = vpop.f32.mrf.mxu0
      %v1748 = vadd.f32 %v708, %v1747
      %1749 = vmatmul.bf16.gmra.mxu0 %v482
      %v1750 = vpop.f32.mrf.mxu0
      %v1751 = vadd.f32 %v708, %v1750
      %v1752 = vpop.f32.mrf.mxu0
      %v1753 = vadd.f32 %v708, %v1752
      %1754 = vmatmul.bf16.gmra.mxu0 %v489
      %v1755 = vpop.f32.mrf.mxu0
      %v1756 = vadd.f32 %v708, %v1755
      %v1757 = vpop.f32.mrf.mxu0
      %v1758 = vadd.f32 %v708, %v1757
      %1759 = vmatmul.bf16.gmra.mxu0 %v496
      %v1760 = vpop.f32.mrf.mxu0
      %v1761 = vadd.f32 %v708, %v1760
      %v1762 = vpop.f32.mrf.mxu0
      %v1763 = vadd.f32 %v708, %v1762
      %1764 = vmatmul.bf16.gmra.mxu0 %v503
      %v1765 = vpop.f32.mrf.mxu0
      %v1766 = vadd.f32 %v708, %v1765
      %v1767 = vpop.f32.mrf.mxu0
      %v1768 = vadd.f32 %v708, %v1767
      %1769 = vdwg.mxu0
      %1770 = vmatpush.bf16.msra.mxu0 %v1364
      %1771 = vmatpush.bf16.msra.mxu0 %v1360
      %1772 = vmatpush.bf16.msra.mxu0 %v1356
      %1773 = vmatpush.bf16.msra.mxu0 %v1352
      %1774 = vmatpush.bf16.msra.mxu0 %v1348
      %1775 = vmatpush.bf16.msra.mxu0 %v1344
      %1776 = vmatpush.bf16.msra.mxu0 %v1340
      %1777 = vmatpush.bf16.msra.mxu0 %v1336
      %1778 = vmatmul.bf16.gmra.mxu0 %v455
      %v1779 = vpop.f32.mrf.mxu0
      %v1780 = vadd.f32 %v1731, %v1779
      %v1781 = vpop.f32.mrf.mxu0
      %v1782 = vadd.f32 %v1733, %v1781
      %1783 = vmatmul.bf16.gmra.mxu0 %v462
      %v1784 = vpop.f32.mrf.mxu0
      %v1785 = vadd.f32 %v1736, %v1784
      %v1786 = vpop.f32.mrf.mxu0
      %v1787 = vadd.f32 %v1738, %v1786
      %1788 = vmatmul.bf16.gmra.mxu0 %v469
      %v1789 = vpop.f32.mrf.mxu0
      %v1790 = vadd.f32 %v1741, %v1789
      %v1791 = vpop.f32.mrf.mxu0
      %v1792 = vadd.f32 %v1743, %v1791
      %1793 = vmatmul.bf16.gmra.mxu0 %v476
      %v1794 = vpop.f32.mrf.mxu0
      %v1795 = vadd.f32 %v1746, %v1794
      %v1796 = vpop.f32.mrf.mxu0
      %v1797 = vadd.f32 %v1748, %v1796
      %1798 = vmatmul.bf16.gmra.mxu0 %v483
      %v1799 = vpop.f32.mrf.mxu0
      %v1800 = vadd.f32 %v1751, %v1799
      %v1801 = vpop.f32.mrf.mxu0
      %v1802 = vadd.f32 %v1753, %v1801
      %1803 = vmatmul.bf16.gmra.mxu0 %v490
      %v1804 = vpop.f32.mrf.mxu0
      %v1805 = vadd.f32 %v1756, %v1804
      %v1806 = vpop.f32.mrf.mxu0
      %v1807 = vadd.f32 %v1758, %v1806
      %1808 = vmatmul.bf16.gmra.mxu0 %v497
      %v1809 = vpop.f32.mrf.mxu0
      %v1810 = vadd.f32 %v1761, %v1809
      %v1811 = vpop.f32.mrf.mxu0
      %v1812 = vadd.f32 %v1763, %v1811
      %1813 = vmatmul.bf16.gmra.mxu0 %v504
      %v1814 = vpop.f32.mrf.mxu0
      %v1815 = vadd.f32 %v1766, %v1814
      %v1816 = vpop.f32.mrf.mxu0
      %v1817 = vadd.f32 %v1768, %v1816
      %1818 = vdwg.mxu0
      %1819 = vmatpush.bf16.msra.mxu0 %v1396
      %1820 = vmatpush.bf16.msra.mxu0 %v1392
      %1821 = vmatpush.bf16.msra.mxu0 %v1388
      %1822 = vmatpush.bf16.msra.mxu0 %v1384
      %1823 = vmatpush.bf16.msra.mxu0 %v1380
      %1824 = vmatpush.bf16.msra.mxu0 %v1376
      %1825 = vmatpush.bf16.msra.mxu0 %v1372
      %1826 = vmatpush.bf16.msra.mxu0 %v1368
      %1827 = vmatmul.bf16.gmra.mxu0 %v456
      %v1828 = vpop.f32.mrf.mxu0
      %v1829 = vadd.f32 %v1780, %v1828
      %v1830 = vpop.f32.mrf.mxu0
      %v1831 = vadd.f32 %v1782, %v1830
      %1832 = vmatmul.bf16.gmra.mxu0 %v463
      %v1833 = vpop.f32.mrf.mxu0
      %v1834 = vadd.f32 %v1785, %v1833
      %v1835 = vpop.f32.mrf.mxu0
      %v1836 = vadd.f32 %v1787, %v1835
      %1837 = vmatmul.bf16.gmra.mxu0 %v470
      %v1838 = vpop.f32.mrf.mxu0
      %v1839 = vadd.f32 %v1790, %v1838
      %v1840 = vpop.f32.mrf.mxu0
      %v1841 = vadd.f32 %v1792, %v1840
      %1842 = vmatmul.bf16.gmra.mxu0 %v477
      %v1843 = vpop.f32.mrf.mxu0
      %v1844 = vadd.f32 %v1795, %v1843
      %v1845 = vpop.f32.mrf.mxu0
      %v1846 = vadd.f32 %v1797, %v1845
      %1847 = vmatmul.bf16.gmra.mxu0 %v484
      %v1848 = vpop.f32.mrf.mxu0
      %v1849 = vadd.f32 %v1800, %v1848
      %v1850 = vpop.f32.mrf.mxu0
      %v1851 = vadd.f32 %v1802, %v1850
      %1852 = vmatmul.bf16.gmra.mxu0 %v491
      %v1853 = vpop.f32.mrf.mxu0
      %v1854 = vadd.f32 %v1805, %v1853
      %v1855 = vpop.f32.mrf.mxu0
      %v1856 = vadd.f32 %v1807, %v1855
      %1857 = vmatmul.bf16.gmra.mxu0 %v498
      %v1858 = vpop.f32.mrf.mxu0
      %v1859 = vadd.f32 %v1810, %v1858
      %v1860 = vpop.f32.mrf.mxu0
      %v1861 = vadd.f32 %v1812, %v1860
      %1862 = vmatmul.bf16.gmra.mxu0 %v505
      %v1863 = vpop.f32.mrf.mxu0
      %v1864 = vadd.f32 %v1815, %v1863
      %v1865 = vpop.f32.mrf.mxu0
      %v1866 = vadd.f32 %v1817, %v1865
      %1867 = vdwg.mxu0
      %1868 = vmatpush.bf16.msra.mxu0 %v1428
      %1869 = vmatpush.bf16.msra.mxu0 %v1424
      %1870 = vmatpush.bf16.msra.mxu0 %v1420
      %1871 = vmatpush.bf16.msra.mxu0 %v1416
      %1872 = vmatpush.bf16.msra.mxu0 %v1412
      %1873 = vmatpush.bf16.msra.mxu0 %v1408
      %1874 = vmatpush.bf16.msra.mxu0 %v1404
      %1875 = vmatpush.bf16.msra.mxu0 %v1400
      %1876 = vmatmul.bf16.gmra.mxu0 %v457
      %v1877 = vpop.f32.mrf.mxu0
      %v1878 = vadd.f32 %v1829, %v1877
      %v1879 = vpop.f32.mrf.mxu0
      %v1880 = vadd.f32 %v1831, %v1879
      %1881 = vmatmul.bf16.gmra.mxu0 %v464
      %v1882 = vpop.f32.mrf.mxu0
      %v1883 = vadd.f32 %v1834, %v1882
      %v1884 = vpop.f32.mrf.mxu0
      %v1885 = vadd.f32 %v1836, %v1884
      %1886 = vmatmul.bf16.gmra.mxu0 %v471
      %v1887 = vpop.f32.mrf.mxu0
      %v1888 = vadd.f32 %v1839, %v1887
      %v1889 = vpop.f32.mrf.mxu0
      %v1890 = vadd.f32 %v1841, %v1889
      %1891 = vmatmul.bf16.gmra.mxu0 %v478
      %v1892 = vpop.f32.mrf.mxu0
      %v1893 = vadd.f32 %v1844, %v1892
      %v1894 = vpop.f32.mrf.mxu0
      %v1895 = vadd.f32 %v1846, %v1894
      %1896 = vmatmul.bf16.gmra.mxu0 %v485
      %v1897 = vpop.f32.mrf.mxu0
      %v1898 = vadd.f32 %v1849, %v1897
      %v1899 = vpop.f32.mrf.mxu0
      %v1900 = vadd.f32 %v1851, %v1899
      %1901 = vmatmul.bf16.gmra.mxu0 %v492
      %v1902 = vpop.f32.mrf.mxu0
      %v1903 = vadd.f32 %v1854, %v1902
      %v1904 = vpop.f32.mrf.mxu0
      %v1905 = vadd.f32 %v1856, %v1904
      %1906 = vmatmul.bf16.gmra.mxu0 %v499
      %v1907 = vpop.f32.mrf.mxu0
      %v1908 = vadd.f32 %v1859, %v1907
      %v1909 = vpop.f32.mrf.mxu0
      %v1910 = vadd.f32 %v1861, %v1909
      %1911 = vmatmul.bf16.gmra.mxu0 %v506
      %v1912 = vpop.f32.mrf.mxu0
      %v1913 = vadd.f32 %v1864, %v1912
      %v1914 = vpop.f32.mrf.mxu0
      %v1915 = vadd.f32 %v1866, %v1914
      %1916 = vdwg.mxu0
      %1917 = vmatpush.bf16.msra.mxu0 %v1460
      %1918 = vmatpush.bf16.msra.mxu0 %v1456
      %1919 = vmatpush.bf16.msra.mxu0 %v1452
      %1920 = vmatpush.bf16.msra.mxu0 %v1448
      %1921 = vmatpush.bf16.msra.mxu0 %v1444
      %1922 = vmatpush.bf16.msra.mxu0 %v1440
      %1923 = vmatpush.bf16.msra.mxu0 %v1436
      %1924 = vmatpush.bf16.msra.mxu0 %v1432
      %1925 = vmatmul.bf16.gmra.mxu0 %v458
      %v1926 = vpop.f32.mrf.mxu0
      %v1927 = vadd.f32 %v1878, %v1926
      %v1928 = vpop.f32.mrf.mxu0
      %v1929 = vadd.f32 %v1880, %v1928
      %1930 = vmatmul.bf16.gmra.mxu0 %v465
      %v1931 = vpop.f32.mrf.mxu0
      %v1932 = vadd.f32 %v1883, %v1931
      %v1933 = vpop.f32.mrf.mxu0
      %v1934 = vadd.f32 %v1885, %v1933
      %1935 = vmatmul.bf16.gmra.mxu0 %v472
      %v1936 = vpop.f32.mrf.mxu0
      %v1937 = vadd.f32 %v1888, %v1936
      %v1938 = vpop.f32.mrf.mxu0
      %v1939 = vadd.f32 %v1890, %v1938
      %1940 = vmatmul.bf16.gmra.mxu0 %v479
      %v1941 = vpop.f32.mrf.mxu0
      %v1942 = vadd.f32 %v1893, %v1941
      %v1943 = vpop.f32.mrf.mxu0
      %v1944 = vadd.f32 %v1895, %v1943
      %1945 = vmatmul.bf16.gmra.mxu0 %v486
      %v1946 = vpop.f32.mrf.mxu0
      %v1947 = vadd.f32 %v1898, %v1946
      %v1948 = vpop.f32.mrf.mxu0
      %v1949 = vadd.f32 %v1900, %v1948
      %1950 = vmatmul.bf16.gmra.mxu0 %v493
      %v1951 = vpop.f32.mrf.mxu0
      %v1952 = vadd.f32 %v1903, %v1951
      %v1953 = vpop.f32.mrf.mxu0
      %v1954 = vadd.f32 %v1905, %v1953
      %1955 = vmatmul.bf16.gmra.mxu0 %v500
      %v1956 = vpop.f32.mrf.mxu0
      %v1957 = vadd.f32 %v1908, %v1956
      %v1958 = vpop.f32.mrf.mxu0
      %v1959 = vadd.f32 %v1910, %v1958
      %1960 = vmatmul.bf16.gmra.mxu0 %v507
      %v1961 = vpop.f32.mrf.mxu0
      %v1962 = vadd.f32 %v1913, %v1961
      %v1963 = vpop.f32.mrf.mxu0
      %v1964 = vadd.f32 %v1915, %v1963
      %1965 = vdwg.mxu0
      %1966 = vmatpush.bf16.msra.mxu0 %v1492
      %1967 = vmatpush.bf16.msra.mxu0 %v1488
      %1968 = vmatpush.bf16.msra.mxu0 %v1484
      %1969 = vmatpush.bf16.msra.mxu0 %v1480
      %1970 = vmatpush.bf16.msra.mxu0 %v1476
      %1971 = vmatpush.bf16.msra.mxu0 %v1472
      %1972 = vmatpush.bf16.msra.mxu0 %v1468
      %1973 = vmatpush.bf16.msra.mxu0 %v1464
      %1974 = vmatmul.bf16.gmra.mxu0 %v459
      %v1975 = vpop.f32.mrf.mxu0
      %v1976 = vadd.f32 %v1927, %v1975
      %v1977 = vpop.f32.mrf.mxu0
      %v1978 = vadd.f32 %v1929, %v1977
      %1979 = vmatmul.bf16.gmra.mxu0 %v466
      %v1980 = vpop.f32.mrf.mxu0
      %v1981 = vadd.f32 %v1932, %v1980
      %v1982 = vpop.f32.mrf.mxu0
      %v1983 = vadd.f32 %v1934, %v1982
      %1984 = vmatmul.bf16.gmra.mxu0 %v473
      %v1985 = vpop.f32.mrf.mxu0
      %v1986 = vadd.f32 %v1937, %v1985
      %v1987 = vpop.f32.mrf.mxu0
      %v1988 = vadd.f32 %v1939, %v1987
      %1989 = vmatmul.bf16.gmra.mxu0 %v480
      %v1990 = vpop.f32.mrf.mxu0
      %v1991 = vadd.f32 %v1942, %v1990
      %v1992 = vpop.f32.mrf.mxu0
      %v1993 = vadd.f32 %v1944, %v1992
      %1994 = vmatmul.bf16.gmra.mxu0 %v487
      %v1995 = vpop.f32.mrf.mxu0
      %v1996 = vadd.f32 %v1947, %v1995
      %v1997 = vpop.f32.mrf.mxu0
      %v1998 = vadd.f32 %v1949, %v1997
      %1999 = vmatmul.bf16.gmra.mxu0 %v494
      %v2000 = vpop.f32.mrf.mxu0
      %v2001 = vadd.f32 %v1952, %v2000
      %v2002 = vpop.f32.mrf.mxu0
      %v2003 = vadd.f32 %v1954, %v2002
      %2004 = vmatmul.bf16.gmra.mxu0 %v501
      %v2005 = vpop.f32.mrf.mxu0
      %v2006 = vadd.f32 %v1957, %v2005
      %v2007 = vpop.f32.mrf.mxu0
      %v2008 = vadd.f32 %v1959, %v2007
      %2009 = vmatmul.bf16.gmra.mxu0 %v508
      %v2010 = vpop.f32.mrf.mxu0
      %v2011 = vadd.f32 %v1962, %v2010
      %v2012 = vpop.f32.mrf.mxu0
      %v2013 = vadd.f32 %v1964, %v2012
      %2014 = vdwg.mxu0
      %2015 = vmatpush.bf16.msra.mxu0 0
      %2016 = vmatpush.bf16.msra.mxu0 0
      %2017 = vmatpush.bf16.msra.mxu0 0
      %2018 = vmatpush.bf16.msra.mxu0 0
      %2019 = vmatpush.bf16.msra.mxu0 0
      %2020 = vmatpush.bf16.msra.mxu0 0
      %2021 = vmatpush.bf16.msra.mxu0 0
      %2022 = vmatpush.bf16.msra.mxu0 %v1496
      %2023 = vmatmul.bf16.gmra.mxu0 %v1698
      %v2024 = vpop.f32.mrf.mxu0
      %v2025 = vadd.f32 %v1976, %v2024
      %v2026 = vpop.f32.mrf.mxu0
      %v2027 = vadd.f32 %v1978, %v2026
      %2028 = vmatmul.bf16.gmra.mxu0 %v1701
      %v2029 = vpop.f32.mrf.mxu0
      %v2030 = vadd.f32 %v1981, %v2029
      %v2031 = vpop.f32.mrf.mxu0
      %v2032 = vadd.f32 %v1983, %v2031
      %2033 = vmatmul.bf16.gmra.mxu0 %v1704
      %v2034 = vpop.f32.mrf.mxu0
      %v2035 = vadd.f32 %v1986, %v2034
      %v2036 = vpop.f32.mrf.mxu0
      %v2037 = vadd.f32 %v1988, %v2036
      %2038 = vmatmul.bf16.gmra.mxu0 %v1707
      %v2039 = vpop.f32.mrf.mxu0
      %v2040 = vadd.f32 %v1991, %v2039
      %v2041 = vpop.f32.mrf.mxu0
      %v2042 = vadd.f32 %v1993, %v2041
      %2043 = vmatmul.bf16.gmra.mxu0 %v1710
      %v2044 = vpop.f32.mrf.mxu0
      %v2045 = vadd.f32 %v1996, %v2044
      %v2046 = vpop.f32.mrf.mxu0
      %v2047 = vadd.f32 %v1998, %v2046
      %2048 = vmatmul.bf16.gmra.mxu0 %v1713
      %v2049 = vpop.f32.mrf.mxu0
      %v2050 = vadd.f32 %v2001, %v2049
      %v2051 = vpop.f32.mrf.mxu0
      %v2052 = vadd.f32 %v2003, %v2051
      %2053 = vmatmul.bf16.gmra.mxu0 %v1716
      %v2054 = vpop.f32.mrf.mxu0
      %v2055 = vadd.f32 %v2006, %v2054
      %v2056 = vpop.f32.mrf.mxu0
      %v2057 = vadd.f32 %v2008, %v2056
      %2058 = vmatmul.bf16.gmra.mxu0 %v1719
      %v2059 = vpop.f32.mrf.mxu0
      %v2060 = vadd.f32 %v2011, %v2059
      %v2061 = vpop.f32.mrf.mxu0
      %v2062 = vadd.f32 %v2013, %v2061
      %2063 = vdwg.mxu0
      %2064 = vmatpush.bf16.msra.mxu0 %v1333
      %2065 = vmatpush.bf16.msra.mxu0 %v1329
      %2066 = vmatpush.bf16.msra.mxu0 %v1325
      %2067 = vmatpush.bf16.msra.mxu0 %v1321
      %2068 = vmatpush.bf16.msra.mxu0 %v1317
      %2069 = vmatpush.bf16.msra.mxu0 %v1313
      %2070 = vmatpush.bf16.msra.mxu0 %v1309
      %2071 = vmatpush.bf16.msra.mxu0 %v1305
      %2072 = vmatmul.bf16.gmra.mxu0 %v454
      %v2073 = vpop.f32.mrf.mxu0
      %v2074 = vadd.f32 %v709, %v2073
      %v2075 = vpop.f32.mrf.mxu0
      %v2076 = vadd.f32 %v709, %v2075
      %2077 = vmatmul.bf16.gmra.mxu0 %v461
      %v2078 = vpop.f32.mrf.mxu0
      %v2079 = vadd.f32 %v709, %v2078
      %v2080 = vpop.f32.mrf.mxu0
      %v2081 = vadd.f32 %v709, %v2080
      %2082 = vmatmul.bf16.gmra.mxu0 %v468
      %v2083 = vpop.f32.mrf.mxu0
      %v2084 = vadd.f32 %v709, %v2083
      %v2085 = vpop.f32.mrf.mxu0
      %v2086 = vadd.f32 %v709, %v2085
      %2087 = vmatmul.bf16.gmra.mxu0 %v475
      %v2088 = vpop.f32.mrf.mxu0
      %v2089 = vadd.f32 %v709, %v2088
      %v2090 = vpop.f32.mrf.mxu0
      %v2091 = vadd.f32 %v709, %v2090
      %2092 = vmatmul.bf16.gmra.mxu0 %v482
      %v2093 = vpop.f32.mrf.mxu0
      %v2094 = vadd.f32 %v709, %v2093
      %v2095 = vpop.f32.mrf.mxu0
      %v2096 = vadd.f32 %v709, %v2095
      %2097 = vmatmul.bf16.gmra.mxu0 %v489
      %v2098 = vpop.f32.mrf.mxu0
      %v2099 = vadd.f32 %v709, %v2098
      %v2100 = vpop.f32.mrf.mxu0
      %v2101 = vadd.f32 %v709, %v2100
      %2102 = vmatmul.bf16.gmra.mxu0 %v496
      %v2103 = vpop.f32.mrf.mxu0
      %v2104 = vadd.f32 %v709, %v2103
      %v2105 = vpop.f32.mrf.mxu0
      %v2106 = vadd.f32 %v709, %v2105
      %2107 = vmatmul.bf16.gmra.mxu0 %v503
      %v2108 = vpop.f32.mrf.mxu0
      %v2109 = vadd.f32 %v709, %v2108
      %v2110 = vpop.f32.mrf.mxu0
      %v2111 = vadd.f32 %v709, %v2110
      %2112 = vdwg.mxu0
      %2113 = vmatpush.bf16.msra.mxu0 %v1365
      %2114 = vmatpush.bf16.msra.mxu0 %v1361
      %2115 = vmatpush.bf16.msra.mxu0 %v1357
      %2116 = vmatpush.bf16.msra.mxu0 %v1353
      %2117 = vmatpush.bf16.msra.mxu0 %v1349
      %2118 = vmatpush.bf16.msra.mxu0 %v1345
      %2119 = vmatpush.bf16.msra.mxu0 %v1341
      %2120 = vmatpush.bf16.msra.mxu0 %v1337
      %2121 = vmatmul.bf16.gmra.mxu0 %v455
      %v2122 = vpop.f32.mrf.mxu0
      %v2123 = vadd.f32 %v2074, %v2122
      %v2124 = vpop.f32.mrf.mxu0
      %v2125 = vadd.f32 %v2076, %v2124
      %2126 = vmatmul.bf16.gmra.mxu0 %v462
      %v2127 = vpop.f32.mrf.mxu0
      %v2128 = vadd.f32 %v2079, %v2127
      %v2129 = vpop.f32.mrf.mxu0
      %v2130 = vadd.f32 %v2081, %v2129
      %2131 = vmatmul.bf16.gmra.mxu0 %v469
      %v2132 = vpop.f32.mrf.mxu0
      %v2133 = vadd.f32 %v2084, %v2132
      %v2134 = vpop.f32.mrf.mxu0
      %v2135 = vadd.f32 %v2086, %v2134
      %2136 = vmatmul.bf16.gmra.mxu0 %v476
      %v2137 = vpop.f32.mrf.mxu0
      %v2138 = vadd.f32 %v2089, %v2137
      %v2139 = vpop.f32.mrf.mxu0
      %v2140 = vadd.f32 %v2091, %v2139
      %2141 = vmatmul.bf16.gmra.mxu0 %v483
      %v2142 = vpop.f32.mrf.mxu0
      %v2143 = vadd.f32 %v2094, %v2142
      %v2144 = vpop.f32.mrf.mxu0
      %v2145 = vadd.f32 %v2096, %v2144
      %2146 = vmatmul.bf16.gmra.mxu0 %v490
      %v2147 = vpop.f32.mrf.mxu0
      %v2148 = vadd.f32 %v2099, %v2147
      %v2149 = vpop.f32.mrf.mxu0
      %v2150 = vadd.f32 %v2101, %v2149
      %2151 = vmatmul.bf16.gmra.mxu0 %v497
      %v2152 = vpop.f32.mrf.mxu0
      %v2153 = vadd.f32 %v2104, %v2152
      %v2154 = vpop.f32.mrf.mxu0
      %v2155 = vadd.f32 %v2106, %v2154
      %2156 = vmatmul.bf16.gmra.mxu0 %v504
      %v2157 = vpop.f32.mrf.mxu0
      %v2158 = vadd.f32 %v2109, %v2157
      %v2159 = vpop.f32.mrf.mxu0
      %v2160 = vadd.f32 %v2111, %v2159
      %2161 = vdwg.mxu0
      %2162 = vmatpush.bf16.msra.mxu0 %v1397
      %2163 = vmatpush.bf16.msra.mxu0 %v1393
      %2164 = vmatpush.bf16.msra.mxu0 %v1389
      %2165 = vmatpush.bf16.msra.mxu0 %v1385
      %2166 = vmatpush.bf16.msra.mxu0 %v1381
      %2167 = vmatpush.bf16.msra.mxu0 %v1377
      %2168 = vmatpush.bf16.msra.mxu0 %v1373
      %2169 = vmatpush.bf16.msra.mxu0 %v1369
      %2170 = vmatmul.bf16.gmra.mxu0 %v456
      %v2171 = vpop.f32.mrf.mxu0
      %v2172 = vadd.f32 %v2123, %v2171
      %v2173 = vpop.f32.mrf.mxu0
      %v2174 = vadd.f32 %v2125, %v2173
      %2175 = vmatmul.bf16.gmra.mxu0 %v463
      %v2176 = vpop.f32.mrf.mxu0
      %v2177 = vadd.f32 %v2128, %v2176
      %v2178 = vpop.f32.mrf.mxu0
      %v2179 = vadd.f32 %v2130, %v2178
      %2180 = vmatmul.bf16.gmra.mxu0 %v470
      %v2181 = vpop.f32.mrf.mxu0
      %v2182 = vadd.f32 %v2133, %v2181
      %v2183 = vpop.f32.mrf.mxu0
      %v2184 = vadd.f32 %v2135, %v2183
      %2185 = vmatmul.bf16.gmra.mxu0 %v477
      %v2186 = vpop.f32.mrf.mxu0
      %v2187 = vadd.f32 %v2138, %v2186
      %v2188 = vpop.f32.mrf.mxu0
      %v2189 = vadd.f32 %v2140, %v2188
      %2190 = vmatmul.bf16.gmra.mxu0 %v484
      %v2191 = vpop.f32.mrf.mxu0
      %v2192 = vadd.f32 %v2143, %v2191
      %v2193 = vpop.f32.mrf.mxu0
      %v2194 = vadd.f32 %v2145, %v2193
      %2195 = vmatmul.bf16.gmra.mxu0 %v491
      %v2196 = vpop.f32.mrf.mxu0
      %v2197 = vadd.f32 %v2148, %v2196
      %v2198 = vpop.f32.mrf.mxu0
      %v2199 = vadd.f32 %v2150, %v2198
      %2200 = vmatmul.bf16.gmra.mxu0 %v498
      %v2201 = vpop.f32.mrf.mxu0
      %v2202 = vadd.f32 %v2153, %v2201
      %v2203 = vpop.f32.mrf.mxu0
      %v2204 = vadd.f32 %v2155, %v2203
      %2205 = vmatmul.bf16.gmra.mxu0 %v505
      %v2206 = vpop.f32.mrf.mxu0
      %v2207 = vadd.f32 %v2158, %v2206
      %v2208 = vpop.f32.mrf.mxu0
      %v2209 = vadd.f32 %v2160, %v2208
      %2210 = vdwg.mxu0
      %2211 = vmatpush.bf16.msra.mxu0 %v1429
      %2212 = vmatpush.bf16.msra.mxu0 %v1425
      %2213 = vmatpush.bf16.msra.mxu0 %v1421
      %2214 = vmatpush.bf16.msra.mxu0 %v1417
      %2215 = vmatpush.bf16.msra.mxu0 %v1413
      %2216 = vmatpush.bf16.msra.mxu0 %v1409
      %2217 = vmatpush.bf16.msra.mxu0 %v1405
      %2218 = vmatpush.bf16.msra.mxu0 %v1401
      %2219 = vmatmul.bf16.gmra.mxu0 %v457
      %v2220 = vpop.f32.mrf.mxu0
      %v2221 = vadd.f32 %v2172, %v2220
      %v2222 = vpop.f32.mrf.mxu0
      %v2223 = vadd.f32 %v2174, %v2222
      %2224 = vmatmul.bf16.gmra.mxu0 %v464
      %v2225 = vpop.f32.mrf.mxu0
      %v2226 = vadd.f32 %v2177, %v2225
      %v2227 = vpop.f32.mrf.mxu0
      %v2228 = vadd.f32 %v2179, %v2227
      %2229 = vmatmul.bf16.gmra.mxu0 %v471
      %v2230 = vpop.f32.mrf.mxu0
      %v2231 = vadd.f32 %v2182, %v2230
      %v2232 = vpop.f32.mrf.mxu0
      %v2233 = vadd.f32 %v2184, %v2232
      %2234 = vmatmul.bf16.gmra.mxu0 %v478
      %v2235 = vpop.f32.mrf.mxu0
      %v2236 = vadd.f32 %v2187, %v2235
      %v2237 = vpop.f32.mrf.mxu0
      %v2238 = vadd.f32 %v2189, %v2237
      %2239 = vmatmul.bf16.gmra.mxu0 %v485
      %v2240 = vpop.f32.mrf.mxu0
      %v2241 = vadd.f32 %v2192, %v2240
      %v2242 = vpop.f32.mrf.mxu0
      %v2243 = vadd.f32 %v2194, %v2242
      %2244 = vmatmul.bf16.gmra.mxu0 %v492
      %v2245 = vpop.f32.mrf.mxu0
      %v2246 = vadd.f32 %v2197, %v2245
      %v2247 = vpop.f32.mrf.mxu0
      %v2248 = vadd.f32 %v2199, %v2247
      %2249 = vmatmul.bf16.gmra.mxu0 %v499
      %v2250 = vpop.f32.mrf.mxu0
      %v2251 = vadd.f32 %v2202, %v2250
      %v2252 = vpop.f32.mrf.mxu0
      %v2253 = vadd.f32 %v2204, %v2252
      %2254 = vmatmul.bf16.gmra.mxu0 %v506
      %v2255 = vpop.f32.mrf.mxu0
      %v2256 = vadd.f32 %v2207, %v2255
      %v2257 = vpop.f32.mrf.mxu0
      %v2258 = vadd.f32 %v2209, %v2257
      %2259 = vdwg.mxu0
      %2260 = vmatpush.bf16.msra.mxu0 %v1461
      %2261 = vmatpush.bf16.msra.mxu0 %v1457
      %2262 = vmatpush.bf16.msra.mxu0 %v1453
      %2263 = vmatpush.bf16.msra.mxu0 %v1449
      %2264 = vmatpush.bf16.msra.mxu0 %v1445
      %2265 = vmatpush.bf16.msra.mxu0 %v1441
      %2266 = vmatpush.bf16.msra.mxu0 %v1437
      %2267 = vmatpush.bf16.msra.mxu0 %v1433
      %2268 = vmatmul.bf16.gmra.mxu0 %v458
      %v2269 = vpop.f32.mrf.mxu0
      %v2270 = vadd.f32 %v2221, %v2269
      %v2271 = vpop.f32.mrf.mxu0
      %v2272 = vadd.f32 %v2223, %v2271
      %2273 = vmatmul.bf16.gmra.mxu0 %v465
      %v2274 = vpop.f32.mrf.mxu0
      %v2275 = vadd.f32 %v2226, %v2274
      %v2276 = vpop.f32.mrf.mxu0
      %v2277 = vadd.f32 %v2228, %v2276
      %2278 = vmatmul.bf16.gmra.mxu0 %v472
      %v2279 = vpop.f32.mrf.mxu0
      %v2280 = vadd.f32 %v2231, %v2279
      %v2281 = vpop.f32.mrf.mxu0
      %v2282 = vadd.f32 %v2233, %v2281
      %2283 = vmatmul.bf16.gmra.mxu0 %v479
      %v2284 = vpop.f32.mrf.mxu0
      %v2285 = vadd.f32 %v2236, %v2284
      %v2286 = vpop.f32.mrf.mxu0
      %v2287 = vadd.f32 %v2238, %v2286
      %2288 = vmatmul.bf16.gmra.mxu0 %v486
      %v2289 = vpop.f32.mrf.mxu0
      %v2290 = vadd.f32 %v2241, %v2289
      %v2291 = vpop.f32.mrf.mxu0
      %v2292 = vadd.f32 %v2243, %v2291
      %2293 = vmatmul.bf16.gmra.mxu0 %v493
      %v2294 = vpop.f32.mrf.mxu0
      %v2295 = vadd.f32 %v2246, %v2294
      %v2296 = vpop.f32.mrf.mxu0
      %v2297 = vadd.f32 %v2248, %v2296
      %2298 = vmatmul.bf16.gmra.mxu0 %v500
      %v2299 = vpop.f32.mrf.mxu0
      %v2300 = vadd.f32 %v2251, %v2299
      %v2301 = vpop.f32.mrf.mxu0
      %v2302 = vadd.f32 %v2253, %v2301
      %2303 = vmatmul.bf16.gmra.mxu0 %v507
      %v2304 = vpop.f32.mrf.mxu0
      %v2305 = vadd.f32 %v2256, %v2304
      %v2306 = vpop.f32.mrf.mxu0
      %v2307 = vadd.f32 %v2258, %v2306
      %2308 = vdwg.mxu0
      %2309 = vmatpush.bf16.msra.mxu0 %v1493
      %2310 = vmatpush.bf16.msra.mxu0 %v1489
      %2311 = vmatpush.bf16.msra.mxu0 %v1485
      %2312 = vmatpush.bf16.msra.mxu0 %v1481
      %2313 = vmatpush.bf16.msra.mxu0 %v1477
      %2314 = vmatpush.bf16.msra.mxu0 %v1473
      %2315 = vmatpush.bf16.msra.mxu0 %v1469
      %2316 = vmatpush.bf16.msra.mxu0 %v1465
      %2317 = vmatmul.bf16.gmra.mxu0 %v459
      %v2318 = vpop.f32.mrf.mxu0
      %v2319 = vadd.f32 %v2270, %v2318
      %v2320 = vpop.f32.mrf.mxu0
      %v2321 = vadd.f32 %v2272, %v2320
      %2322 = vmatmul.bf16.gmra.mxu0 %v466
      %v2323 = vpop.f32.mrf.mxu0
      %v2324 = vadd.f32 %v2275, %v2323
      %v2325 = vpop.f32.mrf.mxu0
      %v2326 = vadd.f32 %v2277, %v2325
      %2327 = vmatmul.bf16.gmra.mxu0 %v473
      %v2328 = vpop.f32.mrf.mxu0
      %v2329 = vadd.f32 %v2280, %v2328
      %v2330 = vpop.f32.mrf.mxu0
      %v2331 = vadd.f32 %v2282, %v2330
      %2332 = vmatmul.bf16.gmra.mxu0 %v480
      %v2333 = vpop.f32.mrf.mxu0
      %v2334 = vadd.f32 %v2285, %v2333
      %v2335 = vpop.f32.mrf.mxu0
      %v2336 = vadd.f32 %v2287, %v2335
      %2337 = vmatmul.bf16.gmra.mxu0 %v487
      %v2338 = vpop.f32.mrf.mxu0
      %v2339 = vadd.f32 %v2290, %v2338
      %v2340 = vpop.f32.mrf.mxu0
      %v2341 = vadd.f32 %v2292, %v2340
      %2342 = vmatmul.bf16.gmra.mxu0 %v494
      %v2343 = vpop.f32.mrf.mxu0
      %v2344 = vadd.f32 %v2295, %v2343
      %v2345 = vpop.f32.mrf.mxu0
      %v2346 = vadd.f32 %v2297, %v2345
      %2347 = vmatmul.bf16.gmra.mxu0 %v501
      %v2348 = vpop.f32.mrf.mxu0
      %v2349 = vadd.f32 %v2300, %v2348
      %v2350 = vpop.f32.mrf.mxu0
      %v2351 = vadd.f32 %v2302, %v2350
      %2352 = vmatmul.bf16.gmra.mxu0 %v508
      %v2353 = vpop.f32.mrf.mxu0
      %v2354 = vadd.f32 %v2305, %v2353
      %v2355 = vpop.f32.mrf.mxu0
      %v2356 = vadd.f32 %v2307, %v2355
      %2357 = vdwg.mxu0
      %2358 = vmatpush.bf16.msra.mxu0 0
      %2359 = vmatpush.bf16.msra.mxu0 0
      %2360 = vmatpush.bf16.msra.mxu0 0
      %2361 = vmatpush.bf16.msra.mxu0 0
      %2362 = vmatpush.bf16.msra.mxu0 0
      %2363 = vmatpush.bf16.msra.mxu0 0
      %2364 = vmatpush.bf16.msra.mxu0 0
      %2365 = vmatpush.bf16.msra.mxu0 %v1497
      %2366 = vmatmul.bf16.gmra.mxu0 %v1698
      %v2367 = vpop.f32.mrf.mxu0
      %v2368 = vadd.f32 %v2319, %v2367
      %v2369 = vpop.f32.mrf.mxu0
      %v2370 = vadd.f32 %v2321, %v2369
      %2371 = vmatmul.bf16.gmra.mxu0 %v1701
      %v2372 = vpop.f32.mrf.mxu0
      %v2373 = vadd.f32 %v2324, %v2372
      %v2374 = vpop.f32.mrf.mxu0
      %v2375 = vadd.f32 %v2326, %v2374
      %2376 = vmatmul.bf16.gmra.mxu0 %v1704
      %v2377 = vpop.f32.mrf.mxu0
      %v2378 = vadd.f32 %v2329, %v2377
      %v2379 = vpop.f32.mrf.mxu0
      %v2380 = vadd.f32 %v2331, %v2379
      %2381 = vmatmul.bf16.gmra.mxu0 %v1707
      %v2382 = vpop.f32.mrf.mxu0
      %v2383 = vadd.f32 %v2334, %v2382
      %v2384 = vpop.f32.mrf.mxu0
      %v2385 = vadd.f32 %v2336, %v2384
      %2386 = vmatmul.bf16.gmra.mxu0 %v1710
      %v2387 = vpop.f32.mrf.mxu0
      %v2388 = vadd.f32 %v2339, %v2387
      %v2389 = vpop.f32.mrf.mxu0
      %v2390 = vadd.f32 %v2341, %v2389
      %2391 = vmatmul.bf16.gmra.mxu0 %v1713
      %v2392 = vpop.f32.mrf.mxu0
      %v2393 = vadd.f32 %v2344, %v2392
      %v2394 = vpop.f32.mrf.mxu0
      %v2395 = vadd.f32 %v2346, %v2394
      %2396 = vmatmul.bf16.gmra.mxu0 %v1716
      %v2397 = vpop.f32.mrf.mxu0
      %v2398 = vadd.f32 %v2349, %v2397
      %v2399 = vpop.f32.mrf.mxu0
      %v2400 = vadd.f32 %v2351, %v2399
      %2401 = vmatmul.bf16.gmra.mxu0 %v1719
      %v2402 = vpop.f32.mrf.mxu0
      %v2403 = vadd.f32 %v2354, %v2402
      %v2404 = vpop.f32.mrf.mxu0
      %v2405 = vadd.f32 %v2356, %v2404
      %2406 = vdwg.mxu0
      %2407 = vmatpush.bf16.msra.mxu0 %v1334
      %2408 = vmatpush.bf16.msra.mxu0 %v1330
      %2409 = vmatpush.bf16.msra.mxu0 %v1326
      %2410 = vmatpush.bf16.msra.mxu0 %v1322
      %2411 = vmatpush.bf16.msra.mxu0 %v1318
      %2412 = vmatpush.bf16.msra.mxu0 %v1314
      %2413 = vmatpush.bf16.msra.mxu0 %v1310
      %2414 = vmatpush.bf16.msra.mxu0 %v1306
      %2415 = vmatmul.bf16.gmra.mxu0 %v454
      %v2416 = vpop.f32.mrf.mxu0
      %v2417 = vadd.f32 %v710, %v2416
      %v2418 = vpop.f32.mrf.mxu0
      %v2419 = vadd.f32 %v710, %v2418
      %2420 = vmatmul.bf16.gmra.mxu0 %v461
      %v2421 = vpop.f32.mrf.mxu0
      %v2422 = vadd.f32 %v710, %v2421
      %v2423 = vpop.f32.mrf.mxu0
      %v2424 = vadd.f32 %v710, %v2423
      %2425 = vmatmul.bf16.gmra.mxu0 %v468
      %v2426 = vpop.f32.mrf.mxu0
      %v2427 = vadd.f32 %v710, %v2426
      %v2428 = vpop.f32.mrf.mxu0
      %v2429 = vadd.f32 %v710, %v2428
      %2430 = vmatmul.bf16.gmra.mxu0 %v475
      %v2431 = vpop.f32.mrf.mxu0
      %v2432 = vadd.f32 %v710, %v2431
      %v2433 = vpop.f32.mrf.mxu0
      %v2434 = vadd.f32 %v710, %v2433
      %2435 = vmatmul.bf16.gmra.mxu0 %v482
      %v2436 = vpop.f32.mrf.mxu0
      %v2437 = vadd.f32 %v710, %v2436
      %v2438 = vpop.f32.mrf.mxu0
      %v2439 = vadd.f32 %v710, %v2438
      %2440 = vmatmul.bf16.gmra.mxu0 %v489
      %v2441 = vpop.f32.mrf.mxu0
      %v2442 = vadd.f32 %v710, %v2441
      %v2443 = vpop.f32.mrf.mxu0
      %v2444 = vadd.f32 %v710, %v2443
      %2445 = vmatmul.bf16.gmra.mxu0 %v496
      %v2446 = vpop.f32.mrf.mxu0
      %v2447 = vadd.f32 %v710, %v2446
      %v2448 = vpop.f32.mrf.mxu0
      %v2449 = vadd.f32 %v710, %v2448
      %2450 = vmatmul.bf16.gmra.mxu0 %v503
      %v2451 = vpop.f32.mrf.mxu0
      %v2452 = vadd.f32 %v710, %v2451
      %v2453 = vpop.f32.mrf.mxu0
      %v2454 = vadd.f32 %v710, %v2453
      %2455 = vdwg.mxu0
      %2456 = vmatpush.bf16.msra.mxu0 %v1366
      %2457 = vmatpush.bf16.msra.mxu0 %v1362
      %2458 = vmatpush.bf16.msra.mxu0 %v1358
      %2459 = vmatpush.bf16.msra.mxu0 %v1354
      %2460 = vmatpush.bf16.msra.mxu0 %v1350
      %2461 = vmatpush.bf16.msra.mxu0 %v1346
      %2462 = vmatpush.bf16.msra.mxu0 %v1342
      %2463 = vmatpush.bf16.msra.mxu0 %v1338
      %2464 = vmatmul.bf16.gmra.mxu0 %v455
      %v2465 = vpop.f32.mrf.mxu0
      %v2466 = vadd.f32 %v2417, %v2465
      %v2467 = vpop.f32.mrf.mxu0
      %v2468 = vadd.f32 %v2419, %v2467
      %2469 = vmatmul.bf16.gmra.mxu0 %v462
      %v2470 = vpop.f32.mrf.mxu0
      %v2471 = vadd.f32 %v2422, %v2470
      %v2472 = vpop.f32.mrf.mxu0
      %v2473 = vadd.f32 %v2424, %v2472
      %2474 = vmatmul.bf16.gmra.mxu0 %v469
      %v2475 = vpop.f32.mrf.mxu0
      %v2476 = vadd.f32 %v2427, %v2475
      %v2477 = vpop.f32.mrf.mxu0
      %v2478 = vadd.f32 %v2429, %v2477
      %2479 = vmatmul.bf16.gmra.mxu0 %v476
      %v2480 = vpop.f32.mrf.mxu0
      %v2481 = vadd.f32 %v2432, %v2480
      %v2482 = vpop.f32.mrf.mxu0
      %v2483 = vadd.f32 %v2434, %v2482
      %2484 = vmatmul.bf16.gmra.mxu0 %v483
      %v2485 = vpop.f32.mrf.mxu0
      %v2486 = vadd.f32 %v2437, %v2485
      %v2487 = vpop.f32.mrf.mxu0
      %v2488 = vadd.f32 %v2439, %v2487
      %2489 = vmatmul.bf16.gmra.mxu0 %v490
      %v2490 = vpop.f32.mrf.mxu0
      %v2491 = vadd.f32 %v2442, %v2490
      %v2492 = vpop.f32.mrf.mxu0
      %v2493 = vadd.f32 %v2444, %v2492
      %2494 = vmatmul.bf16.gmra.mxu0 %v497
      %v2495 = vpop.f32.mrf.mxu0
      %v2496 = vadd.f32 %v2447, %v2495
      %v2497 = vpop.f32.mrf.mxu0
      %v2498 = vadd.f32 %v2449, %v2497
      %2499 = vmatmul.bf16.gmra.mxu0 %v504
      %v2500 = vpop.f32.mrf.mxu0
      %v2501 = vadd.f32 %v2452, %v2500
      %v2502 = vpop.f32.mrf.mxu0
      %v2503 = vadd.f32 %v2454, %v2502
      %2504 = vdwg.mxu0
      %2505 = vmatpush.bf16.msra.mxu0 %v1398
      %2506 = vmatpush.bf16.msra.mxu0 %v1394
      %2507 = vmatpush.bf16.msra.mxu0 %v1390
      %2508 = vmatpush.bf16.msra.mxu0 %v1386
      %2509 = vmatpush.bf16.msra.mxu0 %v1382
      %2510 = vmatpush.bf16.msra.mxu0 %v1378
      %2511 = vmatpush.bf16.msra.mxu0 %v1374
      %2512 = vmatpush.bf16.msra.mxu0 %v1370
      %2513 = vmatmul.bf16.gmra.mxu0 %v456
      %v2514 = vpop.f32.mrf.mxu0
      %v2515 = vadd.f32 %v2466, %v2514
      %v2516 = vpop.f32.mrf.mxu0
      %v2517 = vadd.f32 %v2468, %v2516
      %2518 = vmatmul.bf16.gmra.mxu0 %v463
      %v2519 = vpop.f32.mrf.mxu0
      %v2520 = vadd.f32 %v2471, %v2519
      %v2521 = vpop.f32.mrf.mxu0
      %v2522 = vadd.f32 %v2473, %v2521
      %2523 = vmatmul.bf16.gmra.mxu0 %v470
      %v2524 = vpop.f32.mrf.mxu0
      %v2525 = vadd.f32 %v2476, %v2524
      %v2526 = vpop.f32.mrf.mxu0
      %v2527 = vadd.f32 %v2478, %v2526
      %2528 = vmatmul.bf16.gmra.mxu0 %v477
      %v2529 = vpop.f32.mrf.mxu0
      %v2530 = vadd.f32 %v2481, %v2529
      %v2531 = vpop.f32.mrf.mxu0
      %v2532 = vadd.f32 %v2483, %v2531
      %2533 = vmatmul.bf16.gmra.mxu0 %v484
      %v2534 = vpop.f32.mrf.mxu0
      %v2535 = vadd.f32 %v2486, %v2534
      %v2536 = vpop.f32.mrf.mxu0
      %v2537 = vadd.f32 %v2488, %v2536
      %2538 = vmatmul.bf16.gmra.mxu0 %v491
      %v2539 = vpop.f32.mrf.mxu0
      %v2540 = vadd.f32 %v2491, %v2539
      %v2541 = vpop.f32.mrf.mxu0
      %v2542 = vadd.f32 %v2493, %v2541
      %2543 = vmatmul.bf16.gmra.mxu0 %v498
      %v2544 = vpop.f32.mrf.mxu0
      %v2545 = vadd.f32 %v2496, %v2544
      %v2546 = vpop.f32.mrf.mxu0
      %v2547 = vadd.f32 %v2498, %v2546
      %2548 = vmatmul.bf16.gmra.mxu0 %v505
      %v2549 = vpop.f32.mrf.mxu0
      %v2550 = vadd.f32 %v2501, %v2549
      %v2551 = vpop.f32.mrf.mxu0
      %v2552 = vadd.f32 %v2503, %v2551
      %2553 = vdwg.mxu0
      %2554 = vmatpush.bf16.msra.mxu0 %v1430
      %2555 = vmatpush.bf16.msra.mxu0 %v1426
      %2556 = vmatpush.bf16.msra.mxu0 %v1422
      %2557 = vmatpush.bf16.msra.mxu0 %v1418
      %2558 = vmatpush.bf16.msra.mxu0 %v1414
      %2559 = vmatpush.bf16.msra.mxu0 %v1410
      %2560 = vmatpush.bf16.msra.mxu0 %v1406
      %2561 = vmatpush.bf16.msra.mxu0 %v1402
      %2562 = vmatmul.bf16.gmra.mxu0 %v457
      %v2563 = vpop.f32.mrf.mxu0
      %v2564 = vadd.f32 %v2515, %v2563
      %v2565 = vpop.f32.mrf.mxu0
      %v2566 = vadd.f32 %v2517, %v2565
      %2567 = vmatmul.bf16.gmra.mxu0 %v464
      %v2568 = vpop.f32.mrf.mxu0
      %v2569 = vadd.f32 %v2520, %v2568
      %v2570 = vpop.f32.mrf.mxu0
      %v2571 = vadd.f32 %v2522, %v2570
      %2572 = vmatmul.bf16.gmra.mxu0 %v471
      %v2573 = vpop.f32.mrf.mxu0
      %v2574 = vadd.f32 %v2525, %v2573
      %v2575 = vpop.f32.mrf.mxu0
      %v2576 = vadd.f32 %v2527, %v2575
      %2577 = vmatmul.bf16.gmra.mxu0 %v478
      %v2578 = vpop.f32.mrf.mxu0
      %v2579 = vadd.f32 %v2530, %v2578
      %v2580 = vpop.f32.mrf.mxu0
      %v2581 = vadd.f32 %v2532, %v2580
      %2582 = vmatmul.bf16.gmra.mxu0 %v485
      %v2583 = vpop.f32.mrf.mxu0
      %v2584 = vadd.f32 %v2535, %v2583
      %v2585 = vpop.f32.mrf.mxu0
      %v2586 = vadd.f32 %v2537, %v2585
      %2587 = vmatmul.bf16.gmra.mxu0 %v492
      %v2588 = vpop.f32.mrf.mxu0
      %v2589 = vadd.f32 %v2540, %v2588
      %v2590 = vpop.f32.mrf.mxu0
      %v2591 = vadd.f32 %v2542, %v2590
      %2592 = vmatmul.bf16.gmra.mxu0 %v499
      %v2593 = vpop.f32.mrf.mxu0
      %v2594 = vadd.f32 %v2545, %v2593
      %v2595 = vpop.f32.mrf.mxu0
      %v2596 = vadd.f32 %v2547, %v2595
      %2597 = vmatmul.bf16.gmra.mxu0 %v506
      %v2598 = vpop.f32.mrf.mxu0
      %v2599 = vadd.f32 %v2550, %v2598
      %v2600 = vpop.f32.mrf.mxu0
      %v2601 = vadd.f32 %v2552, %v2600
      %2602 = vdwg.mxu0
      %2603 = vmatpush.bf16.msra.mxu0 %v1462
      %2604 = vmatpush.bf16.msra.mxu0 %v1458
      %2605 = vmatpush.bf16.msra.mxu0 %v1454
      %2606 = vmatpush.bf16.msra.mxu0 %v1450
      %2607 = vmatpush.bf16.msra.mxu0 %v1446
      %2608 = vmatpush.bf16.msra.mxu0 %v1442
      %2609 = vmatpush.bf16.msra.mxu0 %v1438
      %2610 = vmatpush.bf16.msra.mxu0 %v1434
      %2611 = vmatmul.bf16.gmra.mxu0 %v458
      %v2612 = vpop.f32.mrf.mxu0
      %v2613 = vadd.f32 %v2564, %v2612
      %v2614 = vpop.f32.mrf.mxu0
      %v2615 = vadd.f32 %v2566, %v2614
      %2616 = vmatmul.bf16.gmra.mxu0 %v465
      %v2617 = vpop.f32.mrf.mxu0
      %v2618 = vadd.f32 %v2569, %v2617
      %v2619 = vpop.f32.mrf.mxu0
      %v2620 = vadd.f32 %v2571, %v2619
      %2621 = vmatmul.bf16.gmra.mxu0 %v472
      %v2622 = vpop.f32.mrf.mxu0
      %v2623 = vadd.f32 %v2574, %v2622
      %v2624 = vpop.f32.mrf.mxu0
      %v2625 = vadd.f32 %v2576, %v2624
      %2626 = vmatmul.bf16.gmra.mxu0 %v479
      %v2627 = vpop.f32.mrf.mxu0
      %v2628 = vadd.f32 %v2579, %v2627
      %v2629 = vpop.f32.mrf.mxu0
      %v2630 = vadd.f32 %v2581, %v2629
      %2631 = vmatmul.bf16.gmra.mxu0 %v486
      %v2632 = vpop.f32.mrf.mxu0
      %v2633 = vadd.f32 %v2584, %v2632
      %v2634 = vpop.f32.mrf.mxu0
      %v2635 = vadd.f32 %v2586, %v2634
      %2636 = vmatmul.bf16.gmra.mxu0 %v493
      %v2637 = vpop.f32.mrf.mxu0
      %v2638 = vadd.f32 %v2589, %v2637
      %v2639 = vpop.f32.mrf.mxu0
      %v2640 = vadd.f32 %v2591, %v2639
      %2641 = vmatmul.bf16.gmra.mxu0 %v500
      %v2642 = vpop.f32.mrf.mxu0
      %v2643 = vadd.f32 %v2594, %v2642
      %v2644 = vpop.f32.mrf.mxu0
      %v2645 = vadd.f32 %v2596, %v2644
      %2646 = vmatmul.bf16.gmra.mxu0 %v507
      %v2647 = vpop.f32.mrf.mxu0
      %v2648 = vadd.f32 %v2599, %v2647
      %v2649 = vpop.f32.mrf.mxu0
      %v2650 = vadd.f32 %v2601, %v2649
      %2651 = vdwg.mxu0
      %2652 = vmatpush.bf16.msra.mxu0 %v1494
      %2653 = vmatpush.bf16.msra.mxu0 %v1490
      %2654 = vmatpush.bf16.msra.mxu0 %v1486
      %2655 = vmatpush.bf16.msra.mxu0 %v1482
      %2656 = vmatpush.bf16.msra.mxu0 %v1478
      %2657 = vmatpush.bf16.msra.mxu0 %v1474
      %2658 = vmatpush.bf16.msra.mxu0 %v1470
      %2659 = vmatpush.bf16.msra.mxu0 %v1466
      %2660 = vmatmul.bf16.gmra.mxu0 %v459
      %v2661 = vpop.f32.mrf.mxu0
      %v2662 = vadd.f32 %v2613, %v2661
      %v2663 = vpop.f32.mrf.mxu0
      %v2664 = vadd.f32 %v2615, %v2663
      %2665 = vmatmul.bf16.gmra.mxu0 %v466
      %v2666 = vpop.f32.mrf.mxu0
      %v2667 = vadd.f32 %v2618, %v2666
      %v2668 = vpop.f32.mrf.mxu0
      %v2669 = vadd.f32 %v2620, %v2668
      %2670 = vmatmul.bf16.gmra.mxu0 %v473
      %v2671 = vpop.f32.mrf.mxu0
      %v2672 = vadd.f32 %v2623, %v2671
      %v2673 = vpop.f32.mrf.mxu0
      %v2674 = vadd.f32 %v2625, %v2673
      %2675 = vmatmul.bf16.gmra.mxu0 %v480
      %v2676 = vpop.f32.mrf.mxu0
      %v2677 = vadd.f32 %v2628, %v2676
      %v2678 = vpop.f32.mrf.mxu0
      %v2679 = vadd.f32 %v2630, %v2678
      %2680 = vmatmul.bf16.gmra.mxu0 %v487
      %v2681 = vpop.f32.mrf.mxu0
      %v2682 = vadd.f32 %v2633, %v2681
      %v2683 = vpop.f32.mrf.mxu0
      %v2684 = vadd.f32 %v2635, %v2683
      %2685 = vmatmul.bf16.gmra.mxu0 %v494
      %v2686 = vpop.f32.mrf.mxu0
      %v2687 = vadd.f32 %v2638, %v2686
      %v2688 = vpop.f32.mrf.mxu0
      %v2689 = vadd.f32 %v2640, %v2688
      %2690 = vmatmul.bf16.gmra.mxu0 %v501
      %v2691 = vpop.f32.mrf.mxu0
      %v2692 = vadd.f32 %v2643, %v2691
      %v2693 = vpop.f32.mrf.mxu0
      %v2694 = vadd.f32 %v2645, %v2693
      %2695 = vmatmul.bf16.gmra.mxu0 %v508
      %v2696 = vpop.f32.mrf.mxu0
      %v2697 = vadd.f32 %v2648, %v2696
      %v2698 = vpop.f32.mrf.mxu0
      %v2699 = vadd.f32 %v2650, %v2698
      %2700 = vdwg.mxu0
      %2701 = vmatpush.bf16.msra.mxu0 0
      %2702 = vmatpush.bf16.msra.mxu0 0
      %2703 = vmatpush.bf16.msra.mxu0 0
      %2704 = vmatpush.bf16.msra.mxu0 0
      %2705 = vmatpush.bf16.msra.mxu0 0
      %2706 = vmatpush.bf16.msra.mxu0 0
      %2707 = vmatpush.bf16.msra.mxu0 0
      %2708 = vmatpush.bf16.msra.mxu0 %v1498
      %2709 = vmatmul.bf16.gmra.mxu0 %v1698
      %v2710 = vpop.f32.mrf.mxu0
      %v2711 = vadd.f32 %v2662, %v2710
      %v2712 = vpop.f32.mrf.mxu0
      %v2713 = vadd.f32 %v2664, %v2712
      %2714 = vmatmul.bf16.gmra.mxu0 %v1701
      %v2715 = vpop.f32.mrf.mxu0
      %v2716 = vadd.f32 %v2667, %v2715
      %v2717 = vpop.f32.mrf.mxu0
      %v2718 = vadd.f32 %v2669, %v2717
      %2719 = vmatmul.bf16.gmra.mxu0 %v1704
      %v2720 = vpop.f32.mrf.mxu0
      %v2721 = vadd.f32 %v2672, %v2720
      %v2722 = vpop.f32.mrf.mxu0
      %v2723 = vadd.f32 %v2674, %v2722
      %2724 = vmatmul.bf16.gmra.mxu0 %v1707
      %v2725 = vpop.f32.mrf.mxu0
      %v2726 = vadd.f32 %v2677, %v2725
      %v2727 = vpop.f32.mrf.mxu0
      %v2728 = vadd.f32 %v2679, %v2727
      %2729 = vmatmul.bf16.gmra.mxu0 %v1710
      %v2730 = vpop.f32.mrf.mxu0
      %v2731 = vadd.f32 %v2682, %v2730
      %v2732 = vpop.f32.mrf.mxu0
      %v2733 = vadd.f32 %v2684, %v2732
      %2734 = vmatmul.bf16.gmra.mxu0 %v1713
      %v2735 = vpop.f32.mrf.mxu0
      %v2736 = vadd.f32 %v2687, %v2735
      %v2737 = vpop.f32.mrf.mxu0
      %v2738 = vadd.f32 %v2689, %v2737
      %2739 = vmatmul.bf16.gmra.mxu0 %v1716
      %v2740 = vpop.f32.mrf.mxu0
      %v2741 = vadd.f32 %v2692, %v2740
      %v2742 = vpop.f32.mrf.mxu0
      %v2743 = vadd.f32 %v2694, %v2742
      %2744 = vmatmul.bf16.gmra.mxu0 %v1719
      %v2745 = vpop.f32.mrf.mxu0
      %v2746 = vadd.f32 %v2697, %v2745
      %v2747 = vpop.f32.mrf.mxu0
      %v2748 = vadd.f32 %v2699, %v2747
      %2749 = vdwg.mxu0
      %2750 = vmatpush.bf16.msra.mxu0 %v1335
      %2751 = vmatpush.bf16.msra.mxu0 %v1331
      %2752 = vmatpush.bf16.msra.mxu0 %v1327
      %2753 = vmatpush.bf16.msra.mxu0 %v1323
      %2754 = vmatpush.bf16.msra.mxu0 %v1319
      %2755 = vmatpush.bf16.msra.mxu0 %v1315
      %2756 = vmatpush.bf16.msra.mxu0 %v1311
      %2757 = vmatpush.bf16.msra.mxu0 %v1307
      %2758 = vmatmul.bf16.gmra.mxu0 %v454
      %v2759 = vpop.f32.mrf.mxu0
      %v2760 = vadd.f32 %v711, %v2759
      %v2761 = vpop.f32.mrf.mxu0
      %v2762 = vadd.f32 %v711, %v2761
      %2763 = vmatmul.bf16.gmra.mxu0 %v461
      %v2764 = vpop.f32.mrf.mxu0
      %v2765 = vadd.f32 %v711, %v2764
      %v2766 = vpop.f32.mrf.mxu0
      %v2767 = vadd.f32 %v711, %v2766
      %2768 = vmatmul.bf16.gmra.mxu0 %v468
      %v2769 = vpop.f32.mrf.mxu0
      %v2770 = vadd.f32 %v711, %v2769
      %v2771 = vpop.f32.mrf.mxu0
      %v2772 = vadd.f32 %v711, %v2771
      %2773 = vmatmul.bf16.gmra.mxu0 %v475
      %v2774 = vpop.f32.mrf.mxu0
      %v2775 = vadd.f32 %v711, %v2774
      %v2776 = vpop.f32.mrf.mxu0
      %v2777 = vadd.f32 %v711, %v2776
      %2778 = vmatmul.bf16.gmra.mxu0 %v482
      %v2779 = vpop.f32.mrf.mxu0
      %v2780 = vadd.f32 %v711, %v2779
      %v2781 = vpop.f32.mrf.mxu0
      %v2782 = vadd.f32 %v711, %v2781
      %2783 = vmatmul.bf16.gmra.mxu0 %v489
      %v2784 = vpop.f32.mrf.mxu0
      %v2785 = vadd.f32 %v711, %v2784
      %v2786 = vpop.f32.mrf.mxu0
      %v2787 = vadd.f32 %v711, %v2786
      %2788 = vmatmul.bf16.gmra.mxu0 %v496
      %v2789 = vpop.f32.mrf.mxu0
      %v2790 = vadd.f32 %v711, %v2789
      %v2791 = vpop.f32.mrf.mxu0
      %v2792 = vadd.f32 %v711, %v2791
      %2793 = vmatmul.bf16.gmra.mxu0 %v503
      %v2794 = vpop.f32.mrf.mxu0
      %v2795 = vadd.f32 %v711, %v2794
      %v2796 = vpop.f32.mrf.mxu0
      %v2797 = vadd.f32 %v711, %v2796
      %2798 = vdwg.mxu0
      %2799 = vmatpush.bf16.msra.mxu0 %v1367
      %2800 = vmatpush.bf16.msra.mxu0 %v1363
      %2801 = vmatpush.bf16.msra.mxu0 %v1359
      %2802 = vmatpush.bf16.msra.mxu0 %v1355
      %2803 = vmatpush.bf16.msra.mxu0 %v1351
      %2804 = vmatpush.bf16.msra.mxu0 %v1347
      %2805 = vmatpush.bf16.msra.mxu0 %v1343
      %2806 = vmatpush.bf16.msra.mxu0 %v1339
      %2807 = vmatmul.bf16.gmra.mxu0 %v455
      %v2808 = vpop.f32.mrf.mxu0
      %v2809 = vadd.f32 %v2760, %v2808
      %v2810 = vpop.f32.mrf.mxu0
      %v2811 = vadd.f32 %v2762, %v2810
      %2812 = vmatmul.bf16.gmra.mxu0 %v462
      %v2813 = vpop.f32.mrf.mxu0
      %v2814 = vadd.f32 %v2765, %v2813
      %v2815 = vpop.f32.mrf.mxu0
      %v2816 = vadd.f32 %v2767, %v2815
      %2817 = vmatmul.bf16.gmra.mxu0 %v469
      %v2818 = vpop.f32.mrf.mxu0
      %v2819 = vadd.f32 %v2770, %v2818
      %v2820 = vpop.f32.mrf.mxu0
      %v2821 = vadd.f32 %v2772, %v2820
      %2822 = vmatmul.bf16.gmra.mxu0 %v476
      %v2823 = vpop.f32.mrf.mxu0
      %v2824 = vadd.f32 %v2775, %v2823
      %v2825 = vpop.f32.mrf.mxu0
      %v2826 = vadd.f32 %v2777, %v2825
      %2827 = vmatmul.bf16.gmra.mxu0 %v483
      %v2828 = vpop.f32.mrf.mxu0
      %v2829 = vadd.f32 %v2780, %v2828
      %v2830 = vpop.f32.mrf.mxu0
      %v2831 = vadd.f32 %v2782, %v2830
      %2832 = vmatmul.bf16.gmra.mxu0 %v490
      %v2833 = vpop.f32.mrf.mxu0
      %v2834 = vadd.f32 %v2785, %v2833
      %v2835 = vpop.f32.mrf.mxu0
      %v2836 = vadd.f32 %v2787, %v2835
      %2837 = vmatmul.bf16.gmra.mxu0 %v497
      %v2838 = vpop.f32.mrf.mxu0
      %v2839 = vadd.f32 %v2790, %v2838
      %v2840 = vpop.f32.mrf.mxu0
      %v2841 = vadd.f32 %v2792, %v2840
      %2842 = vmatmul.bf16.gmra.mxu0 %v504
      %v2843 = vpop.f32.mrf.mxu0
      %v2844 = vadd.f32 %v2795, %v2843
      %v2845 = vpop.f32.mrf.mxu0
      %v2846 = vadd.f32 %v2797, %v2845
      %2847 = vdwg.mxu0
      %2848 = vmatpush.bf16.msra.mxu0 %v1399
      %2849 = vmatpush.bf16.msra.mxu0 %v1395
      %2850 = vmatpush.bf16.msra.mxu0 %v1391
      %2851 = vmatpush.bf16.msra.mxu0 %v1387
      %2852 = vmatpush.bf16.msra.mxu0 %v1383
      %2853 = vmatpush.bf16.msra.mxu0 %v1379
      %2854 = vmatpush.bf16.msra.mxu0 %v1375
      %2855 = vmatpush.bf16.msra.mxu0 %v1371
      %2856 = vmatmul.bf16.gmra.mxu0 %v456
      %v2857 = vpop.f32.mrf.mxu0
      %v2858 = vadd.f32 %v2809, %v2857
      %v2859 = vpop.f32.mrf.mxu0
      %v2860 = vadd.f32 %v2811, %v2859
      %2861 = vmatmul.bf16.gmra.mxu0 %v463
      %v2862 = vpop.f32.mrf.mxu0
      %v2863 = vadd.f32 %v2814, %v2862
      %v2864 = vpop.f32.mrf.mxu0
      %v2865 = vadd.f32 %v2816, %v2864
      %2866 = vmatmul.bf16.gmra.mxu0 %v470
      %v2867 = vpop.f32.mrf.mxu0
      %v2868 = vadd.f32 %v2819, %v2867
      %v2869 = vpop.f32.mrf.mxu0
      %v2870 = vadd.f32 %v2821, %v2869
      %2871 = vmatmul.bf16.gmra.mxu0 %v477
      %v2872 = vpop.f32.mrf.mxu0
      %v2873 = vadd.f32 %v2824, %v2872
      %v2874 = vpop.f32.mrf.mxu0
      %v2875 = vadd.f32 %v2826, %v2874
      %2876 = vmatmul.bf16.gmra.mxu0 %v484
      %v2877 = vpop.f32.mrf.mxu0
      %v2878 = vadd.f32 %v2829, %v2877
      %v2879 = vpop.f32.mrf.mxu0
      %v2880 = vadd.f32 %v2831, %v2879
      %2881 = vmatmul.bf16.gmra.mxu0 %v491
      %v2882 = vpop.f32.mrf.mxu0
      %v2883 = vadd.f32 %v2834, %v2882
      %v2884 = vpop.f32.mrf.mxu0
      %v2885 = vadd.f32 %v2836, %v2884
      %2886 = vmatmul.bf16.gmra.mxu0 %v498
      %v2887 = vpop.f32.mrf.mxu0
      %v2888 = vadd.f32 %v2839, %v2887
      %v2889 = vpop.f32.mrf.mxu0
      %v2890 = vadd.f32 %v2841, %v2889
      %2891 = vmatmul.bf16.gmra.mxu0 %v505
      %v2892 = vpop.f32.mrf.mxu0
      %v2893 = vadd.f32 %v2844, %v2892
      %v2894 = vpop.f32.mrf.mxu0
      %v2895 = vadd.f32 %v2846, %v2894
      %2896 = vdwg.mxu0
      %2897 = vmatpush.bf16.msra.mxu0 %v1431
      %2898 = vmatpush.bf16.msra.mxu0 %v1427
      %2899 = vmatpush.bf16.msra.mxu0 %v1423
      %2900 = vmatpush.bf16.msra.mxu0 %v1419
      %2901 = vmatpush.bf16.msra.mxu0 %v1415
      %2902 = vmatpush.bf16.msra.mxu0 %v1411
      %2903 = vmatpush.bf16.msra.mxu0 %v1407
      %2904 = vmatpush.bf16.msra.mxu0 %v1403
      %2905 = vmatmul.bf16.gmra.mxu0 %v457
      %v2906 = vpop.f32.mrf.mxu0
      %v2907 = vadd.f32 %v2858, %v2906
      %v2908 = vpop.f32.mrf.mxu0
      %v2909 = vadd.f32 %v2860, %v2908
      %2910 = vmatmul.bf16.gmra.mxu0 %v464
      %v2911 = vpop.f32.mrf.mxu0
      %v2912 = vadd.f32 %v2863, %v2911
      %v2913 = vpop.f32.mrf.mxu0
      %v2914 = vadd.f32 %v2865, %v2913
      %2915 = vmatmul.bf16.gmra.mxu0 %v471
      %v2916 = vpop.f32.mrf.mxu0
      %v2917 = vadd.f32 %v2868, %v2916
      %v2918 = vpop.f32.mrf.mxu0
      %v2919 = vadd.f32 %v2870, %v2918
      %2920 = vmatmul.bf16.gmra.mxu0 %v478
      %v2921 = vpop.f32.mrf.mxu0
      %v2922 = vadd.f32 %v2873, %v2921
      %v2923 = vpop.f32.mrf.mxu0
      %v2924 = vadd.f32 %v2875, %v2923
      %2925 = vmatmul.bf16.gmra.mxu0 %v485
      %v2926 = vpop.f32.mrf.mxu0
      %v2927 = vadd.f32 %v2878, %v2926
      %v2928 = vpop.f32.mrf.mxu0
      %v2929 = vadd.f32 %v2880, %v2928
      %2930 = vmatmul.bf16.gmra.mxu0 %v492
      %v2931 = vpop.f32.mrf.mxu0
      %v2932 = vadd.f32 %v2883, %v2931
      %v2933 = vpop.f32.mrf.mxu0
      %v2934 = vadd.f32 %v2885, %v2933
      %2935 = vmatmul.bf16.gmra.mxu0 %v499
      %v2936 = vpop.f32.mrf.mxu0
      %v2937 = vadd.f32 %v2888, %v2936
      %v2938 = vpop.f32.mrf.mxu0
      %v2939 = vadd.f32 %v2890, %v2938
      %2940 = vmatmul.bf16.gmra.mxu0 %v506
      %v2941 = vpop.f32.mrf.mxu0
      %v2942 = vadd.f32 %v2893, %v2941
      %v2943 = vpop.f32.mrf.mxu0
      %v2944 = vadd.f32 %v2895, %v2943
      %2945 = vdwg.mxu0
      %2946 = vmatpush.bf16.msra.mxu0 %v1463
      %2947 = vmatpush.bf16.msra.mxu0 %v1459
      %2948 = vmatpush.bf16.msra.mxu0 %v1455
      %2949 = vmatpush.bf16.msra.mxu0 %v1451
      %2950 = vmatpush.bf16.msra.mxu0 %v1447
      %2951 = vmatpush.bf16.msra.mxu0 %v1443
      %2952 = vmatpush.bf16.msra.mxu0 %v1439
      %2953 = vmatpush.bf16.msra.mxu0 %v1435
      %2954 = vmatmul.bf16.gmra.mxu0 %v458
      %v2955 = vpop.f32.mrf.mxu0
      %v2956 = vadd.f32 %v2907, %v2955
      %v2957 = vpop.f32.mrf.mxu0
      %v2958 = vadd.f32 %v2909, %v2957
      %2959 = vmatmul.bf16.gmra.mxu0 %v465
      %v2960 = vpop.f32.mrf.mxu0
      %v2961 = vadd.f32 %v2912, %v2960
      %v2962 = vpop.f32.mrf.mxu0
      %v2963 = vadd.f32 %v2914, %v2962
      %2964 = vmatmul.bf16.gmra.mxu0 %v472
      %v2965 = vpop.f32.mrf.mxu0
      %v2966 = vadd.f32 %v2917, %v2965
      %v2967 = vpop.f32.mrf.mxu0
      %v2968 = vadd.f32 %v2919, %v2967
      %2969 = vmatmul.bf16.gmra.mxu0 %v479
      %v2970 = vpop.f32.mrf.mxu0
      %v2971 = vadd.f32 %v2922, %v2970
      %v2972 = vpop.f32.mrf.mxu0
      %v2973 = vadd.f32 %v2924, %v2972
      %2974 = vmatmul.bf16.gmra.mxu0 %v486
      %v2975 = vpop.f32.mrf.mxu0
      %v2976 = vadd.f32 %v2927, %v2975
      %v2977 = vpop.f32.mrf.mxu0
      %v2978 = vadd.f32 %v2929, %v2977
      %2979 = vmatmul.bf16.gmra.mxu0 %v493
      %v2980 = vpop.f32.mrf.mxu0
      %v2981 = vadd.f32 %v2932, %v2980
      %v2982 = vpop.f32.mrf.mxu0
      %v2983 = vadd.f32 %v2934, %v2982
      %2984 = vmatmul.bf16.gmra.mxu0 %v500
      %v2985 = vpop.f32.mrf.mxu0
      %v2986 = vadd.f32 %v2937, %v2985
      %v2987 = vpop.f32.mrf.mxu0
      %v2988 = vadd.f32 %v2939, %v2987
      %2989 = vmatmul.bf16.gmra.mxu0 %v507
      %v2990 = vpop.f32.mrf.mxu0
      %v2991 = vadd.f32 %v2942, %v2990
      %v2992 = vpop.f32.mrf.mxu0
      %v2993 = vadd.f32 %v2944, %v2992
      %2994 = vdwg.mxu0
      %2995 = vmatpush.bf16.msra.mxu0 %v1495
      %2996 = vmatpush.bf16.msra.mxu0 %v1491
      %2997 = vmatpush.bf16.msra.mxu0 %v1487
      %2998 = vmatpush.bf16.msra.mxu0 %v1483
      %2999 = vmatpush.bf16.msra.mxu0 %v1479
      %3000 = vmatpush.bf16.msra.mxu0 %v1475
      %3001 = vmatpush.bf16.msra.mxu0 %v1471
      %3002 = vmatpush.bf16.msra.mxu0 %v1467
      %3003 = vmatmul.bf16.gmra.mxu0 %v459
      %v3004 = vpop.f32.mrf.mxu0
      %v3005 = vadd.f32 %v2956, %v3004
      %v3006 = vpop.f32.mrf.mxu0
      %v3007 = vadd.f32 %v2958, %v3006
      %3008 = vmatmul.bf16.gmra.mxu0 %v466
      %v3009 = vpop.f32.mrf.mxu0
      %v3010 = vadd.f32 %v2961, %v3009
      %v3011 = vpop.f32.mrf.mxu0
      %v3012 = vadd.f32 %v2963, %v3011
      %3013 = vmatmul.bf16.gmra.mxu0 %v473
      %v3014 = vpop.f32.mrf.mxu0
      %v3015 = vadd.f32 %v2966, %v3014
      %v3016 = vpop.f32.mrf.mxu0
      %v3017 = vadd.f32 %v2968, %v3016
      %3018 = vmatmul.bf16.gmra.mxu0 %v480
      %v3019 = vpop.f32.mrf.mxu0
      %v3020 = vadd.f32 %v2971, %v3019
      %v3021 = vpop.f32.mrf.mxu0
      %v3022 = vadd.f32 %v2973, %v3021
      %3023 = vmatmul.bf16.gmra.mxu0 %v487
      %v3024 = vpop.f32.mrf.mxu0
      %v3025 = vadd.f32 %v2976, %v3024
      %v3026 = vpop.f32.mrf.mxu0
      %v3027 = vadd.f32 %v2978, %v3026
      %3028 = vmatmul.bf16.gmra.mxu0 %v494
      %v3029 = vpop.f32.mrf.mxu0
      %v3030 = vadd.f32 %v2981, %v3029
      %v3031 = vpop.f32.mrf.mxu0
      %v3032 = vadd.f32 %v2983, %v3031
      %3033 = vmatmul.bf16.gmra.mxu0 %v501
      %v3034 = vpop.f32.mrf.mxu0
      %v3035 = vadd.f32 %v2986, %v3034
      %v3036 = vpop.f32.mrf.mxu0
      %v3037 = vadd.f32 %v2988, %v3036
      %3038 = vmatmul.bf16.gmra.mxu0 %v508
      %v3039 = vpop.f32.mrf.mxu0
      %v3040 = vadd.f32 %v2991, %v3039
      %v3041 = vpop.f32.mrf.mxu0
      %v3042 = vadd.f32 %v2993, %v3041
      %3043 = vdwg.mxu0
      %3044 = vmatpush.bf16.msra.mxu0 0
      %3045 = vmatpush.bf16.msra.mxu0 0
      %3046 = vmatpush.bf16.msra.mxu0 0
      %3047 = vmatpush.bf16.msra.mxu0 0
      %3048 = vmatpush.bf16.msra.mxu0 0
      %3049 = vmatpush.bf16.msra.mxu0 0
      %3050 = vmatpush.bf16.msra.mxu0 0
      %3051 = vmatpush.bf16.msra.mxu0 %v1499
      %3052 = vmatmul.bf16.gmra.mxu0 %v1698
      %v3053 = vpop.f32.mrf.mxu0
      %v3054 = vadd.f32 %v3005, %v3053
      %v3055 = vpop.f32.mrf.mxu0
      %v3056 = vadd.f32 %v3007, %v3055
      %3057 = vmatmul.bf16.gmra.mxu0 %v1701
      %v3058 = vpop.f32.mrf.mxu0
      %v3059 = vadd.f32 %v3010, %v3058
      %v3060 = vpop.f32.mrf.mxu0
      %v3061 = vadd.f32 %v3012, %v3060
      %3062 = vmatmul.bf16.gmra.mxu0 %v1704
      %v3063 = vpop.f32.mrf.mxu0
      %v3064 = vadd.f32 %v3015, %v3063
      %v3065 = vpop.f32.mrf.mxu0
      %v3066 = vadd.f32 %v3017, %v3065
      %3067 = vmatmul.bf16.gmra.mxu0 %v1707
      %v3068 = vpop.f32.mrf.mxu0
      %v3069 = vadd.f32 %v3020, %v3068
      %v3070 = vpop.f32.mrf.mxu0
      %v3071 = vadd.f32 %v3022, %v3070
      %3072 = vmatmul.bf16.gmra.mxu0 %v1710
      %v3073 = vpop.f32.mrf.mxu0
      %v3074 = vadd.f32 %v3025, %v3073
      %v3075 = vpop.f32.mrf.mxu0
      %v3076 = vadd.f32 %v3027, %v3075
      %3077 = vmatmul.bf16.gmra.mxu0 %v1713
      %v3078 = vpop.f32.mrf.mxu0
      %v3079 = vadd.f32 %v3030, %v3078
      %v3080 = vpop.f32.mrf.mxu0
      %v3081 = vadd.f32 %v3032, %v3080
      %3082 = vmatmul.bf16.gmra.mxu0 %v1716
      %v3083 = vpop.f32.mrf.mxu0
      %v3084 = vadd.f32 %v3035, %v3083
      %v3085 = vpop.f32.mrf.mxu0
      %v3086 = vadd.f32 %v3037, %v3085
      %3087 = vmatmul.bf16.gmra.mxu0 %v1719
      %v3088 = vpop.f32.mrf.mxu0
      %v3089 = vadd.f32 %v3040, %v3088
      %v3090 = vpop.f32.mrf.mxu0
      %v3091 = vadd.f32 %v3042, %v3090
      %3092 = vdwg.mxu0
      %v3093 = vmax.f32 %v2025, 0.0
      %v3094 = vmax.f32 %v2368, 0.0
      %v3095 = vmax.f32 %v2711, 0.0
      %v3096 = vmax.f32 %v3054, 0.0
      %v3097 = vmax.f32 %v2027, 0.0
      %v3098 = vmax.f32 %v2370, 0.0
      %v3099 = vmax.f32 %v2713, 0.0
      %v3100 = vmax.f32 %v3056, 0.0
      %v3101 = vmax.f32 %v2030, 0.0
      %v3102 = vmax.f32 %v2373, 0.0
      %v3103 = vmax.f32 %v2716, 0.0
      %v3104 = vmax.f32 %v3059, 0.0
      %v3105 = vmax.f32 %v2032, 0.0
      %v3106 = vmax.f32 %v2375, 0.0
      %v3107 = vmax.f32 %v2718, 0.0
      %v3108 = vmax.f32 %v3061, 0.0
      %v3109 = vmax.f32 %v2035, 0.0
      %v3110 = vmax.f32 %v2378, 0.0
      %v3111 = vmax.f32 %v2721, 0.0
      %v3112 = vmax.f32 %v3064, 0.0
      %v3113 = vmax.f32 %v2037, 0.0
      %v3114 = vmax.f32 %v2380, 0.0
      %v3115 = vmax.f32 %v2723, 0.0
      %v3116 = vmax.f32 %v3066, 0.0
      %v3117 = vmax.f32 %v2040, 0.0
      %v3118 = vmax.f32 %v2383, 0.0
      %v3119 = vmax.f32 %v2726, 0.0
      %v3120 = vmax.f32 %v3069, 0.0
      %v3121 = vmax.f32 %v2042, 0.0
      %v3122 = vmax.f32 %v2385, 0.0
      %v3123 = vmax.f32 %v2728, 0.0
      %v3124 = vmax.f32 %v3071, 0.0
      %v3125 = vmax.f32 %v2045, 0.0
      %v3126 = vmax.f32 %v2388, 0.0
      %v3127 = vmax.f32 %v2731, 0.0
      %v3128 = vmax.f32 %v3074, 0.0
      %v3129 = vmax.f32 %v2047, 0.0
      %v3130 = vmax.f32 %v2390, 0.0
      %v3131 = vmax.f32 %v2733, 0.0
      %v3132 = vmax.f32 %v3076, 0.0
      %v3133 = vmax.f32 %v2050, 0.0
      %v3134 = vmax.f32 %v2393, 0.0
      %v3135 = vmax.f32 %v2736, 0.0
      %v3136 = vmax.f32 %v3079, 0.0
      %v3137 = vmax.f32 %v2052, 0.0
      %v3138 = vmax.f32 %v2395, 0.0
      %v3139 = vmax.f32 %v2738, 0.0
      %v3140 = vmax.f32 %v3081, 0.0
      %v3141 = vmax.f32 %v2055, 0.0
      %v3142 = vmax.f32 %v2398, 0.0
      %v3143 = vmax.f32 %v2741, 0.0
      %v3144 = vmax.f32 %v3084, 0.0
      %v3145 = vmax.f32 %v2057, 0.0
      %v3146 = vmax.f32 %v2400, 0.0
      %v3147 = vmax.f32 %v2743, 0.0
      %v3148 = vmax.f32 %v3086, 0.0
      %v3149 = vmax.f32 %v2060, 0.0
      %v3150 = vmax.f32 %v2403, 0.0
      %v3151 = vmax.f32 %v2746, 0.0
      %v3152 = vmax.f32 %v3089, 0.0
      %v3153 = vmax.f32 %v2062, 0.0
      %v3154 = vmax.f32 %v2405, 0.0
      %v3155 = vmax.f32 %v2748, 0.0
      %v3156 = vmax.f32 %v3091, 0.0
      %v3157 = vpack.c.bf16 %v3097, %v3093
      %v3158 = vpack.c.bf16 %v3098, %v3094
      %v3159 = vpack.c.bf16 %v3099, %v3095
      %v3160 = vpack.c.bf16 %v3100, %v3096
      %v3161 = vpack.c.bf16 %v3105, %v3101
      %v3162 = vpack.c.bf16 %v3106, %v3102
      %v3163 = vpack.c.bf16 %v3107, %v3103
      %v3164 = vpack.c.bf16 %v3108, %v3104
      %v3165 = vpack.c.bf16 %v3113, %v3109
      %v3166 = vpack.c.bf16 %v3114, %v3110
      %v3167 = vpack.c.bf16 %v3115, %v3111
      %v3168 = vpack.c.bf16 %v3116, %v3112
      %v3169 = vpack.c.bf16 %v3121, %v3117
      %v3170 = vpack.c.bf16 %v3122, %v3118
      %v3171 = vpack.c.bf16 %v3123, %v3119
      %v3172 = vpack.c.bf16 %v3124, %v3120
      %v3173 = vpack.c.bf16 %v3129, %v3125
      %v3174 = vpack.c.bf16 %v3130, %v3126
      %v3175 = vpack.c.bf16 %v3131, %v3127
      %v3176 = vpack.c.bf16 %v3132, %v3128
      %v3177 = vpack.c.bf16 %v3137, %v3133
      %v3178 = vpack.c.bf16 %v3138, %v3134
      %v3179 = vpack.c.bf16 %v3139, %v3135
      %v3180 = vpack.c.bf16 %v3140, %v3136
      %v3181 = vpack.c.bf16 %v3145, %v3141
      %v3182 = vpack.c.bf16 %v3146, %v3142
      %v3183 = vpack.c.bf16 %v3147, %v3143
      %v3184 = vpack.c.bf16 %v3148, %v3144
      %v3185 = vpack.c.bf16 %v3153, %v3149
      %v3186 = vpack.c.bf16 %v3154, %v3150
      %v3187 = vpack.c.bf16 %v3155, %v3151
      %v3188 = vpack.c.bf16 %v3156, %v3152
      %v3189 = vld [vmem:[%s3] sm:$0xf]
      %v3190 = vld [vmem:[%s3 + $0x4] sm:$0xf]
      %v3191 = vld [vmem:[%s3 + $0x8] sm:$0xf]
      %v3192 = vld [vmem:[%s3 + $0xc] sm:$0xf]
      %v3193 = vld [vmem:[%s3 + $0x10] sm:$0xf]
      %v3194 = vld [vmem:[%s3 + $0x14] sm:$0xf]
      %v3195 = vld [vmem:[%s3 + $0x18] sm:$0xf]
      %v3196 = vld [vmem:[%s3 + $0x1c] sm:$0xf]
      %v3197 = vld [vmem:[%s3 + $0x20] sm:$0xf]
      %v3198 = vld [vmem:[%s3 + $0x24] sm:$0xf]
      %v3199 = vld [vmem:[%s3 + $0x28] sm:$0xf]
      %v3200 = vld [vmem:[%s3 + $0x2c] sm:$0xf]
      %v3201 = vld [vmem:[%s3 + $0x30] sm:$0xf]
      %v3202 = vld [vmem:[%s3 + $0x34] sm:$0xf]
      %v3203 = vld [vmem:[%s3 + $0x38] sm:$0xf]
      %v3204 = vld [vmem:[%s3 + $0x3c] sm:$0xf]
      %v3205 = vld [vmem:[%s3 + $0x40] sm:$0xf]
      %v3206 = vld [vmem:[%s3 + $0x44] sm:$0xf]
      %v3207 = vld [vmem:[%s3 + $0x48] sm:$0xf]
      %v3208 = vld [vmem:[%s3 + $0x4c] sm:$0xf]
      %v3209 = vld [vmem:[%s3 + $0x50] sm:$0xf]
      %v3210 = vld [vmem:[%s3 + $0x54] sm:$0xf]
      %v3211 = vld [vmem:[%s3 + $0x58] sm:$0xf]
      %v3212 = vld [vmem:[%s3 + $0x5c] sm:$0xf]
      %v3213 = vld [vmem:[%s3 + $0x60] sm:$0xf]
      %v3214 = vld [vmem:[%s3 + $0x64] sm:$0xf]
      %v3215 = vld [vmem:[%s3 + $0x68] sm:$0xf]
      %v3216 = vld [vmem:[%s3 + $0x6c] sm:$0xf]
      %v3217 = vld [vmem:[%s3 + $0x70] sm:$0xf]
      %v3218 = vld [vmem:[%s3 + $0x74] sm:$0xf]
      %v3219 = vld [vmem:[%s3 + $0x78] sm:$0xf]
      %v3220 = vld [vmem:[%s3 + $0x7c] sm:$0xf]
      %v3221 = vld [vmem:[%s3 + $0x80] sm:$0xf]
      %v3222 = vld [vmem:[%s3 + $0x84] sm:$0xf]
      %v3223 = vld [vmem:[%s3 + $0x88] sm:$0xf]
      %v3224 = vld [vmem:[%s3 + $0x8c] sm:$0xf]
      %v3225 = vld [vmem:[%s3 + $0x90] sm:$0xf]
      %v3226 = vld [vmem:[%s3 + $0x94] sm:$0xf]
      %v3227 = vld [vmem:[%s3 + $0x98] sm:$0xf]
      %v3228 = vld [vmem:[%s3 + $0x9c] sm:$0xf]
      %v3229 = vld [vmem:[%s3 + $0xa0] sm:$0xf]
      %v3230 = vld [vmem:[%s3 + $0xa4] sm:$0xf]
      %v3231 = vld [vmem:[%s3 + $0xa8] sm:$0xf]
      %v3232 = vld [vmem:[%s3 + $0xac] sm:$0xf]
      %v3233 = vld [vmem:[%s3 + $0xb0] sm:$0xf]
      %v3234 = vld [vmem:[%s3 + $0xb4] sm:$0xf]
      %v3235 = vld [vmem:[%s3 + $0xb8] sm:$0xf]
      %v3236 = vld [vmem:[%s3 + $0xbc] sm:$0xf]
      %v3237 = vld [vmem:[%s3 + $0xc0] sm:$0xf]
      %v3238 = vld [vmem:[%s4] sm:$0x1]
      %v3240 = vperm.slane %v3238, 0
      %v3291 = vunpack.c.l.b16 %v3189
      %v3292 = vunpack.c.l.b16 %v3190
      %v3293 = vunpack.c.l.b16 %v3191
      %v3294 = vunpack.c.l.b16 %v3192
      %v3295 = vunpack.c.l.b16 %v3193
      %v3296 = vunpack.c.l.b16 %v3194
      %v3297 = vunpack.c.l.b16 %v3195
      %v3298 = vunpack.c.l.b16 %v3196
      %v3299 = vunpack.c.l.b16 %v3197
      %v3300 = vunpack.c.l.b16 %v3198
      %v3301 = vunpack.c.l.b16 %v3199
      %v3302 = vunpack.c.l.b16 %v3200
      %v3303 = vunpack.c.l.b16 %v3201
      %v3304 = vunpack.c.l.b16 %v3202
      %v3305 = vunpack.c.l.b16 %v3203
      %v3306 = vunpack.c.l.b16 %v3204
      %v3307 = vunpack.c.l.b16 %v3205
      %v3308 = vunpack.c.l.b16 %v3206
      %v3309 = vunpack.c.l.b16 %v3207
      %v3310 = vunpack.c.l.b16 %v3208
      %v3311 = vunpack.c.l.b16 %v3209
      %v3312 = vunpack.c.l.b16 %v3210
      %v3313 = vunpack.c.l.b16 %v3211
      %v3314 = vunpack.c.l.b16 %v3212
      %v3315 = vunpack.c.l.b16 %v3213
      %v3316 = vunpack.c.l.b16 %v3214
      %v3317 = vunpack.c.l.b16 %v3215
      %v3318 = vunpack.c.l.b16 %v3216
      %v3319 = vunpack.c.l.b16 %v3217
      %v3320 = vunpack.c.l.b16 %v3218
      %v3321 = vunpack.c.l.b16 %v3219
      %v3322 = vunpack.c.l.b16 %v3220
      %v3323 = vunpack.c.l.b16 %v3221
      %v3324 = vunpack.c.l.b16 %v3222
      %v3325 = vunpack.c.l.b16 %v3223
      %v3326 = vunpack.c.l.b16 %v3224
      %v3327 = vunpack.c.l.b16 %v3225
      %v3328 = vunpack.c.l.b16 %v3226
      %v3329 = vunpack.c.l.b16 %v3227
      %v3330 = vunpack.c.l.b16 %v3228
      %v3331 = vunpack.c.l.b16 %v3229
      %v3332 = vunpack.c.l.b16 %v3230
      %v3333 = vunpack.c.l.b16 %v3231
      %v3334 = vunpack.c.l.b16 %v3232
      %v3335 = vunpack.c.l.b16 %v3233
      %v3336 = vunpack.c.l.b16 %v3234
      %v3337 = vunpack.c.l.b16 %v3235
      %v3338 = vunpack.c.l.b16 %v3236
      %v3339 = vunpack.c.l.b16 %v3237
      %v3340 = vpack.c.b16 %v3292, %v3291
      %v3341 = vpack.c.b16 %v3294, %v3293
      %v3342 = vpack.c.b16 %v3296, %v3295
      %v3343 = vpack.c.b16 %v3298, %v3297
      %v3344 = vpack.c.b16 %v3300, %v3299
      %v3345 = vpack.c.b16 %v3302, %v3301
      %v3346 = vpack.c.b16 %v3304, %v3303
      %v3347 = vpack.c.b16 %v3306, %v3305
      %v3348 = vpack.c.b16 %v3308, %v3307
      %v3349 = vpack.c.b16 %v3310, %v3309
      %v3350 = vpack.c.b16 %v3312, %v3311
      %v3351 = vpack.c.b16 %v3314, %v3313
      %v3352 = vpack.c.b16 %v3316, %v3315
      %v3353 = vpack.c.b16 %v3318, %v3317
      %v3354 = vpack.c.b16 %v3320, %v3319
      %v3355 = vpack.c.b16 %v3322, %v3321
      %v3356 = vpack.c.b16 %v3324, %v3323
      %v3357 = vpack.c.b16 %v3326, %v3325
      %v3358 = vpack.c.b16 %v3328, %v3327
      %v3359 = vpack.c.b16 %v3330, %v3329
      %v3360 = vpack.c.b16 %v3332, %v3331
      %v3361 = vpack.c.b16 %v3334, %v3333
      %v3362 = vpack.c.b16 %v3336, %v3335
      %v3363 = vpack.c.b16 %v3338, %v3337
      %v3364 = vpack.c.b16 %v3339, %v3339
      %vm3389 = vcmask 64512
      %v3391 = vsel %vm3389, %v3160, 0
      %v3394 = vsel %vm3389, %v3164, 0
      %v3397 = vsel %vm3389, %v3168, 0
      %v3400 = vsel %vm3389, %v3172, 0
      %v3403 = vsel %vm3389, %v3176, 0
      %v3406 = vsel %vm3389, %v3180, 0
      %v3409 = vsel %vm3389, %v3184, 0
      %v3412 = vsel %vm3389, %v3188, 0
      %vm3414 = vcmask 1043456
      %v3416 = vsel %vm3414, %v3364, 0
      %3418 = vmatpush.bf16.msra.mxu0 %v3347
      %3419 = vmatpush.bf16.msra.mxu0 %v3346
      %3420 = vmatpush.bf16.msra.mxu0 %v3345
      %3421 = vmatpush.bf16.msra.mxu0 %v3344
      %3422 = vmatpush.bf16.msra.mxu0 %v3343
      %3423 = vmatpush.bf16.msra.mxu0 %v3342
      %3424 = vmatpush.bf16.msra.mxu0 %v3341
      %3425 = vmatpush.bf16.msra.mxu0 %v3340
      %3426 = vmatmul.bf16.gmra.mxu0 %v3157
      %v3427 = vpop.f32.mrf.mxu0
      %v3428 = vadd.f32 %v3240, %v3427
      %v3429 = vpop.f32.mrf.mxu0
      %v3430 = vadd.f32 %v3240, %v3429
      %3431 = vmatmul.bf16.gmra.mxu0 %v3161
      %v3432 = vpop.f32.mrf.mxu0
      %v3433 = vadd.f32 %v3240, %v3432
      %v3434 = vpop.f32.mrf.mxu0
      %v3435 = vadd.f32 %v3240, %v3434
      %3436 = vmatmul.bf16.gmra.mxu0 %v3165
      %v3437 = vpop.f32.mrf.mxu0
      %v3438 = vadd.f32 %v3240, %v3437
      %v3439 = vpop.f32.mrf.mxu0
      %v3440 = vadd.f32 %v3240, %v3439
      %3441 = vmatmul.bf16.gmra.mxu0 %v3169
      %v3442 = vpop.f32.mrf.mxu0
      %v3443 = vadd.f32 %v3240, %v3442
      %v3444 = vpop.f32.mrf.mxu0
      %v3445 = vadd.f32 %v3240, %v3444
      %3446 = vmatmul.bf16.gmra.mxu0 %v3173
      %v3447 = vpop.f32.mrf.mxu0
      %v3448 = vadd.f32 %v3240, %v3447
      %v3449 = vpop.f32.mrf.mxu0
      %v3450 = vadd.f32 %v3240, %v3449
      %3451 = vmatmul.bf16.gmra.mxu0 %v3177
      %v3452 = vpop.f32.mrf.mxu0
      %v3453 = vadd.f32 %v3240, %v3452
      %v3454 = vpop.f32.mrf.mxu0
      %v3455 = vadd.f32 %v3240, %v3454
      %3456 = vmatmul.bf16.gmra.mxu0 %v3181
      %v3457 = vpop.f32.mrf.mxu0
      %v3458 = vadd.f32 %v3240, %v3457
      %v3459 = vpop.f32.mrf.mxu0
      %v3460 = vadd.f32 %v3240, %v3459
      %3461 = vmatmul.bf16.gmra.mxu0 %v3185
      %v3462 = vpop.f32.mrf.mxu0
      %v3463 = vadd.f32 %v3240, %v3462
      %v3464 = vpop.f32.mrf.mxu0
      %v3465 = vadd.f32 %v3240, %v3464
      %3466 = vdwg.mxu0
      %3467 = vmatpush.bf16.msra.mxu0 %v3355
      %3468 = vmatpush.bf16.msra.mxu0 %v3354
      %3469 = vmatpush.bf16.msra.mxu0 %v3353
      %3470 = vmatpush.bf16.msra.mxu0 %v3352
      %3471 = vmatpush.bf16.msra.mxu0 %v3351
      %3472 = vmatpush.bf16.msra.mxu0 %v3350
      %3473 = vmatpush.bf16.msra.mxu0 %v3349
      %3474 = vmatpush.bf16.msra.mxu0 %v3348
      %3475 = vmatmul.bf16.gmra.mxu0 %v3158
      %v3476 = vpop.f32.mrf.mxu0
      %v3477 = vadd.f32 %v3428, %v3476
      %v3478 = vpop.f32.mrf.mxu0
      %v3479 = vadd.f32 %v3430, %v3478
      %3480 = vmatmul.bf16.gmra.mxu0 %v3162
      %v3481 = vpop.f32.mrf.mxu0
      %v3482 = vadd.f32 %v3433, %v3481
      %v3483 = vpop.f32.mrf.mxu0
      %v3484 = vadd.f32 %v3435, %v3483
      %3485 = vmatmul.bf16.gmra.mxu0 %v3166
      %v3486 = vpop.f32.mrf.mxu0
      %v3487 = vadd.f32 %v3438, %v3486
      %v3488 = vpop.f32.mrf.mxu0
      %v3489 = vadd.f32 %v3440, %v3488
      %3490 = vmatmul.bf16.gmra.mxu0 %v3170
      %v3491 = vpop.f32.mrf.mxu0
      %v3492 = vadd.f32 %v3443, %v3491
      %v3493 = vpop.f32.mrf.mxu0
      %v3494 = vadd.f32 %v3445, %v3493
      %3495 = vmatmul.bf16.gmra.mxu0 %v3174
      %v3496 = vpop.f32.mrf.mxu0
      %v3497 = vadd.f32 %v3448, %v3496
      %v3498 = vpop.f32.mrf.mxu0
      %v3499 = vadd.f32 %v3450, %v3498
      %3500 = vmatmul.bf16.gmra.mxu0 %v3178
      %v3501 = vpop.f32.mrf.mxu0
      %v3502 = vadd.f32 %v3453, %v3501
      %v3503 = vpop.f32.mrf.mxu0
      %v3504 = vadd.f32 %v3455, %v3503
      %3505 = vmatmul.bf16.gmra.mxu0 %v3182
      %v3506 = vpop.f32.mrf.mxu0
      %v3507 = vadd.f32 %v3458, %v3506
      %v3508 = vpop.f32.mrf.mxu0
      %v3509 = vadd.f32 %v3460, %v3508
      %3510 = vmatmul.bf16.gmra.mxu0 %v3186
      %v3511 = vpop.f32.mrf.mxu0
      %v3512 = vadd.f32 %v3463, %v3511
      %v3513 = vpop.f32.mrf.mxu0
      %v3514 = vadd.f32 %v3465, %v3513
      %3515 = vdwg.mxu0
      %3516 = vmatpush.bf16.msra.mxu0 %v3363
      %3517 = vmatpush.bf16.msra.mxu0 %v3362
      %3518 = vmatpush.bf16.msra.mxu0 %v3361
      %3519 = vmatpush.bf16.msra.mxu0 %v3360
      %3520 = vmatpush.bf16.msra.mxu0 %v3359
      %3521 = vmatpush.bf16.msra.mxu0 %v3358
      %3522 = vmatpush.bf16.msra.mxu0 %v3357
      %3523 = vmatpush.bf16.msra.mxu0 %v3356
      %3524 = vmatmul.bf16.gmra.mxu0 %v3159
      %v3525 = vpop.f32.mrf.mxu0
      %v3526 = vadd.f32 %v3477, %v3525
      %v3527 = vpop.f32.mrf.mxu0
      %v3528 = vadd.f32 %v3479, %v3527
      %3529 = vmatmul.bf16.gmra.mxu0 %v3163
      %v3530 = vpop.f32.mrf.mxu0
      %v3531 = vadd.f32 %v3482, %v3530
      %v3532 = vpop.f32.mrf.mxu0
      %v3533 = vadd.f32 %v3484, %v3532
      %3534 = vmatmul.bf16.gmra.mxu0 %v3167
      %v3535 = vpop.f32.mrf.mxu0
      %v3536 = vadd.f32 %v3487, %v3535
      %v3537 = vpop.f32.mrf.mxu0
      %v3538 = vadd.f32 %v3489, %v3537
      %3539 = vmatmul.bf16.gmra.mxu0 %v3171
      %v3540 = vpop.f32.mrf.mxu0
      %v3541 = vadd.f32 %v3492, %v3540
      %v3542 = vpop.f32.mrf.mxu0
      %v3543 = vadd.f32 %v3494, %v3542
      %3544 = vmatmul.bf16.gmra.mxu0 %v3175
      %v3545 = vpop.f32.mrf.mxu0
      %v3546 = vadd.f32 %v3497, %v3545
      %v3547 = vpop.f32.mrf.mxu0
      %v3548 = vadd.f32 %v3499, %v3547
      %3549 = vmatmul.bf16.gmra.mxu0 %v3179
      %v3550 = vpop.f32.mrf.mxu0
      %v3551 = vadd.f32 %v3502, %v3550
      %v3552 = vpop.f32.mrf.mxu0
      %v3553 = vadd.f32 %v3504, %v3552
      %3554 = vmatmul.bf16.gmra.mxu0 %v3183
      %v3555 = vpop.f32.mrf.mxu0
      %v3556 = vadd.f32 %v3507, %v3555
      %v3557 = vpop.f32.mrf.mxu0
      %v3558 = vadd.f32 %v3509, %v3557
      %3559 = vmatmul.bf16.gmra.mxu0 %v3187
      %v3560 = vpop.f32.mrf.mxu0
      %v3561 = vadd.f32 %v3512, %v3560
      %v3562 = vpop.f32.mrf.mxu0
      %v3563 = vadd.f32 %v3514, %v3562
      %3564 = vdwg.mxu0
      %3565 = vmatpush.bf16.msra.mxu0 0
      %3566 = vmatpush.bf16.msra.mxu0 0
      %3567 = vmatpush.bf16.msra.mxu0 0
      %3568 = vmatpush.bf16.msra.mxu0 0
      %3569 = vmatpush.bf16.msra.mxu0 0
      %3570 = vmatpush.bf16.msra.mxu0 0
      %3571 = vmatpush.bf16.msra.mxu0 0
      %3572 = vmatpush.bf16.msra.mxu0 %v3416
      %3573 = vmatmul.bf16.gmra.mxu0 %v3391
      %v3574 = vpop.f32.mrf.mxu0
      %v3575 = vadd.f32 %v3526, %v3574
      %v3576 = vpop.f32.mrf.mxu0
      %v3577 = vadd.f32 %v3528, %v3576
      %3578 = vmatmul.bf16.gmra.mxu0 %v3394
      %v3579 = vpop.f32.mrf.mxu0
      %v3580 = vadd.f32 %v3531, %v3579
      %v3581 = vpop.f32.mrf.mxu0
      %v3582 = vadd.f32 %v3533, %v3581
      %3583 = vmatmul.bf16.gmra.mxu0 %v3397
      %v3584 = vpop.f32.mrf.mxu0
      %v3585 = vadd.f32 %v3536, %v3584
      %v3586 = vpop.f32.mrf.mxu0
      %v3587 = vadd.f32 %v3538, %v3586
      %3588 = vmatmul.bf16.gmra.mxu0 %v3400
      %v3589 = vpop.f32.mrf.mxu0
      %v3590 = vadd.f32 %v3541, %v3589
      %v3591 = vpop.f32.mrf.mxu0
      %v3592 = vadd.f32 %v3543, %v3591
      %3593 = vmatmul.bf16.gmra.mxu0 %v3403
      %v3594 = vpop.f32.mrf.mxu0
      %v3595 = vadd.f32 %v3546, %v3594
      %v3596 = vpop.f32.mrf.mxu0
      %v3597 = vadd.f32 %v3548, %v3596
      %3598 = vmatmul.bf16.gmra.mxu0 %v3406
      %v3599 = vpop.f32.mrf.mxu0
      %v3600 = vadd.f32 %v3551, %v3599
      %v3601 = vpop.f32.mrf.mxu0
      %v3602 = vadd.f32 %v3553, %v3601
      %3603 = vmatmul.bf16.gmra.mxu0 %v3409
      %v3604 = vpop.f32.mrf.mxu0
      %v3605 = vadd.f32 %v3556, %v3604
      %v3606 = vpop.f32.mrf.mxu0
      %v3607 = vadd.f32 %v3558, %v3606
      %3608 = vmatmul.bf16.gmra.mxu0 %v3412
      %v3609 = vpop.f32.mrf.mxu0
      %v3610 = vadd.f32 %v3561, %v3609
      %v3611 = vpop.f32.mrf.mxu0
      %v3612 = vadd.f32 %v3563, %v3611
      %3613 = vdwg.mxu0
      %v3614 = vmax.f32 %v3575, 0.0
      %v3615 = vmax.f32 %v3577, 0.0
      %v3616 = vmax.f32 %v3580, 0.0
      %v3617 = vmax.f32 %v3582, 0.0
      %v3618 = vmax.f32 %v3585, 0.0
      %v3619 = vmax.f32 %v3587, 0.0
      %v3620 = vmax.f32 %v3590, 0.0
      %v3621 = vmax.f32 %v3592, 0.0
      %v3622 = vmax.f32 %v3595, 0.0
      %v3623 = vmax.f32 %v3597, 0.0
      %v3624 = vmax.f32 %v3600, 0.0
      %v3625 = vmax.f32 %v3602, 0.0
      %v3626 = vmax.f32 %v3605, 0.0
      %v3627 = vmax.f32 %v3607, 0.0
      %v3628 = vmax.f32 %v3610, 0.0
      %v3629 = vmax.f32 %v3612, 0.0
      %v3630 = vpack.c.bf16 %v3615, %v3614
      %v3631 = vpack.c.bf16 %v3617, %v3616
      %v3632 = vpack.c.bf16 %v3619, %v3618
      %v3633 = vpack.c.bf16 %v3621, %v3620
      %v3634 = vpack.c.bf16 %v3623, %v3622
      %v3635 = vpack.c.bf16 %v3625, %v3624
      %v3636 = vpack.c.bf16 %v3627, %v3626
      %v3637 = vpack.c.bf16 %v3629, %v3628
      %v3638 = vld [vmem:[%s5] sm:$0xff]
      %v3639 = vld [vmem:[%s5 + $0x8] sm:$0xff]
      %v3640 = vld [vmem:[%s6] sm:$0xf]
      %v3642 = vperm.slane %v3640, 0
      %v3643 = vperm.slane %v3640, 1
      %v3644 = vperm.slane %v3640, 2
      %v3645 = vperm.slane %v3640, 3
      %v3652 = vunpack.c.l.b16 %v3638
      %v3653 = vunpack.c.h.b16 %v3638
      %v3654 = vunpack.c.l.b16 %v3639
      %v3655 = vunpack.c.h.b16 %v3639
      %v3656 = vpack.c.b16 %v3652, %v3652
      %v3657 = vpack.c.b16 %v3653, %v3653
      %v3658 = vpack.c.b16 %v3654, %v3654
      %v3659 = vpack.c.b16 %v3655, %v3655
      %v3661 = vsel %vm3389, %v3630, 0
      %v3664 = vsel %vm3389, %v3631, 0
      %v3667 = vsel %vm3389, %v3632, 0
      %v3670 = vsel %vm3389, %v3633, 0
      %v3673 = vsel %vm3389, %v3634, 0
      %v3676 = vsel %vm3389, %v3635, 0
      %v3679 = vsel %vm3389, %v3636, 0
      %v3682 = vsel %vm3389, %v3637, 0
      %v3685 = vsel %vm3414, %v3656, 0
      %v3688 = vsel %vm3414, %v3657, 0
      %v3691 = vsel %vm3414, %v3658, 0
      %v3694 = vsel %vm3414, %v3659, 0
      %3696 = vmatpush.bf16.msra.mxu0 0
      %3697 = vmatpush.bf16.msra.mxu0 0
      %3698 = vmatpush.bf16.msra.mxu0 0
      %3699 = vmatpush.bf16.msra.mxu0 0
      %3700 = vmatpush.bf16.msra.mxu0 0
      %3701 = vmatpush.bf16.msra.mxu0 0
      %3702 = vmatpush.bf16.msra.mxu0 0
      %3703 = vmatpush.bf16.msra.mxu0 %v3685
      %3704 = vmatmul.bf16.gmra.mxu0 %v3661
      %v3705 = vpop.f32.mrf.mxu0
      %v3706 = vadd.f32 %v3642, %v3705
      %v3707 = vpop.f32.mrf.mxu0
      %v3708 = vadd.f32 %v3642, %v3707
      %3709 = vmatmul.bf16.gmra.mxu0 %v3664
      %v3710 = vpop.f32.mrf.mxu0
      %v3711 = vadd.f32 %v3642, %v3710
      %v3712 = vpop.f32.mrf.mxu0
      %v3713 = vadd.f32 %v3642, %v3712
      %3714 = vmatmul.bf16.gmra.mxu0 %v3667
      %v3715 = vpop.f32.mrf.mxu0
      %v3716 = vadd.f32 %v3642, %v3715
      %v3717 = vpop.f32.mrf.mxu0
      %v3718 = vadd.f32 %v3642, %v3717
      %3719 = vmatmul.bf16.gmra.mxu0 %v3670
      %v3720 = vpop.f32.mrf.mxu0
      %v3721 = vadd.f32 %v3642, %v3720
      %v3722 = vpop.f32.mrf.mxu0
      %v3723 = vadd.f32 %v3642, %v3722
      %3724 = vmatmul.bf16.gmra.mxu0 %v3673
      %v3725 = vpop.f32.mrf.mxu0
      %v3726 = vadd.f32 %v3642, %v3725
      %v3727 = vpop.f32.mrf.mxu0
      %v3728 = vadd.f32 %v3642, %v3727
      %3729 = vmatmul.bf16.gmra.mxu0 %v3676
      %v3730 = vpop.f32.mrf.mxu0
      %v3731 = vadd.f32 %v3642, %v3730
      %v3732 = vpop.f32.mrf.mxu0
      %v3733 = vadd.f32 %v3642, %v3732
      %3734 = vmatmul.bf16.gmra.mxu0 %v3679
      %v3735 = vpop.f32.mrf.mxu0
      %v3736 = vadd.f32 %v3642, %v3735
      %v3737 = vpop.f32.mrf.mxu0
      %v3738 = vadd.f32 %v3642, %v3737
      %3739 = vmatmul.bf16.gmra.mxu0 %v3682
      %v3740 = vpop.f32.mrf.mxu0
      %v3741 = vadd.f32 %v3642, %v3740
      %v3742 = vpop.f32.mrf.mxu0
      %v3743 = vadd.f32 %v3642, %v3742
      %3744 = vdwg.mxu0
      %3745 = vmatpush.bf16.msra.mxu0 0
      %3746 = vmatpush.bf16.msra.mxu0 0
      %3747 = vmatpush.bf16.msra.mxu0 0
      %3748 = vmatpush.bf16.msra.mxu0 0
      %3749 = vmatpush.bf16.msra.mxu0 0
      %3750 = vmatpush.bf16.msra.mxu0 0
      %3751 = vmatpush.bf16.msra.mxu0 0
      %3752 = vmatpush.bf16.msra.mxu0 %v3688
      %3753 = vmatmul.bf16.gmra.mxu0 %v3661
      %v3754 = vpop.f32.mrf.mxu0
      %v3755 = vadd.f32 %v3643, %v3754
      %v3756 = vpop.f32.mrf.mxu0
      %v3757 = vadd.f32 %v3643, %v3756
      %3758 = vmatmul.bf16.gmra.mxu0 %v3664
      %v3759 = vpop.f32.mrf.mxu0
      %v3760 = vadd.f32 %v3643, %v3759
      %v3761 = vpop.f32.mrf.mxu0
      %v3762 = vadd.f32 %v3643, %v3761
      %3763 = vmatmul.bf16.gmra.mxu0 %v3667
      %v3764 = vpop.f32.mrf.mxu0
      %v3765 = vadd.f32 %v3643, %v3764
      %v3766 = vpop.f32.mrf.mxu0
      %v3767 = vadd.f32 %v3643, %v3766
      %3768 = vmatmul.bf16.gmra.mxu0 %v3670
      %v3769 = vpop.f32.mrf.mxu0
      %v3770 = vadd.f32 %v3643, %v3769
      %v3771 = vpop.f32.mrf.mxu0
      %v3772 = vadd.f32 %v3643, %v3771
      %3773 = vmatmul.bf16.gmra.mxu0 %v3673
      %v3774 = vpop.f32.mrf.mxu0
      %v3775 = vadd.f32 %v3643, %v3774
      %v3776 = vpop.f32.mrf.mxu0
      %v3777 = vadd.f32 %v3643, %v3776
      %3778 = vmatmul.bf16.gmra.mxu0 %v3676
      %v3779 = vpop.f32.mrf.mxu0
      %v3780 = vadd.f32 %v3643, %v3779
      %v3781 = vpop.f32.mrf.mxu0
      %v3782 = vadd.f32 %v3643, %v3781
      %3783 = vmatmul.bf16.gmra.mxu0 %v3679
      %v3784 = vpop.f32.mrf.mxu0
      %v3785 = vadd.f32 %v3643, %v3784
      %v3786 = vpop.f32.mrf.mxu0
      %v3787 = vadd.f32 %v3643, %v3786
      %3788 = vmatmul.bf16.gmra.mxu0 %v3682
      %v3789 = vpop.f32.mrf.mxu0
      %v3790 = vadd.f32 %v3643, %v3789
      %v3791 = vpop.f32.mrf.mxu0
      %v3792 = vadd.f32 %v3643, %v3791
      %3793 = vdwg.mxu0
      %3794 = vmatpush.bf16.msra.mxu0 0
      %3795 = vmatpush.bf16.msra.mxu0 0
      %3796 = vmatpush.bf16.msra.mxu0 0
      %3797 = vmatpush.bf16.msra.mxu0 0
      %3798 = vmatpush.bf16.msra.mxu0 0
      %3799 = vmatpush.bf16.msra.mxu0 0
      %3800 = vmatpush.bf16.msra.mxu0 0
      %3801 = vmatpush.bf16.msra.mxu0 %v3691
      %3802 = vmatmul.bf16.gmra.mxu0 %v3661
      %v3803 = vpop.f32.mrf.mxu0
      %v3804 = vadd.f32 %v3644, %v3803
      %v3805 = vpop.f32.mrf.mxu0
      %v3806 = vadd.f32 %v3644, %v3805
      %3807 = vmatmul.bf16.gmra.mxu0 %v3664
      %v3808 = vpop.f32.mrf.mxu0
      %v3809 = vadd.f32 %v3644, %v3808
      %v3810 = vpop.f32.mrf.mxu0
      %v3811 = vadd.f32 %v3644, %v3810
      %3812 = vmatmul.bf16.gmra.mxu0 %v3667
      %v3813 = vpop.f32.mrf.mxu0
      %v3814 = vadd.f32 %v3644, %v3813
      %v3815 = vpop.f32.mrf.mxu0
      %v3816 = vadd.f32 %v3644, %v3815
      %3817 = vmatmul.bf16.gmra.mxu0 %v3670
      %v3818 = vpop.f32.mrf.mxu0
      %v3819 = vadd.f32 %v3644, %v3818
      %v3820 = vpop.f32.mrf.mxu0
      %v3821 = vadd.f32 %v3644, %v3820
      %3822 = vmatmul.bf16.gmra.mxu0 %v3673
      %v3823 = vpop.f32.mrf.mxu0
      %v3824 = vadd.f32 %v3644, %v3823
      %v3825 = vpop.f32.mrf.mxu0
      %v3826 = vadd.f32 %v3644, %v3825
      %3827 = vmatmul.bf16.gmra.mxu0 %v3676
      %v3828 = vpop.f32.mrf.mxu0
      %v3829 = vadd.f32 %v3644, %v3828
      %v3830 = vpop.f32.mrf.mxu0
      %v3831 = vadd.f32 %v3644, %v3830
      %3832 = vmatmul.bf16.gmra.mxu0 %v3679
      %v3833 = vpop.f32.mrf.mxu0
      %v3834 = vadd.f32 %v3644, %v3833
      %v3835 = vpop.f32.mrf.mxu0
      %v3836 = vadd.f32 %v3644, %v3835
      %3837 = vmatmul.bf16.gmra.mxu0 %v3682
      %v3838 = vpop.f32.mrf.mxu0
      %v3839 = vadd.f32 %v3644, %v3838
      %v3840 = vpop.f32.mrf.mxu0
      %v3841 = vadd.f32 %v3644, %v3840
      %3842 = vdwg.mxu0
      %3843 = vmatpush.bf16.msra.mxu0 0
      %3844 = vmatpush.bf16.msra.mxu0 0
      %3845 = vmatpush.bf16.msra.mxu0 0
      %3846 = vmatpush.bf16.msra.mxu0 0
      %3847 = vmatpush.bf16.msra.mxu0 0
      %3848 = vmatpush.bf16.msra.mxu0 0
      %3849 = vmatpush.bf16.msra.mxu0 0
      %3850 = vmatpush.bf16.msra.mxu0 %v3694
      %3851 = vmatmul.bf16.gmra.mxu0 %v3661
      %v3852 = vpop.f32.mrf.mxu0
      %v3853 = vadd.f32 %v3645, %v3852
      %v3854 = vpop.f32.mrf.mxu0
      %v3855 = vadd.f32 %v3645, %v3854
      %3856 = vmatmul.bf16.gmra.mxu0 %v3664
      %v3857 = vpop.f32.mrf.mxu0
      %v3858 = vadd.f32 %v3645, %v3857
      %v3859 = vpop.f32.mrf.mxu0
      %v3860 = vadd.f32 %v3645, %v3859
      %3861 = vmatmul.bf16.gmra.mxu0 %v3667
      %v3862 = vpop.f32.mrf.mxu0
      %v3863 = vadd.f32 %v3645, %v3862
      %v3864 = vpop.f32.mrf.mxu0
      %v3865 = vadd.f32 %v3645, %v3864
      %3866 = vmatmul.bf16.gmra.mxu0 %v3670
      %v3867 = vpop.f32.mrf.mxu0
      %v3868 = vadd.f32 %v3645, %v3867
      %v3869 = vpop.f32.mrf.mxu0
      %v3870 = vadd.f32 %v3645, %v3869
      %3871 = vmatmul.bf16.gmra.mxu0 %v3673
      %v3872 = vpop.f32.mrf.mxu0
      %v3873 = vadd.f32 %v3645, %v3872
      %v3874 = vpop.f32.mrf.mxu0
      %v3875 = vadd.f32 %v3645, %v3874
      %3876 = vmatmul.bf16.gmra.mxu0 %v3676
      %v3877 = vpop.f32.mrf.mxu0
      %v3878 = vadd.f32 %v3645, %v3877
      %v3879 = vpop.f32.mrf.mxu0
      %v3880 = vadd.f32 %v3645, %v3879
      %3881 = vmatmul.bf16.gmra.mxu0 %v3679
      %v3882 = vpop.f32.mrf.mxu0
      %v3883 = vadd.f32 %v3645, %v3882
      %v3884 = vpop.f32.mrf.mxu0
      %v3885 = vadd.f32 %v3645, %v3884
      %3886 = vmatmul.bf16.gmra.mxu0 %v3682
      %v3887 = vpop.f32.mrf.mxu0
      %v3888 = vadd.f32 %v3645, %v3887
      %v3889 = vpop.f32.mrf.mxu0
      %v3890 = vadd.f32 %v3645, %v3889
      %3891 = vdwg.mxu0
      %v3892 = vmax.f32 %v3706, 0.0
      %v3893 = vmax.f32 %v3755, 0.0
      %v3894 = vmax.f32 %v3804, 0.0
      %v3895 = vmax.f32 %v3853, 0.0
      %v3896 = vmax.f32 %v3708, 0.0
      %v3897 = vmax.f32 %v3757, 0.0
      %v3898 = vmax.f32 %v3806, 0.0
      %v3899 = vmax.f32 %v3855, 0.0
      %v3900 = vmax.f32 %v3711, 0.0
      %v3901 = vmax.f32 %v3760, 0.0
      %v3902 = vmax.f32 %v3809, 0.0
      %v3903 = vmax.f32 %v3858, 0.0
      %v3904 = vmax.f32 %v3713, 0.0
      %v3905 = vmax.f32 %v3762, 0.0
      %v3906 = vmax.f32 %v3811, 0.0
      %v3907 = vmax.f32 %v3860, 0.0
      %v3908 = vmax.f32 %v3716, 0.0
      %v3909 = vmax.f32 %v3765, 0.0
      %v3910 = vmax.f32 %v3814, 0.0
      %v3911 = vmax.f32 %v3863, 0.0
      %v3912 = vmax.f32 %v3718, 0.0
      %v3913 = vmax.f32 %v3767, 0.0
      %v3914 = vmax.f32 %v3816, 0.0
      %v3915 = vmax.f32 %v3865, 0.0
      %v3916 = vmax.f32 %v3721, 0.0
      %v3917 = vmax.f32 %v3770, 0.0
      %v3918 = vmax.f32 %v3819, 0.0
      %v3919 = vmax.f32 %v3868, 0.0
      %v3920 = vmax.f32 %v3723, 0.0
      %v3921 = vmax.f32 %v3772, 0.0
      %v3922 = vmax.f32 %v3821, 0.0
      %v3923 = vmax.f32 %v3870, 0.0
      %v3924 = vmax.f32 %v3726, 0.0
      %v3925 = vmax.f32 %v3775, 0.0
      %v3926 = vmax.f32 %v3824, 0.0
      %v3927 = vmax.f32 %v3873, 0.0
      %v3928 = vmax.f32 %v3728, 0.0
      %v3929 = vmax.f32 %v3777, 0.0
      %v3930 = vmax.f32 %v3826, 0.0
      %v3931 = vmax.f32 %v3875, 0.0
      %v3932 = vmax.f32 %v3731, 0.0
      %v3933 = vmax.f32 %v3780, 0.0
      %v3934 = vmax.f32 %v3829, 0.0
      %v3935 = vmax.f32 %v3878, 0.0
      %v3936 = vmax.f32 %v3733, 0.0
      %v3937 = vmax.f32 %v3782, 0.0
      %v3938 = vmax.f32 %v3831, 0.0
      %v3939 = vmax.f32 %v3880, 0.0
      %v3940 = vmax.f32 %v3736, 0.0
      %v3941 = vmax.f32 %v3785, 0.0
      %v3942 = vmax.f32 %v3834, 0.0
      %v3943 = vmax.f32 %v3883, 0.0
      %v3944 = vmax.f32 %v3738, 0.0
      %v3945 = vmax.f32 %v3787, 0.0
      %v3946 = vmax.f32 %v3836, 0.0
      %v3947 = vmax.f32 %v3885, 0.0
      %v3948 = vmax.f32 %v3741, 0.0
      %v3949 = vmax.f32 %v3790, 0.0
      %v3950 = vmax.f32 %v3839, 0.0
      %v3951 = vmax.f32 %v3888, 0.0
      %v3952 = vmax.f32 %v3743, 0.0
      %v3953 = vmax.f32 %v3792, 0.0
      %v3954 = vmax.f32 %v3841, 0.0
      %v3955 = vmax.f32 %v3890, 0.0
      %v3956 = vpack.c.bf16 %v3896, %v3892
      %v3957 = vpack.c.bf16 %v3897, %v3893
      %v3958 = vpack.c.bf16 %v3898, %v3894
      %v3959 = vpack.c.bf16 %v3899, %v3895
      %v3960 = vpack.c.bf16 %v3904, %v3900
      %v3961 = vpack.c.bf16 %v3905, %v3901
      %v3962 = vpack.c.bf16 %v3906, %v3902
      %v3963 = vpack.c.bf16 %v3907, %v3903
      %v3964 = vpack.c.bf16 %v3912, %v3908
      %v3965 = vpack.c.bf16 %v3913, %v3909
      %v3966 = vpack.c.bf16 %v3914, %v3910
      %v3967 = vpack.c.bf16 %v3915, %v3911
      %v3968 = vpack.c.bf16 %v3920, %v3916
      %v3969 = vpack.c.bf16 %v3921, %v3917
      %v3970 = vpack.c.bf16 %v3922, %v3918
      %v3971 = vpack.c.bf16 %v3923, %v3919
      %v3972 = vpack.c.bf16 %v3928, %v3924
      %v3973 = vpack.c.bf16 %v3929, %v3925
      %v3974 = vpack.c.bf16 %v3930, %v3926
      %v3975 = vpack.c.bf16 %v3931, %v3927
      %v3976 = vpack.c.bf16 %v3936, %v3932
      %v3977 = vpack.c.bf16 %v3937, %v3933
      %v3978 = vpack.c.bf16 %v3938, %v3934
      %v3979 = vpack.c.bf16 %v3939, %v3935
      %v3980 = vpack.c.bf16 %v3944, %v3940
      %v3981 = vpack.c.bf16 %v3945, %v3941
      %v3982 = vpack.c.bf16 %v3946, %v3942
      %v3983 = vpack.c.bf16 %v3947, %v3943
      %v3984 = vpack.c.bf16 %v3952, %v3948
      %v3985 = vpack.c.bf16 %v3953, %v3949
      %v3986 = vpack.c.bf16 %v3954, %v3950
      %v3987 = vpack.c.bf16 %v3955, %v3951
      %v3988 = vld [vmem:[%s7] sm:$0xff]
      %v3989 = vld [vmem:[%s7 + $0x8] sm:$0xff]
      %v3990 = vld [vmem:[%s7 + $0x10] sm:$0xff]
      %v3991 = vld [vmem:[%s7 + $0x18] sm:$0xf]
      %v3992 = vld [vmem:[%s7 + $0x1c] sm:$0xff]
      %v3993 = vld [vmem:[%s7 + $0x24] sm:$0xff]
      %v3994 = vld [vmem:[%s7 + $0x2c] sm:$0xff]
      %v3995 = vld [vmem:[%s7 + $0x34] sm:$0xf]
      %v3996 = vld [vmem:[%s7 + $0x38] sm:$0xff]
      %v3997 = vld [vmem:[%s7 + $0x40] sm:$0xff]
      %v3998 = vld [vmem:[%s7 + $0x48] sm:$0xff]
      %v3999 = vld [vmem:[%s7 + $0x50] sm:$0xf]
      %v4000 = vld [vmem:[%s7 + $0x54] sm:$0xff]
      %v4001 = vld [vmem:[%s7 + $0x5c] sm:$0xff]
      %v4002 = vld [vmem:[%s7 + $0x64] sm:$0xff]
      %v4003 = vld [vmem:[%s7 + $0x6c] sm:$0xf]
      %v4004 = vld [vmem:[%s7 + $0x70] sm:$0xff]
      %v4005 = vld [vmem:[%s7 + $0x78] sm:$0xff]
      %v4006 = vld [vmem:[%s7 + $0x80] sm:$0xff]
      %v4007 = vld [vmem:[%s7 + $0x88] sm:$0xf]
      %v4008 = vld [vmem:[%s7 + $0x8c] sm:$0xff]
      %v4009 = vld [vmem:[%s7 + $0x94] sm:$0xff]
      %v4010 = vld [vmem:[%s7 + $0x9c] sm:$0xff]
      %v4011 = vld [vmem:[%s7 + $0xa4] sm:$0xf]
      %v4012 = vld [vmem:[%s7 + $0xa8] sm:$0xff]
      %v4013 = vld [vmem:[%s7 + $0xb0] sm:$0xff]
      %v4014 = vld [vmem:[%s7 + $0xb8] sm:$0xff]
      %v4015 = vld [vmem:[%s7 + $0xc0] sm:$0xf]
      %v4016 = vld [vmem:[%s7 + $0xc4] sm:$0xff]
      %v4017 = vld [vmem:[%s7 + $0xcc] sm:$0xff]
      %v4018 = vld [vmem:[%s7 + $0xd4] sm:$0xff]
      %v4019 = vld [vmem:[%s7 + $0xdc] sm:$0xf]
      %v4020 = vld [vmem:[%s7 + $0xe0] sm:$0xff]
      %v4021 = vld [vmem:[%s7 + $0xe8] sm:$0xff]
      %v4022 = vld [vmem:[%s7 + $0xf0] sm:$0xff]
      %v4023 = vld [vmem:[%s7 + $0xf8] sm:$0xf]
      %v4024 = vld [vmem:[%s7 + $0xfc] sm:$0xff]
      %v4025 = vld [vmem:[%s7 + $0x104] sm:$0xff]
      %v4026 = vld [vmem:[%s7 + $0x10c] sm:$0xff]
      %v4027 = vld [vmem:[%s7 + $0x114] sm:$0xf]
      %v4028 = vld [vmem:[%s7 + $0x118] sm:$0xff]
      %v4029 = vld [vmem:[%s7 + $0x120] sm:$0xff]
      %v4030 = vld [vmem:[%s7 + $0x128] sm:$0xff]
      %v4031 = vld [vmem:[%s7 + $0x130] sm:$0xf]
      %v4032 = vld [vmem:[%s7 + $0x134] sm:$0xff]
      %v4033 = vld [vmem:[%s7 + $0x13c] sm:$0xff]
      %v4034 = vld [vmem:[%s7 + $0x144] sm:$0xff]
      %v4035 = vld [vmem:[%s7 + $0x14c] sm:$0xf]
      %v4036 = vld [vmem:[%s7 + $0x150] sm:$0xff]
      %v4037 = vld [vmem:[%s7 + $0x158] sm:$0xff]
      %v4038 = vld [vmem:[%s7 + $0x160] sm:$0xff]
      %v4039 = vld [vmem:[%s7 + $0x168] sm:$0xf]
      %v4040 = vld [vmem:[%s7 + $0x16c] sm:$0xff]
      %v4041 = vld [vmem:[%s7 + $0x174] sm:$0xff]
      %v4042 = vld [vmem:[%s7 + $0x17c] sm:$0xff]
      %v4043 = vld [vmem:[%s7 + $0x184] sm:$0xf]
      %v4044 = vld [vmem:[%s7 + $0x188] sm:$0xff]
      %v4045 = vld [vmem:[%s7 + $0x190] sm:$0xff]
      %v4046 = vld [vmem:[%s7 + $0x198] sm:$0xff]
      %v4047 = vld [vmem:[%s7 + $0x1a0] sm:$0xf]
      %v4048 = vld [vmem:[%s7 + $0x1a4] sm:$0xff]
      %v4049 = vld [vmem:[%s7 + $0x1ac] sm:$0xff]
      %v4050 = vld [vmem:[%s7 + $0x1b4] sm:$0xff]
      %v4051 = vld [vmem:[%s7 + $0x1bc] sm:$0xf]
      %v4052 = vld [vmem:[%s7 + $0x1c0] sm:$0xff]
      %v4053 = vld [vmem:[%s7 + $0x1c8] sm:$0xff]
      %v4054 = vld [vmem:[%s7 + $0x1d0] sm:$0xff]
      %v4055 = vld [vmem:[%s7 + $0x1d8] sm:$0xf]
      %v4056 = vld [vmem:[%s7 + $0x1dc] sm:$0xff]
      %v4057 = vld [vmem:[%s7 + $0x1e4] sm:$0xff]
      %v4058 = vld [vmem:[%s7 + $0x1ec] sm:$0xff]
      %v4059 = vld [vmem:[%s7 + $0x1f4] sm:$0xf]
      %v4060 = vld [vmem:[%s7 + $0x1f8] sm:$0xff]
      %v4061 = vld [vmem:[%s7 + $0x200] sm:$0xff]
      %v4062 = vld [vmem:[%s7 + $0x208] sm:$0xff]
      %v4063 = vld [vmem:[%s7 + $0x210] sm:$0xf]
      %v4064 = vld [vmem:[%s7 + $0x214] sm:$0xff]
      %v4065 = vld [vmem:[%s7 + $0x21c] sm:$0xff]
      %v4066 = vld [vmem:[%s7 + $0x224] sm:$0xff]
      %v4067 = vld [vmem:[%s7 + $0x22c] sm:$0xf]
      %v4068 = vld [vmem:[%s7 + $0x230] sm:$0xff]
      %v4069 = vld [vmem:[%s7 + $0x238] sm:$0xff]
      %v4070 = vld [vmem:[%s7 + $0x240] sm:$0xff]
      %v4071 = vld [vmem:[%s7 + $0x248] sm:$0xf]
      %v4072 = vld [vmem:[%s7 + $0x24c] sm:$0xff]
      %v4073 = vld [vmem:[%s7 + $0x254] sm:$0xff]
      %v4074 = vld [vmem:[%s7 + $0x25c] sm:$0xff]
      %v4075 = vld [vmem:[%s7 + $0x264] sm:$0xf]
      %v4076 = vld [vmem:[%s7 + $0x268] sm:$0xff]
      %v4077 = vld [vmem:[%s7 + $0x270] sm:$0xff]
      %v4078 = vld [vmem:[%s7 + $0x278] sm:$0xff]
      %v4079 = vld [vmem:[%s7 + $0x280] sm:$0xf]
      %v4080 = vld [vmem:[%s7 + $0x284] sm:$0xff]
      %v4081 = vld [vmem:[%s7 + $0x28c] sm:$0xff]
      %v4082 = vld [vmem:[%s7 + $0x294] sm:$0xff]
      %v4083 = vld [vmem:[%s7 + $0x29c] sm:$0xf]
      %v4084 = vld [vmem:[%s7 + $0x2a0] sm:$0xff]
      %v4085 = vld [vmem:[%s7 + $0x2a8] sm:$0xff]
      %v4086 = vld [vmem:[%s7 + $0x2b0] sm:$0xff]
      %v4087 = vld [vmem:[%s7 + $0x2b8] sm:$0xf]
      %v4088 = vld [vmem:[%s7 + $0x2bc] sm:$0xff]
      %v4089 = vld [vmem:[%s7 + $0x2c4] sm:$0xff]
      %v4090 = vld [vmem:[%s7 + $0x2cc] sm:$0xff]
      %v4091 = vld [vmem:[%s7 + $0x2d4] sm:$0xf]
      %v4092 = vld [vmem:[%s7 + $0x2d8] sm:$0xff]
      %v4093 = vld [vmem:[%s7 + $0x2e0] sm:$0xff]
      %v4094 = vld [vmem:[%s7 + $0x2e8] sm:$0xff]
      %v4095 = vld [vmem:[%s7 + $0x2f0] sm:$0xf]
      %v4096 = vld [vmem:[%s7 + $0x2f4] sm:$0xff]
      %v4097 = vld [vmem:[%s7 + $0x2fc] sm:$0xff]
      %v4098 = vld [vmem:[%s7 + $0x304] sm:$0xff]
      %v4099 = vld [vmem:[%s7 + $0x30c] sm:$0xf]
      %v4100 = vld [vmem:[%s7 + $0x310] sm:$0xff]
      %v4101 = vld [vmem:[%s7 + $0x318] sm:$0xff]
      %v4102 = vld [vmem:[%s7 + $0x320] sm:$0xff]
      %v4103 = vld [vmem:[%s7 + $0x328] sm:$0xf]
      %v4104 = vld [vmem:[%s7 + $0x32c] sm:$0xff]
      %v4105 = vld [vmem:[%s7 + $0x334] sm:$0xff]
      %v4106 = vld [vmem:[%s7 + $0x33c] sm:$0xff]
      %v4107 = vld [vmem:[%s7 + $0x344] sm:$0xf]
      %v4108 = vld [vmem:[%s7 + $0x348] sm:$0xff]
      %v4109 = vld [vmem:[%s7 + $0x350] sm:$0xff]
      %v4110 = vld [vmem:[%s7 + $0x358] sm:$0xff]
      %v4111 = vld [vmem:[%s7 + $0x360] sm:$0xf]
      %v4112 = vld [vmem:[%s7 + $0x364] sm:$0xff]
      %v4113 = vld [vmem:[%s7 + $0x36c] sm:$0xff]
      %v4114 = vld [vmem:[%s7 + $0x374] sm:$0xff]
      %v4115 = vld [vmem:[%s7 + $0x37c] sm:$0xf]
      %v4116 = vld [vmem:[%s7 + $0x380] sm:$0xff]
      %v4117 = vld [vmem:[%s7 + $0x388] sm:$0xff]
      %v4118 = vld [vmem:[%s7 + $0x390] sm:$0xff]
      %v4119 = vld [vmem:[%s7 + $0x398] sm:$0xf]
      %v4120 = vld [vmem:[%s7 + $0x39c] sm:$0xff]
      %v4121 = vld [vmem:[%s7 + $0x3a4] sm:$0xff]
      %v4122 = vld [vmem:[%s7 + $0x3ac] sm:$0xff]
      %v4123 = vld [vmem:[%s7 + $0x3b4] sm:$0xf]
      %v4124 = vld [vmem:[%s7 + $0x3b8] sm:$0xff]
      %v4125 = vld [vmem:[%s7 + $0x3c0] sm:$0xff]
      %v4126 = vld [vmem:[%s7 + $0x3c8] sm:$0xff]
      %v4127 = vld [vmem:[%s7 + $0x3d0] sm:$0xf]
      %v4128 = vld [vmem:[%s7 + $0x3d4] sm:$0xff]
      %v4129 = vld [vmem:[%s7 + $0x3dc] sm:$0xff]
      %v4130 = vld [vmem:[%s7 + $0x3e4] sm:$0xff]
      %v4131 = vld [vmem:[%s7 + $0x3ec] sm:$0xf]
      %v4132 = vld [vmem:[%s7 + $0x3f0] sm:$0xff]
      %v4133 = vld [vmem:[%s7 + $0x3f8] sm:$0xff]
      %v4134 = vld [vmem:[%s7 + $0x400] sm:$0xff]
      %v4135 = vld [vmem:[%s7 + $0x408] sm:$0xf]
      %v4136 = vld [vmem:[%s7 + $0x40c] sm:$0xff]
      %v4137 = vld [vmem:[%s7 + $0x414] sm:$0xff]
      %v4138 = vld [vmem:[%s7 + $0x41c] sm:$0xff]
      %v4139 = vld [vmem:[%s7 + $0x424] sm:$0xf]
      %v4140 = vld [vmem:[%s7 + $0x428] sm:$0xff]
      %v4141 = vld [vmem:[%s7 + $0x430] sm:$0xff]
      %v4142 = vld [vmem:[%s7 + $0x438] sm:$0xff]
      %v4143 = vld [vmem:[%s7 + $0x440] sm:$0xf]
      %v4144 = vld [vmem:[%s7 + $0x444] sm:$0xff]
      %v4145 = vld [vmem:[%s7 + $0x44c] sm:$0xff]
      %v4146 = vld [vmem:[%s7 + $0x454] sm:$0xff]
      %v4147 = vld [vmem:[%s7 + $0x45c] sm:$0xf]
      %v4148 = vld [vmem:[%s7 + $0x460] sm:$0xff]
      %v4149 = vld [vmem:[%s7 + $0x468] sm:$0xff]
      %v4150 = vld [vmem:[%s7 + $0x470] sm:$0xff]
      %v4151 = vld [vmem:[%s7 + $0x478] sm:$0xf]
      %v4152 = vld [vmem:[%s7 + $0x47c] sm:$0xff]
      %v4153 = vld [vmem:[%s7 + $0x484] sm:$0xff]
      %v4154 = vld [vmem:[%s7 + $0x48c] sm:$0xff]
      %v4155 = vld [vmem:[%s7 + $0x494] sm:$0xf]
      %v4156 = vld [vmem:[%s7 + $0x498] sm:$0xff]
      %v4157 = vld [vmem:[%s7 + $0x4a0] sm:$0xff]
      %v4158 = vld [vmem:[%s7 + $0x4a8] sm:$0xff]
      %v4159 = vld [vmem:[%s7 + $0x4b0] sm:$0xf]
      %v4160 = vld [vmem:[%s7 + $0x4b4] sm:$0xff]
      %v4161 = vld [vmem:[%s7 + $0x4bc] sm:$0xff]
      %v4162 = vld [vmem:[%s7 + $0x4c4] sm:$0xff]
      %v4163 = vld [vmem:[%s7 + $0x4cc] sm:$0xf]
      %v4164 = vld [vmem:[%s7 + $0x4d0] sm:$0xff]
      %v4165 = vld [vmem:[%s7 + $0x4d8] sm:$0xff]
      %v4166 = vld [vmem:[%s7 + $0x4e0] sm:$0xff]
      %v4167 = vld [vmem:[%s7 + $0x4e8] sm:$0xf]
      %v4168 = vld [vmem:[%s7 + $0x4ec] sm:$0xff]
      %v4169 = vld [vmem:[%s7 + $0x4f4] sm:$0xff]
      %v4170 = vld [vmem:[%s7 + $0x4fc] sm:$0xff]
      %v4171 = vld [vmem:[%s7 + $0x504] sm:$0xf]
      %v4172 = vld [vmem:[%s7 + $0x508] sm:$0xff]
      %v4173 = vld [vmem:[%s7 + $0x510] sm:$0xff]
      %v4174 = vld [vmem:[%s7 + $0x518] sm:$0xff]
      %v4175 = vld [vmem:[%s7 + $0x520] sm:$0xf]
      %v4176 = vld [vmem:[%s7 + $0x524] sm:$0xff]
      %v4177 = vld [vmem:[%s7 + $0x52c] sm:$0xff]
      %v4178 = vld [vmem:[%s7 + $0x534] sm:$0xff]
      %v4179 = vld [vmem:[%s7 + $0x53c] sm:$0xf]
      %v4180 = vld [vmem:[%s7 + $0x540] sm:$0xff]
      %v4181 = vld [vmem:[%s7 + $0x548] sm:$0xff]
      %v4182 = vld [vmem:[%s7 + $0x550] sm:$0xff]
      %v4183 = vld [vmem:[%s7 + $0x558] sm:$0xf]
      %v4184 = vld [vmem:[%s8] sm:$0x7f]
      %v4186 = vperm.slane %v4184, 0
      %v4187 = vperm.slane %v4184, 1
      %v4188 = vperm.slane %v4184, 2
      %v4189 = vperm.slane %v4184, 3
      %v4190 = vperm.slane %v4184, 4
      %v4191 = vperm.slane %v4184, 5
      %v4192 = vperm.slane %v4184, 6
      %v4396 = vunpack.c.l.b16 %v3988
      %v4397 = vunpack.c.h.b16 %v3988
      %v4398 = vunpack.c.l.b16 %v3989
      %v4399 = vunpack.c.h.b16 %v3989
      %v4400 = vunpack.c.l.b16 %v3990
      %v4401 = vunpack.c.h.b16 %v3990
      %v4402 = vunpack.c.l.b16 %v3991
      %v4403 = vunpack.c.l.b16 %v3992
      %v4404 = vunpack.c.h.b16 %v3992
      %v4405 = vunpack.c.l.b16 %v3993
      %v4406 = vunpack.c.h.b16 %v3993
      %v4407 = vunpack.c.l.b16 %v3994
      %v4408 = vunpack.c.h.b16 %v3994
      %v4409 = vunpack.c.l.b16 %v3995
      %v4410 = vunpack.c.l.b16 %v3996
      %v4411 = vunpack.c.h.b16 %v3996
      %v4412 = vunpack.c.l.b16 %v3997
      %v4413 = vunpack.c.h.b16 %v3997
      %v4414 = vunpack.c.l.b16 %v3998
      %v4415 = vunpack.c.h.b16 %v3998
      %v4416 = vunpack.c.l.b16 %v3999
      %v4417 = vunpack.c.l.b16 %v4000
      %v4418 = vunpack.c.h.b16 %v4000
      %v4419 = vunpack.c.l.b16 %v4001
      %v4420 = vunpack.c.h.b16 %v4001
      %v4421 = vunpack.c.l.b16 %v4002
      %v4422 = vunpack.c.h.b16 %v4002
      %v4423 = vunpack.c.l.b16 %v4003
      %v4424 = vunpack.c.l.b16 %v4004
      %v4425 = vunpack.c.h.b16 %v4004
      %v4426 = vunpack.c.l.b16 %v4005
      %v4427 = vunpack.c.h.b16 %v4005
      %v4428 = vunpack.c.l.b16 %v4006
      %v4429 = vunpack.c.h.b16 %v4006
      %v4430 = vunpack.c.l.b16 %v4007
      %v4431 = vunpack.c.l.b16 %v4008
      %v4432 = vunpack.c.h.b16 %v4008
      %v4433 = vunpack.c.l.b16 %v4009
      %v4434 = vunpack.c.h.b16 %v4009
      %v4435 = vunpack.c.l.b16 %v4010
      %v4436 = vunpack.c.h.b16 %v4010
      %v4437 = vunpack.c.l.b16 %v4011
      %v4438 = vunpack.c.l.b16 %v4012
      %v4439 = vunpack.c.h.b16 %v4012
      %v4440 = vunpack.c.l.b16 %v4013
      %v4441 = vunpack.c.h.b16 %v4013
      %v4442 = vunpack.c.l.b16 %v4014
      %v4443 = vunpack.c.h.b16 %v4014
      %v4444 = vunpack.c.l.b16 %v4015
      %v4445 = vunpack.c.l.b16 %v4016
      %v4446 = vunpack.c.h.b16 %v4016
      %v4447 = vunpack.c.l.b16 %v4017
      %v4448 = vunpack.c.h.b16 %v4017
      %v4449 = vunpack.c.l.b16 %v4018
      %v4450 = vunpack.c.h.b16 %v4018
      %v4451 = vunpack.c.l.b16 %v4019
      %v4452 = vunpack.c.l.b16 %v4020
      %v4453 = vunpack.c.h.b16 %v4020
      %v4454 = vunpack.c.l.b16 %v4021
      %v4455 = vunpack.c.h.b16 %v4021
      %v4456 = vunpack.c.l.b16 %v4022
      %v4457 = vunpack.c.h.b16 %v4022
      %v4458 = vunpack.c.l.b16 %v4023
      %v4459 = vunpack.c.l.b16 %v4024
      %v4460 = vunpack.c.h.b16 %v4024
      %v4461 = vunpack.c.l.b16 %v4025
      %v4462 = vunpack.c.h.b16 %v4025
      %v4463 = vunpack.c.l.b16 %v4026
      %v4464 = vunpack.c.h.b16 %v4026
      %v4465 = vunpack.c.l.b16 %v4027
      %v4466 = vunpack.c.l.b16 %v4028
      %v4467 = vunpack.c.h.b16 %v4028
      %v4468 = vunpack.c.l.b16 %v4029
      %v4469 = vunpack.c.h.b16 %v4029
      %v4470 = vunpack.c.l.b16 %v4030
      %v4471 = vunpack.c.h.b16 %v4030
      %v4472 = vunpack.c.l.b16 %v4031
      %v4473 = vunpack.c.l.b16 %v4032
      %v4474 = vunpack.c.h.b16 %v4032
      %v4475 = vunpack.c.l.b16 %v4033
      %v4476 = vunpack.c.h.b16 %v4033
      %v4477 = vunpack.c.l.b16 %v4034
      %v4478 = vunpack.c.h.b16 %v4034
      %v4479 = vunpack.c.l.b16 %v4035
      %v4480 = vunpack.c.l.b16 %v4036
      %v4481 = vunpack.c.h.b16 %v4036
      %v4482 = vunpack.c.l.b16 %v4037
      %v4483 = vunpack.c.h.b16 %v4037
      %v4484 = vunpack.c.l.b16 %v4038
      %v4485 = vunpack.c.h.b16 %v4038
      %v4486 = vunpack.c.l.b16 %v4039
      %v4487 = vunpack.c.l.b16 %v4040
      %v4488 = vunpack.c.h.b16 %v4040
      %v4489 = vunpack.c.l.b16 %v4041
      %v4490 = vunpack.c.h.b16 %v4041
      %v4491 = vunpack.c.l.b16 %v4042
      %v4492 = vunpack.c.h.b16 %v4042
      %v4493 = vunpack.c.l.b16 %v4043
      %v4494 = vunpack.c.l.b16 %v4044
      %v4495 = vunpack.c.h.b16 %v4044
      %v4496 = vunpack.c.l.b16 %v4045
      %v4497 = vunpack.c.h.b16 %v4045
      %v4498 = vunpack.c.l.b16 %v4046
      %v4499 = vunpack.c.h.b16 %v4046
      %v4500 = vunpack.c.l.b16 %v4047
      %v4501 = vunpack.c.l.b16 %v4048
      %v4502 = vunpack.c.h.b16 %v4048
      %v4503 = vunpack.c.l.b16 %v4049
      %v4504 = vunpack.c.h.b16 %v4049
      %v4505 = vunpack.c.l.b16 %v4050
      %v4506 = vunpack.c.h.b16 %v4050
      %v4507 = vunpack.c.l.b16 %v4051
      %v4508 = vunpack.c.l.b16 %v4052
      %v4509 = vunpack.c.h.b16 %v4052
      %v4510 = vunpack.c.l.b16 %v4053
      %v4511 = vunpack.c.h.b16 %v4053
      %v4512 = vunpack.c.l.b16 %v4054
      %v4513 = vunpack.c.h.b16 %v4054
      %v4514 = vunpack.c.l.b16 %v4055
      %v4515 = vunpack.c.l.b16 %v4056
      %v4516 = vunpack.c.h.b16 %v4056
      %v4517 = vunpack.c.l.b16 %v4057
      %v4518 = vunpack.c.h.b16 %v4057
      %v4519 = vunpack.c.l.b16 %v4058
      %v4520 = vunpack.c.h.b16 %v4058
      %v4521 = vunpack.c.l.b16 %v4059
      %v4522 = vunpack.c.l.b16 %v4060
      %v4523 = vunpack.c.h.b16 %v4060
      %v4524 = vunpack.c.l.b16 %v4061
      %v4525 = vunpack.c.h.b16 %v4061
      %v4526 = vunpack.c.l.b16 %v4062
      %v4527 = vunpack.c.h.b16 %v4062
      %v4528 = vunpack.c.l.b16 %v4063
      %v4529 = vunpack.c.l.b16 %v4064
      %v4530 = vunpack.c.h.b16 %v4064
      %v4531 = vunpack.c.l.b16 %v4065
      %v4532 = vunpack.c.h.b16 %v4065
      %v4533 = vunpack.c.l.b16 %v4066
      %v4534 = vunpack.c.h.b16 %v4066
      %v4535 = vunpack.c.l.b16 %v4067
      %v4536 = vunpack.c.l.b16 %v4068
      %v4537 = vunpack.c.h.b16 %v4068
      %v4538 = vunpack.c.l.b16 %v4069
      %v4539 = vunpack.c.h.b16 %v4069
      %v4540 = vunpack.c.l.b16 %v4070
      %v4541 = vunpack.c.h.b16 %v4070
      %v4542 = vunpack.c.l.b16 %v4071
      %v4543 = vunpack.c.l.b16 %v4072
      %v4544 = vunpack.c.h.b16 %v4072
      %v4545 = vunpack.c.l.b16 %v4073
      %v4546 = vunpack.c.h.b16 %v4073
      %v4547 = vunpack.c.l.b16 %v4074
      %v4548 = vunpack.c.h.b16 %v4074
      %v4549 = vunpack.c.l.b16 %v4075
      %v4550 = vunpack.c.l.b16 %v4076
      %v4551 = vunpack.c.h.b16 %v4076
      %v4552 = vunpack.c.l.b16 %v4077
      %v4553 = vunpack.c.h.b16 %v4077
      %v4554 = vunpack.c.l.b16 %v4078
      %v4555 = vunpack.c.h.b16 %v4078
      %v4556 = vunpack.c.l.b16 %v4079
      %v4557 = vunpack.c.l.b16 %v4080
      %v4558 = vunpack.c.h.b16 %v4080
      %v4559 = vunpack.c.l.b16 %v4081
      %v4560 = vunpack.c.h.b16 %v4081
      %v4561 = vunpack.c.l.b16 %v4082
      %v4562 = vunpack.c.h.b16 %v4082
      %v4563 = vunpack.c.l.b16 %v4083
      %v4564 = vunpack.c.l.b16 %v4084
      %v4565 = vunpack.c.h.b16 %v4084
      %v4566 = vunpack.c.l.b16 %v4085
      %v4567 = vunpack.c.h.b16 %v4085
      %v4568 = vunpack.c.l.b16 %v4086
      %v4569 = vunpack.c.h.b16 %v4086
      %v4570 = vunpack.c.l.b16 %v4087
      %v4571 = vunpack.c.l.b16 %v4088
      %v4572 = vunpack.c.h.b16 %v4088
      %v4573 = vunpack.c.l.b16 %v4089
      %v4574 = vunpack.c.h.b16 %v4089
      %v4575 = vunpack.c.l.b16 %v4090
      %v4576 = vunpack.c.h.b16 %v4090
      %v4577 = vunpack.c.l.b16 %v4091
      %v4578 = vunpack.c.l.b16 %v4092
      %v4579 = vunpack.c.h.b16 %v4092
      %v4580 = vunpack.c.l.b16 %v4093
      %v4581 = vunpack.c.h.b16 %v4093
      %v4582 = vunpack.c.l.b16 %v4094
      %v4583 = vunpack.c.h.b16 %v4094
      %v4584 = vunpack.c.l.b16 %v4095
      %v4585 = vunpack.c.l.b16 %v4096
      %v4586 = vunpack.c.h.b16 %v4096
      %v4587 = vunpack.c.l.b16 %v4097
      %v4588 = vunpack.c.h.b16 %v4097
      %v4589 = vunpack.c.l.b16 %v4098
      %v4590 = vunpack.c.h.b16 %v4098
      %v4591 = vunpack.c.l.b16 %v4099
      %v4592 = vunpack.c.l.b16 %v4100
      %v4593 = vunpack.c.h.b16 %v4100
      %v4594 = vunpack.c.l.b16 %v4101
      %v4595 = vunpack.c.h.b16 %v4101
      %v4596 = vunpack.c.l.b16 %v4102
      %v4597 = vunpack.c.h.b16 %v4102
      %v4598 = vunpack.c.l.b16 %v4103
      %v4599 = vunpack.c.l.b16 %v4104
      %v4600 = vunpack.c.h.b16 %v4104
      %v4601 = vunpack.c.l.b16 %v4105
      %v4602 = vunpack.c.h.b16 %v4105
      %v4603 = vunpack.c.l.b16 %v4106
      %v4604 = vunpack.c.h.b16 %v4106
      %v4605 = vunpack.c.l.b16 %v4107
      %v4606 = vunpack.c.l.b16 %v4108
      %v4607 = vunpack.c.h.b16 %v4108
      %v4608 = vunpack.c.l.b16 %v4109
      %v4609 = vunpack.c.h.b16 %v4109
      %v4610 = vunpack.c.l.b16 %v4110
      %v4611 = vunpack.c.h.b16 %v4110
      %v4612 = vunpack.c.l.b16 %v4111
      %v4613 = vunpack.c.l.b16 %v4112
      %v4614 = vunpack.c.h.b16 %v4112
      %v4615 = vunpack.c.l.b16 %v4113
      %v4616 = vunpack.c.h.b16 %v4113
      %v4617 = vunpack.c.l.b16 %v4114
      %v4618 = vunpack.c.h.b16 %v4114
      %v4619 = vunpack.c.l.b16 %v4115
      %v4620 = vunpack.c.l.b16 %v4116
      %v4621 = vunpack.c.h.b16 %v4116
      %v4622 = vunpack.c.l.b16 %v4117
      %v4623 = vunpack.c.h.b16 %v4117
      %v4624 = vunpack.c.l.b16 %v4118
      %v4625 = vunpack.c.h.b16 %v4118
      %v4626 = vunpack.c.l.b16 %v4119
      %v4627 = vunpack.c.l.b16 %v4120
      %v4628 = vunpack.c.h.b16 %v4120
      %v4629 = vunpack.c.l.b16 %v4121
      %v4630 = vunpack.c.h.b16 %v4121
      %v4631 = vunpack.c.l.b16 %v4122
      %v4632 = vunpack.c.h.b16 %v4122
      %v4633 = vunpack.c.l.b16 %v4123
      %v4634 = vunpack.c.l.b16 %v4124
      %v4635 = vunpack.c.h.b16 %v4124
      %v4636 = vunpack.c.l.b16 %v4125
      %v4637 = vunpack.c.h.b16 %v4125
      %v4638 = vunpack.c.l.b16 %v4126
      %v4639 = vunpack.c.h.b16 %v4126
      %v4640 = vunpack.c.l.b16 %v4127
      %v4641 = vunpack.c.l.b16 %v4128
      %v4642 = vunpack.c.h.b16 %v4128
      %v4643 = vunpack.c.l.b16 %v4129
      %v4644 = vunpack.c.h.b16 %v4129
      %v4645 = vunpack.c.l.b16 %v4130
      %v4646 = vunpack.c.h.b16 %v4130
      %v4647 = vunpack.c.l.b16 %v4131
      %v4648 = vunpack.c.l.b16 %v4132
      %v4649 = vunpack.c.h.b16 %v4132
      %v4650 = vunpack.c.l.b16 %v4133
      %v4651 = vunpack.c.h.b16 %v4133
      %v4652 = vunpack.c.l.b16 %v4134
      %v4653 = vunpack.c.h.b16 %v4134
      %v4654 = vunpack.c.l.b16 %v4135
      %v4655 = vunpack.c.l.b16 %v4136
      %v4656 = vunpack.c.h.b16 %v4136
      %v4657 = vunpack.c.l.b16 %v4137
      %v4658 = vunpack.c.h.b16 %v4137
      %v4659 = vunpack.c.l.b16 %v4138
      %v4660 = vunpack.c.h.b16 %v4138
      %v4661 = vunpack.c.l.b16 %v4139
      %v4662 = vunpack.c.l.b16 %v4140
      %v4663 = vunpack.c.h.b16 %v4140
      %v4664 = vunpack.c.l.b16 %v4141
      %v4665 = vunpack.c.h.b16 %v4141
      %v4666 = vunpack.c.l.b16 %v4142
      %v4667 = vunpack.c.h.b16 %v4142
      %v4668 = vunpack.c.l.b16 %v4143
      %v4669 = vunpack.c.l.b16 %v4144
      %v4670 = vunpack.c.h.b16 %v4144
      %v4671 = vunpack.c.l.b16 %v4145
      %v4672 = vunpack.c.h.b16 %v4145
      %v4673 = vunpack.c.l.b16 %v4146
      %v4674 = vunpack.c.h.b16 %v4146
      %v4675 = vunpack.c.l.b16 %v4147
      %v4676 = vunpack.c.l.b16 %v4148
      %v4677 = vunpack.c.h.b16 %v4148
      %v4678 = vunpack.c.l.b16 %v4149
      %v4679 = vunpack.c.h.b16 %v4149
      %v4680 = vunpack.c.l.b16 %v4150
      %v4681 = vunpack.c.h.b16 %v4150
      %v4682 = vunpack.c.l.b16 %v4151
      %v4683 = vunpack.c.l.b16 %v4152
      %v4684 = vunpack.c.h.b16 %v4152
      %v4685 = vunpack.c.l.b16 %v4153
      %v4686 = vunpack.c.h.b16 %v4153
      %v4687 = vunpack.c.l.b16 %v4154
      %v4688 = vunpack.c.h.b16 %v4154
      %v4689 = vunpack.c.l.b16 %v4155
      %v4690 = vunpack.c.l.b16 %v4156
      %v4691 = vunpack.c.h.b16 %v4156
      %v4692 = vunpack.c.l.b16 %v4157
      %v4693 = vunpack.c.h.b16 %v4157
      %v4694 = vunpack.c.l.b16 %v4158
      %v4695 = vunpack.c.h.b16 %v4158
      %v4696 = vunpack.c.l.b16 %v4159
      %v4697 = vunpack.c.l.b16 %v4160
      %v4698 = vunpack.c.h.b16 %v4160
      %v4699 = vunpack.c.l.b16 %v4161
      %v4700 = vunpack.c.h.b16 %v4161
      %v4701 = vunpack.c.l.b16 %v4162
      %v4702 = vunpack.c.h.b16 %v4162
      %v4703 = vunpack.c.l.b16 %v4163
      %v4704 = vunpack.c.l.b16 %v4164
      %v4705 = vunpack.c.h.b16 %v4164
      %v4706 = vunpack.c.l.b16 %v4165
      %v4707 = vunpack.c.h.b16 %v4165
      %v4708 = vunpack.c.l.b16 %v4166
      %v4709 = vunpack.c.h.b16 %v4166
      %v4710 = vunpack.c.l.b16 %v4167
      %v4711 = vunpack.c.l.b16 %v4168
      %v4712 = vunpack.c.h.b16 %v4168
      %v4713 = vunpack.c.l.b16 %v4169
      %v4714 = vunpack.c.h.b16 %v4169
      %v4715 = vunpack.c.l.b16 %v4170
      %v4716 = vunpack.c.h.b16 %v4170
      %v4717 = vunpack.c.l.b16 %v4171
      %v4718 = vunpack.c.l.b16 %v4172
      %v4719 = vunpack.c.h.b16 %v4172
      %v4720 = vunpack.c.l.b16 %v4173
      %v4721 = vunpack.c.h.b16 %v4173
      %v4722 = vunpack.c.l.b16 %v4174
      %v4723 = vunpack.c.h.b16 %v4174
      %v4724 = vunpack.c.l.b16 %v4175
      %v4725 = vunpack.c.l.b16 %v4176
      %v4726 = vunpack.c.h.b16 %v4176
      %v4727 = vunpack.c.l.b16 %v4177
      %v4728 = vunpack.c.h.b16 %v4177
      %v4729 = vunpack.c.l.b16 %v4178
      %v4730 = vunpack.c.h.b16 %v4178
      %v4731 = vunpack.c.l.b16 %v4179
      %v4732 = vunpack.c.l.b16 %v4180
      %v4733 = vunpack.c.h.b16 %v4180
      %v4734 = vunpack.c.l.b16 %v4181
      %v4735 = vunpack.c.h.b16 %v4181
      %v4736 = vunpack.c.l.b16 %v4182
      %v4737 = vunpack.c.h.b16 %v4182
      %v4738 = vunpack.c.l.b16 %v4183
      %v4739 = vpack.c.b16 %v4403, %v4396
      %v4740 = vpack.c.b16 %v4404, %v4397
      %v4741 = vpack.c.b16 %v4405, %v4398
      %v4742 = vpack.c.b16 %v4406, %v4399
      %v4743 = vpack.c.b16 %v4407, %v4400
      %v4744 = vpack.c.b16 %v4408, %v4401
      %v4745 = vpack.c.b16 %v4409, %v4402
      %v4746 = vpack.c.b16 %v4417, %v4410
      %v4747 = vpack.c.b16 %v4418, %v4411
      %v4748 = vpack.c.b16 %v4419, %v4412
      %v4749 = vpack.c.b16 %v4420, %v4413
      %v4750 = vpack.c.b16 %v4421, %v4414
      %v4751 = vpack.c.b16 %v4422, %v4415
      %v4752 = vpack.c.b16 %v4423, %v4416
      %v4753 = vpack.c.b16 %v4431, %v4424
      %v4754 = vpack.c.b16 %v4432, %v4425
      %v4755 = vpack.c.b16 %v4433, %v4426
      %v4756 = vpack.c.b16 %v4434, %v4427
      %v4757 = vpack.c.b16 %v4435, %v4428
      %v4758 = vpack.c.b16 %v4436, %v4429
      %v4759 = vpack.c.b16 %v4437, %v4430
      %v4760 = vpack.c.b16 %v4445, %v4438
      %v4761 = vpack.c.b16 %v4446, %v4439
      %v4762 = vpack.c.b16 %v4447, %v4440
      %v4763 = vpack.c.b16 %v4448, %v4441
      %v4764 = vpack.c.b16 %v4449, %v4442
      %v4765 = vpack.c.b16 %v4450, %v4443
      %v4766 = vpack.c.b16 %v4451, %v4444
      %v4767 = vpack.c.b16 %v4459, %v4452
      %v4768 = vpack.c.b16 %v4460, %v4453
      %v4769 = vpack.c.b16 %v4461, %v4454
      %v4770 = vpack.c.b16 %v4462, %v4455
      %v4771 = vpack.c.b16 %v4463, %v4456
      %v4772 = vpack.c.b16 %v4464, %v4457
      %v4773 = vpack.c.b16 %v4465, %v4458
      %v4774 = vpack.c.b16 %v4473, %v4466
      %v4775 = vpack.c.b16 %v4474, %v4467
      %v4776 = vpack.c.b16 %v4475, %v4468
      %v4777 = vpack.c.b16 %v4476, %v4469
      %v4778 = vpack.c.b16 %v4477, %v4470
      %v4779 = vpack.c.b16 %v4478, %v4471
      %v4780 = vpack.c.b16 %v4479, %v4472
      %v4781 = vpack.c.b16 %v4487, %v4480
      %v4782 = vpack.c.b16 %v4488, %v4481
      %v4783 = vpack.c.b16 %v4489, %v4482
      %v4784 = vpack.c.b16 %v4490, %v4483
      %v4785 = vpack.c.b16 %v4491, %v4484
      %v4786 = vpack.c.b16 %v4492, %v4485
      %v4787 = vpack.c.b16 %v4493, %v4486
      %v4788 = vpack.c.b16 %v4501, %v4494
      %v4789 = vpack.c.b16 %v4502, %v4495
      %v4790 = vpack.c.b16 %v4503, %v4496
      %v4791 = vpack.c.b16 %v4504, %v4497
      %v4792 = vpack.c.b16 %v4505, %v4498
      %v4793 = vpack.c.b16 %v4506, %v4499
      %v4794 = vpack.c.b16 %v4507, %v4500
      %v4795 = vpack.c.b16 %v4515, %v4508
      %v4796 = vpack.c.b16 %v4516, %v4509
      %v4797 = vpack.c.b16 %v4517, %v4510
      %v4798 = vpack.c.b16 %v4518, %v4511
      %v4799 = vpack.c.b16 %v4519, %v4512
      %v4800 = vpack.c.b16 %v4520, %v4513
      %v4801 = vpack.c.b16 %v4521, %v4514
      %v4802 = vpack.c.b16 %v4529, %v4522
      %v4803 = vpack.c.b16 %v4530, %v4523
      %v4804 = vpack.c.b16 %v4531, %v4524
      %v4805 = vpack.c.b16 %v4532, %v4525
      %v4806 = vpack.c.b16 %v4533, %v4526
      %v4807 = vpack.c.b16 %v4534, %v4527
      %v4808 = vpack.c.b16 %v4535, %v4528
      %v4809 = vpack.c.b16 %v4543, %v4536
      %v4810 = vpack.c.b16 %v4544, %v4537
      %v4811 = vpack.c.b16 %v4545, %v4538
      %v4812 = vpack.c.b16 %v4546, %v4539
      %v4813 = vpack.c.b16 %v4547, %v4540
      %v4814 = vpack.c.b16 %v4548, %v4541
      %v4815 = vpack.c.b16 %v4549, %v4542
      %v4816 = vpack.c.b16 %v4557, %v4550
      %v4817 = vpack.c.b16 %v4558, %v4551
      %v4818 = vpack.c.b16 %v4559, %v4552
      %v4819 = vpack.c.b16 %v4560, %v4553
      %v4820 = vpack.c.b16 %v4561, %v4554
      %v4821 = vpack.c.b16 %v4562, %v4555
      %v4822 = vpack.c.b16 %v4563, %v4556
      %v4823 = vpack.c.b16 %v4571, %v4564
      %v4824 = vpack.c.b16 %v4572, %v4565
      %v4825 = vpack.c.b16 %v4573, %v4566
      %v4826 = vpack.c.b16 %v4574, %v4567
      %v4827 = vpack.c.b16 %v4575, %v4568
      %v4828 = vpack.c.b16 %v4576, %v4569
      %v4829 = vpack.c.b16 %v4577, %v4570
      %v4830 = vpack.c.b16 %v4585, %v4578
      %v4831 = vpack.c.b16 %v4586, %v4579
      %v4832 = vpack.c.b16 %v4587, %v4580
      %v4833 = vpack.c.b16 %v4588, %v4581
      %v4834 = vpack.c.b16 %v4589, %v4582
      %v4835 = vpack.c.b16 %v4590, %v4583
      %v4836 = vpack.c.b16 %v4591, %v4584
      %v4837 = vpack.c.b16 %v4599, %v4592
      %v4838 = vpack.c.b16 %v4600, %v4593
      %v4839 = vpack.c.b16 %v4601, %v4594
      %v4840 = vpack.c.b16 %v4602, %v4595
      %v4841 = vpack.c.b16 %v4603, %v4596
      %v4842 = vpack.c.b16 %v4604, %v4597
      %v4843 = vpack.c.b16 %v4605, %v4598
      %v4844 = vpack.c.b16 %v4613, %v4606
      %v4845 = vpack.c.b16 %v4614, %v4607
      %v4846 = vpack.c.b16 %v4615, %v4608
      %v4847 = vpack.c.b16 %v4616, %v4609
      %v4848 = vpack.c.b16 %v4617, %v4610
      %v4849 = vpack.c.b16 %v4618, %v4611
      %v4850 = vpack.c.b16 %v4619, %v4612
      %v4851 = vpack.c.b16 %v4627, %v4620
      %v4852 = vpack.c.b16 %v4628, %v4621
      %v4853 = vpack.c.b16 %v4629, %v4622
      %v4854 = vpack.c.b16 %v4630, %v4623
      %v4855 = vpack.c.b16 %v4631, %v4624
      %v4856 = vpack.c.b16 %v4632, %v4625
      %v4857 = vpack.c.b16 %v4633, %v4626
      %v4858 = vpack.c.b16 %v4641, %v4634
      %v4859 = vpack.c.b16 %v4642, %v4635
      %v4860 = vpack.c.b16 %v4643, %v4636
      %v4861 = vpack.c.b16 %v4644, %v4637
      %v4862 = vpack.c.b16 %v4645, %v4638
      %v4863 = vpack.c.b16 %v4646, %v4639
      %v4864 = vpack.c.b16 %v4647, %v4640
      %v4865 = vpack.c.b16 %v4655, %v4648
      %v4866 = vpack.c.b16 %v4656, %v4649
      %v4867 = vpack.c.b16 %v4657, %v4650
      %v4868 = vpack.c.b16 %v4658, %v4651
      %v4869 = vpack.c.b16 %v4659, %v4652
      %v4870 = vpack.c.b16 %v4660, %v4653
      %v4871 = vpack.c.b16 %v4661, %v4654
      %v4872 = vpack.c.b16 %v4669, %v4662
      %v4873 = vpack.c.b16 %v4670, %v4663
      %v4874 = vpack.c.b16 %v4671, %v4664
      %v4875 = vpack.c.b16 %v4672, %v4665
      %v4876 = vpack.c.b16 %v4673, %v4666
      %v4877 = vpack.c.b16 %v4674, %v4667
      %v4878 = vpack.c.b16 %v4675, %v4668
      %v4879 = vpack.c.b16 %v4683, %v4676
      %v4880 = vpack.c.b16 %v4684, %v4677
      %v4881 = vpack.c.b16 %v4685, %v4678
      %v4882 = vpack.c.b16 %v4686, %v4679
      %v4883 = vpack.c.b16 %v4687, %v4680
      %v4884 = vpack.c.b16 %v4688, %v4681
      %v4885 = vpack.c.b16 %v4689, %v4682
      %v4886 = vpack.c.b16 %v4697, %v4690
      %v4887 = vpack.c.b16 %v4698, %v4691
      %v4888 = vpack.c.b16 %v4699, %v4692
      %v4889 = vpack.c.b16 %v4700, %v4693
      %v4890 = vpack.c.b16 %v4701, %v4694
      %v4891 = vpack.c.b16 %v4702, %v4695
      %v4892 = vpack.c.b16 %v4703, %v4696
      %v4893 = vpack.c.b16 %v4711, %v4704
      %v4894 = vpack.c.b16 %v4712, %v4705
      %v4895 = vpack.c.b16 %v4713, %v4706
      %v4896 = vpack.c.b16 %v4714, %v4707
      %v4897 = vpack.c.b16 %v4715, %v4708
      %v4898 = vpack.c.b16 %v4716, %v4709
      %v4899 = vpack.c.b16 %v4717, %v4710
      %v4900 = vpack.c.b16 %v4725, %v4718
      %v4901 = vpack.c.b16 %v4726, %v4719
      %v4902 = vpack.c.b16 %v4727, %v4720
      %v4903 = vpack.c.b16 %v4728, %v4721
      %v4904 = vpack.c.b16 %v4729, %v4722
      %v4905 = vpack.c.b16 %v4730, %v4723
      %v4906 = vpack.c.b16 %v4731, %v4724
      %v4907 = vpack.c.b16 %v4732, %v4732
      %v4908 = vpack.c.b16 %v4733, %v4733
      %v4909 = vpack.c.b16 %v4734, %v4734
      %v4910 = vpack.c.b16 %v4735, %v4735
      %v4911 = vpack.c.b16 %v4736, %v4736
      %v4912 = vpack.c.b16 %v4737, %v4737
      %v4913 = vpack.c.b16 %v4738, %v4738
      %v5083 = vsel %vm3389, %v3959, 0
      %v5086 = vsel %vm3389, %v3963, 0
      %v5089 = vsel %vm3389, %v3967, 0
      %v5092 = vsel %vm3389, %v3971, 0
      %v5095 = vsel %vm3389, %v3975, 0
      %v5098 = vsel %vm3389, %v3979, 0
      %v5101 = vsel %vm3389, %v3983, 0
      %v5104 = vsel %vm3389, %v3987, 0
      %v5107 = vsel %vm3414, %v4907, 0
      %v5110 = vsel %vm3414, %v4908, 0
      %v5113 = vsel %vm3414, %v4909, 0
      %v5116 = vsel %vm3414, %v4910, 0
      %v5119 = vsel %vm3414, %v4911, 0
      %v5122 = vsel %vm3414, %v4912, 0
      %v5125 = vsel %vm3414, %v4913, 0
      %5127 = vmatpush.bf16.msra.mxu0 %v4788
      %5128 = vmatpush.bf16.msra.mxu0 %v4781
      %5129 = vmatpush.bf16.msra.mxu0 %v4774
      %5130 = vmatpush.bf16.msra.mxu0 %v4767
      %5131 = vmatpush.bf16.msra.mxu0 %v4760
      %5132 = vmatpush.bf16.msra.mxu0 %v4753
      %5133 = vmatpush.bf16.msra.mxu0 %v4746
      %5134 = vmatpush.bf16.msra.mxu0 %v4739
      %5135 = vmatmul.bf16.gmra.mxu0 %v3956
      %v5136 = vpop.f32.mrf.mxu0
      %v5137 = vadd.f32 %v4186, %v5136
      %v5138 = vpop.f32.mrf.mxu0
      %v5139 = vadd.f32 %v4186, %v5138
      %5140 = vmatmul.bf16.gmra.mxu0 %v3960
      %v5141 = vpop.f32.mrf.mxu0
      %v5142 = vadd.f32 %v4186, %v5141
      %v5143 = vpop.f32.mrf.mxu0
      %v5144 = vadd.f32 %v4186, %v5143
      %5145 = vmatmul.bf16.gmra.mxu0 %v3964
      %v5146 = vpop.f32.mrf.mxu0
      %v5147 = vadd.f32 %v4186, %v5146
      %v5148 = vpop.f32.mrf.mxu0
      %v5149 = vadd.f32 %v4186, %v5148
      %5150 = vmatmul.bf16.gmra.mxu0 %v3968
      %v5151 = vpop.f32.mrf.mxu0
      %v5152 = vadd.f32 %v4186, %v5151
      %v5153 = vpop.f32.mrf.mxu0
      %v5154 = vadd.f32 %v4186, %v5153
      %5155 = vmatmul.bf16.gmra.mxu0 %v3972
      %v5156 = vpop.f32.mrf.mxu0
      %v5157 = vadd.f32 %v4186, %v5156
      %v5158 = vpop.f32.mrf.mxu0
      %v5159 = vadd.f32 %v4186, %v5158
      %5160 = vmatmul.bf16.gmra.mxu0 %v3976
      %v5161 = vpop.f32.mrf.mxu0
      %v5162 = vadd.f32 %v4186, %v5161
      %v5163 = vpop.f32.mrf.mxu0
      %v5164 = vadd.f32 %v4186, %v5163
      %5165 = vmatmul.bf16.gmra.mxu0 %v3980
      %v5166 = vpop.f32.mrf.mxu0
      %v5167 = vadd.f32 %v4186, %v5166
      %v5168 = vpop.f32.mrf.mxu0
      %v5169 = vadd.f32 %v4186, %v5168
      %5170 = vmatmul.bf16.gmra.mxu0 %v3984
      %v5171 = vpop.f32.mrf.mxu0
      %v5172 = vadd.f32 %v4186, %v5171
      %v5173 = vpop.f32.mrf.mxu0
      %v5174 = vadd.f32 %v4186, %v5173
      %5175 = vdwg.mxu0
      %5176 = vmatpush.bf16.msra.mxu0 %v4844
      %5177 = vmatpush.bf16.msra.mxu0 %v4837
      %5178 = vmatpush.bf16.msra.mxu0 %v4830
      %5179 = vmatpush.bf16.msra.mxu0 %v4823
      %5180 = vmatpush.bf16.msra.mxu0 %v4816
      %5181 = vmatpush.bf16.msra.mxu0 %v4809
      %5182 = vmatpush.bf16.msra.mxu0 %v4802
      %5183 = vmatpush.bf16.msra.mxu0 %v4795
      %5184 = vmatmul.bf16.gmra.mxu0 %v3957
      %v5185 = vpop.f32.mrf.mxu0
      %v5186 = vadd.f32 %v5137, %v5185
      %v5187 = vpop.f32.mrf.mxu0
      %v5188 = vadd.f32 %v5139, %v5187
      %5189 = vmatmul.bf16.gmra.mxu0 %v3961
      %v5190 = vpop.f32.mrf.mxu0
      %v5191 = vadd.f32 %v5142, %v5190
      %v5192 = vpop.f32.mrf.mxu0
      %v5193 = vadd.f32 %v5144, %v5192
      %5194 = vmatmul.bf16.gmra.mxu0 %v3965
      %v5195 = vpop.f32.mrf.mxu0
      %v5196 = vadd.f32 %v5147, %v5195
      %v5197 = vpop.f32.mrf.mxu0
      %v5198 = vadd.f32 %v5149, %v5197
      %5199 = vmatmul.bf16.gmra.mxu0 %v3969
      %v5200 = vpop.f32.mrf.mxu0
      %v5201 = vadd.f32 %v5152, %v5200
      %v5202 = vpop.f32.mrf.mxu0
      %v5203 = vadd.f32 %v5154, %v5202
      %5204 = vmatmul.bf16.gmra.mxu0 %v3973
      %v5205 = vpop.f32.mrf.mxu0
      %v5206 = vadd.f32 %v5157, %v5205
      %v5207 = vpop.f32.mrf.mxu0
      %v5208 = vadd.f32 %v5159, %v5207
      %5209 = vmatmul.bf16.gmra.mxu0 %v3977
      %v5210 = vpop.f32.mrf.mxu0
      %v5211 = vadd.f32 %v5162, %v5210
      %v5212 = vpop.f32.mrf.mxu0
      %v5213 = vadd.f32 %v5164, %v5212
      %5214 = vmatmul.bf16.gmra.mxu0 %v3981
      %v5215 = vpop.f32.mrf.mxu0
      %v5216 = vadd.f32 %v5167, %v5215
      %v5217 = vpop.f32.mrf.mxu0
      %v5218 = vadd.f32 %v5169, %v5217
      %5219 = vmatmul.bf16.gmra.mxu0 %v3985
      %v5220 = vpop.f32.mrf.mxu0
      %v5221 = vadd.f32 %v5172, %v5220
      %v5222 = vpop.f32.mrf.mxu0
      %v5223 = vadd.f32 %v5174, %v5222
      %5224 = vdwg.mxu0
      %5225 = vmatpush.bf16.msra.mxu0 %v4900
      %5226 = vmatpush.bf16.msra.mxu0 %v4893
      %5227 = vmatpush.bf16.msra.mxu0 %v4886
      %5228 = vmatpush.bf16.msra.mxu0 %v4879
      %5229 = vmatpush.bf16.msra.mxu0 %v4872
      %5230 = vmatpush.bf16.msra.mxu0 %v4865
      %5231 = vmatpush.bf16.msra.mxu0 %v4858
      %5232 = vmatpush.bf16.msra.mxu0 %v4851
      %5233 = vmatmul.bf16.gmra.mxu0 %v3958
      %v5234 = vpop.f32.mrf.mxu0
      %v5235 = vadd.f32 %v5186, %v5234
      %v5236 = vpop.f32.mrf.mxu0
      %v5237 = vadd.f32 %v5188, %v5236
      %5238 = vmatmul.bf16.gmra.mxu0 %v3962
      %v5239 = vpop.f32.mrf.mxu0
      %v5240 = vadd.f32 %v5191, %v5239
      %v5241 = vpop.f32.mrf.mxu0
      %v5242 = vadd.f32 %v5193, %v5241
      %5243 = vmatmul.bf16.gmra.mxu0 %v3966
      %v5244 = vpop.f32.mrf.mxu0
      %v5245 = vadd.f32 %v5196, %v5244
      %v5246 = vpop.f32.mrf.mxu0
      %v5247 = vadd.f32 %v5198, %v5246
      %5248 = vmatmul.bf16.gmra.mxu0 %v3970
      %v5249 = vpop.f32.mrf.mxu0
      %v5250 = vadd.f32 %v5201, %v5249
      %v5251 = vpop.f32.mrf.mxu0
      %v5252 = vadd.f32 %v5203, %v5251
      %5253 = vmatmul.bf16.gmra.mxu0 %v3974
      %v5254 = vpop.f32.mrf.mxu0
      %v5255 = vadd.f32 %v5206, %v5254
      %v5256 = vpop.f32.mrf.mxu0
      %v5257 = vadd.f32 %v5208, %v5256
      %5258 = vmatmul.bf16.gmra.mxu0 %v3978
      %v5259 = vpop.f32.mrf.mxu0
      %v5260 = vadd.f32 %v5211, %v5259
      %v5261 = vpop.f32.mrf.mxu0
      %v5262 = vadd.f32 %v5213, %v5261
      %5263 = vmatmul.bf16.gmra.mxu0 %v3982
      %v5264 = vpop.f32.mrf.mxu0
      %v5265 = vadd.f32 %v5216, %v5264
      %v5266 = vpop.f32.mrf.mxu0
      %v5267 = vadd.f32 %v5218, %v5266
      %5268 = vmatmul.bf16.gmra.mxu0 %v3986
      %v5269 = vpop.f32.mrf.mxu0
      %v5270 = vadd.f32 %v5221, %v5269
      %v5271 = vpop.f32.mrf.mxu0
      %v5272 = vadd.f32 %v5223, %v5271
      %5273 = vdwg.mxu0
      %5274 = vmatpush.bf16.msra.mxu0 0
      %5275 = vmatpush.bf16.msra.mxu0 0
      %5276 = vmatpush.bf16.msra.mxu0 0
      %5277 = vmatpush.bf16.msra.mxu0 0
      %5278 = vmatpush.bf16.msra.mxu0 0
      %5279 = vmatpush.bf16.msra.mxu0 0
      %5280 = vmatpush.bf16.msra.mxu0 0
      %5281 = vmatpush.bf16.msra.mxu0 %v5107
      %5282 = vmatmul.bf16.gmra.mxu0 %v5083
      %v5283 = vpop.f32.mrf.mxu0
      %v5284 = vadd.f32 %v5235, %v5283
      %v5285 = vpop.f32.mrf.mxu0
      %v5286 = vadd.f32 %v5237, %v5285
      %5287 = vmatmul.bf16.gmra.mxu0 %v5086
      %v5288 = vpop.f32.mrf.mxu0
      %v5289 = vadd.f32 %v5240, %v5288
      %v5290 = vpop.f32.mrf.mxu0
      %v5291 = vadd.f32 %v5242, %v5290
      %5292 = vmatmul.bf16.gmra.mxu0 %v5089
      %v5293 = vpop.f32.mrf.mxu0
      %v5294 = vadd.f32 %v5245, %v5293
      %v5295 = vpop.f32.mrf.mxu0
      %v5296 = vadd.f32 %v5247, %v5295
      %5297 = vmatmul.bf16.gmra.mxu0 %v5092
      %v5298 = vpop.f32.mrf.mxu0
      %v5299 = vadd.f32 %v5250, %v5298
      %v5300 = vpop.f32.mrf.mxu0
      %v5301 = vadd.f32 %v5252, %v5300
      %5302 = vmatmul.bf16.gmra.mxu0 %v5095
      %v5303 = vpop.f32.mrf.mxu0
      %v5304 = vadd.f32 %v5255, %v5303
      %v5305 = vpop.f32.mrf.mxu0
      %v5306 = vadd.f32 %v5257, %v5305
      %5307 = vmatmul.bf16.gmra.mxu0 %v5098
      %v5308 = vpop.f32.mrf.mxu0
      %v5309 = vadd.f32 %v5260, %v5308
      %v5310 = vpop.f32.mrf.mxu0
      %v5311 = vadd.f32 %v5262, %v5310
      %5312 = vmatmul.bf16.gmra.mxu0 %v5101
      %v5313 = vpop.f32.mrf.mxu0
      %v5314 = vadd.f32 %v5265, %v5313
      %v5315 = vpop.f32.mrf.mxu0
      %v5316 = vadd.f32 %v5267, %v5315
      %5317 = vmatmul.bf16.gmra.mxu0 %v5104
      %v5318 = vpop.f32.mrf.mxu0
      %v5319 = vadd.f32 %v5270, %v5318
      %v5320 = vpop.f32.mrf.mxu0
      %v5321 = vadd.f32 %v5272, %v5320
      %5322 = vdwg.mxu0
      %5323 = vmatpush.bf16.msra.mxu0 %v4789
      %5324 = vmatpush.bf16.msra.mxu0 %v4782
      %5325 = vmatpush.bf16.msra.mxu0 %v4775
      %5326 = vmatpush.bf16.msra.mxu0 %v4768
      %5327 = vmatpush.bf16.msra.mxu0 %v4761
      %5328 = vmatpush.bf16.msra.mxu0 %v4754
      %5329 = vmatpush.bf16.msra.mxu0 %v4747
      %5330 = vmatpush.bf16.msra.mxu0 %v4740
      %5331 = vmatmul.bf16.gmra.mxu0 %v3956
      %v5332 = vpop.f32.mrf.mxu0
      %v5333 = vadd.f32 %v4187, %v5332
      %v5334 = vpop.f32.mrf.mxu0
      %v5335 = vadd.f32 %v4187, %v5334
      %5336 = vmatmul.bf16.gmra.mxu0 %v3960
      %v5337 = vpop.f32.mrf.mxu0
      %v5338 = vadd.f32 %v4187, %v5337
      %v5339 = vpop.f32.mrf.mxu0
      %v5340 = vadd.f32 %v4187, %v5339
      %5341 = vmatmul.bf16.gmra.mxu0 %v3964
      %v5342 = vpop.f32.mrf.mxu0
      %v5343 = vadd.f32 %v4187, %v5342
      %v5344 = vpop.f32.mrf.mxu0
      %v5345 = vadd.f32 %v4187, %v5344
      %5346 = vmatmul.bf16.gmra.mxu0 %v3968
      %v5347 = vpop.f32.mrf.mxu0
      %v5348 = vadd.f32 %v4187, %v5347
      %v5349 = vpop.f32.mrf.mxu0
      %v5350 = vadd.f32 %v4187, %v5349
      %5351 = vmatmul.bf16.gmra.mxu0 %v3972
      %v5352 = vpop.f32.mrf.mxu0
      %v5353 = vadd.f32 %v4187, %v5352
      %v5354 = vpop.f32.mrf.mxu0
      %v5355 = vadd.f32 %v4187, %v5354
      %5356 = vmatmul.bf16.gmra.mxu0 %v3976
      %v5357 = vpop.f32.mrf.mxu0
      %v5358 = vadd.f32 %v4187, %v5357
      %v5359 = vpop.f32.mrf.mxu0
      %v5360 = vadd.f32 %v4187, %v5359
      %5361 = vmatmul.bf16.gmra.mxu0 %v3980
      %v5362 = vpop.f32.mrf.mxu0
      %v5363 = vadd.f32 %v4187, %v5362
      %v5364 = vpop.f32.mrf.mxu0
      %v5365 = vadd.f32 %v4187, %v5364
      %5366 = vmatmul.bf16.gmra.mxu0 %v3984
      %v5367 = vpop.f32.mrf.mxu0
      %v5368 = vadd.f32 %v4187, %v5367
      %v5369 = vpop.f32.mrf.mxu0
      %v5370 = vadd.f32 %v4187, %v5369
      %5371 = vdwg.mxu0
      %5372 = vmatpush.bf16.msra.mxu0 %v4845
      %5373 = vmatpush.bf16.msra.mxu0 %v4838
      %5374 = vmatpush.bf16.msra.mxu0 %v4831
      %5375 = vmatpush.bf16.msra.mxu0 %v4824
      %5376 = vmatpush.bf16.msra.mxu0 %v4817
      %5377 = vmatpush.bf16.msra.mxu0 %v4810
      %5378 = vmatpush.bf16.msra.mxu0 %v4803
      %5379 = vmatpush.bf16.msra.mxu0 %v4796
      %5380 = vmatmul.bf16.gmra.mxu0 %v3957
      %v5381 = vpop.f32.mrf.mxu0
      %v5382 = vadd.f32 %v5333, %v5381
      %v5383 = vpop.f32.mrf.mxu0
      %v5384 = vadd.f32 %v5335, %v5383
      %5385 = vmatmul.bf16.gmra.mxu0 %v3961
      %v5386 = vpop.f32.mrf.mxu0
      %v5387 = vadd.f32 %v5338, %v5386
      %v5388 = vpop.f32.mrf.mxu0
      %v5389 = vadd.f32 %v5340, %v5388
      %5390 = vmatmul.bf16.gmra.mxu0 %v3965
      %v5391 = vpop.f32.mrf.mxu0
      %v5392 = vadd.f32 %v5343, %v5391
      %v5393 = vpop.f32.mrf.mxu0
      %v5394 = vadd.f32 %v5345, %v5393
      %5395 = vmatmul.bf16.gmra.mxu0 %v3969
      %v5396 = vpop.f32.mrf.mxu0
      %v5397 = vadd.f32 %v5348, %v5396
      %v5398 = vpop.f32.mrf.mxu0
      %v5399 = vadd.f32 %v5350, %v5398
      %5400 = vmatmul.bf16.gmra.mxu0 %v3973
      %v5401 = vpop.f32.mrf.mxu0
      %v5402 = vadd.f32 %v5353, %v5401
      %v5403 = vpop.f32.mrf.mxu0
      %v5404 = vadd.f32 %v5355, %v5403
      %5405 = vmatmul.bf16.gmra.mxu0 %v3977
      %v5406 = vpop.f32.mrf.mxu0
      %v5407 = vadd.f32 %v5358, %v5406
      %v5408 = vpop.f32.mrf.mxu0
      %v5409 = vadd.f32 %v5360, %v5408
      %5410 = vmatmul.bf16.gmra.mxu0 %v3981
      %v5411 = vpop.f32.mrf.mxu0
      %v5412 = vadd.f32 %v5363, %v5411
      %v5413 = vpop.f32.mrf.mxu0
      %v5414 = vadd.f32 %v5365, %v5413
      %5415 = vmatmul.bf16.gmra.mxu0 %v3985
      %v5416 = vpop.f32.mrf.mxu0
      %v5417 = vadd.f32 %v5368, %v5416
      %v5418 = vpop.f32.mrf.mxu0
      %v5419 = vadd.f32 %v5370, %v5418
      %5420 = vdwg.mxu0
      %5421 = vmatpush.bf16.msra.mxu0 %v4901
      %5422 = vmatpush.bf16.msra.mxu0 %v4894
      %5423 = vmatpush.bf16.msra.mxu0 %v4887
      %5424 = vmatpush.bf16.msra.mxu0 %v4880
      %5425 = vmatpush.bf16.msra.mxu0 %v4873
      %5426 = vmatpush.bf16.msra.mxu0 %v4866
      %5427 = vmatpush.bf16.msra.mxu0 %v4859
      %5428 = vmatpush.bf16.msra.mxu0 %v4852
      %5429 = vmatmul.bf16.gmra.mxu0 %v3958
      %v5430 = vpop.f32.mrf.mxu0
      %v5431 = vadd.f32 %v5382, %v5430
      %v5432 = vpop.f32.mrf.mxu0
      %v5433 = vadd.f32 %v5384, %v5432
      %5434 = vmatmul.bf16.gmra.mxu0 %v3962
      %v5435 = vpop.f32.mrf.mxu0
      %v5436 = vadd.f32 %v5387, %v5435
      %v5437 = vpop.f32.mrf.mxu0
      %v5438 = vadd.f32 %v5389, %v5437
      %5439 = vmatmul.bf16.gmra.mxu0 %v3966
      %v5440 = vpop.f32.mrf.mxu0
      %v5441 = vadd.f32 %v5392, %v5440
      %v5442 = vpop.f32.mrf.mxu0
      %v5443 = vadd.f32 %v5394, %v5442
      %5444 = vmatmul.bf16.gmra.mxu0 %v3970
      %v5445 = vpop.f32.mrf.mxu0
      %v5446 = vadd.f32 %v5397, %v5445
      %v5447 = vpop.f32.mrf.mxu0
      %v5448 = vadd.f32 %v5399, %v5447
      %5449 = vmatmul.bf16.gmra.mxu0 %v3974
      %v5450 = vpop.f32.mrf.mxu0
      %v5451 = vadd.f32 %v5402, %v5450
      %v5452 = vpop.f32.mrf.mxu0
      %v5453 = vadd.f32 %v5404, %v5452
      %5454 = vmatmul.bf16.gmra.mxu0 %v3978
      %v5455 = vpop.f32.mrf.mxu0
      %v5456 = vadd.f32 %v5407, %v5455
      %v5457 = vpop.f32.mrf.mxu0
      %v5458 = vadd.f32 %v5409, %v5457
      %5459 = vmatmul.bf16.gmra.mxu0 %v3982
      %v5460 = vpop.f32.mrf.mxu0
      %v5461 = vadd.f32 %v5412, %v5460
      %v5462 = vpop.f32.mrf.mxu0
      %v5463 = vadd.f32 %v5414, %v5462
      %5464 = vmatmul.bf16.gmra.mxu0 %v3986
      %v5465 = vpop.f32.mrf.mxu0
      %v5466 = vadd.f32 %v5417, %v5465
      %v5467 = vpop.f32.mrf.mxu0
      %v5468 = vadd.f32 %v5419, %v5467
      %5469 = vdwg.mxu0
      %5470 = vmatpush.bf16.msra.mxu0 0
      %5471 = vmatpush.bf16.msra.mxu0 0
      %5472 = vmatpush.bf16.msra.mxu0 0
      %5473 = vmatpush.bf16.msra.mxu0 0
      %5474 = vmatpush.bf16.msra.mxu0 0
      %5475 = vmatpush.bf16.msra.mxu0 0
      %5476 = vmatpush.bf16.msra.mxu0 0
      %5477 = vmatpush.bf16.msra.mxu0 %v5110
      %5478 = vmatmul.bf16.gmra.mxu0 %v5083
      %v5479 = vpop.f32.mrf.mxu0
      %v5480 = vadd.f32 %v5431, %v5479
      %v5481 = vpop.f32.mrf.mxu0
      %v5482 = vadd.f32 %v5433, %v5481
      %5483 = vmatmul.bf16.gmra.mxu0 %v5086
      %v5484 = vpop.f32.mrf.mxu0
      %v5485 = vadd.f32 %v5436, %v5484
      %v5486 = vpop.f32.mrf.mxu0
      %v5487 = vadd.f32 %v5438, %v5486
      %5488 = vmatmul.bf16.gmra.mxu0 %v5089
      %v5489 = vpop.f32.mrf.mxu0
      %v5490 = vadd.f32 %v5441, %v5489
      %v5491 = vpop.f32.mrf.mxu0
      %v5492 = vadd.f32 %v5443, %v5491
      %5493 = vmatmul.bf16.gmra.mxu0 %v5092
      %v5494 = vpop.f32.mrf.mxu0
      %v5495 = vadd.f32 %v5446, %v5494
      %v5496 = vpop.f32.mrf.mxu0
      %v5497 = vadd.f32 %v5448, %v5496
      %5498 = vmatmul.bf16.gmra.mxu0 %v5095
      %v5499 = vpop.f32.mrf.mxu0
      %v5500 = vadd.f32 %v5451, %v5499
      %v5501 = vpop.f32.mrf.mxu0
      %v5502 = vadd.f32 %v5453, %v5501
      %5503 = vmatmul.bf16.gmra.mxu0 %v5098
      %v5504 = vpop.f32.mrf.mxu0
      %v5505 = vadd.f32 %v5456, %v5504
      %v5506 = vpop.f32.mrf.mxu0
      %v5507 = vadd.f32 %v5458, %v5506
      %5508 = vmatmul.bf16.gmra.mxu0 %v5101
      %v5509 = vpop.f32.mrf.mxu0
      %v5510 = vadd.f32 %v5461, %v5509
      %v5511 = vpop.f32.mrf.mxu0
      %v5512 = vadd.f32 %v5463, %v5511
      %5513 = vmatmul.bf16.gmra.mxu0 %v5104
      %v5514 = vpop.f32.mrf.mxu0
      %v5515 = vadd.f32 %v5466, %v5514
      %v5516 = vpop.f32.mrf.mxu0
      %v5517 = vadd.f32 %v5468, %v5516
      %5518 = vdwg.mxu0
      %5519 = vmatpush.bf16.msra.mxu0 %v4790
      %5520 = vmatpush.bf16.msra.mxu0 %v4783
      %5521 = vmatpush.bf16.msra.mxu0 %v4776
      %5522 = vmatpush.bf16.msra.mxu0 %v4769
      %5523 = vmatpush.bf16.msra.mxu0 %v4762
      %5524 = vmatpush.bf16.msra.mxu0 %v4755
      %5525 = vmatpush.bf16.msra.mxu0 %v4748
      %5526 = vmatpush.bf16.msra.mxu0 %v4741
      %5527 = vmatmul.bf16.gmra.mxu0 %v3956
      %v5528 = vpop.f32.mrf.mxu0
      %v5529 = vadd.f32 %v4188, %v5528
      %v5530 = vpop.f32.mrf.mxu0
      %v5531 = vadd.f32 %v4188, %v5530
      %5532 = vmatmul.bf16.gmra.mxu0 %v3960
      %v5533 = vpop.f32.mrf.mxu0
      %v5534 = vadd.f32 %v4188, %v5533
      %v5535 = vpop.f32.mrf.mxu0
      %v5536 = vadd.f32 %v4188, %v5535
      %5537 = vmatmul.bf16.gmra.mxu0 %v3964
      %v5538 = vpop.f32.mrf.mxu0
      %v5539 = vadd.f32 %v4188, %v5538
      %v5540 = vpop.f32.mrf.mxu0
      %v5541 = vadd.f32 %v4188, %v5540
      %5542 = vmatmul.bf16.gmra.mxu0 %v3968
      %v5543 = vpop.f32.mrf.mxu0
      %v5544 = vadd.f32 %v4188, %v5543
      %v5545 = vpop.f32.mrf.mxu0
      %v5546 = vadd.f32 %v4188, %v5545
      %5547 = vmatmul.bf16.gmra.mxu0 %v3972
      %v5548 = vpop.f32.mrf.mxu0
      %v5549 = vadd.f32 %v4188, %v5548
      %v5550 = vpop.f32.mrf.mxu0
      %v5551 = vadd.f32 %v4188, %v5550
      %5552 = vmatmul.bf16.gmra.mxu0 %v3976
      %v5553 = vpop.f32.mrf.mxu0
      %v5554 = vadd.f32 %v4188, %v5553
      %v5555 = vpop.f32.mrf.mxu0
      %v5556 = vadd.f32 %v4188, %v5555
      %5557 = vmatmul.bf16.gmra.mxu0 %v3980
      %v5558 = vpop.f32.mrf.mxu0
      %v5559 = vadd.f32 %v4188, %v5558
      %v5560 = vpop.f32.mrf.mxu0
      %v5561 = vadd.f32 %v4188, %v5560
      %5562 = vmatmul.bf16.gmra.mxu0 %v3984
      %v5563 = vpop.f32.mrf.mxu0
      %v5564 = vadd.f32 %v4188, %v5563
      %v5565 = vpop.f32.mrf.mxu0
      %v5566 = vadd.f32 %v4188, %v5565
      %5567 = vdwg.mxu0
      %5568 = vmatpush.bf16.msra.mxu0 %v4846
      %5569 = vmatpush.bf16.msra.mxu0 %v4839
      %5570 = vmatpush.bf16.msra.mxu0 %v4832
      %5571 = vmatpush.bf16.msra.mxu0 %v4825
      %5572 = vmatpush.bf16.msra.mxu0 %v4818
      %5573 = vmatpush.bf16.msra.mxu0 %v4811
      %5574 = vmatpush.bf16.msra.mxu0 %v4804
      %5575 = vmatpush.bf16.msra.mxu0 %v4797
      %5576 = vmatmul.bf16.gmra.mxu0 %v3957
      %v5577 = vpop.f32.mrf.mxu0
      %v5578 = vadd.f32 %v5529, %v5577
      %v5579 = vpop.f32.mrf.mxu0
      %v5580 = vadd.f32 %v5531, %v5579
      %5581 = vmatmul.bf16.gmra.mxu0 %v3961
      %v5582 = vpop.f32.mrf.mxu0
      %v5583 = vadd.f32 %v5534, %v5582
      %v5584 = vpop.f32.mrf.mxu0
      %v5585 = vadd.f32 %v5536, %v5584
      %5586 = vmatmul.bf16.gmra.mxu0 %v3965
      %v5587 = vpop.f32.mrf.mxu0
      %v5588 = vadd.f32 %v5539, %v5587
      %v5589 = vpop.f32.mrf.mxu0
      %v5590 = vadd.f32 %v5541, %v5589
      %5591 = vmatmul.bf16.gmra.mxu0 %v3969
      %v5592 = vpop.f32.mrf.mxu0
      %v5593 = vadd.f32 %v5544, %v5592
      %v5594 = vpop.f32.mrf.mxu0
      %v5595 = vadd.f32 %v5546, %v5594
      %5596 = vmatmul.bf16.gmra.mxu0 %v3973
      %v5597 = vpop.f32.mrf.mxu0
      %v5598 = vadd.f32 %v5549, %v5597
      %v5599 = vpop.f32.mrf.mxu0
      %v5600 = vadd.f32 %v5551, %v5599
      %5601 = vmatmul.bf16.gmra.mxu0 %v3977
      %v5602 = vpop.f32.mrf.mxu0
      %v5603 = vadd.f32 %v5554, %v5602
      %v5604 = vpop.f32.mrf.mxu0
      %v5605 = vadd.f32 %v5556, %v5604
      %5606 = vmatmul.bf16.gmra.mxu0 %v3981
      %v5607 = vpop.f32.mrf.mxu0
      %v5608 = vadd.f32 %v5559, %v5607
      %v5609 = vpop.f32.mrf.mxu0
      %v5610 = vadd.f32 %v5561, %v5609
      %5611 = vmatmul.bf16.gmra.mxu0 %v3985
      %v5612 = vpop.f32.mrf.mxu0
      %v5613 = vadd.f32 %v5564, %v5612
      %v5614 = vpop.f32.mrf.mxu0
      %v5615 = vadd.f32 %v5566, %v5614
      %5616 = vdwg.mxu0
      %5617 = vmatpush.bf16.msra.mxu0 %v4902
      %5618 = vmatpush.bf16.msra.mxu0 %v4895
      %5619 = vmatpush.bf16.msra.mxu0 %v4888
      %5620 = vmatpush.bf16.msra.mxu0 %v4881
      %5621 = vmatpush.bf16.msra.mxu0 %v4874
      %5622 = vmatpush.bf16.msra.mxu0 %v4867
      %5623 = vmatpush.bf16.msra.mxu0 %v4860
      %5624 = vmatpush.bf16.msra.mxu0 %v4853
      %5625 = vmatmul.bf16.gmra.mxu0 %v3958
      %v5626 = vpop.f32.mrf.mxu0
      %v5627 = vadd.f32 %v5578, %v5626
      %v5628 = vpop.f32.mrf.mxu0
      %v5629 = vadd.f32 %v5580, %v5628
      %5630 = vmatmul.bf16.gmra.mxu0 %v3962
      %v5631 = vpop.f32.mrf.mxu0
      %v5632 = vadd.f32 %v5583, %v5631
      %v5633 = vpop.f32.mrf.mxu0
      %v5634 = vadd.f32 %v5585, %v5633
      %5635 = vmatmul.bf16.gmra.mxu0 %v3966
      %v5636 = vpop.f32.mrf.mxu0
      %v5637 = vadd.f32 %v5588, %v5636
      %v5638 = vpop.f32.mrf.mxu0
      %v5639 = vadd.f32 %v5590, %v5638
      %5640 = vmatmul.bf16.gmra.mxu0 %v3970
      %v5641 = vpop.f32.mrf.mxu0
      %v5642 = vadd.f32 %v5593, %v5641
      %v5643 = vpop.f32.mrf.mxu0
      %v5644 = vadd.f32 %v5595, %v5643
      %5645 = vmatmul.bf16.gmra.mxu0 %v3974
      %v5646 = vpop.f32.mrf.mxu0
      %v5647 = vadd.f32 %v5598, %v5646
      %v5648 = vpop.f32.mrf.mxu0
      %v5649 = vadd.f32 %v5600, %v5648
      %5650 = vmatmul.bf16.gmra.mxu0 %v3978
      %v5651 = vpop.f32.mrf.mxu0
      %v5652 = vadd.f32 %v5603, %v5651
      %v5653 = vpop.f32.mrf.mxu0
      %v5654 = vadd.f32 %v5605, %v5653
      %5655 = vmatmul.bf16.gmra.mxu0 %v3982
      %v5656 = vpop.f32.mrf.mxu0
      %v5657 = vadd.f32 %v5608, %v5656
      %v5658 = vpop.f32.mrf.mxu0
      %v5659 = vadd.f32 %v5610, %v5658
      %5660 = vmatmul.bf16.gmra.mxu0 %v3986
      %v5661 = vpop.f32.mrf.mxu0
      %v5662 = vadd.f32 %v5613, %v5661
      %v5663 = vpop.f32.mrf.mxu0
      %v5664 = vadd.f32 %v5615, %v5663
      %5665 = vdwg.mxu0
      %5666 = vmatpush.bf16.msra.mxu0 0
      %5667 = vmatpush.bf16.msra.mxu0 0
      %5668 = vmatpush.bf16.msra.mxu0 0
      %5669 = vmatpush.bf16.msra.mxu0 0
      %5670 = vmatpush.bf16.msra.mxu0 0
      %5671 = vmatpush.bf16.msra.mxu0 0
      %5672 = vmatpush.bf16.msra.mxu0 0
      %5673 = vmatpush.bf16.msra.mxu0 %v5113
      %5674 = vmatmul.bf16.gmra.mxu0 %v5083
      %v5675 = vpop.f32.mrf.mxu0
      %v5676 = vadd.f32 %v5627, %v5675
      %v5677 = vpop.f32.mrf.mxu0
      %v5678 = vadd.f32 %v5629, %v5677
      %5679 = vmatmul.bf16.gmra.mxu0 %v5086
      %v5680 = vpop.f32.mrf.mxu0
      %v5681 = vadd.f32 %v5632, %v5680
      %v5682 = vpop.f32.mrf.mxu0
      %v5683 = vadd.f32 %v5634, %v5682
      %5684 = vmatmul.bf16.gmra.mxu0 %v5089
      %v5685 = vpop.f32.mrf.mxu0
      %v5686 = vadd.f32 %v5637, %v5685
      %v5687 = vpop.f32.mrf.mxu0
      %v5688 = vadd.f32 %v5639, %v5687
      %5689 = vmatmul.bf16.gmra.mxu0 %v5092
      %v5690 = vpop.f32.mrf.mxu0
      %v5691 = vadd.f32 %v5642, %v5690
      %v5692 = vpop.f32.mrf.mxu0
      %v5693 = vadd.f32 %v5644, %v5692
      %5694 = vmatmul.bf16.gmra.mxu0 %v5095
      %v5695 = vpop.f32.mrf.mxu0
      %v5696 = vadd.f32 %v5647, %v5695
      %v5697 = vpop.f32.mrf.mxu0
      %v5698 = vadd.f32 %v5649, %v5697
      %5699 = vmatmul.bf16.gmra.mxu0 %v5098
      %v5700 = vpop.f32.mrf.mxu0
      %v5701 = vadd.f32 %v5652, %v5700
      %v5702 = vpop.f32.mrf.mxu0
      %v5703 = vadd.f32 %v5654, %v5702
      %5704 = vmatmul.bf16.gmra.mxu0 %v5101
      %v5705 = vpop.f32.mrf.mxu0
      %v5706 = vadd.f32 %v5657, %v5705
      %v5707 = vpop.f32.mrf.mxu0
      %v5708 = vadd.f32 %v5659, %v5707
      %5709 = vmatmul.bf16.gmra.mxu0 %v5104
      %v5710 = vpop.f32.mrf.mxu0
      %v5711 = vadd.f32 %v5662, %v5710
      %v5712 = vpop.f32.mrf.mxu0
      %v5713 = vadd.f32 %v5664, %v5712
      %5714 = vdwg.mxu0
      %5715 = vmatpush.bf16.msra.mxu0 %v4791
      %5716 = vmatpush.bf16.msra.mxu0 %v4784
      %5717 = vmatpush.bf16.msra.mxu0 %v4777
      %5718 = vmatpush.bf16.msra.mxu0 %v4770
      %5719 = vmatpush.bf16.msra.mxu0 %v4763
      %5720 = vmatpush.bf16.msra.mxu0 %v4756
      %5721 = vmatpush.bf16.msra.mxu0 %v4749
      %5722 = vmatpush.bf16.msra.mxu0 %v4742
      %5723 = vmatmul.bf16.gmra.mxu0 %v3956
      %v5724 = vpop.f32.mrf.mxu0
      %v5725 = vadd.f32 %v4189, %v5724
      %v5726 = vpop.f32.mrf.mxu0
      %v5727 = vadd.f32 %v4189, %v5726
      %5728 = vmatmul.bf16.gmra.mxu0 %v3960
      %v5729 = vpop.f32.mrf.mxu0
      %v5730 = vadd.f32 %v4189, %v5729
      %v5731 = vpop.f32.mrf.mxu0
      %v5732 = vadd.f32 %v4189, %v5731
      %5733 = vmatmul.bf16.gmra.mxu0 %v3964
      %v5734 = vpop.f32.mrf.mxu0
      %v5735 = vadd.f32 %v4189, %v5734
      %v5736 = vpop.f32.mrf.mxu0
      %v5737 = vadd.f32 %v4189, %v5736
      %5738 = vmatmul.bf16.gmra.mxu0 %v3968
      %v5739 = vpop.f32.mrf.mxu0
      %v5740 = vadd.f32 %v4189, %v5739
      %v5741 = vpop.f32.mrf.mxu0
      %v5742 = vadd.f32 %v4189, %v5741
      %5743 = vmatmul.bf16.gmra.mxu0 %v3972
      %v5744 = vpop.f32.mrf.mxu0
      %v5745 = vadd.f32 %v4189, %v5744
      %v5746 = vpop.f32.mrf.mxu0
      %v5747 = vadd.f32 %v4189, %v5746
      %5748 = vmatmul.bf16.gmra.mxu0 %v3976
      %v5749 = vpop.f32.mrf.mxu0
      %v5750 = vadd.f32 %v4189, %v5749
      %v5751 = vpop.f32.mrf.mxu0
      %v5752 = vadd.f32 %v4189, %v5751
      %5753 = vmatmul.bf16.gmra.mxu0 %v3980
      %v5754 = vpop.f32.mrf.mxu0
      %v5755 = vadd.f32 %v4189, %v5754
      %v5756 = vpop.f32.mrf.mxu0
      %v5757 = vadd.f32 %v4189, %v5756
      %5758 = vmatmul.bf16.gmra.mxu0 %v3984
      %v5759 = vpop.f32.mrf.mxu0
      %v5760 = vadd.f32 %v4189, %v5759
      %v5761 = vpop.f32.mrf.mxu0
      %v5762 = vadd.f32 %v4189, %v5761
      %5763 = vdwg.mxu0
      %5764 = vmatpush.bf16.msra.mxu0 %v4847
      %5765 = vmatpush.bf16.msra.mxu0 %v4840
      %5766 = vmatpush.bf16.msra.mxu0 %v4833
      %5767 = vmatpush.bf16.msra.mxu0 %v4826
      %5768 = vmatpush.bf16.msra.mxu0 %v4819
      %5769 = vmatpush.bf16.msra.mxu0 %v4812
      %5770 = vmatpush.bf16.msra.mxu0 %v4805
      %5771 = vmatpush.bf16.msra.mxu0 %v4798
      %5772 = vmatmul.bf16.gmra.mxu0 %v3957
      %v5773 = vpop.f32.mrf.mxu0
      %v5774 = vadd.f32 %v5725, %v5773
      %v5775 = vpop.f32.mrf.mxu0
      %v5776 = vadd.f32 %v5727, %v5775
      %5777 = vmatmul.bf16.gmra.mxu0 %v3961
      %v5778 = vpop.f32.mrf.mxu0
      %v5779 = vadd.f32 %v5730, %v5778
      %v5780 = vpop.f32.mrf.mxu0
      %v5781 = vadd.f32 %v5732, %v5780
      %5782 = vmatmul.bf16.gmra.mxu0 %v3965
      %v5783 = vpop.f32.mrf.mxu0
      %v5784 = vadd.f32 %v5735, %v5783
      %v5785 = vpop.f32.mrf.mxu0
      %v5786 = vadd.f32 %v5737, %v5785
      %5787 = vmatmul.bf16.gmra.mxu0 %v3969
      %v5788 = vpop.f32.mrf.mxu0
      %v5789 = vadd.f32 %v5740, %v5788
      %v5790 = vpop.f32.mrf.mxu0
      %v5791 = vadd.f32 %v5742, %v5790
      %5792 = vmatmul.bf16.gmra.mxu0 %v3973
      %v5793 = vpop.f32.mrf.mxu0
      %v5794 = vadd.f32 %v5745, %v5793
      %v5795 = vpop.f32.mrf.mxu0
      %v5796 = vadd.f32 %v5747, %v5795
      %5797 = vmatmul.bf16.gmra.mxu0 %v3977
      %v5798 = vpop.f32.mrf.mxu0
      %v5799 = vadd.f32 %v5750, %v5798
      %v5800 = vpop.f32.mrf.mxu0
      %v5801 = vadd.f32 %v5752, %v5800
      %5802 = vmatmul.bf16.gmra.mxu0 %v3981
      %v5803 = vpop.f32.mrf.mxu0
      %v5804 = vadd.f32 %v5755, %v5803
      %v5805 = vpop.f32.mrf.mxu0
      %v5806 = vadd.f32 %v5757, %v5805
      %5807 = vmatmul.bf16.gmra.mxu0 %v3985
      %v5808 = vpop.f32.mrf.mxu0
      %v5809 = vadd.f32 %v5760, %v5808
      %v5810 = vpop.f32.mrf.mxu0
      %v5811 = vadd.f32 %v5762, %v5810
      %5812 = vdwg.mxu0
      %5813 = vmatpush.bf16.msra.mxu0 %v4903
      %5814 = vmatpush.bf16.msra.mxu0 %v4896
      %5815 = vmatpush.bf16.msra.mxu0 %v4889
      %5816 = vmatpush.bf16.msra.mxu0 %v4882
      %5817 = vmatpush.bf16.msra.mxu0 %v4875
      %5818 = vmatpush.bf16.msra.mxu0 %v4868
      %5819 = vmatpush.bf16.msra.mxu0 %v4861
      %5820 = vmatpush.bf16.msra.mxu0 %v4854
      %5821 = vmatmul.bf16.gmra.mxu0 %v3958
      %v5822 = vpop.f32.mrf.mxu0
      %v5823 = vadd.f32 %v5774, %v5822
      %v5824 = vpop.f32.mrf.mxu0
      %v5825 = vadd.f32 %v5776, %v5824
      %5826 = vmatmul.bf16.gmra.mxu0 %v3962
      %v5827 = vpop.f32.mrf.mxu0
      %v5828 = vadd.f32 %v5779, %v5827
      %v5829 = vpop.f32.mrf.mxu0
      %v5830 = vadd.f32 %v5781, %v5829
      %5831 = vmatmul.bf16.gmra.mxu0 %v3966
      %v5832 = vpop.f32.mrf.mxu0
      %v5833 = vadd.f32 %v5784, %v5832
      %v5834 = vpop.f32.mrf.mxu0
      %v5835 = vadd.f32 %v5786, %v5834
      %5836 = vmatmul.bf16.gmra.mxu0 %v3970
      %v5837 = vpop.f32.mrf.mxu0
      %v5838 = vadd.f32 %v5789, %v5837
      %v5839 = vpop.f32.mrf.mxu0
      %v5840 = vadd.f32 %v5791, %v5839
      %5841 = vmatmul.bf16.gmra.mxu0 %v3974
      %v5842 = vpop.f32.mrf.mxu0
      %v5843 = vadd.f32 %v5794, %v5842
      %v5844 = vpop.f32.mrf.mxu0
      %v5845 = vadd.f32 %v5796, %v5844
      %5846 = vmatmul.bf16.gmra.mxu0 %v3978
      %v5847 = vpop.f32.mrf.mxu0
      %v5848 = vadd.f32 %v5799, %v5847
      %v5849 = vpop.f32.mrf.mxu0
      %v5850 = vadd.f32 %v5801, %v5849
      %5851 = vmatmul.bf16.gmra.mxu0 %v3982
      %v5852 = vpop.f32.mrf.mxu0
      %v5853 = vadd.f32 %v5804, %v5852
      %v5854 = vpop.f32.mrf.mxu0
      %v5855 = vadd.f32 %v5806, %v5854
      %5856 = vmatmul.bf16.gmra.mxu0 %v3986
      %v5857 = vpop.f32.mrf.mxu0
      %v5858 = vadd.f32 %v5809, %v5857
      %v5859 = vpop.f32.mrf.mxu0
      %v5860 = vadd.f32 %v5811, %v5859
      %5861 = vdwg.mxu0
      %5862 = vmatpush.bf16.msra.mxu0 0
      %5863 = vmatpush.bf16.msra.mxu0 0
      %5864 = vmatpush.bf16.msra.mxu0 0
      %5865 = vmatpush.bf16.msra.mxu0 0
      %5866 = vmatpush.bf16.msra.mxu0 0
      %5867 = vmatpush.bf16.msra.mxu0 0
      %5868 = vmatpush.bf16.msra.mxu0 0
      %5869 = vmatpush.bf16.msra.mxu0 %v5116
      %5870 = vmatmul.bf16.gmra.mxu0 %v5083
      %v5871 = vpop.f32.mrf.mxu0
      %v5872 = vadd.f32 %v5823, %v5871
      %v5873 = vpop.f32.mrf.mxu0
      %v5874 = vadd.f32 %v5825, %v5873
      %5875 = vmatmul.bf16.gmra.mxu0 %v5086
      %v5876 = vpop.f32.mrf.mxu0
      %v5877 = vadd.f32 %v5828, %v5876
      %v5878 = vpop.f32.mrf.mxu0
      %v5879 = vadd.f32 %v5830, %v5878
      %5880 = vmatmul.bf16.gmra.mxu0 %v5089
      %v5881 = vpop.f32.mrf.mxu0
      %v5882 = vadd.f32 %v5833, %v5881
      %v5883 = vpop.f32.mrf.mxu0
      %v5884 = vadd.f32 %v5835, %v5883
      %5885 = vmatmul.bf16.gmra.mxu0 %v5092
      %v5886 = vpop.f32.mrf.mxu0
      %v5887 = vadd.f32 %v5838, %v5886
      %v5888 = vpop.f32.mrf.mxu0
      %v5889 = vadd.f32 %v5840, %v5888
      %5890 = vmatmul.bf16.gmra.mxu0 %v5095
      %v5891 = vpop.f32.mrf.mxu0
      %v5892 = vadd.f32 %v5843, %v5891
      %v5893 = vpop.f32.mrf.mxu0
      %v5894 = vadd.f32 %v5845, %v5893
      %5895 = vmatmul.bf16.gmra.mxu0 %v5098
      %v5896 = vpop.f32.mrf.mxu0
      %v5897 = vadd.f32 %v5848, %v5896
      %v5898 = vpop.f32.mrf.mxu0
      %v5899 = vadd.f32 %v5850, %v5898
      %5900 = vmatmul.bf16.gmra.mxu0 %v5101
      %v5901 = vpop.f32.mrf.mxu0
      %v5902 = vadd.f32 %v5853, %v5901
      %v5903 = vpop.f32.mrf.mxu0
      %v5904 = vadd.f32 %v5855, %v5903
      %5905 = vmatmul.bf16.gmra.mxu0 %v5104
      %v5906 = vpop.f32.mrf.mxu0
      %v5907 = vadd.f32 %v5858, %v5906
      %v5908 = vpop.f32.mrf.mxu0
      %v5909 = vadd.f32 %v5860, %v5908
      %5910 = vdwg.mxu0
      %5911 = vmatpush.bf16.msra.mxu0 %v4792
      %5912 = vmatpush.bf16.msra.mxu0 %v4785
      %5913 = vmatpush.bf16.msra.mxu0 %v4778
      %5914 = vmatpush.bf16.msra.mxu0 %v4771
      %5915 = vmatpush.bf16.msra.mxu0 %v4764
      %5916 = vmatpush.bf16.msra.mxu0 %v4757
      %5917 = vmatpush.bf16.msra.mxu0 %v4750
      %5918 = vmatpush.bf16.msra.mxu0 %v4743
      %5919 = vmatmul.bf16.gmra.mxu0 %v3956
      %v5920 = vpop.f32.mrf.mxu0
      %v5921 = vadd.f32 %v4190, %v5920
      %v5922 = vpop.f32.mrf.mxu0
      %v5923 = vadd.f32 %v4190, %v5922
      %5924 = vmatmul.bf16.gmra.mxu0 %v3960
      %v5925 = vpop.f32.mrf.mxu0
      %v5926 = vadd.f32 %v4190, %v5925
      %v5927 = vpop.f32.mrf.mxu0
      %v5928 = vadd.f32 %v4190, %v5927
      %5929 = vmatmul.bf16.gmra.mxu0 %v3964
      %v5930 = vpop.f32.mrf.mxu0
      %v5931 = vadd.f32 %v4190, %v5930
      %v5932 = vpop.f32.mrf.mxu0
      %v5933 = vadd.f32 %v4190, %v5932
      %5934 = vmatmul.bf16.gmra.mxu0 %v3968
      %v5935 = vpop.f32.mrf.mxu0
      %v5936 = vadd.f32 %v4190, %v5935
      %v5937 = vpop.f32.mrf.mxu0
      %v5938 = vadd.f32 %v4190, %v5937
      %5939 = vmatmul.bf16.gmra.mxu0 %v3972
      %v5940 = vpop.f32.mrf.mxu0
      %v5941 = vadd.f32 %v4190, %v5940
      %v5942 = vpop.f32.mrf.mxu0
      %v5943 = vadd.f32 %v4190, %v5942
      %5944 = vmatmul.bf16.gmra.mxu0 %v3976
      %v5945 = vpop.f32.mrf.mxu0
      %v5946 = vadd.f32 %v4190, %v5945
      %v5947 = vpop.f32.mrf.mxu0
      %v5948 = vadd.f32 %v4190, %v5947
      %5949 = vmatmul.bf16.gmra.mxu0 %v3980
      %v5950 = vpop.f32.mrf.mxu0
      %v5951 = vadd.f32 %v4190, %v5950
      %v5952 = vpop.f32.mrf.mxu0
      %v5953 = vadd.f32 %v4190, %v5952
      %5954 = vmatmul.bf16.gmra.mxu0 %v3984
      %v5955 = vpop.f32.mrf.mxu0
      %v5956 = vadd.f32 %v4190, %v5955
      %v5957 = vpop.f32.mrf.mxu0
      %v5958 = vadd.f32 %v4190, %v5957
      %5959 = vdwg.mxu0
      %5960 = vmatpush.bf16.msra.mxu0 %v4848
      %5961 = vmatpush.bf16.msra.mxu0 %v4841
      %5962 = vmatpush.bf16.msra.mxu0 %v4834
      %5963 = vmatpush.bf16.msra.mxu0 %v4827
      %5964 = vmatpush.bf16.msra.mxu0 %v4820
      %5965 = vmatpush.bf16.msra.mxu0 %v4813
      %5966 = vmatpush.bf16.msra.mxu0 %v4806
      %5967 = vmatpush.bf16.msra.mxu0 %v4799
      %5968 = vmatmul.bf16.gmra.mxu0 %v3957
      %v5969 = vpop.f32.mrf.mxu0
      %v5970 = vadd.f32 %v5921, %v5969
      %v5971 = vpop.f32.mrf.mxu0
      %v5972 = vadd.f32 %v5923, %v5971
      %5973 = vmatmul.bf16.gmra.mxu0 %v3961
      %v5974 = vpop.f32.mrf.mxu0
      %v5975 = vadd.f32 %v5926, %v5974
      %v5976 = vpop.f32.mrf.mxu0
      %v5977 = vadd.f32 %v5928, %v5976
      %5978 = vmatmul.bf16.gmra.mxu0 %v3965
      %v5979 = vpop.f32.mrf.mxu0
      %v5980 = vadd.f32 %v5931, %v5979
      %v5981 = vpop.f32.mrf.mxu0
      %v5982 = vadd.f32 %v5933, %v5981
      %5983 = vmatmul.bf16.gmra.mxu0 %v3969
      %v5984 = vpop.f32.mrf.mxu0
      %v5985 = vadd.f32 %v5936, %v5984
      %v5986 = vpop.f32.mrf.mxu0
      %v5987 = vadd.f32 %v5938, %v5986
      %5988 = vmatmul.bf16.gmra.mxu0 %v3973
      %v5989 = vpop.f32.mrf.mxu0
      %v5990 = vadd.f32 %v5941, %v5989
      %v5991 = vpop.f32.mrf.mxu0
      %v5992 = vadd.f32 %v5943, %v5991
      %5993 = vmatmul.bf16.gmra.mxu0 %v3977
      %v5994 = vpop.f32.mrf.mxu0
      %v5995 = vadd.f32 %v5946, %v5994
      %v5996 = vpop.f32.mrf.mxu0
      %v5997 = vadd.f32 %v5948, %v5996
      %5998 = vmatmul.bf16.gmra.mxu0 %v3981
      %v5999 = vpop.f32.mrf.mxu0
      %v6000 = vadd.f32 %v5951, %v5999
      %v6001 = vpop.f32.mrf.mxu0
      %v6002 = vadd.f32 %v5953, %v6001
      %6003 = vmatmul.bf16.gmra.mxu0 %v3985
      %v6004 = vpop.f32.mrf.mxu0
      %v6005 = vadd.f32 %v5956, %v6004
      %v6006 = vpop.f32.mrf.mxu0
      %v6007 = vadd.f32 %v5958, %v6006
      %6008 = vdwg.mxu0
      %6009 = vmatpush.bf16.msra.mxu0 %v4904
      %6010 = vmatpush.bf16.msra.mxu0 %v4897
      %6011 = vmatpush.bf16.msra.mxu0 %v4890
      %6012 = vmatpush.bf16.msra.mxu0 %v4883
      %6013 = vmatpush.bf16.msra.mxu0 %v4876
      %6014 = vmatpush.bf16.msra.mxu0 %v4869
      %6015 = vmatpush.bf16.msra.mxu0 %v4862
      %6016 = vmatpush.bf16.msra.mxu0 %v4855
      %6017 = vmatmul.bf16.gmra.mxu0 %v3958
      %v6018 = vpop.f32.mrf.mxu0
      %v6019 = vadd.f32 %v5970, %v6018
      %v6020 = vpop.f32.mrf.mxu0
      %v6021 = vadd.f32 %v5972, %v6020
      %6022 = vmatmul.bf16.gmra.mxu0 %v3962
      %v6023 = vpop.f32.mrf.mxu0
      %v6024 = vadd.f32 %v5975, %v6023
      %v6025 = vpop.f32.mrf.mxu0
      %v6026 = vadd.f32 %v5977, %v6025
      %6027 = vmatmul.bf16.gmra.mxu0 %v3966
      %v6028 = vpop.f32.mrf.mxu0
      %v6029 = vadd.f32 %v5980, %v6028
      %v6030 = vpop.f32.mrf.mxu0
      %v6031 = vadd.f32 %v5982, %v6030
      %6032 = vmatmul.bf16.gmra.mxu0 %v3970
      %v6033 = vpop.f32.mrf.mxu0
      %v6034 = vadd.f32 %v5985, %v6033
      %v6035 = vpop.f32.mrf.mxu0
      %v6036 = vadd.f32 %v5987, %v6035
      %6037 = vmatmul.bf16.gmra.mxu0 %v3974
      %v6038 = vpop.f32.mrf.mxu0
      %v6039 = vadd.f32 %v5990, %v6038
      %v6040 = vpop.f32.mrf.mxu0
      %v6041 = vadd.f32 %v5992, %v6040
      %6042 = vmatmul.bf16.gmra.mxu0 %v3978
      %v6043 = vpop.f32.mrf.mxu0
      %v6044 = vadd.f32 %v5995, %v6043
      %v6045 = vpop.f32.mrf.mxu0
      %v6046 = vadd.f32 %v5997, %v6045
      %6047 = vmatmul.bf16.gmra.mxu0 %v3982
      %v6048 = vpop.f32.mrf.mxu0
      %v6049 = vadd.f32 %v6000, %v6048
      %v6050 = vpop.f32.mrf.mxu0
      %v6051 = vadd.f32 %v6002, %v6050
      %6052 = vmatmul.bf16.gmra.mxu0 %v3986
      %v6053 = vpop.f32.mrf.mxu0
      %v6054 = vadd.f32 %v6005, %v6053
      %v6055 = vpop.f32.mrf.mxu0
      %v6056 = vadd.f32 %v6007, %v6055
      %6057 = vdwg.mxu0
      %6058 = vmatpush.bf16.msra.mxu0 0
      %6059 = vmatpush.bf16.msra.mxu0 0
      %6060 = vmatpush.bf16.msra.mxu0 0
      %6061 = vmatpush.bf16.msra.mxu0 0
      %6062 = vmatpush.bf16.msra.mxu0 0
      %6063 = vmatpush.bf16.msra.mxu0 0
      %6064 = vmatpush.bf16.msra.mxu0 0
      %6065 = vmatpush.bf16.msra.mxu0 %v5119
      %6066 = vmatmul.bf16.gmra.mxu0 %v5083
      %v6067 = vpop.f32.mrf.mxu0
      %v6068 = vadd.f32 %v6019, %v6067
      %v6069 = vpop.f32.mrf.mxu0
      %v6070 = vadd.f32 %v6021, %v6069
      %6071 = vmatmul.bf16.gmra.mxu0 %v5086
      %v6072 = vpop.f32.mrf.mxu0
      %v6073 = vadd.f32 %v6024, %v6072
      %v6074 = vpop.f32.mrf.mxu0
      %v6075 = vadd.f32 %v6026, %v6074
      %6076 = vmatmul.bf16.gmra.mxu0 %v5089
      %v6077 = vpop.f32.mrf.mxu0
      %v6078 = vadd.f32 %v6029, %v6077
      %v6079 = vpop.f32.mrf.mxu0
      %v6080 = vadd.f32 %v6031, %v6079
      %6081 = vmatmul.bf16.gmra.mxu0 %v5092
      %v6082 = vpop.f32.mrf.mxu0
      %v6083 = vadd.f32 %v6034, %v6082
      %v6084 = vpop.f32.mrf.mxu0
      %v6085 = vadd.f32 %v6036, %v6084
      %6086 = vmatmul.bf16.gmra.mxu0 %v5095
      %v6087 = vpop.f32.mrf.mxu0
      %v6088 = vadd.f32 %v6039, %v6087
      %v6089 = vpop.f32.mrf.mxu0
      %v6090 = vadd.f32 %v6041, %v6089
      %6091 = vmatmul.bf16.gmra.mxu0 %v5098
      %v6092 = vpop.f32.mrf.mxu0
      %v6093 = vadd.f32 %v6044, %v6092
      %v6094 = vpop.f32.mrf.mxu0
      %v6095 = vadd.f32 %v6046, %v6094
      %6096 = vmatmul.bf16.gmra.mxu0 %v5101
      %v6097 = vpop.f32.mrf.mxu0
      %v6098 = vadd.f32 %v6049, %v6097
      %v6099 = vpop.f32.mrf.mxu0
      %v6100 = vadd.f32 %v6051, %v6099
      %6101 = vmatmul.bf16.gmra.mxu0 %v5104
      %v6102 = vpop.f32.mrf.mxu0
      %v6103 = vadd.f32 %v6054, %v6102
      %v6104 = vpop.f32.mrf.mxu0
      %v6105 = vadd.f32 %v6056, %v6104
      %6106 = vdwg.mxu0
      %6107 = vmatpush.bf16.msra.mxu0 %v4793
      %6108 = vmatpush.bf16.msra.mxu0 %v4786
      %6109 = vmatpush.bf16.msra.mxu0 %v4779
      %6110 = vmatpush.bf16.msra.mxu0 %v4772
      %6111 = vmatpush.bf16.msra.mxu0 %v4765
      %6112 = vmatpush.bf16.msra.mxu0 %v4758
      %6113 = vmatpush.bf16.msra.mxu0 %v4751
      %6114 = vmatpush.bf16.msra.mxu0 %v4744
      %6115 = vmatmul.bf16.gmra.mxu0 %v3956
      %v6116 = vpop.f32.mrf.mxu0
      %v6117 = vadd.f32 %v4191, %v6116
      %v6118 = vpop.f32.mrf.mxu0
      %v6119 = vadd.f32 %v4191, %v6118
      %6120 = vmatmul.bf16.gmra.mxu0 %v3960
      %v6121 = vpop.f32.mrf.mxu0
      %v6122 = vadd.f32 %v4191, %v6121
      %v6123 = vpop.f32.mrf.mxu0
      %v6124 = vadd.f32 %v4191, %v6123
      %6125 = vmatmul.bf16.gmra.mxu0 %v3964
      %v6126 = vpop.f32.mrf.mxu0
      %v6127 = vadd.f32 %v4191, %v6126
      %v6128 = vpop.f32.mrf.mxu0
      %v6129 = vadd.f32 %v4191, %v6128
      %6130 = vmatmul.bf16.gmra.mxu0 %v3968
      %v6131 = vpop.f32.mrf.mxu0
      %v6132 = vadd.f32 %v4191, %v6131
      %v6133 = vpop.f32.mrf.mxu0
      %v6134 = vadd.f32 %v4191, %v6133
      %6135 = vmatmul.bf16.gmra.mxu0 %v3972
      %v6136 = vpop.f32.mrf.mxu0
      %v6137 = vadd.f32 %v4191, %v6136
      %v6138 = vpop.f32.mrf.mxu0
      %v6139 = vadd.f32 %v4191, %v6138
      %6140 = vmatmul.bf16.gmra.mxu0 %v3976
      %v6141 = vpop.f32.mrf.mxu0
      %v6142 = vadd.f32 %v4191, %v6141
      %v6143 = vpop.f32.mrf.mxu0
      %v6144 = vadd.f32 %v4191, %v6143
      %6145 = vmatmul.bf16.gmra.mxu0 %v3980
      %v6146 = vpop.f32.mrf.mxu0
      %v6147 = vadd.f32 %v4191, %v6146
      %v6148 = vpop.f32.mrf.mxu0
      %v6149 = vadd.f32 %v4191, %v6148
      %6150 = vmatmul.bf16.gmra.mxu0 %v3984
      %v6151 = vpop.f32.mrf.mxu0
      %v6152 = vadd.f32 %v4191, %v6151
      %v6153 = vpop.f32.mrf.mxu0
      %v6154 = vadd.f32 %v4191, %v6153
      %6155 = vdwg.mxu0
      %6156 = vmatpush.bf16.msra.mxu0 %v4849
      %6157 = vmatpush.bf16.msra.mxu0 %v4842
      %6158 = vmatpush.bf16.msra.mxu0 %v4835
      %6159 = vmatpush.bf16.msra.mxu0 %v4828
      %6160 = vmatpush.bf16.msra.mxu0 %v4821
      %6161 = vmatpush.bf16.msra.mxu0 %v4814
      %6162 = vmatpush.bf16.msra.mxu0 %v4807
      %6163 = vmatpush.bf16.msra.mxu0 %v4800
      %6164 = vmatmul.bf16.gmra.mxu0 %v3957
      %v6165 = vpop.f32.mrf.mxu0
      %v6166 = vadd.f32 %v6117, %v6165
      %v6167 = vpop.f32.mrf.mxu0
      %v6168 = vadd.f32 %v6119, %v6167
      %6169 = vmatmul.bf16.gmra.mxu0 %v3961
      %v6170 = vpop.f32.mrf.mxu0
      %v6171 = vadd.f32 %v6122, %v6170
      %v6172 = vpop.f32.mrf.mxu0
      %v6173 = vadd.f32 %v6124, %v6172
      %6174 = vmatmul.bf16.gmra.mxu0 %v3965
      %v6175 = vpop.f32.mrf.mxu0
      %v6176 = vadd.f32 %v6127, %v6175
      %v6177 = vpop.f32.mrf.mxu0
      %v6178 = vadd.f32 %v6129, %v6177
      %6179 = vmatmul.bf16.gmra.mxu0 %v3969
      %v6180 = vpop.f32.mrf.mxu0
      %v6181 = vadd.f32 %v6132, %v6180
      %v6182 = vpop.f32.mrf.mxu0
      %v6183 = vadd.f32 %v6134, %v6182
      %6184 = vmatmul.bf16.gmra.mxu0 %v3973
      %v6185 = vpop.f32.mrf.mxu0
      %v6186 = vadd.f32 %v6137, %v6185
      %v6187 = vpop.f32.mrf.mxu0
      %v6188 = vadd.f32 %v6139, %v6187
      %6189 = vmatmul.bf16.gmra.mxu0 %v3977
      %v6190 = vpop.f32.mrf.mxu0
      %v6191 = vadd.f32 %v6142, %v6190
      %v6192 = vpop.f32.mrf.mxu0
      %v6193 = vadd.f32 %v6144, %v6192
      %6194 = vmatmul.bf16.gmra.mxu0 %v3981
      %v6195 = vpop.f32.mrf.mxu0
      %v6196 = vadd.f32 %v6147, %v6195
      %v6197 = vpop.f32.mrf.mxu0
      %v6198 = vadd.f32 %v6149, %v6197
      %6199 = vmatmul.bf16.gmra.mxu0 %v3985
      %v6200 = vpop.f32.mrf.mxu0
      %v6201 = vadd.f32 %v6152, %v6200
      %v6202 = vpop.f32.mrf.mxu0
      %v6203 = vadd.f32 %v6154, %v6202
      %6204 = vdwg.mxu0
      %6205 = vmatpush.bf16.msra.mxu0 %v4905
      %6206 = vmatpush.bf16.msra.mxu0 %v4898
      %6207 = vmatpush.bf16.msra.mxu0 %v4891
      %6208 = vmatpush.bf16.msra.mxu0 %v4884
      %6209 = vmatpush.bf16.msra.mxu0 %v4877
      %6210 = vmatpush.bf16.msra.mxu0 %v4870
      %6211 = vmatpush.bf16.msra.mxu0 %v4863
      %6212 = vmatpush.bf16.msra.mxu0 %v4856
      %6213 = vmatmul.bf16.gmra.mxu0 %v3958
      %v6214 = vpop.f32.mrf.mxu0
      %v6215 = vadd.f32 %v6166, %v6214
      %v6216 = vpop.f32.mrf.mxu0
      %v6217 = vadd.f32 %v6168, %v6216
      %6218 = vmatmul.bf16.gmra.mxu0 %v3962
      %v6219 = vpop.f32.mrf.mxu0
      %v6220 = vadd.f32 %v6171, %v6219
      %v6221 = vpop.f32.mrf.mxu0
      %v6222 = vadd.f32 %v6173, %v6221
      %6223 = vmatmul.bf16.gmra.mxu0 %v3966
      %v6224 = vpop.f32.mrf.mxu0
      %v6225 = vadd.f32 %v6176, %v6224
      %v6226 = vpop.f32.mrf.mxu0
      %v6227 = vadd.f32 %v6178, %v6226
      %6228 = vmatmul.bf16.gmra.mxu0 %v3970
      %v6229 = vpop.f32.mrf.mxu0
      %v6230 = vadd.f32 %v6181, %v6229
      %v6231 = vpop.f32.mrf.mxu0
      %v6232 = vadd.f32 %v6183, %v6231
      %6233 = vmatmul.bf16.gmra.mxu0 %v3974
      %v6234 = vpop.f32.mrf.mxu0
      %v6235 = vadd.f32 %v6186, %v6234
      %v6236 = vpop.f32.mrf.mxu0
      %v6237 = vadd.f32 %v6188, %v6236
      %6238 = vmatmul.bf16.gmra.mxu0 %v3978
      %v6239 = vpop.f32.mrf.mxu0
      %v6240 = vadd.f32 %v6191, %v6239
      %v6241 = vpop.f32.mrf.mxu0
      %v6242 = vadd.f32 %v6193, %v6241
      %6243 = vmatmul.bf16.gmra.mxu0 %v3982
      %v6244 = vpop.f32.mrf.mxu0
      %v6245 = vadd.f32 %v6196, %v6244
      %v6246 = vpop.f32.mrf.mxu0
      %v6247 = vadd.f32 %v6198, %v6246
      %6248 = vmatmul.bf16.gmra.mxu0 %v3986
      %v6249 = vpop.f32.mrf.mxu0
      %v6250 = vadd.f32 %v6201, %v6249
      %v6251 = vpop.f32.mrf.mxu0
      %v6252 = vadd.f32 %v6203, %v6251
      %6253 = vdwg.mxu0
      %6254 = vmatpush.bf16.msra.mxu0 0
      %6255 = vmatpush.bf16.msra.mxu0 0
      %6256 = vmatpush.bf16.msra.mxu0 0
      %6257 = vmatpush.bf16.msra.mxu0 0
      %6258 = vmatpush.bf16.msra.mxu0 0
      %6259 = vmatpush.bf16.msra.mxu0 0
      %6260 = vmatpush.bf16.msra.mxu0 0
      %6261 = vmatpush.bf16.msra.mxu0 %v5122
      %6262 = vmatmul.bf16.gmra.mxu0 %v5083
      %v6263 = vpop.f32.mrf.mxu0
      %v6264 = vadd.f32 %v6215, %v6263
      %v6265 = vpop.f32.mrf.mxu0
      %v6266 = vadd.f32 %v6217, %v6265
      %6267 = vmatmul.bf16.gmra.mxu0 %v5086
      %v6268 = vpop.f32.mrf.mxu0
      %v6269 = vadd.f32 %v6220, %v6268
      %v6270 = vpop.f32.mrf.mxu0
      %v6271 = vadd.f32 %v6222, %v6270
      %6272 = vmatmul.bf16.gmra.mxu0 %v5089
      %v6273 = vpop.f32.mrf.mxu0
      %v6274 = vadd.f32 %v6225, %v6273
      %v6275 = vpop.f32.mrf.mxu0
      %v6276 = vadd.f32 %v6227, %v6275
      %6277 = vmatmul.bf16.gmra.mxu0 %v5092
      %v6278 = vpop.f32.mrf.mxu0
      %v6279 = vadd.f32 %v6230, %v6278
      %v6280 = vpop.f32.mrf.mxu0
      %v6281 = vadd.f32 %v6232, %v6280
      %6282 = vmatmul.bf16.gmra.mxu0 %v5095
      %v6283 = vpop.f32.mrf.mxu0
      %v6284 = vadd.f32 %v6235, %v6283
      %v6285 = vpop.f32.mrf.mxu0
      %v6286 = vadd.f32 %v6237, %v6285
      %6287 = vmatmul.bf16.gmra.mxu0 %v5098
      %v6288 = vpop.f32.mrf.mxu0
      %v6289 = vadd.f32 %v6240, %v6288
      %v6290 = vpop.f32.mrf.mxu0
      %v6291 = vadd.f32 %v6242, %v6290
      %6292 = vmatmul.bf16.gmra.mxu0 %v5101
      %v6293 = vpop.f32.mrf.mxu0
      %v6294 = vadd.f32 %v6245, %v6293
      %v6295 = vpop.f32.mrf.mxu0
      %v6296 = vadd.f32 %v6247, %v6295
      %6297 = vmatmul.bf16.gmra.mxu0 %v5104
      %v6298 = vpop.f32.mrf.mxu0
      %v6299 = vadd.f32 %v6250, %v6298
      %v6300 = vpop.f32.mrf.mxu0
      %v6301 = vadd.f32 %v6252, %v6300
      %6302 = vdwg.mxu0
      %6303 = vmatpush.bf16.msra.mxu0 %v4794
      %6304 = vmatpush.bf16.msra.mxu0 %v4787
      %6305 = vmatpush.bf16.msra.mxu0 %v4780
      %6306 = vmatpush.bf16.msra.mxu0 %v4773
      %6307 = vmatpush.bf16.msra.mxu0 %v4766
      %6308 = vmatpush.bf16.msra.mxu0 %v4759
      %6309 = vmatpush.bf16.msra.mxu0 %v4752
      %6310 = vmatpush.bf16.msra.mxu0 %v4745
      %6311 = vmatmul.bf16.gmra.mxu0 %v3956
      %v6312 = vpop.f32.mrf.mxu0
      %v6313 = vadd.f32 %v4192, %v6312
      %v6314 = vpop.f32.mrf.mxu0
      %v6315 = vadd.f32 %v4192, %v6314
      %6316 = vmatmul.bf16.gmra.mxu0 %v3960
      %v6317 = vpop.f32.mrf.mxu0
      %v6318 = vadd.f32 %v4192, %v6317
      %v6319 = vpop.f32.mrf.mxu0
      %v6320 = vadd.f32 %v4192, %v6319
      %6321 = vmatmul.bf16.gmra.mxu0 %v3964
      %v6322 = vpop.f32.mrf.mxu0
      %v6323 = vadd.f32 %v4192, %v6322
      %v6324 = vpop.f32.mrf.mxu0
      %v6325 = vadd.f32 %v4192, %v6324
      %6326 = vmatmul.bf16.gmra.mxu0 %v3968
      %v6327 = vpop.f32.mrf.mxu0
      %v6328 = vadd.f32 %v4192, %v6327
      %v6329 = vpop.f32.mrf.mxu0
      %v6330 = vadd.f32 %v4192, %v6329
      %6331 = vmatmul.bf16.gmra.mxu0 %v3972
      %v6332 = vpop.f32.mrf.mxu0
      %v6333 = vadd.f32 %v4192, %v6332
      %v6334 = vpop.f32.mrf.mxu0
      %v6335 = vadd.f32 %v4192, %v6334
      %6336 = vmatmul.bf16.gmra.mxu0 %v3976
      %v6337 = vpop.f32.mrf.mxu0
      %v6338 = vadd.f32 %v4192, %v6337
      %v6339 = vpop.f32.mrf.mxu0
      %v6340 = vadd.f32 %v4192, %v6339
      %6341 = vmatmul.bf16.gmra.mxu0 %v3980
      %v6342 = vpop.f32.mrf.mxu0
      %v6343 = vadd.f32 %v4192, %v6342
      %v6344 = vpop.f32.mrf.mxu0
      %v6345 = vadd.f32 %v4192, %v6344
      %6346 = vmatmul.bf16.gmra.mxu0 %v3984
      %v6347 = vpop.f32.mrf.mxu0
      %v6348 = vadd.f32 %v4192, %v6347
      %v6349 = vpop.f32.mrf.mxu0
      %v6350 = vadd.f32 %v4192, %v6349
      %6351 = vdwg.mxu0
      %6352 = vmatpush.bf16.msra.mxu0 %v4850
      %6353 = vmatpush.bf16.msra.mxu0 %v4843
      %6354 = vmatpush.bf16.msra.mxu0 %v4836
      %6355 = vmatpush.bf16.msra.mxu0 %v4829
      %6356 = vmatpush.bf16.msra.mxu0 %v4822
      %6357 = vmatpush.bf16.msra.mxu0 %v4815
      %6358 = vmatpush.bf16.msra.mxu0 %v4808
      %6359 = vmatpush.bf16.msra.mxu0 %v4801
      %6360 = vmatmul.bf16.gmra.mxu0 %v3957
      %v6361 = vpop.f32.mrf.mxu0
      %v6362 = vadd.f32 %v6313, %v6361
      %v6363 = vpop.f32.mrf.mxu0
      %v6364 = vadd.f32 %v6315, %v6363
      %6365 = vmatmul.bf16.gmra.mxu0 %v3961
      %v6366 = vpop.f32.mrf.mxu0
      %v6367 = vadd.f32 %v6318, %v6366
      %v6368 = vpop.f32.mrf.mxu0
      %v6369 = vadd.f32 %v6320, %v6368
      %6370 = vmatmul.bf16.gmra.mxu0 %v3965
      %v6371 = vpop.f32.mrf.mxu0
      %v6372 = vadd.f32 %v6323, %v6371
      %v6373 = vpop.f32.mrf.mxu0
      %v6374 = vadd.f32 %v6325, %v6373
      %6375 = vmatmul.bf16.gmra.mxu0 %v3969
      %v6376 = vpop.f32.mrf.mxu0
      %v6377 = vadd.f32 %v6328, %v6376
      %v6378 = vpop.f32.mrf.mxu0
      %v6379 = vadd.f32 %v6330, %v6378
      %6380 = vmatmul.bf16.gmra.mxu0 %v3973
      %v6381 = vpop.f32.mrf.mxu0
      %v6382 = vadd.f32 %v6333, %v6381
      %v6383 = vpop.f32.mrf.mxu0
      %v6384 = vadd.f32 %v6335, %v6383
      %6385 = vmatmul.bf16.gmra.mxu0 %v3977
      %v6386 = vpop.f32.mrf.mxu0
      %v6387 = vadd.f32 %v6338, %v6386
      %v6388 = vpop.f32.mrf.mxu0
      %v6389 = vadd.f32 %v6340, %v6388
      %6390 = vmatmul.bf16.gmra.mxu0 %v3981
      %v6391 = vpop.f32.mrf.mxu0
      %v6392 = vadd.f32 %v6343, %v6391
      %v6393 = vpop.f32.mrf.mxu0
      %v6394 = vadd.f32 %v6345, %v6393
      %6395 = vmatmul.bf16.gmra.mxu0 %v3985
      %v6396 = vpop.f32.mrf.mxu0
      %v6397 = vadd.f32 %v6348, %v6396
      %v6398 = vpop.f32.mrf.mxu0
      %v6399 = vadd.f32 %v6350, %v6398
      %6400 = vdwg.mxu0
      %6401 = vmatpush.bf16.msra.mxu0 %v4906
      %6402 = vmatpush.bf16.msra.mxu0 %v4899
      %6403 = vmatpush.bf16.msra.mxu0 %v4892
      %6404 = vmatpush.bf16.msra.mxu0 %v4885
      %6405 = vmatpush.bf16.msra.mxu0 %v4878
      %6406 = vmatpush.bf16.msra.mxu0 %v4871
      %6407 = vmatpush.bf16.msra.mxu0 %v4864
      %6408 = vmatpush.bf16.msra.mxu0 %v4857
      %6409 = vmatmul.bf16.gmra.mxu0 %v3958
      %v6410 = vpop.f32.mrf.mxu0
      %v6411 = vadd.f32 %v6362, %v6410
      %v6412 = vpop.f32.mrf.mxu0
      %v6413 = vadd.f32 %v6364, %v6412
      %6414 = vmatmul.bf16.gmra.mxu0 %v3962
      %v6415 = vpop.f32.mrf.mxu0
      %v6416 = vadd.f32 %v6367, %v6415
      %v6417 = vpop.f32.mrf.mxu0
      %v6418 = vadd.f32 %v6369, %v6417
      %6419 = vmatmul.bf16.gmra.mxu0 %v3966
      %v6420 = vpop.f32.mrf.mxu0
      %v6421 = vadd.f32 %v6372, %v6420
      %v6422 = vpop.f32.mrf.mxu0
      %v6423 = vadd.f32 %v6374, %v6422
      %6424 = vmatmul.bf16.gmra.mxu0 %v3970
      %v6425 = vpop.f32.mrf.mxu0
      %v6426 = vadd.f32 %v6377, %v6425
      %v6427 = vpop.f32.mrf.mxu0
      %v6428 = vadd.f32 %v6379, %v6427
      %6429 = vmatmul.bf16.gmra.mxu0 %v3974
      %v6430 = vpop.f32.mrf.mxu0
      %v6431 = vadd.f32 %v6382, %v6430
      %v6432 = vpop.f32.mrf.mxu0
      %v6433 = vadd.f32 %v6384, %v6432
      %6434 = vmatmul.bf16.gmra.mxu0 %v3978
      %v6435 = vpop.f32.mrf.mxu0
      %v6436 = vadd.f32 %v6387, %v6435
      %v6437 = vpop.f32.mrf.mxu0
      %v6438 = vadd.f32 %v6389, %v6437
      %6439 = vmatmul.bf16.gmra.mxu0 %v3982
      %v6440 = vpop.f32.mrf.mxu0
      %v6441 = vadd.f32 %v6392, %v6440
      %v6442 = vpop.f32.mrf.mxu0
      %v6443 = vadd.f32 %v6394, %v6442
      %6444 = vmatmul.bf16.gmra.mxu0 %v3986
      %v6445 = vpop.f32.mrf.mxu0
      %v6446 = vadd.f32 %v6397, %v6445
      %v6447 = vpop.f32.mrf.mxu0
      %v6448 = vadd.f32 %v6399, %v6447
      %6449 = vdwg.mxu0
      %6450 = vmatpush.bf16.msra.mxu0 0
      %6451 = vmatpush.bf16.msra.mxu0 0
      %6452 = vmatpush.bf16.msra.mxu0 0
      %6453 = vmatpush.bf16.msra.mxu0 0
      %6454 = vmatpush.bf16.msra.mxu0 0
      %6455 = vmatpush.bf16.msra.mxu0 0
      %6456 = vmatpush.bf16.msra.mxu0 0
      %6457 = vmatpush.bf16.msra.mxu0 %v5125
      %6458 = vmatmul.bf16.gmra.mxu0 %v5083
      %v6459 = vpop.f32.mrf.mxu0
      %v6460 = vadd.f32 %v6411, %v6459
      %v6461 = vpop.f32.mrf.mxu0
      %v6462 = vadd.f32 %v6413, %v6461
      %6463 = vmatmul.bf16.gmra.mxu0 %v5086
      %v6464 = vpop.f32.mrf.mxu0
      %v6465 = vadd.f32 %v6416, %v6464
      %v6466 = vpop.f32.mrf.mxu0
      %v6467 = vadd.f32 %v6418, %v6466
      %6468 = vmatmul.bf16.gmra.mxu0 %v5089
      %v6469 = vpop.f32.mrf.mxu0
      %v6470 = vadd.f32 %v6421, %v6469
      %v6471 = vpop.f32.mrf.mxu0
      %v6472 = vadd.f32 %v6423, %v6471
      %6473 = vmatmul.bf16.gmra.mxu0 %v5092
      %v6474 = vpop.f32.mrf.mxu0
      %v6475 = vadd.f32 %v6426, %v6474
      %v6476 = vpop.f32.mrf.mxu0
      %v6477 = vadd.f32 %v6428, %v6476
      %6478 = vmatmul.bf16.gmra.mxu0 %v5095
      %v6479 = vpop.f32.mrf.mxu0
      %v6480 = vadd.f32 %v6431, %v6479
      %v6481 = vpop.f32.mrf.mxu0
      %v6482 = vadd.f32 %v6433, %v6481
      %6483 = vmatmul.bf16.gmra.mxu0 %v5098
      %v6484 = vpop.f32.mrf.mxu0
      %v6485 = vadd.f32 %v6436, %v6484
      %v6486 = vpop.f32.mrf.mxu0
      %v6487 = vadd.f32 %v6438, %v6486
      %6488 = vmatmul.bf16.gmra.mxu0 %v5101
      %v6489 = vpop.f32.mrf.mxu0
      %v6490 = vadd.f32 %v6441, %v6489
      %v6491 = vpop.f32.mrf.mxu0
      %v6492 = vadd.f32 %v6443, %v6491
      %6493 = vmatmul.bf16.gmra.mxu0 %v5104
      %v6494 = vpop.f32.mrf.mxu0
      %v6495 = vadd.f32 %v6446, %v6494
      %v6496 = vpop.f32.mrf.mxu0
      %v6497 = vadd.f32 %v6448, %v6496
      %6498 = vdwg.mxu0
      %v6499 = vxor.u32 %v5284, 2147483648
      %v6500 = vxor.u32 %v5480, 2147483648
      %v6501 = vxor.u32 %v5676, 2147483648
      %v6502 = vxor.u32 %v5872, 2147483648
      %v6503 = vxor.u32 %v6068, 2147483648
      %v6504 = vxor.u32 %v6264, 2147483648
      %v6505 = vxor.u32 %v6460, 2147483648
      %v6506 = vxor.u32 %v5286, 2147483648
      %v6507 = vxor.u32 %v5482, 2147483648
      %v6508 = vxor.u32 %v5678, 2147483648
      %v6509 = vxor.u32 %v5874, 2147483648
      %v6510 = vxor.u32 %v6070, 2147483648
      %v6511 = vxor.u32 %v6266, 2147483648
      %v6512 = vxor.u32 %v6462, 2147483648
      %v6513 = vxor.u32 %v5289, 2147483648
      %v6514 = vxor.u32 %v5485, 2147483648
      %v6515 = vxor.u32 %v5681, 2147483648
      %v6516 = vxor.u32 %v5877, 2147483648
      %v6517 = vxor.u32 %v6073, 2147483648
      %v6518 = vxor.u32 %v6269, 2147483648
      %v6519 = vxor.u32 %v6465, 2147483648
      %v6520 = vxor.u32 %v5291, 2147483648
      %v6521 = vxor.u32 %v5487, 2147483648
      %v6522 = vxor.u32 %v5683, 2147483648
      %v6523 = vxor.u32 %v5879, 2147483648
      %v6524 = vxor.u32 %v6075, 2147483648
      %v6525 = vxor.u32 %v6271, 2147483648
      %v6526 = vxor.u32 %v6467, 2147483648
      %v6527 = vxor.u32 %v5294, 2147483648
      %v6528 = vxor.u32 %v5490, 2147483648
      %v6529 = vxor.u32 %v5686, 2147483648
      %v6530 = vxor.u32 %v5882, 2147483648
      %v6531 = vxor.u32 %v6078, 2147483648
      %v6532 = vxor.u32 %v6274, 2147483648
      %v6533 = vxor.u32 %v6470, 2147483648
      %v6534 = vxor.u32 %v5296, 2147483648
      %v6535 = vxor.u32 %v5492, 2147483648
      %v6536 = vxor.u32 %v5688, 2147483648
      %v6537 = vxor.u32 %v5884, 2147483648
      %v6538 = vxor.u32 %v6080, 2147483648
      %v6539 = vxor.u32 %v6276, 2147483648
      %v6540 = vxor.u32 %v6472, 2147483648
      %v6541 = vxor.u32 %v5299, 2147483648
      %v6542 = vxor.u32 %v5495, 2147483648
      %v6543 = vxor.u32 %v5691, 2147483648
      %v6544 = vxor.u32 %v5887, 2147483648
      %v6545 = vxor.u32 %v6083, 2147483648
      %v6546 = vxor.u32 %v6279, 2147483648
      %v6547 = vxor.u32 %v6475, 2147483648
      %v6548 = vxor.u32 %v5301, 2147483648
      %v6549 = vxor.u32 %v5497, 2147483648
      %v6550 = vxor.u32 %v5693, 2147483648
      %v6551 = vxor.u32 %v5889, 2147483648
      %v6552 = vxor.u32 %v6085, 2147483648
      %v6553 = vxor.u32 %v6281, 2147483648
      %v6554 = vxor.u32 %v6477, 2147483648
      %v6555 = vxor.u32 %v5304, 2147483648
      %v6556 = vxor.u32 %v5500, 2147483648
      %v6557 = vxor.u32 %v5696, 2147483648
      %v6558 = vxor.u32 %v5892, 2147483648
      %v6559 = vxor.u32 %v6088, 2147483648
      %v6560 = vxor.u32 %v6284, 2147483648
      %v6561 = vxor.u32 %v6480, 2147483648
      %v6562 = vxor.u32 %v5306, 2147483648
      %v6563 = vxor.u32 %v5502, 2147483648
      %v6564 = vxor.u32 %v5698, 2147483648
      %v6565 = vxor.u32 %v5894, 2147483648
      %v6566 = vxor.u32 %v6090, 2147483648
      %v6567 = vxor.u32 %v6286, 2147483648
      %v6568 = vxor.u32 %v6482, 2147483648
      %v6569 = vxor.u32 %v5309, 2147483648
      %v6570 = vxor.u32 %v5505, 2147483648
      %v6571 = vxor.u32 %v5701, 2147483648
      %v6572 = vxor.u32 %v5897, 2147483648
      %v6573 = vxor.u32 %v6093, 2147483648
      %v6574 = vxor.u32 %v6289, 2147483648
      %v6575 = vxor.u32 %v6485, 2147483648
      %v6576 = vxor.u32 %v5311, 2147483648
      %v6577 = vxor.u32 %v5507, 2147483648
      %v6578 = vxor.u32 %v5703, 2147483648
      %v6579 = vxor.u32 %v5899, 2147483648
      %v6580 = vxor.u32 %v6095, 2147483648
      %v6581 = vxor.u32 %v6291, 2147483648
      %v6582 = vxor.u32 %v6487, 2147483648
      %v6583 = vxor.u32 %v5314, 2147483648
      %v6584 = vxor.u32 %v5510, 2147483648
      %v6585 = vxor.u32 %v5706, 2147483648
      %v6586 = vxor.u32 %v5902, 2147483648
      %v6587 = vxor.u32 %v6098, 2147483648
      %v6588 = vxor.u32 %v6294, 2147483648
      %v6589 = vxor.u32 %v6490, 2147483648
      %v6590 = vxor.u32 %v5316, 2147483648
      %v6591 = vxor.u32 %v5512, 2147483648
      %v6592 = vxor.u32 %v5708, 2147483648
      %v6593 = vxor.u32 %v5904, 2147483648
      %v6594 = vxor.u32 %v6100, 2147483648
      %v6595 = vxor.u32 %v6296, 2147483648
      %v6596 = vxor.u32 %v6492, 2147483648
      %v6597 = vxor.u32 %v5319, 2147483648
      %v6598 = vxor.u32 %v5515, 2147483648
      %v6599 = vxor.u32 %v5711, 2147483648
      %v6600 = vxor.u32 %v5907, 2147483648
      %v6601 = vxor.u32 %v6103, 2147483648
      %v6602 = vxor.u32 %v6299, 2147483648
      %v6603 = vxor.u32 %v6495, 2147483648
      %v6604 = vxor.u32 %v5321, 2147483648
      %v6605 = vxor.u32 %v5517, 2147483648
      %v6606 = vxor.u32 %v5713, 2147483648
      %v6607 = vxor.u32 %v5909, 2147483648
      %v6608 = vxor.u32 %v6105, 2147483648
      %v6609 = vxor.u32 %v6301, 2147483648
      %v6610 = vxor.u32 %v6497, 2147483648
      %v6611 = vmul.f32 %v6499, 1.442695
      %v6612 = vpow.pop %v6611
      %v6613 = vmul.f32 %v6500, 1.442695
      %v6614 = vpow.pop %v6613
      %v6615 = vmul.f32 %v6501, 1.442695
      %v6616 = vpow.pop %v6615
      %v6617 = vmul.f32 %v6502, 1.442695
      %v6618 = vpow.pop %v6617
      %v6619 = vmul.f32 %v6503, 1.442695
      %v6620 = vpow.pop %v6619
      %v6621 = vmul.f32 %v6504, 1.442695
      %v6622 = vpow.pop %v6621
      %v6623 = vmul.f32 %v6505, 1.442695
      %v6624 = vpow.pop %v6623
      %v6625 = vmul.f32 %v6506, 1.442695
      %v6626 = vpow.pop %v6625
      %v6627 = vmul.f32 %v6507, 1.442695
      %v6628 = vpow.pop %v6627
      %v6629 = vmul.f32 %v6508, 1.442695
      %v6630 = vpow.pop %v6629
      %v6631 = vmul.f32 %v6509, 1.442695
      %v6632 = vpow.pop %v6631
      %v6633 = vmul.f32 %v6510, 1.442695
      %v6634 = vpow.pop %v6633
      %v6635 = vmul.f32 %v6511, 1.442695
      %v6636 = vpow.pop %v6635
      %v6637 = vmul.f32 %v6512, 1.442695
      %v6638 = vpow.pop %v6637
      %v6639 = vmul.f32 %v6513, 1.442695
      %v6640 = vpow.pop %v6639
      %v6641 = vmul.f32 %v6514, 1.442695
      %v6642 = vpow.pop %v6641
      %v6643 = vmul.f32 %v6515, 1.442695
      %v6644 = vpow.pop %v6643
      %v6645 = vmul.f32 %v6516, 1.442695
      %v6646 = vpow.pop %v6645
      %v6647 = vmul.f32 %v6517, 1.442695
      %v6648 = vpow.pop %v6647
      %v6649 = vmul.f32 %v6518, 1.442695
      %v6650 = vpow.pop %v6649
      %v6651 = vmul.f32 %v6519, 1.442695
      %v6652 = vpow.pop %v6651
      %v6653 = vmul.f32 %v6520, 1.442695
      %v6654 = vpow.pop %v6653
      %v6655 = vmul.f32 %v6521, 1.442695
      %v6656 = vpow.pop %v6655
      %v6657 = vmul.f32 %v6522, 1.442695
      %v6658 = vpow.pop %v6657
      %v6659 = vmul.f32 %v6523, 1.442695
      %v6660 = vpow.pop %v6659
      %v6661 = vmul.f32 %v6524, 1.442695
      %v6662 = vpow.pop %v6661
      %v6663 = vmul.f32 %v6525, 1.442695
      %v6664 = vpow.pop %v6663
      %v6665 = vmul.f32 %v6526, 1.442695
      %v6666 = vpow.pop %v6665
      %v6667 = vmul.f32 %v6527, 1.442695
      %v6668 = vpow.pop %v6667
      %v6669 = vmul.f32 %v6528, 1.442695
      %v6670 = vpow.pop %v6669
      %v6671 = vmul.f32 %v6529, 1.442695
      %v6672 = vpow.pop %v6671
      %v6673 = vmul.f32 %v6530, 1.442695
      %v6674 = vpow.pop %v6673
      %v6675 = vmul.f32 %v6531, 1.442695
      %v6676 = vpow.pop %v6675
      %v6677 = vmul.f32 %v6532, 1.442695
      %v6678 = vpow.pop %v6677
      %v6679 = vmul.f32 %v6533, 1.442695
      %v6680 = vpow.pop %v6679
      %v6681 = vmul.f32 %v6534, 1.442695
      %v6682 = vpow.pop %v6681
      %v6683 = vmul.f32 %v6535, 1.442695
      %v6684 = vpow.pop %v6683
      %v6685 = vmul.f32 %v6536, 1.442695
      %v6686 = vpow.pop %v6685
      %v6687 = vmul.f32 %v6537, 1.442695
      %v6688 = vpow.pop %v6687
      %v6689 = vmul.f32 %v6538, 1.442695
      %v6690 = vpow.pop %v6689
      %v6691 = vmul.f32 %v6539, 1.442695
      %v6692 = vpow.pop %v6691
      %v6693 = vmul.f32 %v6540, 1.442695
      %v6694 = vpow.pop %v6693
      %v6695 = vmul.f32 %v6541, 1.442695
      %v6696 = vpow.pop %v6695
      %v6697 = vmul.f32 %v6542, 1.442695
      %v6698 = vpow.pop %v6697
      %v6699 = vmul.f32 %v6543, 1.442695
      %v6700 = vpow.pop %v6699
      %v6701 = vmul.f32 %v6544, 1.442695
      %v6702 = vpow.pop %v6701
      %v6703 = vmul.f32 %v6545, 1.442695
      %v6704 = vpow.pop %v6703
      %v6705 = vmul.f32 %v6546, 1.442695
      %v6706 = vpow.pop %v6705
      %v6707 = vmul.f32 %v6547, 1.442695
      %v6708 = vpow.pop %v6707
      %v6709 = vmul.f32 %v6548, 1.442695
      %v6710 = vpow.pop %v6709
      %v6711 = vmul.f32 %v6549, 1.442695
      %v6712 = vpow.pop %v6711
      %v6713 = vmul.f32 %v6550, 1.442695
      %v6714 = vpow.pop %v6713
      %v6715 = vmul.f32 %v6551, 1.442695
      %v6716 = vpow.pop %v6715
      %v6717 = vmul.f32 %v6552, 1.442695
      %v6718 = vpow.pop %v6717
      %v6719 = vmul.f32 %v6553, 1.442695
      %v6720 = vpow.pop %v6719
      %v6721 = vmul.f32 %v6554, 1.442695
      %v6722 = vpow.pop %v6721
      %v6723 = vmul.f32 %v6555, 1.442695
      %v6724 = vpow.pop %v6723
      %v6725 = vmul.f32 %v6556, 1.442695
      %v6726 = vpow.pop %v6725
      %v6727 = vmul.f32 %v6557, 1.442695
      %v6728 = vpow.pop %v6727
      %v6729 = vmul.f32 %v6558, 1.442695
      %v6730 = vpow.pop %v6729
      %v6731 = vmul.f32 %v6559, 1.442695
      %v6732 = vpow.pop %v6731
      %v6733 = vmul.f32 %v6560, 1.442695
      %v6734 = vpow.pop %v6733
      %v6735 = vmul.f32 %v6561, 1.442695
      %v6736 = vpow.pop %v6735
      %v6737 = vmul.f32 %v6562, 1.442695
      %v6738 = vpow.pop %v6737
      %v6739 = vmul.f32 %v6563, 1.442695
      %v6740 = vpow.pop %v6739
      %v6741 = vmul.f32 %v6564, 1.442695
      %v6742 = vpow.pop %v6741
      %v6743 = vmul.f32 %v6565, 1.442695
      %v6744 = vpow.pop %v6743
      %v6745 = vmul.f32 %v6566, 1.442695
      %v6746 = vpow.pop %v6745
      %v6747 = vmul.f32 %v6567, 1.442695
      %v6748 = vpow.pop %v6747
      %v6749 = vmul.f32 %v6568, 1.442695
      %v6750 = vpow.pop %v6749
      %v6751 = vmul.f32 %v6569, 1.442695
      %v6752 = vpow.pop %v6751
      %v6753 = vmul.f32 %v6570, 1.442695
      %v6754 = vpow.pop %v6753
      %v6755 = vmul.f32 %v6571, 1.442695
      %v6756 = vpow.pop %v6755
      %v6757 = vmul.f32 %v6572, 1.442695
      %v6758 = vpow.pop %v6757
      %v6759 = vmul.f32 %v6573, 1.442695
      %v6760 = vpow.pop %v6759
      %v6761 = vmul.f32 %v6574, 1.442695
      %v6762 = vpow.pop %v6761
      %v6763 = vmul.f32 %v6575, 1.442695
      %v6764 = vpow.pop %v6763
      %v6765 = vmul.f32 %v6576, 1.442695
      %v6766 = vpow.pop %v6765
      %v6767 = vmul.f32 %v6577, 1.442695
      %v6768 = vpow.pop %v6767
      %v6769 = vmul.f32 %v6578, 1.442695
      %v6770 = vpow.pop %v6769
      %v6771 = vmul.f32 %v6579, 1.442695
      %v6772 = vpow.pop %v6771
      %v6773 = vmul.f32 %v6580, 1.442695
      %v6774 = vpow.pop %v6773
      %v6775 = vmul.f32 %v6581, 1.442695
      %v6776 = vpow.pop %v6775
      %v6777 = vmul.f32 %v6582, 1.442695
      %v6778 = vpow.pop %v6777
      %v6779 = vmul.f32 %v6583, 1.442695
      %v6780 = vpow.pop %v6779
      %v6781 = vmul.f32 %v6584, 1.442695
      %v6782 = vpow.pop %v6781
      %v6783 = vmul.f32 %v6585, 1.442695
      %v6784 = vpow.pop %v6783
      %v6785 = vmul.f32 %v6586, 1.442695
      %v6786 = vpow.pop %v6785
      %v6787 = vmul.f32 %v6587, 1.442695
      %v6788 = vpow.pop %v6787
      %v6789 = vmul.f32 %v6588, 1.442695
      %v6790 = vpow.pop %v6789
      %v6791 = vmul.f32 %v6589, 1.442695
      %v6792 = vpow.pop %v6791
      %v6793 = vmul.f32 %v6590, 1.442695
      %v6794 = vpow.pop %v6793
      %v6795 = vmul.f32 %v6591, 1.442695
      %v6796 = vpow.pop %v6795
      %v6797 = vmul.f32 %v6592, 1.442695
      %v6798 = vpow.pop %v6797
      %v6799 = vmul.f32 %v6593, 1.442695
      %v6800 = vpow.pop %v6799
      %v6801 = vmul.f32 %v6594, 1.442695
      %v6802 = vpow.pop %v6801
      %v6803 = vmul.f32 %v6595, 1.442695
      %v6804 = vpow.pop %v6803
      %v6805 = vmul.f32 %v6596, 1.442695
      %v6806 = vpow.pop %v6805
      %v6807 = vmul.f32 %v6597, 1.442695
      %v6808 = vpow.pop %v6807
      %v6809 = vmul.f32 %v6598, 1.442695
      %v6810 = vpow.pop %v6809
      %v6811 = vmul.f32 %v6599, 1.442695
      %v6812 = vpow.pop %v6811
      %v6813 = vmul.f32 %v6600, 1.442695
      %v6814 = vpow.pop %v6813
      %v6815 = vmul.f32 %v6601, 1.442695
      %v6816 = vpow.pop %v6815
      %v6817 = vmul.f32 %v6602, 1.442695
      %v6818 = vpow.pop %v6817
      %v6819 = vmul.f32 %v6603, 1.442695
      %v6820 = vpow.pop %v6819
      %v6821 = vmul.f32 %v6604, 1.442695
      %v6822 = vpow.pop %v6821
      %v6823 = vmul.f32 %v6605, 1.442695
      %v6824 = vpow.pop %v6823
      %v6825 = vmul.f32 %v6606, 1.442695
      %v6826 = vpow.pop %v6825
      %v6827 = vmul.f32 %v6607, 1.442695
      %v6828 = vpow.pop %v6827
      %v6829 = vmul.f32 %v6608, 1.442695
      %v6830 = vpow.pop %v6829
      %v6831 = vmul.f32 %v6609, 1.442695
      %v6832 = vpow.pop %v6831
      %v6833 = vmul.f32 %v6610, 1.442695
      %v6834 = vpow.pop %v6833
      %v6835 = vadd.f32 %v6612, 1.0
      %v6836 = vadd.f32 %v6614, 1.0
      %v6837 = vadd.f32 %v6616, 1.0
      %v6838 = vadd.f32 %v6618, 1.0
      %v6839 = vadd.f32 %v6620, 1.0
      %v6840 = vadd.f32 %v6622, 1.0
      %v6841 = vadd.f32 %v6624, 1.0
      %v6842 = vadd.f32 %v6626, 1.0
      %v6843 = vadd.f32 %v6628, 1.0
      %v6844 = vadd.f32 %v6630, 1.0
      %v6845 = vadd.f32 %v6632, 1.0
      %v6846 = vadd.f32 %v6634, 1.0
      %v6847 = vadd.f32 %v6636, 1.0
      %v6848 = vadd.f32 %v6638, 1.0
      %v6849 = vadd.f32 %v6640, 1.0
      %v6850 = vadd.f32 %v6642, 1.0
      %v6851 = vadd.f32 %v6644, 1.0
      %v6852 = vadd.f32 %v6646, 1.0
      %v6853 = vadd.f32 %v6648, 1.0
      %v6854 = vadd.f32 %v6650, 1.0
      %v6855 = vadd.f32 %v6652, 1.0
      %v6856 = vadd.f32 %v6654, 1.0
      %v6857 = vadd.f32 %v6656, 1.0
      %v6858 = vadd.f32 %v6658, 1.0
      %v6859 = vadd.f32 %v6660, 1.0
      %v6860 = vadd.f32 %v6662, 1.0
      %v6861 = vadd.f32 %v6664, 1.0
      %v6862 = vadd.f32 %v6666, 1.0
      %v6863 = vadd.f32 %v6668, 1.0
      %v6864 = vadd.f32 %v6670, 1.0
      %v6865 = vadd.f32 %v6672, 1.0
      %v6866 = vadd.f32 %v6674, 1.0
      %v6867 = vadd.f32 %v6676, 1.0
      %v6868 = vadd.f32 %v6678, 1.0
      %v6869 = vadd.f32 %v6680, 1.0
      %v6870 = vadd.f32 %v6682, 1.0
      %v6871 = vadd.f32 %v6684, 1.0
      %v6872 = vadd.f32 %v6686, 1.0
      %v6873 = vadd.f32 %v6688, 1.0
      %v6874 = vadd.f32 %v6690, 1.0
      %v6875 = vadd.f32 %v6692, 1.0
      %v6876 = vadd.f32 %v6694, 1.0
      %v6877 = vadd.f32 %v6696, 1.0
      %v6878 = vadd.f32 %v6698, 1.0
      %v6879 = vadd.f32 %v6700, 1.0
      %v6880 = vadd.f32 %v6702, 1.0
      %v6881 = vadd.f32 %v6704, 1.0
      %v6882 = vadd.f32 %v6706, 1.0
      %v6883 = vadd.f32 %v6708, 1.0
      %v6884 = vadd.f32 %v6710, 1.0
      %v6885 = vadd.f32 %v6712, 1.0
      %v6886 = vadd.f32 %v6714, 1.0
      %v6887 = vadd.f32 %v6716, 1.0
      %v6888 = vadd.f32 %v6718, 1.0
      %v6889 = vadd.f32 %v6720, 1.0
      %v6890 = vadd.f32 %v6722, 1.0
      %v6891 = vadd.f32 %v6724, 1.0
      %v6892 = vadd.f32 %v6726, 1.0
      %v6893 = vadd.f32 %v6728, 1.0
      %v6894 = vadd.f32 %v6730, 1.0
      %v6895 = vadd.f32 %v6732, 1.0
      %v6896 = vadd.f32 %v6734, 1.0
      %v6897 = vadd.f32 %v6736, 1.0
      %v6898 = vadd.f32 %v6738, 1.0
      %v6899 = vadd.f32 %v6740, 1.0
      %v6900 = vadd.f32 %v6742, 1.0
      %v6901 = vadd.f32 %v6744, 1.0
      %v6902 = vadd.f32 %v6746, 1.0
      %v6903 = vadd.f32 %v6748, 1.0
      %v6904 = vadd.f32 %v6750, 1.0
      %v6905 = vadd.f32 %v6752, 1.0
      %v6906 = vadd.f32 %v6754, 1.0
      %v6907 = vadd.f32 %v6756, 1.0
      %v6908 = vadd.f32 %v6758, 1.0
      %v6909 = vadd.f32 %v6760, 1.0
      %v6910 = vadd.f32 %v6762, 1.0
      %v6911 = vadd.f32 %v6764, 1.0
      %v6912 = vadd.f32 %v6766, 1.0
      %v6913 = vadd.f32 %v6768, 1.0
      %v6914 = vadd.f32 %v6770, 1.0
      %v6915 = vadd.f32 %v6772, 1.0
      %v6916 = vadd.f32 %v6774, 1.0
      %v6917 = vadd.f32 %v6776, 1.0
      %v6918 = vadd.f32 %v6778, 1.0
      %v6919 = vadd.f32 %v6780, 1.0
      %v6920 = vadd.f32 %v6782, 1.0
      %v6921 = vadd.f32 %v6784, 1.0
      %v6922 = vadd.f32 %v6786, 1.0
      %v6923 = vadd.f32 %v6788, 1.0
      %v6924 = vadd.f32 %v6790, 1.0
      %v6925 = vadd.f32 %v6792, 1.0
      %v6926 = vadd.f32 %v6794, 1.0
      %v6927 = vadd.f32 %v6796, 1.0
      %v6928 = vadd.f32 %v6798, 1.0
      %v6929 = vadd.f32 %v6800, 1.0
      %v6930 = vadd.f32 %v6802, 1.0
      %v6931 = vadd.f32 %v6804, 1.0
      %v6932 = vadd.f32 %v6806, 1.0
      %v6933 = vadd.f32 %v6808, 1.0
      %v6934 = vadd.f32 %v6810, 1.0
      %v6935 = vadd.f32 %v6812, 1.0
      %v6936 = vadd.f32 %v6814, 1.0
      %v6937 = vadd.f32 %v6816, 1.0
      %v6938 = vadd.f32 %v6818, 1.0
      %v6939 = vadd.f32 %v6820, 1.0
      %v6940 = vadd.f32 %v6822, 1.0
      %v6941 = vadd.f32 %v6824, 1.0
      %v6942 = vadd.f32 %v6826, 1.0
      %v6943 = vadd.f32 %v6828, 1.0
      %v6944 = vadd.f32 %v6830, 1.0
      %v6945 = vadd.f32 %v6832, 1.0
      %v6946 = vadd.f32 %v6834, 1.0
      %v6947 = vrcp.pop %v6835
      %v6948 = vmul.f32 %v6835, %v6947
      %v6949 = vsub.f32 1.0, %v6948
      %v6950 = vmul.f32 %v6947, %v6949
      %v6951 = vadd.f32 %v6947, %v6950
      %vm6952 = vweird.f32 %v6835
      %vm6953 = vweird.f32 %v6947
      %vm6954 = vmor %vm6952, %vm6953
      %v6955 = vsel %vm6954, %v6947, %v6951
      %v6956 = vand.u32 2147483647, %v6835
      %vm6957 = vcmp.eq.f32.partialorder %v6956, 8.507059e+37
      %v6958 = vand.u32 %v6835, 2147483648
      %v6959 = vor.u32 1.1754944e-38, %v6958
      %v6960 = vsel %vm6957, %v6959, %v6955
      %v6961 = vmul.f32 1.0, %v6960
      %v6962 = vrcp.pop %v6836
      %v6963 = vmul.f32 %v6836, %v6962
      %v6964 = vsub.f32 1.0, %v6963
      %v6965 = vmul.f32 %v6962, %v6964
      %v6966 = vadd.f32 %v6962, %v6965
      %vm6967 = vweird.f32 %v6836
      %vm6968 = vweird.f32 %v6962
      %vm6969 = vmor %vm6967, %vm6968
      %v6970 = vsel %vm6969, %v6962, %v6966
      %v6971 = vand.u32 2147483647, %v6836
      %vm6972 = vcmp.eq.f32.partialorder %v6971, 8.507059e+37
      %v6973 = vand.u32 %v6836, 2147483648
      %v6974 = vor.u32 1.1754944e-38, %v6973
      %v6975 = vsel %vm6972, %v6974, %v6970
      %v6976 = vmul.f32 1.0, %v6975
      %v6977 = vrcp.pop %v6837
      %v6978 = vmul.f32 %v6837, %v6977
      %v6979 = vsub.f32 1.0, %v6978
      %v6980 = vmul.f32 %v6977, %v6979
      %v6981 = vadd.f32 %v6977, %v6980
      %vm6982 = vweird.f32 %v6837
      %vm6983 = vweird.f32 %v6977
      %vm6984 = vmor %vm6982, %vm6983
      %v6985 = vsel %vm6984, %v6977, %v6981
      %v6986 = vand.u32 2147483647, %v6837
      %vm6987 = vcmp.eq.f32.partialorder %v6986, 8.507059e+37
      %v6988 = vand.u32 %v6837, 2147483648
      %v6989 = vor.u32 1.1754944e-38, %v6988
      %v6990 = vsel %vm6987, %v6989, %v6985
      %v6991 = vmul.f32 1.0, %v6990
      %v6992 = vrcp.pop %v6838
      %v6993 = vmul.f32 %v6838, %v6992
      %v6994 = vsub.f32 1.0, %v6993
      %v6995 = vmul.f32 %v6992, %v6994
      %v6996 = vadd.f32 %v6992, %v6995
      %vm6997 = vweird.f32 %v6838
      %vm6998 = vweird.f32 %v6992
      %vm6999 = vmor %vm6997, %vm6998
      %v7000 = vsel %vm6999, %v6992, %v6996
      %v7001 = vand.u32 2147483647, %v6838
      %vm7002 = vcmp.eq.f32.partialorder %v7001, 8.507059e+37
      %v7003 = vand.u32 %v6838, 2147483648
      %v7004 = vor.u32 1.1754944e-38, %v7003
      %v7005 = vsel %vm7002, %v7004, %v7000
      %v7006 = vmul.f32 1.0, %v7005
      %v7007 = vrcp.pop %v6839
      %v7008 = vmul.f32 %v6839, %v7007
      %v7009 = vsub.f32 1.0, %v7008
      %v7010 = vmul.f32 %v7007, %v7009
      %v7011 = vadd.f32 %v7007, %v7010
      %vm7012 = vweird.f32 %v6839
      %vm7013 = vweird.f32 %v7007
      %vm7014 = vmor %vm7012, %vm7013
      %v7015 = vsel %vm7014, %v7007, %v7011
      %v7016 = vand.u32 2147483647, %v6839
      %vm7017 = vcmp.eq.f32.partialorder %v7016, 8.507059e+37
      %v7018 = vand.u32 %v6839, 2147483648
      %v7019 = vor.u32 1.1754944e-38, %v7018
      %v7020 = vsel %vm7017, %v7019, %v7015
      %v7021 = vmul.f32 1.0, %v7020
      %v7022 = vrcp.pop %v6840
      %v7023 = vmul.f32 %v6840, %v7022
      %v7024 = vsub.f32 1.0, %v7023
      %v7025 = vmul.f32 %v7022, %v7024
      %v7026 = vadd.f32 %v7022, %v7025
      %vm7027 = vweird.f32 %v6840
      %vm7028 = vweird.f32 %v7022
      %vm7029 = vmor %vm7027, %vm7028
      %v7030 = vsel %vm7029, %v7022, %v7026
      %v7031 = vand.u32 2147483647, %v6840
      %vm7032 = vcmp.eq.f32.partialorder %v7031, 8.507059e+37
      %v7033 = vand.u32 %v6840, 2147483648
      %v7034 = vor.u32 1.1754944e-38, %v7033
      %v7035 = vsel %vm7032, %v7034, %v7030
      %v7036 = vmul.f32 1.0, %v7035
      %v7037 = vrcp.pop %v6841
      %v7038 = vmul.f32 %v6841, %v7037
      %v7039 = vsub.f32 1.0, %v7038
      %v7040 = vmul.f32 %v7037, %v7039
      %v7041 = vadd.f32 %v7037, %v7040
      %vm7042 = vweird.f32 %v6841
      %vm7043 = vweird.f32 %v7037
      %vm7044 = vmor %vm7042, %vm7043
      %v7045 = vsel %vm7044, %v7037, %v7041
      %v7046 = vand.u32 2147483647, %v6841
      %vm7047 = vcmp.eq.f32.partialorder %v7046, 8.507059e+37
      %v7048 = vand.u32 %v6841, 2147483648
      %v7049 = vor.u32 1.1754944e-38, %v7048
      %v7050 = vsel %vm7047, %v7049, %v7045
      %v7051 = vmul.f32 1.0, %v7050
      %v7052 = vrcp.pop %v6842
      %v7053 = vmul.f32 %v6842, %v7052
      %v7054 = vsub.f32 1.0, %v7053
      %v7055 = vmul.f32 %v7052, %v7054
      %v7056 = vadd.f32 %v7052, %v7055
      %vm7057 = vweird.f32 %v6842
      %vm7058 = vweird.f32 %v7052
      %vm7059 = vmor %vm7057, %vm7058
      %v7060 = vsel %vm7059, %v7052, %v7056
      %v7061 = vand.u32 2147483647, %v6842
      %vm7062 = vcmp.eq.f32.partialorder %v7061, 8.507059e+37
      %v7063 = vand.u32 %v6842, 2147483648
      %v7064 = vor.u32 1.1754944e-38, %v7063
      %v7065 = vsel %vm7062, %v7064, %v7060
      %v7066 = vmul.f32 1.0, %v7065
      %v7067 = vrcp.pop %v6843
      %v7068 = vmul.f32 %v6843, %v7067
      %v7069 = vsub.f32 1.0, %v7068
      %v7070 = vmul.f32 %v7067, %v7069
      %v7071 = vadd.f32 %v7067, %v7070
      %vm7072 = vweird.f32 %v6843
      %vm7073 = vweird.f32 %v7067
      %vm7074 = vmor %vm7072, %vm7073
      %v7075 = vsel %vm7074, %v7067, %v7071
      %v7076 = vand.u32 2147483647, %v6843
      %vm7077 = vcmp.eq.f32.partialorder %v7076, 8.507059e+37
      %v7078 = vand.u32 %v6843, 2147483648
      %v7079 = vor.u32 1.1754944e-38, %v7078
      %v7080 = vsel %vm7077, %v7079, %v7075
      %v7081 = vmul.f32 1.0, %v7080
      %v7082 = vrcp.pop %v6844
      %v7083 = vmul.f32 %v6844, %v7082
      %v7084 = vsub.f32 1.0, %v7083
      %v7085 = vmul.f32 %v7082, %v7084
      %v7086 = vadd.f32 %v7082, %v7085
      %vm7087 = vweird.f32 %v6844
      %vm7088 = vweird.f32 %v7082
      %vm7089 = vmor %vm7087, %vm7088
      %v7090 = vsel %vm7089, %v7082, %v7086
      %v7091 = vand.u32 2147483647, %v6844
      %vm7092 = vcmp.eq.f32.partialorder %v7091, 8.507059e+37
      %v7093 = vand.u32 %v6844, 2147483648
      %v7094 = vor.u32 1.1754944e-38, %v7093
      %v7095 = vsel %vm7092, %v7094, %v7090
      %v7096 = vmul.f32 1.0, %v7095
      %v7097 = vrcp.pop %v6845
      %v7098 = vmul.f32 %v6845, %v7097
      %v7099 = vsub.f32 1.0, %v7098
      %v7100 = vmul.f32 %v7097, %v7099
      %v7101 = vadd.f32 %v7097, %v7100
      %vm7102 = vweird.f32 %v6845
      %vm7103 = vweird.f32 %v7097
      %vm7104 = vmor %vm7102, %vm7103
      %v7105 = vsel %vm7104, %v7097, %v7101
      %v7106 = vand.u32 2147483647, %v6845
      %vm7107 = vcmp.eq.f32.partialorder %v7106, 8.507059e+37
      %v7108 = vand.u32 %v6845, 2147483648
      %v7109 = vor.u32 1.1754944e-38, %v7108
      %v7110 = vsel %vm7107, %v7109, %v7105
      %v7111 = vmul.f32 1.0, %v7110
      %v7112 = vrcp.pop %v6846
      %v7113 = vmul.f32 %v6846, %v7112
      %v7114 = vsub.f32 1.0, %v7113
      %v7115 = vmul.f32 %v7112, %v7114
      %v7116 = vadd.f32 %v7112, %v7115
      %vm7117 = vweird.f32 %v6846
      %vm7118 = vweird.f32 %v7112
      %vm7119 = vmor %vm7117, %vm7118
      %v7120 = vsel %vm7119, %v7112, %v7116
      %v7121 = vand.u32 2147483647, %v6846
      %vm7122 = vcmp.eq.f32.partialorder %v7121, 8.507059e+37
      %v7123 = vand.u32 %v6846, 2147483648
      %v7124 = vor.u32 1.1754944e-38, %v7123
      %v7125 = vsel %vm7122, %v7124, %v7120
      %v7126 = vmul.f32 1.0, %v7125
      %v7127 = vrcp.pop %v6847
      %v7128 = vmul.f32 %v6847, %v7127
      %v7129 = vsub.f32 1.0, %v7128
      %v7130 = vmul.f32 %v7127, %v7129
      %v7131 = vadd.f32 %v7127, %v7130
      %vm7132 = vweird.f32 %v6847
      %vm7133 = vweird.f32 %v7127
      %vm7134 = vmor %vm7132, %vm7133
      %v7135 = vsel %vm7134, %v7127, %v7131
      %v7136 = vand.u32 2147483647, %v6847
      %vm7137 = vcmp.eq.f32.partialorder %v7136, 8.507059e+37
      %v7138 = vand.u32 %v6847, 2147483648
      %v7139 = vor.u32 1.1754944e-38, %v7138
      %v7140 = vsel %vm7137, %v7139, %v7135
      %v7141 = vmul.f32 1.0, %v7140
      %v7142 = vrcp.pop %v6848
      %v7143 = vmul.f32 %v6848, %v7142
      %v7144 = vsub.f32 1.0, %v7143
      %v7145 = vmul.f32 %v7142, %v7144
      %v7146 = vadd.f32 %v7142, %v7145
      %vm7147 = vweird.f32 %v6848
      %vm7148 = vweird.f32 %v7142
      %vm7149 = vmor %vm7147, %vm7148
      %v7150 = vsel %vm7149, %v7142, %v7146
      %v7151 = vand.u32 2147483647, %v6848
      %vm7152 = vcmp.eq.f32.partialorder %v7151, 8.507059e+37
      %v7153 = vand.u32 %v6848, 2147483648
      %v7154 = vor.u32 1.1754944e-38, %v7153
      %v7155 = vsel %vm7152, %v7154, %v7150
      %v7156 = vmul.f32 1.0, %v7155
      %v7157 = vrcp.pop %v6849
      %v7158 = vmul.f32 %v6849, %v7157
      %v7159 = vsub.f32 1.0, %v7158
      %v7160 = vmul.f32 %v7157, %v7159
      %v7161 = vadd.f32 %v7157, %v7160
      %vm7162 = vweird.f32 %v6849
      %vm7163 = vweird.f32 %v7157
      %vm7164 = vmor %vm7162, %vm7163
      %v7165 = vsel %vm7164, %v7157, %v7161
      %v7166 = vand.u32 2147483647, %v6849
      %vm7167 = vcmp.eq.f32.partialorder %v7166, 8.507059e+37
      %v7168 = vand.u32 %v6849, 2147483648
      %v7169 = vor.u32 1.1754944e-38, %v7168
      %v7170 = vsel %vm7167, %v7169, %v7165
      %v7171 = vmul.f32 1.0, %v7170
      %v7172 = vrcp.pop %v6850
      %v7173 = vmul.f32 %v6850, %v7172
      %v7174 = vsub.f32 1.0, %v7173
      %v7175 = vmul.f32 %v7172, %v7174
      %v7176 = vadd.f32 %v7172, %v7175
      %vm7177 = vweird.f32 %v6850
      %vm7178 = vweird.f32 %v7172
      %vm7179 = vmor %vm7177, %vm7178
      %v7180 = vsel %vm7179, %v7172, %v7176
      %v7181 = vand.u32 2147483647, %v6850
      %vm7182 = vcmp.eq.f32.partialorder %v7181, 8.507059e+37
      %v7183 = vand.u32 %v6850, 2147483648
      %v7184 = vor.u32 1.1754944e-38, %v7183
      %v7185 = vsel %vm7182, %v7184, %v7180
      %v7186 = vmul.f32 1.0, %v7185
      %v7187 = vrcp.pop %v6851
      %v7188 = vmul.f32 %v6851, %v7187
      %v7189 = vsub.f32 1.0, %v7188
      %v7190 = vmul.f32 %v7187, %v7189
      %v7191 = vadd.f32 %v7187, %v7190
      %vm7192 = vweird.f32 %v6851
      %vm7193 = vweird.f32 %v7187
      %vm7194 = vmor %vm7192, %vm7193
      %v7195 = vsel %vm7194, %v7187, %v7191
      %v7196 = vand.u32 2147483647, %v6851
      %vm7197 = vcmp.eq.f32.partialorder %v7196, 8.507059e+37
      %v7198 = vand.u32 %v6851, 2147483648
      %v7199 = vor.u32 1.1754944e-38, %v7198
      %v7200 = vsel %vm7197, %v7199, %v7195
      %v7201 = vmul.f32 1.0, %v7200
      %v7202 = vrcp.pop %v6852
      %v7203 = vmul.f32 %v6852, %v7202
      %v7204 = vsub.f32 1.0, %v7203
      %v7205 = vmul.f32 %v7202, %v7204
      %v7206 = vadd.f32 %v7202, %v7205
      %vm7207 = vweird.f32 %v6852
      %vm7208 = vweird.f32 %v7202
      %vm7209 = vmor %vm7207, %vm7208
      %v7210 = vsel %vm7209, %v7202, %v7206
      %v7211 = vand.u32 2147483647, %v6852
      %vm7212 = vcmp.eq.f32.partialorder %v7211, 8.507059e+37
      %v7213 = vand.u32 %v6852, 2147483648
      %v7214 = vor.u32 1.1754944e-38, %v7213
      %v7215 = vsel %vm7212, %v7214, %v7210
      %v7216 = vmul.f32 1.0, %v7215
      %v7217 = vrcp.pop %v6853
      %v7218 = vmul.f32 %v6853, %v7217
      %v7219 = vsub.f32 1.0, %v7218
      %v7220 = vmul.f32 %v7217, %v7219
      %v7221 = vadd.f32 %v7217, %v7220
      %vm7222 = vweird.f32 %v6853
      %vm7223 = vweird.f32 %v7217
      %vm7224 = vmor %vm7222, %vm7223
      %v7225 = vsel %vm7224, %v7217, %v7221
      %v7226 = vand.u32 2147483647, %v6853
      %vm7227 = vcmp.eq.f32.partialorder %v7226, 8.507059e+37
      %v7228 = vand.u32 %v6853, 2147483648
      %v7229 = vor.u32 1.1754944e-38, %v7228
      %v7230 = vsel %vm7227, %v7229, %v7225
      %v7231 = vmul.f32 1.0, %v7230
      %v7232 = vrcp.pop %v6854
      %v7233 = vmul.f32 %v6854, %v7232
      %v7234 = vsub.f32 1.0, %v7233
      %v7235 = vmul.f32 %v7232, %v7234
      %v7236 = vadd.f32 %v7232, %v7235
      %vm7237 = vweird.f32 %v6854
      %vm7238 = vweird.f32 %v7232
      %vm7239 = vmor %vm7237, %vm7238
      %v7240 = vsel %vm7239, %v7232, %v7236
      %v7241 = vand.u32 2147483647, %v6854
      %vm7242 = vcmp.eq.f32.partialorder %v7241, 8.507059e+37
      %v7243 = vand.u32 %v6854, 2147483648
      %v7244 = vor.u32 1.1754944e-38, %v7243
      %v7245 = vsel %vm7242, %v7244, %v7240
      %v7246 = vmul.f32 1.0, %v7245
      %v7247 = vrcp.pop %v6855
      %v7248 = vmul.f32 %v6855, %v7247
      %v7249 = vsub.f32 1.0, %v7248
      %v7250 = vmul.f32 %v7247, %v7249
      %v7251 = vadd.f32 %v7247, %v7250
      %vm7252 = vweird.f32 %v6855
      %vm7253 = vweird.f32 %v7247
      %vm7254 = vmor %vm7252, %vm7253
      %v7255 = vsel %vm7254, %v7247, %v7251
      %v7256 = vand.u32 2147483647, %v6855
      %vm7257 = vcmp.eq.f32.partialorder %v7256, 8.507059e+37
      %v7258 = vand.u32 %v6855, 2147483648
      %v7259 = vor.u32 1.1754944e-38, %v7258
      %v7260 = vsel %vm7257, %v7259, %v7255
      %v7261 = vmul.f32 1.0, %v7260
      %v7262 = vrcp.pop %v6856
      %v7263 = vmul.f32 %v6856, %v7262
      %v7264 = vsub.f32 1.0, %v7263
      %v7265 = vmul.f32 %v7262, %v7264
      %v7266 = vadd.f32 %v7262, %v7265
      %vm7267 = vweird.f32 %v6856
      %vm7268 = vweird.f32 %v7262
      %vm7269 = vmor %vm7267, %vm7268
      %v7270 = vsel %vm7269, %v7262, %v7266
      %v7271 = vand.u32 2147483647, %v6856
      %vm7272 = vcmp.eq.f32.partialorder %v7271, 8.507059e+37
      %v7273 = vand.u32 %v6856, 2147483648
      %v7274 = vor.u32 1.1754944e-38, %v7273
      %v7275 = vsel %vm7272, %v7274, %v7270
      %v7276 = vmul.f32 1.0, %v7275
      %v7277 = vrcp.pop %v6857
      %v7278 = vmul.f32 %v6857, %v7277
      %v7279 = vsub.f32 1.0, %v7278
      %v7280 = vmul.f32 %v7277, %v7279
      %v7281 = vadd.f32 %v7277, %v7280
      %vm7282 = vweird.f32 %v6857
      %vm7283 = vweird.f32 %v7277
      %vm7284 = vmor %vm7282, %vm7283
      %v7285 = vsel %vm7284, %v7277, %v7281
      %v7286 = vand.u32 2147483647, %v6857
      %vm7287 = vcmp.eq.f32.partialorder %v7286, 8.507059e+37
      %v7288 = vand.u32 %v6857, 2147483648
      %v7289 = vor.u32 1.1754944e-38, %v7288
      %v7290 = vsel %vm7287, %v7289, %v7285
      %v7291 = vmul.f32 1.0, %v7290
      %v7292 = vrcp.pop %v6858
      %v7293 = vmul.f32 %v6858, %v7292
      %v7294 = vsub.f32 1.0, %v7293
      %v7295 = vmul.f32 %v7292, %v7294
      %v7296 = vadd.f32 %v7292, %v7295
      %vm7297 = vweird.f32 %v6858
      %vm7298 = vweird.f32 %v7292
      %vm7299 = vmor %vm7297, %vm7298
      %v7300 = vsel %vm7299, %v7292, %v7296
      %v7301 = vand.u32 2147483647, %v6858
      %vm7302 = vcmp.eq.f32.partialorder %v7301, 8.507059e+37
      %v7303 = vand.u32 %v6858, 2147483648
      %v7304 = vor.u32 1.1754944e-38, %v7303
      %v7305 = vsel %vm7302, %v7304, %v7300
      %v7306 = vmul.f32 1.0, %v7305
      %v7307 = vrcp.pop %v6859
      %v7308 = vmul.f32 %v6859, %v7307
      %v7309 = vsub.f32 1.0, %v7308
      %v7310 = vmul.f32 %v7307, %v7309
      %v7311 = vadd.f32 %v7307, %v7310
      %vm7312 = vweird.f32 %v6859
      %vm7313 = vweird.f32 %v7307
      %vm7314 = vmor %vm7312, %vm7313
      %v7315 = vsel %vm7314, %v7307, %v7311
      %v7316 = vand.u32 2147483647, %v6859
      %vm7317 = vcmp.eq.f32.partialorder %v7316, 8.507059e+37
      %v7318 = vand.u32 %v6859, 2147483648
      %v7319 = vor.u32 1.1754944e-38, %v7318
      %v7320 = vsel %vm7317, %v7319, %v7315
      %v7321 = vmul.f32 1.0, %v7320
      %v7322 = vrcp.pop %v6860
      %v7323 = vmul.f32 %v6860, %v7322
      %v7324 = vsub.f32 1.0, %v7323
      %v7325 = vmul.f32 %v7322, %v7324
      %v7326 = vadd.f32 %v7322, %v7325
      %vm7327 = vweird.f32 %v6860
      %vm7328 = vweird.f32 %v7322
      %vm7329 = vmor %vm7327, %vm7328
      %v7330 = vsel %vm7329, %v7322, %v7326
      %v7331 = vand.u32 2147483647, %v6860
      %vm7332 = vcmp.eq.f32.partialorder %v7331, 8.507059e+37
      %v7333 = vand.u32 %v6860, 2147483648
      %v7334 = vor.u32 1.1754944e-38, %v7333
      %v7335 = vsel %vm7332, %v7334, %v7330
      %v7336 = vmul.f32 1.0, %v7335
      %v7337 = vrcp.pop %v6861
      %v7338 = vmul.f32 %v6861, %v7337
      %v7339 = vsub.f32 1.0, %v7338
      %v7340 = vmul.f32 %v7337, %v7339
      %v7341 = vadd.f32 %v7337, %v7340
      %vm7342 = vweird.f32 %v6861
      %vm7343 = vweird.f32 %v7337
      %vm7344 = vmor %vm7342, %vm7343
      %v7345 = vsel %vm7344, %v7337, %v7341
      %v7346 = vand.u32 2147483647, %v6861
      %vm7347 = vcmp.eq.f32.partialorder %v7346, 8.507059e+37
      %v7348 = vand.u32 %v6861, 2147483648
      %v7349 = vor.u32 1.1754944e-38, %v7348
      %v7350 = vsel %vm7347, %v7349, %v7345
      %v7351 = vmul.f32 1.0, %v7350
      %v7352 = vrcp.pop %v6862
      %v7353 = vmul.f32 %v6862, %v7352
      %v7354 = vsub.f32 1.0, %v7353
      %v7355 = vmul.f32 %v7352, %v7354
      %v7356 = vadd.f32 %v7352, %v7355
      %vm7357 = vweird.f32 %v6862
      %vm7358 = vweird.f32 %v7352
      %vm7359 = vmor %vm7357, %vm7358
      %v7360 = vsel %vm7359, %v7352, %v7356
      %v7361 = vand.u32 2147483647, %v6862
      %vm7362 = vcmp.eq.f32.partialorder %v7361, 8.507059e+37
      %v7363 = vand.u32 %v6862, 2147483648
      %v7364 = vor.u32 1.1754944e-38, %v7363
      %v7365 = vsel %vm7362, %v7364, %v7360
      %v7366 = vmul.f32 1.0, %v7365
      %v7367 = vrcp.pop %v6863
      %v7368 = vmul.f32 %v6863, %v7367
      %v7369 = vsub.f32 1.0, %v7368
      %v7370 = vmul.f32 %v7367, %v7369
      %v7371 = vadd.f32 %v7367, %v7370
      %vm7372 = vweird.f32 %v6863
      %vm7373 = vweird.f32 %v7367
      %vm7374 = vmor %vm7372, %vm7373
      %v7375 = vsel %vm7374, %v7367, %v7371
      %v7376 = vand.u32 2147483647, %v6863
      %vm7377 = vcmp.eq.f32.partialorder %v7376, 8.507059e+37
      %v7378 = vand.u32 %v6863, 2147483648
      %v7379 = vor.u32 1.1754944e-38, %v7378
      %v7380 = vsel %vm7377, %v7379, %v7375
      %v7381 = vmul.f32 1.0, %v7380
      %v7382 = vrcp.pop %v6864
      %v7383 = vmul.f32 %v6864, %v7382
      %v7384 = vsub.f32 1.0, %v7383
      %v7385 = vmul.f32 %v7382, %v7384
      %v7386 = vadd.f32 %v7382, %v7385
      %vm7387 = vweird.f32 %v6864
      %vm7388 = vweird.f32 %v7382
      %vm7389 = vmor %vm7387, %vm7388
      %v7390 = vsel %vm7389, %v7382, %v7386
      %v7391 = vand.u32 2147483647, %v6864
      %vm7392 = vcmp.eq.f32.partialorder %v7391, 8.507059e+37
      %v7393 = vand.u32 %v6864, 2147483648
      %v7394 = vor.u32 1.1754944e-38, %v7393
      %v7395 = vsel %vm7392, %v7394, %v7390
      %v7396 = vmul.f32 1.0, %v7395
      %v7397 = vrcp.pop %v6865
      %v7398 = vmul.f32 %v6865, %v7397
      %v7399 = vsub.f32 1.0, %v7398
      %v7400 = vmul.f32 %v7397, %v7399
      %v7401 = vadd.f32 %v7397, %v7400
      %vm7402 = vweird.f32 %v6865
      %vm7403 = vweird.f32 %v7397
      %vm7404 = vmor %vm7402, %vm7403
      %v7405 = vsel %vm7404, %v7397, %v7401
      %v7406 = vand.u32 2147483647, %v6865
      %vm7407 = vcmp.eq.f32.partialorder %v7406, 8.507059e+37
      %v7408 = vand.u32 %v6865, 2147483648
      %v7409 = vor.u32 1.1754944e-38, %v7408
      %v7410 = vsel %vm7407, %v7409, %v7405
      %v7411 = vmul.f32 1.0, %v7410
      %v7412 = vrcp.pop %v6866
      %v7413 = vmul.f32 %v6866, %v7412
      %v7414 = vsub.f32 1.0, %v7413
      %v7415 = vmul.f32 %v7412, %v7414
      %v7416 = vadd.f32 %v7412, %v7415
      %vm7417 = vweird.f32 %v6866
      %vm7418 = vweird.f32 %v7412
      %vm7419 = vmor %vm7417, %vm7418
      %v7420 = vsel %vm7419, %v7412, %v7416
      %v7421 = vand.u32 2147483647, %v6866
      %vm7422 = vcmp.eq.f32.partialorder %v7421, 8.507059e+37
      %v7423 = vand.u32 %v6866, 2147483648
      %v7424 = vor.u32 1.1754944e-38, %v7423
      %v7425 = vsel %vm7422, %v7424, %v7420
      %v7426 = vmul.f32 1.0, %v7425
      %v7427 = vrcp.pop %v6867
      %v7428 = vmul.f32 %v6867, %v7427
      %v7429 = vsub.f32 1.0, %v7428
      %v7430 = vmul.f32 %v7427, %v7429
      %v7431 = vadd.f32 %v7427, %v7430
      %vm7432 = vweird.f32 %v6867
      %vm7433 = vweird.f32 %v7427
      %vm7434 = vmor %vm7432, %vm7433
      %v7435 = vsel %vm7434, %v7427, %v7431
      %v7436 = vand.u32 2147483647, %v6867
      %vm7437 = vcmp.eq.f32.partialorder %v7436, 8.507059e+37
      %v7438 = vand.u32 %v6867, 2147483648
      %v7439 = vor.u32 1.1754944e-38, %v7438
      %v7440 = vsel %vm7437, %v7439, %v7435
      %v7441 = vmul.f32 1.0, %v7440
      %v7442 = vrcp.pop %v6868
      %v7443 = vmul.f32 %v6868, %v7442
      %v7444 = vsub.f32 1.0, %v7443
      %v7445 = vmul.f32 %v7442, %v7444
      %v7446 = vadd.f32 %v7442, %v7445
      %vm7447 = vweird.f32 %v6868
      %vm7448 = vweird.f32 %v7442
      %vm7449 = vmor %vm7447, %vm7448
      %v7450 = vsel %vm7449, %v7442, %v7446
      %v7451 = vand.u32 2147483647, %v6868
      %vm7452 = vcmp.eq.f32.partialorder %v7451, 8.507059e+37
      %v7453 = vand.u32 %v6868, 2147483648
      %v7454 = vor.u32 1.1754944e-38, %v7453
      %v7455 = vsel %vm7452, %v7454, %v7450
      %v7456 = vmul.f32 1.0, %v7455
      %v7457 = vrcp.pop %v6869
      %v7458 = vmul.f32 %v6869, %v7457
      %v7459 = vsub.f32 1.0, %v7458
      %v7460 = vmul.f32 %v7457, %v7459
      %v7461 = vadd.f32 %v7457, %v7460
      %vm7462 = vweird.f32 %v6869
      %vm7463 = vweird.f32 %v7457
      %vm7464 = vmor %vm7462, %vm7463
      %v7465 = vsel %vm7464, %v7457, %v7461
      %v7466 = vand.u32 2147483647, %v6869
      %vm7467 = vcmp.eq.f32.partialorder %v7466, 8.507059e+37
      %v7468 = vand.u32 %v6869, 2147483648
      %v7469 = vor.u32 1.1754944e-38, %v7468
      %v7470 = vsel %vm7467, %v7469, %v7465
      %v7471 = vmul.f32 1.0, %v7470
      %v7472 = vrcp.pop %v6870
      %v7473 = vmul.f32 %v6870, %v7472
      %v7474 = vsub.f32 1.0, %v7473
      %v7475 = vmul.f32 %v7472, %v7474
      %v7476 = vadd.f32 %v7472, %v7475
      %vm7477 = vweird.f32 %v6870
      %vm7478 = vweird.f32 %v7472
      %vm7479 = vmor %vm7477, %vm7478
      %v7480 = vsel %vm7479, %v7472, %v7476
      %v7481 = vand.u32 2147483647, %v6870
      %vm7482 = vcmp.eq.f32.partialorder %v7481, 8.507059e+37
      %v7483 = vand.u32 %v6870, 2147483648
      %v7484 = vor.u32 1.1754944e-38, %v7483
      %v7485 = vsel %vm7482, %v7484, %v7480
      %v7486 = vmul.f32 1.0, %v7485
      %v7487 = vrcp.pop %v6871
      %v7488 = vmul.f32 %v6871, %v7487
      %v7489 = vsub.f32 1.0, %v7488
      %v7490 = vmul.f32 %v7487, %v7489
      %v7491 = vadd.f32 %v7487, %v7490
      %vm7492 = vweird.f32 %v6871
      %vm7493 = vweird.f32 %v7487
      %vm7494 = vmor %vm7492, %vm7493
      %v7495 = vsel %vm7494, %v7487, %v7491
      %v7496 = vand.u32 2147483647, %v6871
      %vm7497 = vcmp.eq.f32.partialorder %v7496, 8.507059e+37
      %v7498 = vand.u32 %v6871, 2147483648
      %v7499 = vor.u32 1.1754944e-38, %v7498
      %v7500 = vsel %vm7497, %v7499, %v7495
      %v7501 = vmul.f32 1.0, %v7500
      %v7502 = vrcp.pop %v6872
      %v7503 = vmul.f32 %v6872, %v7502
      %v7504 = vsub.f32 1.0, %v7503
      %v7505 = vmul.f32 %v7502, %v7504
      %v7506 = vadd.f32 %v7502, %v7505
      %vm7507 = vweird.f32 %v6872
      %vm7508 = vweird.f32 %v7502
      %vm7509 = vmor %vm7507, %vm7508
      %v7510 = vsel %vm7509, %v7502, %v7506
      %v7511 = vand.u32 2147483647, %v6872
      %vm7512 = vcmp.eq.f32.partialorder %v7511, 8.507059e+37
      %v7513 = vand.u32 %v6872, 2147483648
      %v7514 = vor.u32 1.1754944e-38, %v7513
      %v7515 = vsel %vm7512, %v7514, %v7510
      %v7516 = vmul.f32 1.0, %v7515
      %v7517 = vrcp.pop %v6873
      %v7518 = vmul.f32 %v6873, %v7517
      %v7519 = vsub.f32 1.0, %v7518
      %v7520 = vmul.f32 %v7517, %v7519
      %v7521 = vadd.f32 %v7517, %v7520
      %vm7522 = vweird.f32 %v6873
      %vm7523 = vweird.f32 %v7517
      %vm7524 = vmor %vm7522, %vm7523
      %v7525 = vsel %vm7524, %v7517, %v7521
      %v7526 = vand.u32 2147483647, %v6873
      %vm7527 = vcmp.eq.f32.partialorder %v7526, 8.507059e+37
      %v7528 = vand.u32 %v6873, 2147483648
      %v7529 = vor.u32 1.1754944e-38, %v7528
      %v7530 = vsel %vm7527, %v7529, %v7525
      %v7531 = vmul.f32 1.0, %v7530
      %v7532 = vrcp.pop %v6874
      %v7533 = vmul.f32 %v6874, %v7532
      %v7534 = vsub.f32 1.0, %v7533
      %v7535 = vmul.f32 %v7532, %v7534
      %v7536 = vadd.f32 %v7532, %v7535
      %vm7537 = vweird.f32 %v6874
      %vm7538 = vweird.f32 %v7532
      %vm7539 = vmor %vm7537, %vm7538
      %v7540 = vsel %vm7539, %v7532, %v7536
      %v7541 = vand.u32 2147483647, %v6874
      %vm7542 = vcmp.eq.f32.partialorder %v7541, 8.507059e+37
      %v7543 = vand.u32 %v6874, 2147483648
      %v7544 = vor.u32 1.1754944e-38, %v7543
      %v7545 = vsel %vm7542, %v7544, %v7540
      %v7546 = vmul.f32 1.0, %v7545
      %v7547 = vrcp.pop %v6875
      %v7548 = vmul.f32 %v6875, %v7547
      %v7549 = vsub.f32 1.0, %v7548
      %v7550 = vmul.f32 %v7547, %v7549
      %v7551 = vadd.f32 %v7547, %v7550
      %vm7552 = vweird.f32 %v6875
      %vm7553 = vweird.f32 %v7547
      %vm7554 = vmor %vm7552, %vm7553
      %v7555 = vsel %vm7554, %v7547, %v7551
      %v7556 = vand.u32 2147483647, %v6875
      %vm7557 = vcmp.eq.f32.partialorder %v7556, 8.507059e+37
      %v7558 = vand.u32 %v6875, 2147483648
      %v7559 = vor.u32 1.1754944e-38, %v7558
      %v7560 = vsel %vm7557, %v7559, %v7555
      %v7561 = vmul.f32 1.0, %v7560
      %v7562 = vrcp.pop %v6876
      %v7563 = vmul.f32 %v6876, %v7562
      %v7564 = vsub.f32 1.0, %v7563
      %v7565 = vmul.f32 %v7562, %v7564
      %v7566 = vadd.f32 %v7562, %v7565
      %vm7567 = vweird.f32 %v6876
      %vm7568 = vweird.f32 %v7562
      %vm7569 = vmor %vm7567, %vm7568
      %v7570 = vsel %vm7569, %v7562, %v7566
      %v7571 = vand.u32 2147483647, %v6876
      %vm7572 = vcmp.eq.f32.partialorder %v7571, 8.507059e+37
      %v7573 = vand.u32 %v6876, 2147483648
      %v7574 = vor.u32 1.1754944e-38, %v7573
      %v7575 = vsel %vm7572, %v7574, %v7570
      %v7576 = vmul.f32 1.0, %v7575
      %v7577 = vrcp.pop %v6877
      %v7578 = vmul.f32 %v6877, %v7577
      %v7579 = vsub.f32 1.0, %v7578
      %v7580 = vmul.f32 %v7577, %v7579
      %v7581 = vadd.f32 %v7577, %v7580
      %vm7582 = vweird.f32 %v6877
      %vm7583 = vweird.f32 %v7577
      %vm7584 = vmor %vm7582, %vm7583
      %v7585 = vsel %vm7584, %v7577, %v7581
      %v7586 = vand.u32 2147483647, %v6877
      %vm7587 = vcmp.eq.f32.partialorder %v7586, 8.507059e+37
      %v7588 = vand.u32 %v6877, 2147483648
      %v7589 = vor.u32 1.1754944e-38, %v7588
      %v7590 = vsel %vm7587, %v7589, %v7585
      %v7591 = vmul.f32 1.0, %v7590
      %v7592 = vrcp.pop %v6878
      %v7593 = vmul.f32 %v6878, %v7592
      %v7594 = vsub.f32 1.0, %v7593
      %v7595 = vmul.f32 %v7592, %v7594
      %v7596 = vadd.f32 %v7592, %v7595
      %vm7597 = vweird.f32 %v6878
      %vm7598 = vweird.f32 %v7592
      %vm7599 = vmor %vm7597, %vm7598
      %v7600 = vsel %vm7599, %v7592, %v7596
      %v7601 = vand.u32 2147483647, %v6878
      %vm7602 = vcmp.eq.f32.partialorder %v7601, 8.507059e+37
      %v7603 = vand.u32 %v6878, 2147483648
      %v7604 = vor.u32 1.1754944e-38, %v7603
      %v7605 = vsel %vm7602, %v7604, %v7600
      %v7606 = vmul.f32 1.0, %v7605
      %v7607 = vrcp.pop %v6879
      %v7608 = vmul.f32 %v6879, %v7607
      %v7609 = vsub.f32 1.0, %v7608
      %v7610 = vmul.f32 %v7607, %v7609
      %v7611 = vadd.f32 %v7607, %v7610
      %vm7612 = vweird.f32 %v6879
      %vm7613 = vweird.f32 %v7607
      %vm7614 = vmor %vm7612, %vm7613
      %v7615 = vsel %vm7614, %v7607, %v7611
      %v7616 = vand.u32 2147483647, %v6879
      %vm7617 = vcmp.eq.f32.partialorder %v7616, 8.507059e+37
      %v7618 = vand.u32 %v6879, 2147483648
      %v7619 = vor.u32 1.1754944e-38, %v7618
      %v7620 = vsel %vm7617, %v7619, %v7615
      %v7621 = vmul.f32 1.0, %v7620
      %v7622 = vrcp.pop %v6880
      %v7623 = vmul.f32 %v6880, %v7622
      %v7624 = vsub.f32 1.0, %v7623
      %v7625 = vmul.f32 %v7622, %v7624
      %v7626 = vadd.f32 %v7622, %v7625
      %vm7627 = vweird.f32 %v6880
      %vm7628 = vweird.f32 %v7622
      %vm7629 = vmor %vm7627, %vm7628
      %v7630 = vsel %vm7629, %v7622, %v7626
      %v7631 = vand.u32 2147483647, %v6880
      %vm7632 = vcmp.eq.f32.partialorder %v7631, 8.507059e+37
      %v7633 = vand.u32 %v6880, 2147483648
      %v7634 = vor.u32 1.1754944e-38, %v7633
      %v7635 = vsel %vm7632, %v7634, %v7630
      %v7636 = vmul.f32 1.0, %v7635
      %v7637 = vrcp.pop %v6881
      %v7638 = vmul.f32 %v6881, %v7637
      %v7639 = vsub.f32 1.0, %v7638
      %v7640 = vmul.f32 %v7637, %v7639
      %v7641 = vadd.f32 %v7637, %v7640
      %vm7642 = vweird.f32 %v6881
      %vm7643 = vweird.f32 %v7637
      %vm7644 = vmor %vm7642, %vm7643
      %v7645 = vsel %vm7644, %v7637, %v7641
      %v7646 = vand.u32 2147483647, %v6881
      %vm7647 = vcmp.eq.f32.partialorder %v7646, 8.507059e+37
      %v7648 = vand.u32 %v6881, 2147483648
      %v7649 = vor.u32 1.1754944e-38, %v7648
      %v7650 = vsel %vm7647, %v7649, %v7645
      %v7651 = vmul.f32 1.0, %v7650
      %v7652 = vrcp.pop %v6882
      %v7653 = vmul.f32 %v6882, %v7652
      %v7654 = vsub.f32 1.0, %v7653
      %v7655 = vmul.f32 %v7652, %v7654
      %v7656 = vadd.f32 %v7652, %v7655
      %vm7657 = vweird.f32 %v6882
      %vm7658 = vweird.f32 %v7652
      %vm7659 = vmor %vm7657, %vm7658
      %v7660 = vsel %vm7659, %v7652, %v7656
      %v7661 = vand.u32 2147483647, %v6882
      %vm7662 = vcmp.eq.f32.partialorder %v7661, 8.507059e+37
      %v7663 = vand.u32 %v6882, 2147483648
      %v7664 = vor.u32 1.1754944e-38, %v7663
      %v7665 = vsel %vm7662, %v7664, %v7660
      %v7666 = vmul.f32 1.0, %v7665
      %v7667 = vrcp.pop %v6883
      %v7668 = vmul.f32 %v6883, %v7667
      %v7669 = vsub.f32 1.0, %v7668
      %v7670 = vmul.f32 %v7667, %v7669
      %v7671 = vadd.f32 %v7667, %v7670
      %vm7672 = vweird.f32 %v6883
      %vm7673 = vweird.f32 %v7667
      %vm7674 = vmor %vm7672, %vm7673
      %v7675 = vsel %vm7674, %v7667, %v7671
      %v7676 = vand.u32 2147483647, %v6883
      %vm7677 = vcmp.eq.f32.partialorder %v7676, 8.507059e+37
      %v7678 = vand.u32 %v6883, 2147483648
      %v7679 = vor.u32 1.1754944e-38, %v7678
      %v7680 = vsel %vm7677, %v7679, %v7675
      %v7681 = vmul.f32 1.0, %v7680
      %v7682 = vrcp.pop %v6884
      %v7683 = vmul.f32 %v6884, %v7682
      %v7684 = vsub.f32 1.0, %v7683
      %v7685 = vmul.f32 %v7682, %v7684
      %v7686 = vadd.f32 %v7682, %v7685
      %vm7687 = vweird.f32 %v6884
      %vm7688 = vweird.f32 %v7682
      %vm7689 = vmor %vm7687, %vm7688
      %v7690 = vsel %vm7689, %v7682, %v7686
      %v7691 = vand.u32 2147483647, %v6884
      %vm7692 = vcmp.eq.f32.partialorder %v7691, 8.507059e+37
      %v7693 = vand.u32 %v6884, 2147483648
      %v7694 = vor.u32 1.1754944e-38, %v7693
      %v7695 = vsel %vm7692, %v7694, %v7690
      %v7696 = vmul.f32 1.0, %v7695
      %v7697 = vrcp.pop %v6885
      %v7698 = vmul.f32 %v6885, %v7697
      %v7699 = vsub.f32 1.0, %v7698
      %v7700 = vmul.f32 %v7697, %v7699
      %v7701 = vadd.f32 %v7697, %v7700
      %vm7702 = vweird.f32 %v6885
      %vm7703 = vweird.f32 %v7697
      %vm7704 = vmor %vm7702, %vm7703
      %v7705 = vsel %vm7704, %v7697, %v7701
      %v7706 = vand.u32 2147483647, %v6885
      %vm7707 = vcmp.eq.f32.partialorder %v7706, 8.507059e+37
      %v7708 = vand.u32 %v6885, 2147483648
      %v7709 = vor.u32 1.1754944e-38, %v7708
      %v7710 = vsel %vm7707, %v7709, %v7705
      %v7711 = vmul.f32 1.0, %v7710
      %v7712 = vrcp.pop %v6886
      %v7713 = vmul.f32 %v6886, %v7712
      %v7714 = vsub.f32 1.0, %v7713
      %v7715 = vmul.f32 %v7712, %v7714
      %v7716 = vadd.f32 %v7712, %v7715
      %vm7717 = vweird.f32 %v6886
      %vm7718 = vweird.f32 %v7712
      %vm7719 = vmor %vm7717, %vm7718
      %v7720 = vsel %vm7719, %v7712, %v7716
      %v7721 = vand.u32 2147483647, %v6886
      %vm7722 = vcmp.eq.f32.partialorder %v7721, 8.507059e+37
      %v7723 = vand.u32 %v6886, 2147483648
      %v7724 = vor.u32 1.1754944e-38, %v7723
      %v7725 = vsel %vm7722, %v7724, %v7720
      %v7726 = vmul.f32 1.0, %v7725
      %v7727 = vrcp.pop %v6887
      %v7728 = vmul.f32 %v6887, %v7727
      %v7729 = vsub.f32 1.0, %v7728
      %v7730 = vmul.f32 %v7727, %v7729
      %v7731 = vadd.f32 %v7727, %v7730
      %vm7732 = vweird.f32 %v6887
      %vm7733 = vweird.f32 %v7727
      %vm7734 = vmor %vm7732, %vm7733
      %v7735 = vsel %vm7734, %v7727, %v7731
      %v7736 = vand.u32 2147483647, %v6887
      %vm7737 = vcmp.eq.f32.partialorder %v7736, 8.507059e+37
      %v7738 = vand.u32 %v6887, 2147483648
      %v7739 = vor.u32 1.1754944e-38, %v7738
      %v7740 = vsel %vm7737, %v7739, %v7735
      %v7741 = vmul.f32 1.0, %v7740
      %v7742 = vrcp.pop %v6888
      %v7743 = vmul.f32 %v6888, %v7742
      %v7744 = vsub.f32 1.0, %v7743
      %v7745 = vmul.f32 %v7742, %v7744
      %v7746 = vadd.f32 %v7742, %v7745
      %vm7747 = vweird.f32 %v6888
      %vm7748 = vweird.f32 %v7742
      %vm7749 = vmor %vm7747, %vm7748
      %v7750 = vsel %vm7749, %v7742, %v7746
      %v7751 = vand.u32 2147483647, %v6888
      %vm7752 = vcmp.eq.f32.partialorder %v7751, 8.507059e+37
      %v7753 = vand.u32 %v6888, 2147483648
      %v7754 = vor.u32 1.1754944e-38, %v7753
      %v7755 = vsel %vm7752, %v7754, %v7750
      %v7756 = vmul.f32 1.0, %v7755
      %v7757 = vrcp.pop %v6889
      %v7758 = vmul.f32 %v6889, %v7757
      %v7759 = vsub.f32 1.0, %v7758
      %v7760 = vmul.f32 %v7757, %v7759
      %v7761 = vadd.f32 %v7757, %v7760
      %vm7762 = vweird.f32 %v6889
      %vm7763 = vweird.f32 %v7757
      %vm7764 = vmor %vm7762, %vm7763
      %v7765 = vsel %vm7764, %v7757, %v7761
      %v7766 = vand.u32 2147483647, %v6889
      %vm7767 = vcmp.eq.f32.partialorder %v7766, 8.507059e+37
      %v7768 = vand.u32 %v6889, 2147483648
      %v7769 = vor.u32 1.1754944e-38, %v7768
      %v7770 = vsel %vm7767, %v7769, %v7765
      %v7771 = vmul.f32 1.0, %v7770
      %v7772 = vrcp.pop %v6890
      %v7773 = vmul.f32 %v6890, %v7772
      %v7774 = vsub.f32 1.0, %v7773
      %v7775 = vmul.f32 %v7772, %v7774
      %v7776 = vadd.f32 %v7772, %v7775
      %vm7777 = vweird.f32 %v6890
      %vm7778 = vweird.f32 %v7772
      %vm7779 = vmor %vm7777, %vm7778
      %v7780 = vsel %vm7779, %v7772, %v7776
      %v7781 = vand.u32 2147483647, %v6890
      %vm7782 = vcmp.eq.f32.partialorder %v7781, 8.507059e+37
      %v7783 = vand.u32 %v6890, 2147483648
      %v7784 = vor.u32 1.1754944e-38, %v7783
      %v7785 = vsel %vm7782, %v7784, %v7780
      %v7786 = vmul.f32 1.0, %v7785
      %v7787 = vrcp.pop %v6891
      %v7788 = vmul.f32 %v6891, %v7787
      %v7789 = vsub.f32 1.0, %v7788
      %v7790 = vmul.f32 %v7787, %v7789
      %v7791 = vadd.f32 %v7787, %v7790
      %vm7792 = vweird.f32 %v6891
      %vm7793 = vweird.f32 %v7787
      %vm7794 = vmor %vm7792, %vm7793
      %v7795 = vsel %vm7794, %v7787, %v7791
      %v7796 = vand.u32 2147483647, %v6891
      %vm7797 = vcmp.eq.f32.partialorder %v7796, 8.507059e+37
      %v7798 = vand.u32 %v6891, 2147483648
      %v7799 = vor.u32 1.1754944e-38, %v7798
      %v7800 = vsel %vm7797, %v7799, %v7795
      %v7801 = vmul.f32 1.0, %v7800
      %v7802 = vrcp.pop %v6892
      %v7803 = vmul.f32 %v6892, %v7802
      %v7804 = vsub.f32 1.0, %v7803
      %v7805 = vmul.f32 %v7802, %v7804
      %v7806 = vadd.f32 %v7802, %v7805
      %vm7807 = vweird.f32 %v6892
      %vm7808 = vweird.f32 %v7802
      %vm7809 = vmor %vm7807, %vm7808
      %v7810 = vsel %vm7809, %v7802, %v7806
      %v7811 = vand.u32 2147483647, %v6892
      %vm7812 = vcmp.eq.f32.partialorder %v7811, 8.507059e+37
      %v7813 = vand.u32 %v6892, 2147483648
      %v7814 = vor.u32 1.1754944e-38, %v7813
      %v7815 = vsel %vm7812, %v7814, %v7810
      %v7816 = vmul.f32 1.0, %v7815
      %v7817 = vrcp.pop %v6893
      %v7818 = vmul.f32 %v6893, %v7817
      %v7819 = vsub.f32 1.0, %v7818
      %v7820 = vmul.f32 %v7817, %v7819
      %v7821 = vadd.f32 %v7817, %v7820
      %vm7822 = vweird.f32 %v6893
      %vm7823 = vweird.f32 %v7817
      %vm7824 = vmor %vm7822, %vm7823
      %v7825 = vsel %vm7824, %v7817, %v7821
      %v7826 = vand.u32 2147483647, %v6893
      %vm7827 = vcmp.eq.f32.partialorder %v7826, 8.507059e+37
      %v7828 = vand.u32 %v6893, 2147483648
      %v7829 = vor.u32 1.1754944e-38, %v7828
      %v7830 = vsel %vm7827, %v7829, %v7825
      %v7831 = vmul.f32 1.0, %v7830
      %v7832 = vrcp.pop %v6894
      %v7833 = vmul.f32 %v6894, %v7832
      %v7834 = vsub.f32 1.0, %v7833
      %v7835 = vmul.f32 %v7832, %v7834
      %v7836 = vadd.f32 %v7832, %v7835
      %vm7837 = vweird.f32 %v6894
      %vm7838 = vweird.f32 %v7832
      %vm7839 = vmor %vm7837, %vm7838
      %v7840 = vsel %vm7839, %v7832, %v7836
      %v7841 = vand.u32 2147483647, %v6894
      %vm7842 = vcmp.eq.f32.partialorder %v7841, 8.507059e+37
      %v7843 = vand.u32 %v6894, 2147483648
      %v7844 = vor.u32 1.1754944e-38, %v7843
      %v7845 = vsel %vm7842, %v7844, %v7840
      %v7846 = vmul.f32 1.0, %v7845
      %v7847 = vrcp.pop %v6895
      %v7848 = vmul.f32 %v6895, %v7847
      %v7849 = vsub.f32 1.0, %v7848
      %v7850 = vmul.f32 %v7847, %v7849
      %v7851 = vadd.f32 %v7847, %v7850
      %vm7852 = vweird.f32 %v6895
      %vm7853 = vweird.f32 %v7847
      %vm7854 = vmor %vm7852, %vm7853
      %v7855 = vsel %vm7854, %v7847, %v7851
      %v7856 = vand.u32 2147483647, %v6895
      %vm7857 = vcmp.eq.f32.partialorder %v7856, 8.507059e+37
      %v7858 = vand.u32 %v6895, 2147483648
      %v7859 = vor.u32 1.1754944e-38, %v7858
      %v7860 = vsel %vm7857, %v7859, %v7855
      %v7861 = vmul.f32 1.0, %v7860
      %v7862 = vrcp.pop %v6896
      %v7863 = vmul.f32 %v6896, %v7862
      %v7864 = vsub.f32 1.0, %v7863
      %v7865 = vmul.f32 %v7862, %v7864
      %v7866 = vadd.f32 %v7862, %v7865
      %vm7867 = vweird.f32 %v6896
      %vm7868 = vweird.f32 %v7862
      %vm7869 = vmor %vm7867, %vm7868
      %v7870 = vsel %vm7869, %v7862, %v7866
      %v7871 = vand.u32 2147483647, %v6896
      %vm7872 = vcmp.eq.f32.partialorder %v7871, 8.507059e+37
      %v7873 = vand.u32 %v6896, 2147483648
      %v7874 = vor.u32 1.1754944e-38, %v7873
      %v7875 = vsel %vm7872, %v7874, %v7870
      %v7876 = vmul.f32 1.0, %v7875
      %v7877 = vrcp.pop %v6897
      %v7878 = vmul.f32 %v6897, %v7877
      %v7879 = vsub.f32 1.0, %v7878
      %v7880 = vmul.f32 %v7877, %v7879
      %v7881 = vadd.f32 %v7877, %v7880
      %vm7882 = vweird.f32 %v6897
      %vm7883 = vweird.f32 %v7877
      %vm7884 = vmor %vm7882, %vm7883
      %v7885 = vsel %vm7884, %v7877, %v7881
      %v7886 = vand.u32 2147483647, %v6897
      %vm7887 = vcmp.eq.f32.partialorder %v7886, 8.507059e+37
      %v7888 = vand.u32 %v6897, 2147483648
      %v7889 = vor.u32 1.1754944e-38, %v7888
      %v7890 = vsel %vm7887, %v7889, %v7885
      %v7891 = vmul.f32 1.0, %v7890
      %v7892 = vrcp.pop %v6898
      %v7893 = vmul.f32 %v6898, %v7892
      %v7894 = vsub.f32 1.0, %v7893
      %v7895 = vmul.f32 %v7892, %v7894
      %v7896 = vadd.f32 %v7892, %v7895
      %vm7897 = vweird.f32 %v6898
      %vm7898 = vweird.f32 %v7892
      %vm7899 = vmor %vm7897, %vm7898
      %v7900 = vsel %vm7899, %v7892, %v7896
      %v7901 = vand.u32 2147483647, %v6898
      %vm7902 = vcmp.eq.f32.partialorder %v7901, 8.507059e+37
      %v7903 = vand.u32 %v6898, 2147483648
      %v7904 = vor.u32 1.1754944e-38, %v7903
      %v7905 = vsel %vm7902, %v7904, %v7900
      %v7906 = vmul.f32 1.0, %v7905
      %v7907 = vrcp.pop %v6899
      %v7908 = vmul.f32 %v6899, %v7907
      %v7909 = vsub.f32 1.0, %v7908
      %v7910 = vmul.f32 %v7907, %v7909
      %v7911 = vadd.f32 %v7907, %v7910
      %vm7912 = vweird.f32 %v6899
      %vm7913 = vweird.f32 %v7907
      %vm7914 = vmor %vm7912, %vm7913
      %v7915 = vsel %vm7914, %v7907, %v7911
      %v7916 = vand.u32 2147483647, %v6899
      %vm7917 = vcmp.eq.f32.partialorder %v7916, 8.507059e+37
      %v7918 = vand.u32 %v6899, 2147483648
      %v7919 = vor.u32 1.1754944e-38, %v7918
      %v7920 = vsel %vm7917, %v7919, %v7915
      %v7921 = vmul.f32 1.0, %v7920
      %v7922 = vrcp.pop %v6900
      %v7923 = vmul.f32 %v6900, %v7922
      %v7924 = vsub.f32 1.0, %v7923
      %v7925 = vmul.f32 %v7922, %v7924
      %v7926 = vadd.f32 %v7922, %v7925
      %vm7927 = vweird.f32 %v6900
      %vm7928 = vweird.f32 %v7922
      %vm7929 = vmor %vm7927, %vm7928
      %v7930 = vsel %vm7929, %v7922, %v7926
      %v7931 = vand.u32 2147483647, %v6900
      %vm7932 = vcmp.eq.f32.partialorder %v7931, 8.507059e+37
      %v7933 = vand.u32 %v6900, 2147483648
      %v7934 = vor.u32 1.1754944e-38, %v7933
      %v7935 = vsel %vm7932, %v7934, %v7930
      %v7936 = vmul.f32 1.0, %v7935
      %v7937 = vrcp.pop %v6901
      %v7938 = vmul.f32 %v6901, %v7937
      %v7939 = vsub.f32 1.0, %v7938
      %v7940 = vmul.f32 %v7937, %v7939
      %v7941 = vadd.f32 %v7937, %v7940
      %vm7942 = vweird.f32 %v6901
      %vm7943 = vweird.f32 %v7937
      %vm7944 = vmor %vm7942, %vm7943
      %v7945 = vsel %vm7944, %v7937, %v7941
      %v7946 = vand.u32 2147483647, %v6901
      %vm7947 = vcmp.eq.f32.partialorder %v7946, 8.507059e+37
      %v7948 = vand.u32 %v6901, 2147483648
      %v7949 = vor.u32 1.1754944e-38, %v7948
      %v7950 = vsel %vm7947, %v7949, %v7945
      %v7951 = vmul.f32 1.0, %v7950
      %v7952 = vrcp.pop %v6902
      %v7953 = vmul.f32 %v6902, %v7952
      %v7954 = vsub.f32 1.0, %v7953
      %v7955 = vmul.f32 %v7952, %v7954
      %v7956 = vadd.f32 %v7952, %v7955
      %vm7957 = vweird.f32 %v6902
      %vm7958 = vweird.f32 %v7952
      %vm7959 = vmor %vm7957, %vm7958
      %v7960 = vsel %vm7959, %v7952, %v7956
      %v7961 = vand.u32 2147483647, %v6902
      %vm7962 = vcmp.eq.f32.partialorder %v7961, 8.507059e+37
      %v7963 = vand.u32 %v6902, 2147483648
      %v7964 = vor.u32 1.1754944e-38, %v7963
      %v7965 = vsel %vm7962, %v7964, %v7960
      %v7966 = vmul.f32 1.0, %v7965
      %v7967 = vrcp.pop %v6903
      %v7968 = vmul.f32 %v6903, %v7967
      %v7969 = vsub.f32 1.0, %v7968
      %v7970 = vmul.f32 %v7967, %v7969
      %v7971 = vadd.f32 %v7967, %v7970
      %vm7972 = vweird.f32 %v6903
      %vm7973 = vweird.f32 %v7967
      %vm7974 = vmor %vm7972, %vm7973
      %v7975 = vsel %vm7974, %v7967, %v7971
      %v7976 = vand.u32 2147483647, %v6903
      %vm7977 = vcmp.eq.f32.partialorder %v7976, 8.507059e+37
      %v7978 = vand.u32 %v6903, 2147483648
      %v7979 = vor.u32 1.1754944e-38, %v7978
      %v7980 = vsel %vm7977, %v7979, %v7975
      %v7981 = vmul.f32 1.0, %v7980
      %v7982 = vrcp.pop %v6904
      %v7983 = vmul.f32 %v6904, %v7982
      %v7984 = vsub.f32 1.0, %v7983
      %v7985 = vmul.f32 %v7982, %v7984
      %v7986 = vadd.f32 %v7982, %v7985
      %vm7987 = vweird.f32 %v6904
      %vm7988 = vweird.f32 %v7982
      %vm7989 = vmor %vm7987, %vm7988
      %v7990 = vsel %vm7989, %v7982, %v7986
      %v7991 = vand.u32 2147483647, %v6904
      %vm7992 = vcmp.eq.f32.partialorder %v7991, 8.507059e+37
      %v7993 = vand.u32 %v6904, 2147483648
      %v7994 = vor.u32 1.1754944e-38, %v7993
      %v7995 = vsel %vm7992, %v7994, %v7990
      %v7996 = vmul.f32 1.0, %v7995
      %v7997 = vrcp.pop %v6905
      %v7998 = vmul.f32 %v6905, %v7997
      %v7999 = vsub.f32 1.0, %v7998
      %v8000 = vmul.f32 %v7997, %v7999
      %v8001 = vadd.f32 %v7997, %v8000
      %vm8002 = vweird.f32 %v6905
      %vm8003 = vweird.f32 %v7997
      %vm8004 = vmor %vm8002, %vm8003
      %v8005 = vsel %vm8004, %v7997, %v8001
      %v8006 = vand.u32 2147483647, %v6905
      %vm8007 = vcmp.eq.f32.partialorder %v8006, 8.507059e+37
      %v8008 = vand.u32 %v6905, 2147483648
      %v8009 = vor.u32 1.1754944e-38, %v8008
      %v8010 = vsel %vm8007, %v8009, %v8005
      %v8011 = vmul.f32 1.0, %v8010
      %v8012 = vrcp.pop %v6906
      %v8013 = vmul.f32 %v6906, %v8012
      %v8014 = vsub.f32 1.0, %v8013
      %v8015 = vmul.f32 %v8012, %v8014
      %v8016 = vadd.f32 %v8012, %v8015
      %vm8017 = vweird.f32 %v6906
      %vm8018 = vweird.f32 %v8012
      %vm8019 = vmor %vm8017, %vm8018
      %v8020 = vsel %vm8019, %v8012, %v8016
      %v8021 = vand.u32 2147483647, %v6906
      %vm8022 = vcmp.eq.f32.partialorder %v8021, 8.507059e+37
      %v8023 = vand.u32 %v6906, 2147483648
      %v8024 = vor.u32 1.1754944e-38, %v8023
      %v8025 = vsel %vm8022, %v8024, %v8020
      %v8026 = vmul.f32 1.0, %v8025
      %v8027 = vrcp.pop %v6907
      %v8028 = vmul.f32 %v6907, %v8027
      %v8029 = vsub.f32 1.0, %v8028
      %v8030 = vmul.f32 %v8027, %v8029
      %v8031 = vadd.f32 %v8027, %v8030
      %vm8032 = vweird.f32 %v6907
      %vm8033 = vweird.f32 %v8027
      %vm8034 = vmor %vm8032, %vm8033
      %v8035 = vsel %vm8034, %v8027, %v8031
      %v8036 = vand.u32 2147483647, %v6907
      %vm8037 = vcmp.eq.f32.partialorder %v8036, 8.507059e+37
      %v8038 = vand.u32 %v6907, 2147483648
      %v8039 = vor.u32 1.1754944e-38, %v8038
      %v8040 = vsel %vm8037, %v8039, %v8035
      %v8041 = vmul.f32 1.0, %v8040
      %v8042 = vrcp.pop %v6908
      %v8043 = vmul.f32 %v6908, %v8042
      %v8044 = vsub.f32 1.0, %v8043
      %v8045 = vmul.f32 %v8042, %v8044
      %v8046 = vadd.f32 %v8042, %v8045
      %vm8047 = vweird.f32 %v6908
      %vm8048 = vweird.f32 %v8042
      %vm8049 = vmor %vm8047, %vm8048
      %v8050 = vsel %vm8049, %v8042, %v8046
      %v8051 = vand.u32 2147483647, %v6908
      %vm8052 = vcmp.eq.f32.partialorder %v8051, 8.507059e+37
      %v8053 = vand.u32 %v6908, 2147483648
      %v8054 = vor.u32 1.1754944e-38, %v8053
      %v8055 = vsel %vm8052, %v8054, %v8050
      %v8056 = vmul.f32 1.0, %v8055
      %v8057 = vrcp.pop %v6909
      %v8058 = vmul.f32 %v6909, %v8057
      %v8059 = vsub.f32 1.0, %v8058
      %v8060 = vmul.f32 %v8057, %v8059
      %v8061 = vadd.f32 %v8057, %v8060
      %vm8062 = vweird.f32 %v6909
      %vm8063 = vweird.f32 %v8057
      %vm8064 = vmor %vm8062, %vm8063
      %v8065 = vsel %vm8064, %v8057, %v8061
      %v8066 = vand.u32 2147483647, %v6909
      %vm8067 = vcmp.eq.f32.partialorder %v8066, 8.507059e+37
      %v8068 = vand.u32 %v6909, 2147483648
      %v8069 = vor.u32 1.1754944e-38, %v8068
      %v8070 = vsel %vm8067, %v8069, %v8065
      %v8071 = vmul.f32 1.0, %v8070
      %v8072 = vrcp.pop %v6910
      %v8073 = vmul.f32 %v6910, %v8072
      %v8074 = vsub.f32 1.0, %v8073
      %v8075 = vmul.f32 %v8072, %v8074
      %v8076 = vadd.f32 %v8072, %v8075
      %vm8077 = vweird.f32 %v6910
      %vm8078 = vweird.f32 %v8072
      %vm8079 = vmor %vm8077, %vm8078
      %v8080 = vsel %vm8079, %v8072, %v8076
      %v8081 = vand.u32 2147483647, %v6910
      %vm8082 = vcmp.eq.f32.partialorder %v8081, 8.507059e+37
      %v8083 = vand.u32 %v6910, 2147483648
      %v8084 = vor.u32 1.1754944e-38, %v8083
      %v8085 = vsel %vm8082, %v8084, %v8080
      %v8086 = vmul.f32 1.0, %v8085
      %v8087 = vrcp.pop %v6911
      %v8088 = vmul.f32 %v6911, %v8087
      %v8089 = vsub.f32 1.0, %v8088
      %v8090 = vmul.f32 %v8087, %v8089
      %v8091 = vadd.f32 %v8087, %v8090
      %vm8092 = vweird.f32 %v6911
      %vm8093 = vweird.f32 %v8087
      %vm8094 = vmor %vm8092, %vm8093
      %v8095 = vsel %vm8094, %v8087, %v8091
      %v8096 = vand.u32 2147483647, %v6911
      %vm8097 = vcmp.eq.f32.partialorder %v8096, 8.507059e+37
      %v8098 = vand.u32 %v6911, 2147483648
      %v8099 = vor.u32 1.1754944e-38, %v8098
      %v8100 = vsel %vm8097, %v8099, %v8095
      %v8101 = vmul.f32 1.0, %v8100
      %v8102 = vrcp.pop %v6912
      %v8103 = vmul.f32 %v6912, %v8102
      %v8104 = vsub.f32 1.0, %v8103
      %v8105 = vmul.f32 %v8102, %v8104
      %v8106 = vadd.f32 %v8102, %v8105
      %vm8107 = vweird.f32 %v6912
      %vm8108 = vweird.f32 %v8102
      %vm8109 = vmor %vm8107, %vm8108
      %v8110 = vsel %vm8109, %v8102, %v8106
      %v8111 = vand.u32 2147483647, %v6912
      %vm8112 = vcmp.eq.f32.partialorder %v8111, 8.507059e+37
      %v8113 = vand.u32 %v6912, 2147483648
      %v8114 = vor.u32 1.1754944e-38, %v8113
      %v8115 = vsel %vm8112, %v8114, %v8110
      %v8116 = vmul.f32 1.0, %v8115
      %v8117 = vrcp.pop %v6913
      %v8118 = vmul.f32 %v6913, %v8117
      %v8119 = vsub.f32 1.0, %v8118
      %v8120 = vmul.f32 %v8117, %v8119
      %v8121 = vadd.f32 %v8117, %v8120
      %vm8122 = vweird.f32 %v6913
      %vm8123 = vweird.f32 %v8117
      %vm8124 = vmor %vm8122, %vm8123
      %v8125 = vsel %vm8124, %v8117, %v8121
      %v8126 = vand.u32 2147483647, %v6913
      %vm8127 = vcmp.eq.f32.partialorder %v8126, 8.507059e+37
      %v8128 = vand.u32 %v6913, 2147483648
      %v8129 = vor.u32 1.1754944e-38, %v8128
      %v8130 = vsel %vm8127, %v8129, %v8125
      %v8131 = vmul.f32 1.0, %v8130
      %v8132 = vrcp.pop %v6914
      %v8133 = vmul.f32 %v6914, %v8132
      %v8134 = vsub.f32 1.0, %v8133
      %v8135 = vmul.f32 %v8132, %v8134
      %v8136 = vadd.f32 %v8132, %v8135
      %vm8137 = vweird.f32 %v6914
      %vm8138 = vweird.f32 %v8132
      %vm8139 = vmor %vm8137, %vm8138
      %v8140 = vsel %vm8139, %v8132, %v8136
      %v8141 = vand.u32 2147483647, %v6914
      %vm8142 = vcmp.eq.f32.partialorder %v8141, 8.507059e+37
      %v8143 = vand.u32 %v6914, 2147483648
      %v8144 = vor.u32 1.1754944e-38, %v8143
      %v8145 = vsel %vm8142, %v8144, %v8140
      %v8146 = vmul.f32 1.0, %v8145
      %v8147 = vrcp.pop %v6915
      %v8148 = vmul.f32 %v6915, %v8147
      %v8149 = vsub.f32 1.0, %v8148
      %v8150 = vmul.f32 %v8147, %v8149
      %v8151 = vadd.f32 %v8147, %v8150
      %vm8152 = vweird.f32 %v6915
      %vm8153 = vweird.f32 %v8147
      %vm8154 = vmor %vm8152, %vm8153
      %v8155 = vsel %vm8154, %v8147, %v8151
      %v8156 = vand.u32 2147483647, %v6915
      %vm8157 = vcmp.eq.f32.partialorder %v8156, 8.507059e+37
      %v8158 = vand.u32 %v6915, 2147483648
      %v8159 = vor.u32 1.1754944e-38, %v8158
      %v8160 = vsel %vm8157, %v8159, %v8155
      %v8161 = vmul.f32 1.0, %v8160
      %v8162 = vrcp.pop %v6916
      %v8163 = vmul.f32 %v6916, %v8162
      %v8164 = vsub.f32 1.0, %v8163
      %v8165 = vmul.f32 %v8162, %v8164
      %v8166 = vadd.f32 %v8162, %v8165
      %vm8167 = vweird.f32 %v6916
      %vm8168 = vweird.f32 %v8162
      %vm8169 = vmor %vm8167, %vm8168
      %v8170 = vsel %vm8169, %v8162, %v8166
      %v8171 = vand.u32 2147483647, %v6916
      %vm8172 = vcmp.eq.f32.partialorder %v8171, 8.507059e+37
      %v8173 = vand.u32 %v6916, 2147483648
      %v8174 = vor.u32 1.1754944e-38, %v8173
      %v8175 = vsel %vm8172, %v8174, %v8170
      %v8176 = vmul.f32 1.0, %v8175
      %v8177 = vrcp.pop %v6917
      %v8178 = vmul.f32 %v6917, %v8177
      %v8179 = vsub.f32 1.0, %v8178
      %v8180 = vmul.f32 %v8177, %v8179
      %v8181 = vadd.f32 %v8177, %v8180
      %vm8182 = vweird.f32 %v6917
      %vm8183 = vweird.f32 %v8177
      %vm8184 = vmor %vm8182, %vm8183
      %v8185 = vsel %vm8184, %v8177, %v8181
      %v8186 = vand.u32 2147483647, %v6917
      %vm8187 = vcmp.eq.f32.partialorder %v8186, 8.507059e+37
      %v8188 = vand.u32 %v6917, 2147483648
      %v8189 = vor.u32 1.1754944e-38, %v8188
      %v8190 = vsel %vm8187, %v8189, %v8185
      %v8191 = vmul.f32 1.0, %v8190
      %v8192 = vrcp.pop %v6918
      %v8193 = vmul.f32 %v6918, %v8192
      %v8194 = vsub.f32 1.0, %v8193
      %v8195 = vmul.f32 %v8192, %v8194
      %v8196 = vadd.f32 %v8192, %v8195
      %vm8197 = vweird.f32 %v6918
      %vm8198 = vweird.f32 %v8192
      %vm8199 = vmor %vm8197, %vm8198
      %v8200 = vsel %vm8199, %v8192, %v8196
      %v8201 = vand.u32 2147483647, %v6918
      %vm8202 = vcmp.eq.f32.partialorder %v8201, 8.507059e+37
      %v8203 = vand.u32 %v6918, 2147483648
      %v8204 = vor.u32 1.1754944e-38, %v8203
      %v8205 = vsel %vm8202, %v8204, %v8200
      %v8206 = vmul.f32 1.0, %v8205
      %v8207 = vrcp.pop %v6919
      %v8208 = vmul.f32 %v6919, %v8207
      %v8209 = vsub.f32 1.0, %v8208
      %v8210 = vmul.f32 %v8207, %v8209
      %v8211 = vadd.f32 %v8207, %v8210
      %vm8212 = vweird.f32 %v6919
      %vm8213 = vweird.f32 %v8207
      %vm8214 = vmor %vm8212, %vm8213
      %v8215 = vsel %vm8214, %v8207, %v8211
      %v8216 = vand.u32 2147483647, %v6919
      %vm8217 = vcmp.eq.f32.partialorder %v8216, 8.507059e+37
      %v8218 = vand.u32 %v6919, 2147483648
      %v8219 = vor.u32 1.1754944e-38, %v8218
      %v8220 = vsel %vm8217, %v8219, %v8215
      %v8221 = vmul.f32 1.0, %v8220
      %v8222 = vrcp.pop %v6920
      %v8223 = vmul.f32 %v6920, %v8222
      %v8224 = vsub.f32 1.0, %v8223
      %v8225 = vmul.f32 %v8222, %v8224
      %v8226 = vadd.f32 %v8222, %v8225
      %vm8227 = vweird.f32 %v6920
      %vm8228 = vweird.f32 %v8222
      %vm8229 = vmor %vm8227, %vm8228
      %v8230 = vsel %vm8229, %v8222, %v8226
      %v8231 = vand.u32 2147483647, %v6920
      %vm8232 = vcmp.eq.f32.partialorder %v8231, 8.507059e+37
      %v8233 = vand.u32 %v6920, 2147483648
      %v8234 = vor.u32 1.1754944e-38, %v8233
      %v8235 = vsel %vm8232, %v8234, %v8230
      %v8236 = vmul.f32 1.0, %v8235
      %v8237 = vrcp.pop %v6921
      %v8238 = vmul.f32 %v6921, %v8237
      %v8239 = vsub.f32 1.0, %v8238
      %v8240 = vmul.f32 %v8237, %v8239
      %v8241 = vadd.f32 %v8237, %v8240
      %vm8242 = vweird.f32 %v6921
      %vm8243 = vweird.f32 %v8237
      %vm8244 = vmor %vm8242, %vm8243
      %v8245 = vsel %vm8244, %v8237, %v8241
      %v8246 = vand.u32 2147483647, %v6921
      %vm8247 = vcmp.eq.f32.partialorder %v8246, 8.507059e+37
      %v8248 = vand.u32 %v6921, 2147483648
      %v8249 = vor.u32 1.1754944e-38, %v8248
      %v8250 = vsel %vm8247, %v8249, %v8245
      %v8251 = vmul.f32 1.0, %v8250
      %v8252 = vrcp.pop %v6922
      %v8253 = vmul.f32 %v6922, %v8252
      %v8254 = vsub.f32 1.0, %v8253
      %v8255 = vmul.f32 %v8252, %v8254
      %v8256 = vadd.f32 %v8252, %v8255
      %vm8257 = vweird.f32 %v6922
      %vm8258 = vweird.f32 %v8252
      %vm8259 = vmor %vm8257, %vm8258
      %v8260 = vsel %vm8259, %v8252, %v8256
      %v8261 = vand.u32 2147483647, %v6922
      %vm8262 = vcmp.eq.f32.partialorder %v8261, 8.507059e+37
      %v8263 = vand.u32 %v6922, 2147483648
      %v8264 = vor.u32 1.1754944e-38, %v8263
      %v8265 = vsel %vm8262, %v8264, %v8260
      %v8266 = vmul.f32 1.0, %v8265
      %v8267 = vrcp.pop %v6923
      %v8268 = vmul.f32 %v6923, %v8267
      %v8269 = vsub.f32 1.0, %v8268
      %v8270 = vmul.f32 %v8267, %v8269
      %v8271 = vadd.f32 %v8267, %v8270
      %vm8272 = vweird.f32 %v6923
      %vm8273 = vweird.f32 %v8267
      %vm8274 = vmor %vm8272, %vm8273
      %v8275 = vsel %vm8274, %v8267, %v8271
      %v8276 = vand.u32 2147483647, %v6923
      %vm8277 = vcmp.eq.f32.partialorder %v8276, 8.507059e+37
      %v8278 = vand.u32 %v6923, 2147483648
      %v8279 = vor.u32 1.1754944e-38, %v8278
      %v8280 = vsel %vm8277, %v8279, %v8275
      %v8281 = vmul.f32 1.0, %v8280
      %v8282 = vrcp.pop %v6924
      %v8283 = vmul.f32 %v6924, %v8282
      %v8284 = vsub.f32 1.0, %v8283
      %v8285 = vmul.f32 %v8282, %v8284
      %v8286 = vadd.f32 %v8282, %v8285
      %vm8287 = vweird.f32 %v6924
      %vm8288 = vweird.f32 %v8282
      %vm8289 = vmor %vm8287, %vm8288
      %v8290 = vsel %vm8289, %v8282, %v8286
      %v8291 = vand.u32 2147483647, %v6924
      %vm8292 = vcmp.eq.f32.partialorder %v8291, 8.507059e+37
      %v8293 = vand.u32 %v6924, 2147483648
      %v8294 = vor.u32 1.1754944e-38, %v8293
      %v8295 = vsel %vm8292, %v8294, %v8290
      %v8296 = vmul.f32 1.0, %v8295
      %v8297 = vrcp.pop %v6925
      %v8298 = vmul.f32 %v6925, %v8297
      %v8299 = vsub.f32 1.0, %v8298
      %v8300 = vmul.f32 %v8297, %v8299
      %v8301 = vadd.f32 %v8297, %v8300
      %vm8302 = vweird.f32 %v6925
      %vm8303 = vweird.f32 %v8297
      %vm8304 = vmor %vm8302, %vm8303
      %v8305 = vsel %vm8304, %v8297, %v8301
      %v8306 = vand.u32 2147483647, %v6925
      %vm8307 = vcmp.eq.f32.partialorder %v8306, 8.507059e+37
      %v8308 = vand.u32 %v6925, 2147483648
      %v8309 = vor.u32 1.1754944e-38, %v8308
      %v8310 = vsel %vm8307, %v8309, %v8305
      %v8311 = vmul.f32 1.0, %v8310
      %v8312 = vrcp.pop %v6926
      %v8313 = vmul.f32 %v6926, %v8312
      %v8314 = vsub.f32 1.0, %v8313
      %v8315 = vmul.f32 %v8312, %v8314
      %v8316 = vadd.f32 %v8312, %v8315
      %vm8317 = vweird.f32 %v6926
      %vm8318 = vweird.f32 %v8312
      %vm8319 = vmor %vm8317, %vm8318
      %v8320 = vsel %vm8319, %v8312, %v8316
      %v8321 = vand.u32 2147483647, %v6926
      %vm8322 = vcmp.eq.f32.partialorder %v8321, 8.507059e+37
      %v8323 = vand.u32 %v6926, 2147483648
      %v8324 = vor.u32 1.1754944e-38, %v8323
      %v8325 = vsel %vm8322, %v8324, %v8320
      %v8326 = vmul.f32 1.0, %v8325
      %v8327 = vrcp.pop %v6927
      %v8328 = vmul.f32 %v6927, %v8327
      %v8329 = vsub.f32 1.0, %v8328
      %v8330 = vmul.f32 %v8327, %v8329
      %v8331 = vadd.f32 %v8327, %v8330
      %vm8332 = vweird.f32 %v6927
      %vm8333 = vweird.f32 %v8327
      %vm8334 = vmor %vm8332, %vm8333
      %v8335 = vsel %vm8334, %v8327, %v8331
      %v8336 = vand.u32 2147483647, %v6927
      %vm8337 = vcmp.eq.f32.partialorder %v8336, 8.507059e+37
      %v8338 = vand.u32 %v6927, 2147483648
      %v8339 = vor.u32 1.1754944e-38, %v8338
      %v8340 = vsel %vm8337, %v8339, %v8335
      %v8341 = vmul.f32 1.0, %v8340
      %v8342 = vrcp.pop %v6928
      %v8343 = vmul.f32 %v6928, %v8342
      %v8344 = vsub.f32 1.0, %v8343
      %v8345 = vmul.f32 %v8342, %v8344
      %v8346 = vadd.f32 %v8342, %v8345
      %vm8347 = vweird.f32 %v6928
      %vm8348 = vweird.f32 %v8342
      %vm8349 = vmor %vm8347, %vm8348
      %v8350 = vsel %vm8349, %v8342, %v8346
      %v8351 = vand.u32 2147483647, %v6928
      %vm8352 = vcmp.eq.f32.partialorder %v8351, 8.507059e+37
      %v8353 = vand.u32 %v6928, 2147483648
      %v8354 = vor.u32 1.1754944e-38, %v8353
      %v8355 = vsel %vm8352, %v8354, %v8350
      %v8356 = vmul.f32 1.0, %v8355
      %v8357 = vrcp.pop %v6929
      %v8358 = vmul.f32 %v6929, %v8357
      %v8359 = vsub.f32 1.0, %v8358
      %v8360 = vmul.f32 %v8357, %v8359
      %v8361 = vadd.f32 %v8357, %v8360
      %vm8362 = vweird.f32 %v6929
      %vm8363 = vweird.f32 %v8357
      %vm8364 = vmor %vm8362, %vm8363
      %v8365 = vsel %vm8364, %v8357, %v8361
      %v8366 = vand.u32 2147483647, %v6929
      %vm8367 = vcmp.eq.f32.partialorder %v8366, 8.507059e+37
      %v8368 = vand.u32 %v6929, 2147483648
      %v8369 = vor.u32 1.1754944e-38, %v8368
      %v8370 = vsel %vm8367, %v8369, %v8365
      %v8371 = vmul.f32 1.0, %v8370
      %v8372 = vrcp.pop %v6930
      %v8373 = vmul.f32 %v6930, %v8372
      %v8374 = vsub.f32 1.0, %v8373
      %v8375 = vmul.f32 %v8372, %v8374
      %v8376 = vadd.f32 %v8372, %v8375
      %vm8377 = vweird.f32 %v6930
      %vm8378 = vweird.f32 %v8372
      %vm8379 = vmor %vm8377, %vm8378
      %v8380 = vsel %vm8379, %v8372, %v8376
      %v8381 = vand.u32 2147483647, %v6930
      %vm8382 = vcmp.eq.f32.partialorder %v8381, 8.507059e+37
      %v8383 = vand.u32 %v6930, 2147483648
      %v8384 = vor.u32 1.1754944e-38, %v8383
      %v8385 = vsel %vm8382, %v8384, %v8380
      %v8386 = vmul.f32 1.0, %v8385
      %v8387 = vrcp.pop %v6931
      %v8388 = vmul.f32 %v6931, %v8387
      %v8389 = vsub.f32 1.0, %v8388
      %v8390 = vmul.f32 %v8387, %v8389
      %v8391 = vadd.f32 %v8387, %v8390
      %vm8392 = vweird.f32 %v6931
      %vm8393 = vweird.f32 %v8387
      %vm8394 = vmor %vm8392, %vm8393
      %v8395 = vsel %vm8394, %v8387, %v8391
      %v8396 = vand.u32 2147483647, %v6931
      %vm8397 = vcmp.eq.f32.partialorder %v8396, 8.507059e+37
      %v8398 = vand.u32 %v6931, 2147483648
      %v8399 = vor.u32 1.1754944e-38, %v8398
      %v8400 = vsel %vm8397, %v8399, %v8395
      %v8401 = vmul.f32 1.0, %v8400
      %v8402 = vrcp.pop %v6932
      %v8403 = vmul.f32 %v6932, %v8402
      %v8404 = vsub.f32 1.0, %v8403
      %v8405 = vmul.f32 %v8402, %v8404
      %v8406 = vadd.f32 %v8402, %v8405
      %vm8407 = vweird.f32 %v6932
      %vm8408 = vweird.f32 %v8402
      %vm8409 = vmor %vm8407, %vm8408
      %v8410 = vsel %vm8409, %v8402, %v8406
      %v8411 = vand.u32 2147483647, %v6932
      %vm8412 = vcmp.eq.f32.partialorder %v8411, 8.507059e+37
      %v8413 = vand.u32 %v6932, 2147483648
      %v8414 = vor.u32 1.1754944e-38, %v8413
      %v8415 = vsel %vm8412, %v8414, %v8410
      %v8416 = vmul.f32 1.0, %v8415
      %v8417 = vrcp.pop %v6933
      %v8418 = vmul.f32 %v6933, %v8417
      %v8419 = vsub.f32 1.0, %v8418
      %v8420 = vmul.f32 %v8417, %v8419
      %v8421 = vadd.f32 %v8417, %v8420
      %vm8422 = vweird.f32 %v6933
      %vm8423 = vweird.f32 %v8417
      %vm8424 = vmor %vm8422, %vm8423
      %v8425 = vsel %vm8424, %v8417, %v8421
      %v8426 = vand.u32 2147483647, %v6933
      %vm8427 = vcmp.eq.f32.partialorder %v8426, 8.507059e+37
      %v8428 = vand.u32 %v6933, 2147483648
      %v8429 = vor.u32 1.1754944e-38, %v8428
      %v8430 = vsel %vm8427, %v8429, %v8425
      %v8431 = vmul.f32 1.0, %v8430
      %v8432 = vrcp.pop %v6934
      %v8433 = vmul.f32 %v6934, %v8432
      %v8434 = vsub.f32 1.0, %v8433
      %v8435 = vmul.f32 %v8432, %v8434
      %v8436 = vadd.f32 %v8432, %v8435
      %vm8437 = vweird.f32 %v6934
      %vm8438 = vweird.f32 %v8432
      %vm8439 = vmor %vm8437, %vm8438
      %v8440 = vsel %vm8439, %v8432, %v8436
      %v8441 = vand.u32 2147483647, %v6934
      %vm8442 = vcmp.eq.f32.partialorder %v8441, 8.507059e+37
      %v8443 = vand.u32 %v6934, 2147483648
      %v8444 = vor.u32 1.1754944e-38, %v8443
      %v8445 = vsel %vm8442, %v8444, %v8440
      %v8446 = vmul.f32 1.0, %v8445
      %v8447 = vrcp.pop %v6935
      %v8448 = vmul.f32 %v6935, %v8447
      %v8449 = vsub.f32 1.0, %v8448
      %v8450 = vmul.f32 %v8447, %v8449
      %v8451 = vadd.f32 %v8447, %v8450
      %vm8452 = vweird.f32 %v6935
      %vm8453 = vweird.f32 %v8447
      %vm8454 = vmor %vm8452, %vm8453
      %v8455 = vsel %vm8454, %v8447, %v8451
      %v8456 = vand.u32 2147483647, %v6935
      %vm8457 = vcmp.eq.f32.partialorder %v8456, 8.507059e+37
      %v8458 = vand.u32 %v6935, 2147483648
      %v8459 = vor.u32 1.1754944e-38, %v8458
      %v8460 = vsel %vm8457, %v8459, %v8455
      %v8461 = vmul.f32 1.0, %v8460
      %v8462 = vrcp.pop %v6936
      %v8463 = vmul.f32 %v6936, %v8462
      %v8464 = vsub.f32 1.0, %v8463
      %v8465 = vmul.f32 %v8462, %v8464
      %v8466 = vadd.f32 %v8462, %v8465
      %vm8467 = vweird.f32 %v6936
      %vm8468 = vweird.f32 %v8462
      %vm8469 = vmor %vm8467, %vm8468
      %v8470 = vsel %vm8469, %v8462, %v8466
      %v8471 = vand.u32 2147483647, %v6936
      %vm8472 = vcmp.eq.f32.partialorder %v8471, 8.507059e+37
      %v8473 = vand.u32 %v6936, 2147483648
      %v8474 = vor.u32 1.1754944e-38, %v8473
      %v8475 = vsel %vm8472, %v8474, %v8470
      %v8476 = vmul.f32 1.0, %v8475
      %v8477 = vrcp.pop %v6937
      %v8478 = vmul.f32 %v6937, %v8477
      %v8479 = vsub.f32 1.0, %v8478
      %v8480 = vmul.f32 %v8477, %v8479
      %v8481 = vadd.f32 %v8477, %v8480
      %vm8482 = vweird.f32 %v6937
      %vm8483 = vweird.f32 %v8477
      %vm8484 = vmor %vm8482, %vm8483
      %v8485 = vsel %vm8484, %v8477, %v8481
      %v8486 = vand.u32 2147483647, %v6937
      %vm8487 = vcmp.eq.f32.partialorder %v8486, 8.507059e+37
      %v8488 = vand.u32 %v6937, 2147483648
      %v8489 = vor.u32 1.1754944e-38, %v8488
      %v8490 = vsel %vm8487, %v8489, %v8485
      %v8491 = vmul.f32 1.0, %v8490
      %v8492 = vrcp.pop %v6938
      %v8493 = vmul.f32 %v6938, %v8492
      %v8494 = vsub.f32 1.0, %v8493
      %v8495 = vmul.f32 %v8492, %v8494
      %v8496 = vadd.f32 %v8492, %v8495
      %vm8497 = vweird.f32 %v6938
      %vm8498 = vweird.f32 %v8492
      %vm8499 = vmor %vm8497, %vm8498
      %v8500 = vsel %vm8499, %v8492, %v8496
      %v8501 = vand.u32 2147483647, %v6938
      %vm8502 = vcmp.eq.f32.partialorder %v8501, 8.507059e+37
      %v8503 = vand.u32 %v6938, 2147483648
      %v8504 = vor.u32 1.1754944e-38, %v8503
      %v8505 = vsel %vm8502, %v8504, %v8500
      %v8506 = vmul.f32 1.0, %v8505
      %v8507 = vrcp.pop %v6939
      %v8508 = vmul.f32 %v6939, %v8507
      %v8509 = vsub.f32 1.0, %v8508
      %v8510 = vmul.f32 %v8507, %v8509
      %v8511 = vadd.f32 %v8507, %v8510
      %vm8512 = vweird.f32 %v6939
      %vm8513 = vweird.f32 %v8507
      %vm8514 = vmor %vm8512, %vm8513
      %v8515 = vsel %vm8514, %v8507, %v8511
      %v8516 = vand.u32 2147483647, %v6939
      %vm8517 = vcmp.eq.f32.partialorder %v8516, 8.507059e+37
      %v8518 = vand.u32 %v6939, 2147483648
      %v8519 = vor.u32 1.1754944e-38, %v8518
      %v8520 = vsel %vm8517, %v8519, %v8515
      %v8521 = vmul.f32 1.0, %v8520
      %v8522 = vrcp.pop %v6940
      %v8523 = vmul.f32 %v6940, %v8522
      %v8524 = vsub.f32 1.0, %v8523
      %v8525 = vmul.f32 %v8522, %v8524
      %v8526 = vadd.f32 %v8522, %v8525
      %vm8527 = vweird.f32 %v6940
      %vm8528 = vweird.f32 %v8522
      %vm8529 = vmor %vm8527, %vm8528
      %v8530 = vsel %vm8529, %v8522, %v8526
      %v8531 = vand.u32 2147483647, %v6940
      %vm8532 = vcmp.eq.f32.partialorder %v8531, 8.507059e+37
      %v8533 = vand.u32 %v6940, 2147483648
      %v8534 = vor.u32 1.1754944e-38, %v8533
      %v8535 = vsel %vm8532, %v8534, %v8530
      %v8536 = vmul.f32 1.0, %v8535
      %v8537 = vrcp.pop %v6941
      %v8538 = vmul.f32 %v6941, %v8537
      %v8539 = vsub.f32 1.0, %v8538
      %v8540 = vmul.f32 %v8537, %v8539
      %v8541 = vadd.f32 %v8537, %v8540
      %vm8542 = vweird.f32 %v6941
      %vm8543 = vweird.f32 %v8537
      %vm8544 = vmor %vm8542, %vm8543
      %v8545 = vsel %vm8544, %v8537, %v8541
      %v8546 = vand.u32 2147483647, %v6941
      %vm8547 = vcmp.eq.f32.partialorder %v8546, 8.507059e+37
      %v8548 = vand.u32 %v6941, 2147483648
      %v8549 = vor.u32 1.1754944e-38, %v8548
      %v8550 = vsel %vm8547, %v8549, %v8545
      %v8551 = vmul.f32 1.0, %v8550
      %v8552 = vrcp.pop %v6942
      %v8553 = vmul.f32 %v6942, %v8552
      %v8554 = vsub.f32 1.0, %v8553
      %v8555 = vmul.f32 %v8552, %v8554
      %v8556 = vadd.f32 %v8552, %v8555
      %vm8557 = vweird.f32 %v6942
      %vm8558 = vweird.f32 %v8552
      %vm8559 = vmor %vm8557, %vm8558
      %v8560 = vsel %vm8559, %v8552, %v8556
      %v8561 = vand.u32 2147483647, %v6942
      %vm8562 = vcmp.eq.f32.partialorder %v8561, 8.507059e+37
      %v8563 = vand.u32 %v6942, 2147483648
      %v8564 = vor.u32 1.1754944e-38, %v8563
      %v8565 = vsel %vm8562, %v8564, %v8560
      %v8566 = vmul.f32 1.0, %v8565
      %v8567 = vrcp.pop %v6943
      %v8568 = vmul.f32 %v6943, %v8567
      %v8569 = vsub.f32 1.0, %v8568
      %v8570 = vmul.f32 %v8567, %v8569
      %v8571 = vadd.f32 %v8567, %v8570
      %vm8572 = vweird.f32 %v6943
      %vm8573 = vweird.f32 %v8567
      %vm8574 = vmor %vm8572, %vm8573
      %v8575 = vsel %vm8574, %v8567, %v8571
      %v8576 = vand.u32 2147483647, %v6943
      %vm8577 = vcmp.eq.f32.partialorder %v8576, 8.507059e+37
      %v8578 = vand.u32 %v6943, 2147483648
      %v8579 = vor.u32 1.1754944e-38, %v8578
      %v8580 = vsel %vm8577, %v8579, %v8575
      %v8581 = vmul.f32 1.0, %v8580
      %v8582 = vrcp.pop %v6944
      %v8583 = vmul.f32 %v6944, %v8582
      %v8584 = vsub.f32 1.0, %v8583
      %v8585 = vmul.f32 %v8582, %v8584
      %v8586 = vadd.f32 %v8582, %v8585
      %vm8587 = vweird.f32 %v6944
      %vm8588 = vweird.f32 %v8582
      %vm8589 = vmor %vm8587, %vm8588
      %v8590 = vsel %vm8589, %v8582, %v8586
      %v8591 = vand.u32 2147483647, %v6944
      %vm8592 = vcmp.eq.f32.partialorder %v8591, 8.507059e+37
      %v8593 = vand.u32 %v6944, 2147483648
      %v8594 = vor.u32 1.1754944e-38, %v8593
      %v8595 = vsel %vm8592, %v8594, %v8590
      %v8596 = vmul.f32 1.0, %v8595
      %v8597 = vrcp.pop %v6945
      %v8598 = vmul.f32 %v6945, %v8597
      %v8599 = vsub.f32 1.0, %v8598
      %v8600 = vmul.f32 %v8597, %v8599
      %v8601 = vadd.f32 %v8597, %v8600
      %vm8602 = vweird.f32 %v6945
      %vm8603 = vweird.f32 %v8597
      %vm8604 = vmor %vm8602, %vm8603
      %v8605 = vsel %vm8604, %v8597, %v8601
      %v8606 = vand.u32 2147483647, %v6945
      %vm8607 = vcmp.eq.f32.partialorder %v8606, 8.507059e+37
      %v8608 = vand.u32 %v6945, 2147483648
      %v8609 = vor.u32 1.1754944e-38, %v8608
      %v8610 = vsel %vm8607, %v8609, %v8605
      %v8611 = vmul.f32 1.0, %v8610
      %v8612 = vrcp.pop %v6946
      %v8613 = vmul.f32 %v6946, %v8612
      %v8614 = vsub.f32 1.0, %v8613
      %v8615 = vmul.f32 %v8612, %v8614
      %v8616 = vadd.f32 %v8612, %v8615
      %vm8617 = vweird.f32 %v6946
      %vm8618 = vweird.f32 %v8612
      %vm8619 = vmor %vm8617, %vm8618
      %v8620 = vsel %vm8619, %v8612, %v8616
      %v8621 = vand.u32 2147483647, %v6946
      %vm8622 = vcmp.eq.f32.partialorder %v8621, 8.507059e+37
      %v8623 = vand.u32 %v6946, 2147483648
      %v8624 = vor.u32 1.1754944e-38, %v8623
      %v8625 = vsel %vm8622, %v8624, %v8620
      %v8626 = vmul.f32 1.0, %v8625
      %8627 = vst [vmem:[%s339] sm:$0xff] %v6961
      %8628 = vst [vmem:[%s339 + $0x8] sm:$0xff] %v6976
      %8629 = vst [vmem:[%s339 + $0x10] sm:$0xff] %v6991
      %8630 = vst [vmem:[%s339 + $0x18] sm:$0xff] %v7006
      %8631 = vst [vmem:[%s339 + $0x20] sm:$0xff] %v7021
      %8632 = vst [vmem:[%s339 + $0x28] sm:$0xff] %v7036
      %8633 = vst.msk [vmem:[%s339 + $0x30] sm:$0xff] %vm1696, %v7051
      %8634 = vst [vmem:[%s339 + $0x38] sm:$0xff] %v7066
      %8635 = vst [vmem:[%s339 + $0x40] sm:$0xff] %v7081
      %8636 = vst [vmem:[%s339 + $0x48] sm:$0xff] %v7096
      %8637 = vst [vmem:[%s339 + $0x50] sm:$0xff] %v7111
      %8638 = vst [vmem:[%s339 + $0x58] sm:$0xff] %v7126
      %8639 = vst [vmem:[%s339 + $0x60] sm:$0xff] %v7141
      %8640 = vst.msk [vmem:[%s339 + $0x68] sm:$0xff] %vm1696, %v7156
      %8641 = vst [vmem:[%s339 + $0x70] sm:$0xff] %v7171
      %8642 = vst [vmem:[%s339 + $0x78] sm:$0xff] %v7186
      %8643 = vst [vmem:[%s339 + $0x80] sm:$0xff] %v7201
      %8644 = vst [vmem:[%s339 + $0x88] sm:$0xff] %v7216
      %8645 = vst [vmem:[%s339 + $0x90] sm:$0xff] %v7231
      %8646 = vst [vmem:[%s339 + $0x98] sm:$0xff] %v7246
      %8647 = vst.msk [vmem:[%s339 + $0xa0] sm:$0xff] %vm1696, %v7261
      %8648 = vst [vmem:[%s339 + $0xa8] sm:$0xff] %v7276
      %8649 = vst [vmem:[%s339 + $0xb0] sm:$0xff] %v7291
      %8650 = vst [vmem:[%s339 + $0xb8] sm:$0xff] %v7306
      %8651 = vst [vmem:[%s339 + $0xc0] sm:$0xff] %v7321
      %8652 = vst [vmem:[%s339 + $0xc8] sm:$0xff] %v7336
      %8653 = vst [vmem:[%s339 + $0xd0] sm:$0xff] %v7351
      %8654 = vst.msk [vmem:[%s339 + $0xd8] sm:$0xff] %vm1696, %v7366
      %8655 = vst [vmem:[%s339 + $0xe0] sm:$0xff] %v7381
      %8656 = vst [vmem:[%s339 + $0xe8] sm:$0xff] %v7396
      %8657 = vst [vmem:[%s339 + $0xf0] sm:$0xff] %v7411
      %8658 = vst [vmem:[%s339 + $0xf8] sm:$0xff] %v7426
      %8659 = vst [vmem:[%s339 + $0x100] sm:$0xff] %v7441
      %8660 = vst [vmem:[%s339 + $0x108] sm:$0xff] %v7456
      %8661 = vst.msk [vmem:[%s339 + $0x110] sm:$0xff] %vm1696, %v7471
      %8662 = vst [vmem:[%s339 + $0x118] sm:$0xff] %v7486
      %8663 = vst [vmem:[%s339 + $0x120] sm:$0xff] %v7501
      %8664 = vst [vmem:[%s339 + $0x128] sm:$0xff] %v7516
      %8665 = vst [vmem:[%s339 + $0x130] sm:$0xff] %v7531
      %8666 = vst [vmem:[%s339 + $0x138] sm:$0xff] %v7546
      %8667 = vst [vmem:[%s339 + $0x140] sm:$0xff] %v7561
      %8668 = vst.msk [vmem:[%s339 + $0x148] sm:$0xff] %vm1696, %v7576
      %8669 = vst [vmem:[%s339 + $0x150] sm:$0xff] %v7591
      %8670 = vst [vmem:[%s339 + $0x158] sm:$0xff] %v7606
      %8671 = vst [vmem:[%s339 + $0x160] sm:$0xff] %v7621
      %8672 = vst [vmem:[%s339 + $0x168] sm:$0xff] %v7636
      %8673 = vst [vmem:[%s339 + $0x170] sm:$0xff] %v7651
      %8674 = vst [vmem:[%s339 + $0x178] sm:$0xff] %v7666
      %8675 = vst.msk [vmem:[%s339 + $0x180] sm:$0xff] %vm1696, %v7681
      %8676 = vst [vmem:[%s339 + $0x188] sm:$0xff] %v7696
      %8677 = vst [vmem:[%s339 + $0x190] sm:$0xff] %v7711
      %8678 = vst [vmem:[%s339 + $0x198] sm:$0xff] %v7726
      %8679 = vst [vmem:[%s339 + $0x1a0] sm:$0xff] %v7741
      %8680 = vst [vmem:[%s339 + $0x1a8] sm:$0xff] %v7756
      %8681 = vst [vmem:[%s339 + $0x1b0] sm:$0xff] %v7771
      %8682 = vst.msk [vmem:[%s339 + $0x1b8] sm:$0xff] %vm1696, %v7786
      %8683 = vst [vmem:[%s339 + $0x1c0] sm:$0xff] %v7801
      %8684 = vst [vmem:[%s339 + $0x1c8] sm:$0xff] %v7816
      %8685 = vst [vmem:[%s339 + $0x1d0] sm:$0xff] %v7831
      %8686 = vst [vmem:[%s339 + $0x1d8] sm:$0xff] %v7846
      %8687 = vst [vmem:[%s339 + $0x1e0] sm:$0xff] %v7861
      %8688 = vst [vmem:[%s339 + $0x1e8] sm:$0xff] %v7876
      %8689 = vst.msk [vmem:[%s339 + $0x1f0] sm:$0xff] %vm1696, %v7891
      %8690 = vst [vmem:[%s339 + $0x1f8] sm:$0xff] %v7906
      %8691 = vst [vmem:[%s339 + $0x200] sm:$0xff] %v7921
      %8692 = vst [vmem:[%s339 + $0x208] sm:$0xff] %v7936
      %8693 = vst [vmem:[%s339 + $0x210] sm:$0xff] %v7951
      %8694 = vst [vmem:[%s339 + $0x218] sm:$0xff] %v7966
      %8695 = vst [vmem:[%s339 + $0x220] sm:$0xff] %v7981
      %8696 = vst.msk [vmem:[%s339 + $0x228] sm:$0xff] %vm1696, %v7996
      %8697 = vst [vmem:[%s339 + $0x230] sm:$0xff] %v8011
      %8698 = vst [vmem:[%s339 + $0x238] sm:$0xff] %v8026
      %8699 = vst [vmem:[%s339 + $0x240] sm:$0xff] %v8041
      %8700 = vst [vmem:[%s339 + $0x248] sm:$0xff] %v8056
      %8701 = vst [vmem:[%s339 + $0x250] sm:$0xff] %v8071
      %8702 = vst [vmem:[%s339 + $0x258] sm:$0xff] %v8086
      %8703 = vst.msk [vmem:[%s339 + $0x260] sm:$0xff] %vm1696, %v8101
      %8704 = vst [vmem:[%s339 + $0x268] sm:$0xff] %v8116
      %8705 = vst [vmem:[%s339 + $0x270] sm:$0xff] %v8131
      %8706 = vst [vmem:[%s339 + $0x278] sm:$0xff] %v8146
      %8707 = vst [vmem:[%s339 + $0x280] sm:$0xff] %v8161
      %8708 = vst [vmem:[%s339 + $0x288] sm:$0xff] %v8176
      %8709 = vst [vmem:[%s339 + $0x290] sm:$0xff] %v8191
      %8710 = vst.msk [vmem:[%s339 + $0x298] sm:$0xff] %vm1696, %v8206
      %8711 = vst [vmem:[%s339 + $0x2a0] sm:$0xff] %v8221
      %8712 = vst [vmem:[%s339 + $0x2a8] sm:$0xff] %v8236
      %8713 = vst [vmem:[%s339 + $0x2b0] sm:$0xff] %v8251
      %8714 = vst [vmem:[%s339 + $0x2b8] sm:$0xff] %v8266
      %8715 = vst [vmem:[%s339 + $0x2c0] sm:$0xff] %v8281
      %8716 = vst [vmem:[%s339 + $0x2c8] sm:$0xff] %v8296
      %8717 = vst.msk [vmem:[%s339 + $0x2d0] sm:$0xff] %vm1696, %v8311
      %8718 = vst [vmem:[%s339 + $0x2d8] sm:$0xff] %v8326
      %8719 = vst [vmem:[%s339 + $0x2e0] sm:$0xff] %v8341
      %8720 = vst [vmem:[%s339 + $0x2e8] sm:$0xff] %v8356
      %8721 = vst [vmem:[%s339 + $0x2f0] sm:$0xff] %v8371
      %8722 = vst [vmem:[%s339 + $0x2f8] sm:$0xff] %v8386
      %8723 = vst [vmem:[%s339 + $0x300] sm:$0xff] %v8401
      %8724 = vst.msk [vmem:[%s339 + $0x308] sm:$0xff] %vm1696, %v8416
      %8725 = vst [vmem:[%s339 + $0x310] sm:$0xff] %v8431
      %8726 = vst [vmem:[%s339 + $0x318] sm:$0xff] %v8446
      %8727 = vst [vmem:[%s339 + $0x320] sm:$0xff] %v8461
      %8728 = vst [vmem:[%s339 + $0x328] sm:$0xff] %v8476
      %8729 = vst [vmem:[%s339 + $0x330] sm:$0xff] %v8491
      %8730 = vst [vmem:[%s339 + $0x338] sm:$0xff] %v8506
      %8731 = vst.msk [vmem:[%s339 + $0x340] sm:$0xff] %vm1696, %v8521
      %8732 = vst [vmem:[%s339 + $0x348] sm:$0xff] %v8536
      %8733 = vst [vmem:[%s339 + $0x350] sm:$0xff] %v8551
      %8734 = vst [vmem:[%s339 + $0x358] sm:$0xff] %v8566
      %8735 = vst [vmem:[%s339 + $0x360] sm:$0xff] %v8581
      %8736 = vst [vmem:[%s339 + $0x368] sm:$0xff] %v8596
      %8737 = vst [vmem:[%s339 + $0x370] sm:$0xff] %v8611
      %8738 = vst.msk [vmem:[%s339 + $0x378] sm:$0xff] %vm1696, %v8626
      %s8739 = smul.u32 16, %s20
      %p8740 = scmp.lt.s32.totalorder %s8739, 31
      %s8741 = scalar_select %p8740, %s8739, 31
      %s8742 = smul.addr %s8741, 7
      %s8743 = smul.addr %s8742, 8
      %s8744 = scalar_lea.vmem %s9, %s8743
      // Predicated region
      $region57: #{tpu_custom_call.1} parent=55 // pred_check
        %p8745 = pneg %p232
      $region58: #{tpu_custom_call.1} parent=55 // pred_check_branch
        %8747 = sbr.rel (%p8745) target = $region60
      $region59: #{tpu_custom_call.1} parent=55 // pred_region
        %s8748 = smul.u32 16, %s20
      $region60: #{tpu_custom_call.1} parent=55 // pred_fallthru
        _
    $region56: #{tpu_custom_call.1} parent=5 // pred_fallthru
      _
    %p8749 = scmp.le.s32.totalorder 2, %s15
    // Predicated region
    $region61: #{tpu_custom_call.1} parent=5 // pred_check
      %p8750 = pneg %p8749
    $region62: #{tpu_custom_call.1} parent=5 // pred_check_branch
      %8752 = sbr.rel (%p8750) target = $region64
    $region63: #{tpu_custom_call.1} parent=5 // pred_region
      %s8753 = ssub.s32 %s15, 2
      // Predicated region
      $region65: #{tpu_custom_call.1} parent=63 // pred_check
        %p8754 = pneg %p238
      $region66: #{tpu_custom_call.1} parent=63 // pred_check_branch
        %8756 = sbr.rel (%p8754) target = $region68
      $region67: #{tpu_custom_call.1} parent=63 // pred_region
        %s8757 = smul.u32 16, %s21
        %p8758 = scmp.lt.s32.totalorder %s8757, 31
        %s8759 = scalar_select %p8758, %s8757, 31
        %s8760 = smul.addr %s8759, 7
        %s8761 = smul.addr %s8760, 8
        %s8762 = scalar_lea.vmem %s9, %s8761
      $region68: #{tpu_custom_call.1} parent=63 // pred_fallthru
        _
    $region64: #{tpu_custom_call.1} parent=5 // pred_fallthru
      _
  $region6: #{tpu_custom_call.1} parent=0 // loop_footer
    %s19 = sadd.s32 1, %s15
  $region7: #{tpu_custom_call.1} parent=0 // loop_footer_branch
    %14 = sbr.rel target = $region3
  $region8: #{tpu_custom_call.1} parent=0 // loop_exit
    _

</llo_original>
